<compile_context>
chip_gen: v7x
topology: tpu7x:2x2x1
jax: 0.10.0
libtpu: 0.0.40
codegen_flags: <defaults>
</compile_context>

<pallas_src>
import numpy as np
import jax
import jax.numpy as jnp
from jax.experimental import pallas as pl
from jax.experimental.pallas import tpu as pltpu

_B = 128          # samples per grid step (lane axis of every in-kernel tensor)
_IN = 26 * 26     # flattened input raster, row = h*26 + w
_P1 = 600         # pool1 map rows: (c*10 + h1)*10 + w1
_P2 = 64          # pool2 map rows: c*4 + h*2 + w  (== torch flatten order)


# ---------------------------------------------------------------------------
# Fused kernel: conv1+pool1 -> conv2+pool2 -> fc1 -> fc2 -> fc3   (per 128-sample block)
# ---------------------------------------------------------------------------
def _net_kernel(x_ref, t1_ref, b1_ref, t2_ref, b2_ref,
                wf1_ref, bf1_ref, wf2_ref, bf2_ref, wf3_ref, bf3_ref, out_ref):
    bf16, f32 = jnp.bfloat16, jnp.float32

    # conv1: ONE dense (2400,676)x(676,B) MXU matmul, batch on lanes.
    xb = x_ref[0].astype(bf16)                                    # (676, B), cast once
    y1 = jnp.dot(t1_ref[...], xb, preferred_element_type=f32)     # (2400, B) f32

    # pool1: the 4 row-banks of t1 are the 4 positions of each 2x2 window.
    p = jnp.maximum(jnp.maximum(y1[0:_P1], y1[_P1:2 * _P1]),
                    jnp.maximum(y1[2 * _P1:3 * _P1], y1[3 * _P1:4 * _P1]))
    p = jnp.maximum(p + b1_ref[...], 0.0).astype(bf16)            # (600, B)

    # conv2: ONE dense (256,600)x(600,B) MXU matmul.
    y2 = jnp.dot(t2_ref[...], p, preferred_element_type=f32)      # (256, B) f32

    # pool2 (same 4-bank trick); rows come out in torch flatten order c*4+h*2+w.
    f = jnp.maximum(jnp.maximum(y2[0:_P2], y2[_P2:2 * _P2]),
                    jnp.maximum(y2[2 * _P2:3 * _P2], y2[3 * _P2:4 * _P2]))
    f = jnp.maximum(f + b2_ref[...], 0.0).astype(bf16)            # (64, B)

    # fc1 -> fc2 -> fc3; batch stays on lanes, weights are (out, in).
    h = jnp.dot(wf1_ref[...], f, preferred_element_type=f32) + bf1_ref[...]
    h = jnp.maximum(h, 0.0).astype(bf16)                          # (120, B)
    h = jnp.dot(wf2_ref[...], h, preferred_element_type=f32) + bf2_ref[...]
    h = jnp.maximum(h, 0.0).astype(bf16)                          # (88, B)
    h = jnp.dot(wf3_ref[...], h, preferred_element_type=f32) + bf3_ref[...]
    out_ref[0] = h                                                # (16, B); rows 0..9 real


# ---------------------------------------------------------------------------
# Wrapper
# ---------------------------------------------------------------------------
def net_forward(x, params):
    """x: NCHW float32 (N, 1, 26, 26) -> logits (N, 10)."""
    t1, b1, t2, b2, wf1, bf1, wf2, bf2, wf3, bf3 = params
    N = x.shape[0]
    G = pl.cdiv(N, _B)
    Np = G * _B

    xs = x.reshape(N, _IN)
    if Np != N:
        xs = jnp.pad(xs, ((0, Np - N), (0, 0)))
    xs = xs.reshape(G, _B, _IN).transpose(0, 2, 1)     # (G, 676, 128): batch on lanes

    out = pl.pallas_call(
        _net_kernel,
        out_shape=jax.ShapeDtypeStruct((G, 16, _B), jnp.float32),
        grid=(G,),
        in_specs=[
            pl.BlockSpec((1, _IN, _B), lambda g: (g, 0, 0)),   # image block (per 128 samples)
            pl.BlockSpec(t1.shape, lambda g: (0, 0)),          # conv1 lowered matrix
            pl.BlockSpec(b1.shape, lambda g: (0, 0)),          # conv1 bias (per pooled row)
            pl.BlockSpec(t2.shape, lambda g: (0, 0)),          # conv2 lowered matrix
            pl.BlockSpec(b2.shape, lambda g: (0, 0)),          # conv2 bias (per pooled row)
            pl.BlockSpec(wf1.shape, lambda g: (0, 0)),         # fc1 weight (120, 64)
            pl.BlockSpec(bf1.shape, lambda g: (0, 0)),
            pl.BlockSpec(wf2.shape, lambda g: (0, 0)),         # fc2 weight (88, 120)
            pl.BlockSpec(bf2.shape, lambda g: (0, 0)),
            pl.BlockSpec(wf3.shape, lambda g: (0, 0)),         # fc3 weight (16, 88)
            pl.BlockSpec(bf3.shape, lambda g: (0, 0)),
        ],
        out_specs=pl.BlockSpec((1, 16, _B), lambda g: (g, 0, 0)),
        compiler_params=pltpu.CompilerParams(
            dimension_semantics=("parallel",),        # >=2 blocks -> both v7x cores busy
            vmem_limit_bytes=32 * 1024 * 1024,        # headroom only; actual use ~a few MiB
        ),
    )(xs, t1, b1, t2, b2, wf1, bf1, wf2, bf2, wf3, bf3)

    return out.transpose(0, 2, 1).reshape(Np, 16)[:N, :10]


# ---------------------------------------------------------------------------
# Parameter packing: torch-layout weights -> dense lowered-conv matrices etc.
# ---------------------------------------------------------------------------
def pack_params(w1, b1, w2, b2, wf1, bf1, wf2, bf2, wf3, bf3):
    w1 = np.asarray(w1, np.float32)
    w2 = np.asarray(w2, np.float32)

    # conv1 -> dense matmul.  Row (ph*2+pw)*600 + (c*10+h1)*10 + w1 holds the conv
    # weights for output position (2*h1+ph, 2*w1+pw); cols are h_in*26 + w_in.
    t1 = np.zeros((4 * _P1, _IN), np.float32)
    for ph in range(2):
        for pw in range(2):
            bank = (ph * 2 + pw) * _P1
            for c in range(6):
                for h1 in range(10):
                    for w1i in range(10):
                        r = bank + (c * 10 + h1) * 10 + w1i
                        hh, ww = 2 * h1 + ph, 2 * w1i + pw
                        for kh in range(7):
                            for kw in range(7):
                                t1[r, (hh + kh) * 26 + (ww + kw)] = w1[c, 0, kh, kw]
    b1p = np.repeat(np.asarray(b1, np.float32), 100).reshape(_P1, 1)

    # conv2 -> dense matmul on the flattened pool1 map (cols = (c*10+h1)*10 + w1).
    # Row (ph*2+pw)*64 + o*4 + hh*2 + ww -> pool2 output lands in torch flatten order.
    t2 = np.zeros((4 * _P2, _P1), np.float32)
    for ph in range(2):
        for pw in range(2):
            bank = (ph * 2 + pw) * _P2
            for o in range(16):
                for hh in range(2):
                    for ww in range(2):
                        r = bank + o * 4 + hh * 2 + ww
                        h2, w2i = 2 * hh + ph, 2 * ww + pw
                        for c in range(6):
                            for kh in range(7):
                                for kw in range(7):
                                    col = (c * 10 + h2 + kh) * 10 + (w2i + kw)
                                    t2[r, col] = w2[o, c, kh, kw]
    b2p = np.repeat(np.asarray(b2, np.float32), 4).reshape(_P2, 1)

    # fc weights: (out, in) layout (batch stays on lanes); out/in dims zero-padded
    # to sublane multiples where needed.  Padding rows/cols stay exactly zero.
    wf1p = np.asarray(wf1, np.float32)                                   # (120, 64)
    bf1p = np.asarray(bf1, np.float32).reshape(120, 1)
    wf2p = np.zeros((88, 120), np.float32); wf2p[:84] = np.asarray(wf2, np.float32)
    bf2p = np.zeros((88, 1), np.float32);   bf2p[:84, 0] = np.asarray(bf2, np.float32)
    wf3p = np.zeros((16, 88), np.float32);  wf3p[:10, :84] = np.asarray(wf3, np.float32)
    bf3p = np.zeros((16, 1), np.float32);   bf3p[:10, 0] = np.asarray(bf3, np.float32)

    as_bf = lambda a: jnp.asarray(a, dtype=jnp.bfloat16)
    as_f32 = lambda a: jnp.asarray(a, dtype=jnp.float32)
    return (as_bf(t1), as_f32(b1p), as_bf(t2), as_f32(b2p),
            as_bf(wf1p), as_f32(bf1p), as_bf(wf2p), as_f32(bf2p),
            as_bf(wf3p), as_f32(bf3p))


def init_torch_params(key):
    ks = jax.random.split(key, 10)

    def u(k, shape, fan_in):
        bound = 1.0 / float(np.sqrt(fan_in))
        return jax.random.uniform(k, shape, jnp.float32, -bound, bound)

    w1 = u(ks[0], (6, 1, 7, 7), 49);    b1 = u(ks[1], (6,), 49)
    w2 = u(ks[2], (16, 6, 7, 7), 294);  b2 = u(ks[3], (16,), 294)
    wf1 = u(ks[4], (120, 64), 64);      bf1 = u(ks[5], (120,), 64)
    wf2 = u(ks[6], (84, 120), 120);     bf2 = u(ks[7], (84,), 120)
    wf3 = u(ks[8], (10, 84), 84);       bf3 = u(ks[9], (10,), 84)
    return (w1, b1, w2, b2, wf1, bf1, wf2, bf2, wf3, bf3)


def net_reference(x, tp):
    """Pure-JAX f32 reference of the torch module (for a tolerance check)."""
    w1, b1, w2, b2, wf1, bf1, wf2, bf2, wf3, bf3 = tp

    def conv(a, w, b):
        y = jax.lax.conv_general_dilated(
            a, w, (1, 1), "VALID", dimension_numbers=("NCHW", "OIHW", "NCHW"))
        return y + b.reshape(1, -1, 1, 1)

    def pool(a):
        return jax.lax.reduce_window(a, -jnp.inf, jax.lax.max,
                                     (1, 1, 2, 2), (1, 1, 2, 2), "VALID")

    h = pool(jax.nn.relu(conv(x, w1, b1)))
    h = pool(jax.nn.relu(conv(h, w2, b2)))
    h = h.reshape(h.shape[0], -1)
    h = jax.nn.relu(h @ wf1.T + bf1)
    h = jax.nn.relu(h @ wf2.T + bf2)
    return h @ wf3.T + bf3


if __name__ == "__main__":
    key = jax.random.PRNGKey(0)
    kx, kp = jax.random.split(key)

    # fc1 expects 64 = 16*2*2 features -> input spatial must be 26x26.
    x = jax.random.normal(kx, (2, 1, 26, 26), jnp.float32)
    torch_params = init_torch_params(kp)
    params = pack_params(*torch_params)

    fwd = jax.jit(net_forward)
    out = fwd(x, params)
    jax.block_until_ready(out)
    assert out.shape == (2, 10) and out.dtype == jnp.float32
    assert bool(jnp.all(jnp.isfinite(out)))

    # Tolerance-asserted reference check (bf16 matmul operands, f32 accumulation).
    ref = net_reference(x, torch_params)
    np.testing.assert_allclose(np.asarray(out), np.asarray(ref), rtol=0.1, atol=0.1)
    print("KERNEL_OK")
</pallas_src>

<mosaic_0001>
module attributes {stable_mosaic.version = 11 : i64} {
  func.func @_net_kernel(%arg0: i32, %arg1: memref<1x676x128xf32, #tpu.memory_space<vmem>>, %arg2: memref<2400x676xbf16, #tpu.memory_space<vmem>>, %arg3: memref<600x1xf32, #tpu.memory_space<vmem>>, %arg4: memref<256x600xbf16, #tpu.memory_space<vmem>>, %arg5: memref<64x1xf32, #tpu.memory_space<vmem>>, %arg6: memref<120x64xbf16, #tpu.memory_space<vmem>>, %arg7: memref<120x1xf32, #tpu.memory_space<vmem>>, %arg8: memref<88x120xbf16, #tpu.memory_space<vmem>>, %arg9: memref<88x1xf32, #tpu.memory_space<vmem>>, %arg10: memref<16x88xbf16, #tpu.memory_space<vmem>>, %arg11: memref<16x1xf32, #tpu.memory_space<vmem>>, %arg12: memref<1x16x128xf32, #tpu.memory_space<vmem>>) attributes {dimension_semantics = [#tpu.dimension_semantics<parallel>], iteration_bounds = array<i64: 1>, scalar_prefetch = 0 : i64, scratch_operands = 0 : i64, tpu.core_type = #tpu.core_type<tc>, window_params = [{transform_indices = @transform_0, window_bounds = array<i64: 1, 676, 128>}, {pipeline_mode = #tpu.pipeline_mode<synchronous>, transform_indices = @transform_1, window_bounds = array<i64: 2400, 676>}, {pipeline_mode = #tpu.pipeline_mode<synchronous>, transform_indices = @transform_2, window_bounds = array<i64: 600, 1>}, {pipeline_mode = #tpu.pipeline_mode<synchronous>, transform_indices = @transform_3, window_bounds = array<i64: 256, 600>}, {pipeline_mode = #tpu.pipeline_mode<synchronous>, transform_indices = @transform_4, window_bounds = array<i64: 64, 1>}, {pipeline_mode = #tpu.pipeline_mode<synchronous>, transform_indices = @transform_5, window_bounds = array<i64: 120, 64>}, {pipeline_mode = #tpu.pipeline_mode<synchronous>, transform_indices = @transform_6, window_bounds = array<i64: 120, 1>}, {pipeline_mode = #tpu.pipeline_mode<synchronous>, transform_indices = @transform_7, window_bounds = array<i64: 88, 120>}, {pipeline_mode = #tpu.pipeline_mode<synchronous>, transform_indices = @transform_8, window_bounds = array<i64: 88, 1>}, {pipeline_mode = #tpu.pipeline_mode<synchronous>, transform_indices = @transform_9, window_bounds = array<i64: 16, 88>}, {pipeline_mode = #tpu.pipeline_mode<synchronous>, transform_indices = @transform_10, window_bounds = array<i64: 16, 1>}, {transform_indices = @transform_11, window_bounds = array<i64: 1, 16, 128>}]} {
    %c0 = arith.constant 0 : index
    %c0_0 = arith.constant 0 : index
    %c0_1 = arith.constant 0 : index
    %0 = vector.load %arg1[%c0, %c0_0, %c0_1] : memref<1x676x128xf32, #tpu.memory_space<vmem>>, vector<1x676x128xf32>
    %1 = vector.shape_cast %0 : vector<1x676x128xf32> to vector<676x128xf32>
    %2 = arith.truncf %1 : vector<676x128xf32> to vector<676x128xbf16>
    %c0_2 = arith.constant 0 : index
    %c0_3 = arith.constant 0 : index
    %3 = vector.load %arg2[%c0_2, %c0_3] : memref<2400x676xbf16, #tpu.memory_space<vmem>>, vector<2400x676xbf16>
    %cst = arith.constant dense<0.000000e+00> : vector<2400x128xf32>
    %4 = tpu.matmul %3, %2, %cst {dimension_numbers = #tpu.dot_dimension_numbers<[1], [0], [0], [1], [0, 0, 1, 1], [], []>} : vector<2400x676xbf16>, vector<676x128xbf16>, vector<2400x128xf32> -> vector<2400x128xf32>
    %5 = vector.extract_strided_slice %4 {offsets = [0, 0], sizes = [600, 128], strides = [1, 1]} : vector<2400x128xf32> to vector<600x128xf32>
    %6 = vector.extract_strided_slice %4 {offsets = [600, 0], sizes = [600, 128], strides = [1, 1]} : vector<2400x128xf32> to vector<600x128xf32>
    %7 = arith.maximumf %5, %6 : vector<600x128xf32>
    %8 = vector.extract_strided_slice %4 {offsets = [1200, 0], sizes = [600, 128], strides = [1, 1]} : vector<2400x128xf32> to vector<600x128xf32>
    %9 = vector.extract_strided_slice %4 {offsets = [1800, 0], sizes = [600, 128], strides = [1, 1]} : vector<2400x128xf32> to vector<600x128xf32>
    %10 = arith.maximumf %8, %9 : vector<600x128xf32>
    %11 = arith.maximumf %7, %10 : vector<600x128xf32>
    %c0_4 = arith.constant 0 : index
    %c0_5 = arith.constant 0 : index
    %12 = vector.load %arg3[%c0_4, %c0_5] : memref<600x1xf32, #tpu.memory_space<vmem>>, vector<600x1xf32>
    %13 = vector.broadcast %12 : vector<600x1xf32> to vector<600x128xf32>
    %14 = arith.addf %11, %13 : vector<600x128xf32>
    %cst_6 = arith.constant 0.000000e+00 : f32
    %15 = vector.broadcast %cst_6 : f32 to vector<600x128xf32>
    %16 = arith.maximumf %14, %15 : vector<600x128xf32>
    %17 = arith.truncf %16 : vector<600x128xf32> to vector<600x128xbf16>
    %c0_7 = arith.constant 0 : index
    %c0_8 = arith.constant 0 : index
    %18 = vector.load %arg4[%c0_7, %c0_8] : memref<256x600xbf16, #tpu.memory_space<vmem>>, vector<256x600xbf16>
    %cst_9 = arith.constant dense<0.000000e+00> : vector<256x128xf32>
    %19 = tpu.matmul %18, %17, %cst_9 {dimension_numbers = #tpu.dot_dimension_numbers<[1], [0], [0], [1], [0, 0, 1, 1], [], []>} : vector<256x600xbf16>, vector<600x128xbf16>, vector<256x128xf32> -> vector<256x128xf32>
    %20 = vector.extract_strided_slice %19 {offsets = [0, 0], sizes = [64, 128], strides = [1, 1]} : vector<256x128xf32> to vector<64x128xf32>
    %21 = vector.extract_strided_slice %19 {offsets = [64, 0], sizes = [64, 128], strides = [1, 1]} : vector<256x128xf32> to vector<64x128xf32>
    %22 = arith.maximumf %20, %21 : vector<64x128xf32>
    %23 = vector.extract_strided_slice %19 {offsets = [128, 0], sizes = [64, 128], strides = [1, 1]} : vector<256x128xf32> to vector<64x128xf32>
    %24 = vector.extract_strided_slice %19 {offsets = [192, 0], sizes = [64, 128], strides = [1, 1]} : vector<256x128xf32> to vector<64x128xf32>
    %25 = arith.maximumf %23, %24 : vector<64x128xf32>
    %26 = arith.maximumf %22, %25 : vector<64x128xf32>
    %c0_10 = arith.constant 0 : index
    %c0_11 = arith.constant 0 : index
    %27 = vector.load %arg5[%c0_10, %c0_11] : memref<64x1xf32, #tpu.memory_space<vmem>>, vector<64x1xf32>
    %28 = vector.broadcast %27 : vector<64x1xf32> to vector<64x128xf32>
    %29 = arith.addf %26, %28 : vector<64x128xf32>
    %cst_12 = arith.constant 0.000000e+00 : f32
    %30 = vector.broadcast %cst_12 : f32 to vector<64x128xf32>
    %31 = arith.maximumf %29, %30 : vector<64x128xf32>
    %32 = arith.truncf %31 : vector<64x128xf32> to vector<64x128xbf16>
    %c0_13 = arith.constant 0 : index
    %c0_14 = arith.constant 0 : index
    %33 = vector.load %arg6[%c0_13, %c0_14] : memref<120x64xbf16, #tpu.memory_space<vmem>>, vector<120x64xbf16>
    %cst_15 = arith.constant dense<0.000000e+00> : vector<120x128xf32>
    %34 = tpu.matmul %33, %32, %cst_15 {dimension_numbers = #tpu.dot_dimension_numbers<[1], [0], [0], [1], [0, 0, 1, 1], [], []>} : vector<120x64xbf16>, vector<64x128xbf16>, vector<120x128xf32> -> vector<120x128xf32>
    %c0_16 = arith.constant 0 : index
    %c0_17 = arith.constant 0 : index
    %35 = vector.load %arg7[%c0_16, %c0_17] : memref<120x1xf32, #tpu.memory_space<vmem>>, vector<120x1xf32>
    %36 = vector.broadcast %35 : vector<120x1xf32> to vector<120x128xf32>
    %37 = arith.addf %34, %36 : vector<120x128xf32>
    %cst_18 = arith.constant 0.000000e+00 : f32
    %38 = vector.broadcast %cst_18 : f32 to vector<120x128xf32>
    %39 = arith.maximumf %37, %38 : vector<120x128xf32>
    %40 = arith.truncf %39 : vector<120x128xf32> to vector<120x128xbf16>
    %c0_19 = arith.constant 0 : index
    %c0_20 = arith.constant 0 : index
    %41 = vector.load %arg8[%c0_19, %c0_20] : memref<88x120xbf16, #tpu.memory_space<vmem>>, vector<88x120xbf16>
    %cst_21 = arith.constant dense<0.000000e+00> : vector<88x128xf32>
    %42 = tpu.matmul %41, %40, %cst_21 {dimension_numbers = #tpu.dot_dimension_numbers<[1], [0], [0], [1], [0, 0, 1, 1], [], []>} : vector<88x120xbf16>, vector<120x128xbf16>, vector<88x128xf32> -> vector<88x128xf32>
    %c0_22 = arith.constant 0 : index
    %c0_23 = arith.constant 0 : index
    %43 = vector.load %arg9[%c0_22, %c0_23] : memref<88x1xf32, #tpu.memory_space<vmem>>, vector<88x1xf32>
    %44 = vector.broadcast %43 : vector<88x1xf32> to vector<88x128xf32>
    %45 = arith.addf %42, %44 : vector<88x128xf32>
    %cst_24 = arith.constant 0.000000e+00 : f32
    %46 = vector.broadcast %cst_24 : f32 to vector<88x128xf32>
    %47 = arith.maximumf %45, %46 : vector<88x128xf32>
    %48 = arith.truncf %47 : vector<88x128xf32> to vector<88x128xbf16>
    %c0_25 = arith.constant 0 : index
    %c0_26 = arith.constant 0 : index
    %49 = vector.load %arg10[%c0_25, %c0_26] : memref<16x88xbf16, #tpu.memory_space<vmem>>, vector<16x88xbf16>
    %cst_27 = arith.constant dense<0.000000e+00> : vector<16x128xf32>
    %50 = tpu.matmul %49, %48, %cst_27 {dimension_numbers = #tpu.dot_dimension_numbers<[1], [0], [0], [1], [0, 0, 1, 1], [], []>} : vector<16x88xbf16>, vector<88x128xbf16>, vector<16x128xf32> -> vector<16x128xf32>
    %c0_28 = arith.constant 0 : index
    %c0_29 = arith.constant 0 : index
    %51 = vector.load %arg11[%c0_28, %c0_29] : memref<16x1xf32, #tpu.memory_space<vmem>>, vector<16x1xf32>
    %52 = vector.broadcast %51 : vector<16x1xf32> to vector<16x128xf32>
    %53 = arith.addf %50, %52 : vector<16x128xf32>
    %c0_30 = arith.constant 0 : index
    %c0_31 = arith.constant 0 : index
    %c0_32 = arith.constant 0 : index
    %54 = vector.load %arg12[%c0_30, %c0_31, %c0_32] : memref<1x16x128xf32, #tpu.memory_space<vmem>>, vector<1x16x128xf32>
    %55 = vector.shape_cast %54 : vector<1x16x128xf32> to vector<16x128xf32>
    %56 = vector.shape_cast %53 : vector<16x128xf32> to vector<1x16x128xf32>
    tpu.vector_store %arg12[%c0_30, %c0_31, %c0_32], %56 {strides = array<i32>} : memref<1x16x128xf32, #tpu.memory_space<vmem>>, vector<1x16x128xf32>,
    return
  }
  func.func @transform_0(%arg0: i32) -> (i32, i32, i32) {
    %c0_i32 = arith.constant 0 : i32
    %c0_i32_0 = arith.constant 0 : i32
    %c0_i32_1 = arith.constant 0 : i32
    return %arg0, %c0_i32, %c0_i32_0 : i32, i32, i32
  }
  func.func @transform_1(%arg0: i32) -> (i32, i32) {
    %c0_i32 = arith.constant 0 : i32
    %c0_i32_0 = arith.constant 0 : i32
    %c0_i32_1 = arith.constant 0 : i32
    return %c0_i32, %c0_i32_0 : i32, i32
  }
  func.func @transform_2(%arg0: i32) -> (i32, i32) {
    %c0_i32 = arith.constant 0 : i32
    %c0_i32_0 = arith.constant 0 : i32
    %c0_i32_1 = arith.constant 0 : i32
    return %c0_i32, %c0_i32_0 : i32, i32
  }
  func.func @transform_3(%arg0: i32) -> (i32, i32) {
    %c0_i32 = arith.constant 0 : i32
    %c0_i32_0 = arith.constant 0 : i32
    %c0_i32_1 = arith.constant 0 : i32
    return %c0_i32, %c0_i32_0 : i32, i32
  }
  func.func @transform_4(%arg0: i32) -> (i32, i32) {
    %c0_i32 = arith.constant 0 : i32
    %c0_i32_0 = arith.constant 0 : i32
    %c0_i32_1 = arith.constant 0 : i32
    return %c0_i32, %c0_i32_0 : i32, i32
  }
  func.func @transform_5(%arg0: i32) -> (i32, i32) {
    %c0_i32 = arith.constant 0 : i32
    %c0_i32_0 = arith.constant 0 : i32
    %c0_i32_1 = arith.constant 0 : i32
    return %c0_i32, %c0_i32_0 : i32, i32
  }
  func.func @transform_6(%arg0: i32) -> (i32, i32) {
    %c0_i32 = arith.constant 0 : i32
    %c0_i32_0 = arith.constant 0 : i32
    %c0_i32_1 = arith.constant 0 : i32
    return %c0_i32, %c0_i32_0 : i32, i32
  }
  func.func @transform_7(%arg0: i32) -> (i32, i32) {
    %c0_i32 = arith.constant 0 : i32
    %c0_i32_0 = arith.constant 0 : i32
    %c0_i32_1 = arith.constant 0 : i32
    return %c0_i32, %c0_i32_0 : i32, i32
  }
  func.func @transform_8(%arg0: i32) -> (i32, i32) {
    %c0_i32 = arith.constant 0 : i32
    %c0_i32_0 = arith.constant 0 : i32
    %c0_i32_1 = arith.constant 0 : i32
    return %c0_i32, %c0_i32_0 : i32, i32
  }
  func.func @transform_9(%arg0: i32) -> (i32, i32) {
    %c0_i32 = arith.constant 0 : i32
    %c0_i32_0 = arith.constant 0 : i32
    %c0_i32_1 = arith.constant 0 : i32
    return %c0_i32, %c0_i32_0 : i32, i32
  }
  func.func @transform_10(%arg0: i32) -> (i32, i32) {
    %c0_i32 = arith.constant 0 : i32
    %c0_i32_0 = arith.constant 0 : i32
    %c0_i32_1 = arith.constant 0 : i32
    return %c0_i32, %c0_i32_0 : i32, i32
  }
  func.func @transform_11(%arg0: i32) -> (i32, i32, i32) {
    %c0_i32 = arith.constant 0 : i32
    %c0_i32_0 = arith.constant 0 : i32
    %c0_i32_1 = arith.constant 0 : i32
    return %arg0, %c0_i32, %c0_i32_0 : i32, i32, i32
  }
}

</mosaic_0001>

<llo_original>
// kernel: net_forward.1
$region0: #{net_forward.1}
  #allocation0 [shape = 'u32[]', space=smem, size = 0x4, offset = 0x4, fixed_abs, tag = 'smem constant byte address 0x4 - core index']
  #allocation1 [shape = 'u32[144,128]{1,0:T(1,128)}', space=vmem, size = 0x12000, scoped, tag = 'internal scratch']
  %s0 = inlined_call_operand.vmem [shape: f32[1,676,128], index: 0, kind: input, shape index: {}]
  %s1 = inlined_call_operand.vmem [shape: bf16[2400,676], index: 1, kind: input, shape index: {}]
  %s2 = inlined_call_operand.vmem [shape: f32[600,1], index: 2, kind: input, shape index: {}]
  %s3 = inlined_call_operand.vmem [shape: bf16[256,600], index: 3, kind: input, shape index: {}]
  %s4 = inlined_call_operand.vmem [shape: f32[64,1], index: 4, kind: input, shape index: {}]
  %s5 = inlined_call_operand.vmem [shape: bf16[120,64], index: 5, kind: input, shape index: {}]
  %s6 = inlined_call_operand.vmem [shape: f32[120,1], index: 6, kind: input, shape index: {}]
  %s7 = inlined_call_operand.vmem [shape: bf16[88,120], index: 7, kind: input, shape index: {}]
  %s8 = inlined_call_operand.vmem [shape: f32[88,1], index: 8, kind: input, shape index: {}]
  %s9 = inlined_call_operand.vmem [shape: bf16[16,88], index: 9, kind: input, shape index: {}]
  %s10 = inlined_call_operand.vmem [shape: f32[16,1], index: 10, kind: input, shape index: {}]
  %s11 = inlined_call_operand.vmem [shape: f32[1,16,128], index: 11, kind: output, shape index: {}]
  %s12 = sld [smem:[#allocation0]]
  $region54: #{net_forward.1} parent=0
    _
  %s14 = ssub.s32 1, %s12
  %s15 = scalar_select 0, %s14, %s12
  // Predicated region
  $region2: #{net_forward.1} parent=0 // pred_check
    _
  $region3: #{net_forward.1} parent=0 // pred_check_branch
    %17 = sbr.rel (0) target = $region5
  $region4: #{net_forward.1} parent=0 // pred_region
    _
  $region5: #{net_forward.1} parent=0 // pred_fallthru
    _
  // Predicated region
  $region6: #{net_forward.1} parent=0 // pred_check
    _
  $region7: #{net_forward.1} parent=0 // pred_check_branch
    %19 = sbr.rel (0) target = $region9
  $region8: #{net_forward.1} parent=0 // pred_region
    _
  $region9: #{net_forward.1} parent=0 // pred_fallthru
    _
  // Predicated region
  $region10: #{net_forward.1} parent=0 // pred_check
    _
  $region11: #{net_forward.1} parent=0 // pred_check_branch
    %21 = sbr.rel (0) target = $region13
  $region12: #{net_forward.1} parent=0 // pred_region
    _
  $region13: #{net_forward.1} parent=0 // pred_fallthru
    _
  // Predicated region
  $region14: #{net_forward.1} parent=0 // pred_check
    _
  $region15: #{net_forward.1} parent=0 // pred_check_branch
    %23 = sbr.rel (0) target = $region17
  $region16: #{net_forward.1} parent=0 // pred_region
    _
  $region17: #{net_forward.1} parent=0 // pred_fallthru
    _
  // Predicated region
  $region18: #{net_forward.1} parent=0 // pred_check
    _
  $region19: #{net_forward.1} parent=0 // pred_check_branch
    %25 = sbr.rel (0) target = $region21
  $region20: #{net_forward.1} parent=0 // pred_region
    _
  $region21: #{net_forward.1} parent=0 // pred_fallthru
    _
  // Predicated region
  $region22: #{net_forward.1} parent=0 // pred_check
    _
  $region23: #{net_forward.1} parent=0 // pred_check_branch
    %27 = sbr.rel (0) target = $region25
  $region24: #{net_forward.1} parent=0 // pred_region
    _
  $region25: #{net_forward.1} parent=0 // pred_fallthru
    _
  // Predicated region
  $region26: #{net_forward.1} parent=0 // pred_check
    _
  $region27: #{net_forward.1} parent=0 // pred_check_branch
    %29 = sbr.rel (0) target = $region29
  $region28: #{net_forward.1} parent=0 // pred_region
    _
  $region29: #{net_forward.1} parent=0 // pred_fallthru
    _
  // Predicated region
  $region30: #{net_forward.1} parent=0 // pred_check
    _
  $region31: #{net_forward.1} parent=0 // pred_check_branch
    %31 = sbr.rel (0) target = $region33
  $region32: #{net_forward.1} parent=0 // pred_region
    _
  $region33: #{net_forward.1} parent=0 // pred_fallthru
    _
  // Predicated region
  $region34: #{net_forward.1} parent=0 // pred_check
    _
  $region35: #{net_forward.1} parent=0 // pred_check_branch
    %33 = sbr.rel (0) target = $region37
  $region36: #{net_forward.1} parent=0 // pred_region
    _
  $region37: #{net_forward.1} parent=0 // pred_fallthru
    _
  // Predicated region
  $region38: #{net_forward.1} parent=0 // pred_check
    _
  $region39: #{net_forward.1} parent=0 // pred_check_branch
    %35 = sbr.rel (0) target = $region41
  $region40: #{net_forward.1} parent=0 // pred_region
    _
  $region41: #{net_forward.1} parent=0 // pred_fallthru
    _
  // Predicated region
  $region42: #{net_forward.1} parent=0 // pred_check
    _
  $region43: #{net_forward.1} parent=0 // pred_check_branch
    %37 = sbr.rel (0) target = $region45
  $region44: #{net_forward.1} parent=0 // pred_region
    _
  $region45: #{net_forward.1} parent=0 // pred_fallthru
    _
  %v39 = vld [vmem:[%s0] sm:$0xff]
  %v40 = vld [vmem:[%s0 + $0x8] sm:$0xff]
  %v41 = vld [vmem:[%s0 + $0x10] sm:$0xff]
  %v42 = vld [vmem:[%s0 + $0x18] sm:$0xff]
  %v43 = vld [vmem:[%s0 + $0x20] sm:$0xff]
  %v44 = vld [vmem:[%s0 + $0x28] sm:$0xff]
  %v45 = vld [vmem:[%s0 + $0x30] sm:$0xff]
  %v46 = vld [vmem:[%s0 + $0x38] sm:$0xff]
  %v47 = vld [vmem:[%s0 + $0x40] sm:$0xff]
  %v48 = vld [vmem:[%s0 + $0x48] sm:$0xff]
  %v49 = vld [vmem:[%s0 + $0x50] sm:$0xff]
  %v50 = vld [vmem:[%s0 + $0x58] sm:$0xff]
  %v51 = vld [vmem:[%s0 + $0x60] sm:$0xff]
  %v52 = vld [vmem:[%s0 + $0x68] sm:$0xff]
  %v53 = vld [vmem:[%s0 + $0x70] sm:$0xff]
  %v54 = vld [vmem:[%s0 + $0x78] sm:$0xff]
  %v55 = vld [vmem:[%s0 + $0x80] sm:$0xff]
  %v56 = vld [vmem:[%s0 + $0x88] sm:$0xff]
  %v57 = vld [vmem:[%s0 + $0x90] sm:$0xff]
  %v58 = vld [vmem:[%s0 + $0x98] sm:$0xff]
  %v59 = vld [vmem:[%s0 + $0xa0] sm:$0xff]
  %v60 = vld [vmem:[%s0 + $0xa8] sm:$0xff]
  %v61 = vld [vmem:[%s0 + $0xb0] sm:$0xff]
  %v62 = vld [vmem:[%s0 + $0xb8] sm:$0xff]
  %v63 = vld [vmem:[%s0 + $0xc0] sm:$0xff]
  %v64 = vld [vmem:[%s0 + $0xc8] sm:$0xff]
  %v65 = vld [vmem:[%s0 + $0xd0] sm:$0xff]
  %v66 = vld [vmem:[%s0 + $0xd8] sm:$0xff]
  %v67 = vld [vmem:[%s0 + $0xe0] sm:$0xff]
  %v68 = vld [vmem:[%s0 + $0xe8] sm:$0xff]
  %v69 = vld [vmem:[%s0 + $0xf0] sm:$0xff]
  %v70 = vld [vmem:[%s0 + $0xf8] sm:$0xff]
  %v71 = vld [vmem:[%s0 + $0x100] sm:$0xff]
  %v72 = vld [vmem:[%s0 + $0x108] sm:$0xff]
  %v73 = vld [vmem:[%s0 + $0x110] sm:$0xff]
  %v74 = vld [vmem:[%s0 + $0x118] sm:$0xff]
  %v75 = vld [vmem:[%s0 + $0x120] sm:$0xff]
  %v76 = vld [vmem:[%s0 + $0x128] sm:$0xff]
  %v77 = vld [vmem:[%s0 + $0x130] sm:$0xff]
  %v78 = vld [vmem:[%s0 + $0x138] sm:$0xff]
  %v79 = vld [vmem:[%s0 + $0x140] sm:$0xff]
  %v80 = vld [vmem:[%s0 + $0x148] sm:$0xff]
  %v81 = vld [vmem:[%s0 + $0x150] sm:$0xff]
  %v82 = vld [vmem:[%s0 + $0x158] sm:$0xff]
  %v83 = vld [vmem:[%s0 + $0x160] sm:$0xff]
  %v84 = vld [vmem:[%s0 + $0x168] sm:$0xff]
  %v85 = vld [vmem:[%s0 + $0x170] sm:$0xff]
  %v86 = vld [vmem:[%s0 + $0x178] sm:$0xff]
  %v87 = vld [vmem:[%s0 + $0x180] sm:$0xff]
  %v88 = vld [vmem:[%s0 + $0x188] sm:$0xff]
  %v89 = vld [vmem:[%s0 + $0x190] sm:$0xff]
  %v90 = vld [vmem:[%s0 + $0x198] sm:$0xff]
  %v91 = vld [vmem:[%s0 + $0x1a0] sm:$0xff]
  %v92 = vld [vmem:[%s0 + $0x1a8] sm:$0xff]
  %v93 = vld [vmem:[%s0 + $0x1b0] sm:$0xff]
  %v94 = vld [vmem:[%s0 + $0x1b8] sm:$0xff]
  %v95 = vld [vmem:[%s0 + $0x1c0] sm:$0xff]
  %v96 = vld [vmem:[%s0 + $0x1c8] sm:$0xff]
  %v97 = vld [vmem:[%s0 + $0x1d0] sm:$0xff]
  %v98 = vld [vmem:[%s0 + $0x1d8] sm:$0xff]
  %v99 = vld [vmem:[%s0 + $0x1e0] sm:$0xff]
  %v100 = vld [vmem:[%s0 + $0x1e8] sm:$0xff]
  %v101 = vld [vmem:[%s0 + $0x1f0] sm:$0xff]
  %v102 = vld [vmem:[%s0 + $0x1f8] sm:$0xff]
  %v103 = vld [vmem:[%s0 + $0x200] sm:$0xff]
  %v104 = vld [vmem:[%s0 + $0x208] sm:$0xff]
  %v105 = vld [vmem:[%s0 + $0x210] sm:$0xff]
  %v106 = vld [vmem:[%s0 + $0x218] sm:$0xff]
  %v107 = vld [vmem:[%s0 + $0x220] sm:$0xff]
  %v108 = vld [vmem:[%s0 + $0x228] sm:$0xff]
  %v109 = vld [vmem:[%s0 + $0x230] sm:$0xff]
  %v110 = vld [vmem:[%s0 + $0x238] sm:$0xff]
  %v111 = vld [vmem:[%s0 + $0x240] sm:$0xff]
  %v112 = vld [vmem:[%s0 + $0x248] sm:$0xff]
  %v113 = vld [vmem:[%s0 + $0x250] sm:$0xff]
  %v114 = vld [vmem:[%s0 + $0x258] sm:$0xff]
  %v115 = vld [vmem:[%s0 + $0x260] sm:$0xff]
  %v116 = vld [vmem:[%s0 + $0x268] sm:$0xff]
  %v117 = vld [vmem:[%s0 + $0x270] sm:$0xff]
  %v118 = vld [vmem:[%s0 + $0x278] sm:$0xff]
  %v119 = vld [vmem:[%s0 + $0x280] sm:$0xff]
  %v120 = vld [vmem:[%s0 + $0x288] sm:$0xff]
  %v121 = vld [vmem:[%s0 + $0x290] sm:$0xff]
  %v122 = vld [vmem:[%s0 + $0x298] sm:$0xff]
  %v123 = vld [vmem:[%s0 + $0x2a0] sm:$0xf]
  %v124 = vpack.c.bf16 %v40, %v39
  %v125 = vpack.c.bf16 %v42, %v41
  %v126 = vpack.c.bf16 %v44, %v43
  %v127 = vpack.c.bf16 %v46, %v45
  %v128 = vpack.c.bf16 %v48, %v47
  %v129 = vpack.c.bf16 %v50, %v49
  %v130 = vpack.c.bf16 %v52, %v51
  %v131 = vpack.c.bf16 %v54, %v53
  %v132 = vpack.c.bf16 %v56, %v55
  %v133 = vpack.c.bf16 %v58, %v57
  %v134 = vpack.c.bf16 %v60, %v59
  %v135 = vpack.c.bf16 %v62, %v61
  %v136 = vpack.c.bf16 %v64, %v63
  %v137 = vpack.c.bf16 %v66, %v65
  %v138 = vpack.c.bf16 %v68, %v67
  %v139 = vpack.c.bf16 %v70, %v69
  %v140 = vpack.c.bf16 %v72, %v71
  %v141 = vpack.c.bf16 %v74, %v73
  %v142 = vpack.c.bf16 %v76, %v75
  %v143 = vpack.c.bf16 %v78, %v77
  %v144 = vpack.c.bf16 %v80, %v79
  %v145 = vpack.c.bf16 %v82, %v81
  %v146 = vpack.c.bf16 %v84, %v83
  %v147 = vpack.c.bf16 %v86, %v85
  %v148 = vpack.c.bf16 %v88, %v87
  %v149 = vpack.c.bf16 %v90, %v89
  %v150 = vpack.c.bf16 %v92, %v91
  %v151 = vpack.c.bf16 %v94, %v93
  %v152 = vpack.c.bf16 %v96, %v95
  %v153 = vpack.c.bf16 %v98, %v97
  %v154 = vpack.c.bf16 %v100, %v99
  %v155 = vpack.c.bf16 %v102, %v101
  %v156 = vpack.c.bf16 %v104, %v103
  %v157 = vpack.c.bf16 %v106, %v105
  %v158 = vpack.c.bf16 %v108, %v107
  %v159 = vpack.c.bf16 %v110, %v109
  %v160 = vpack.c.bf16 %v112, %v111
  %v161 = vpack.c.bf16 %v114, %v113
  %v162 = vpack.c.bf16 %v116, %v115
  %v163 = vpack.c.bf16 %v118, %v117
  %v164 = vpack.c.bf16 %v120, %v119
  %v165 = vpack.c.bf16 %v122, %v121
  %v166 = vpack.c.bf16 %v123, %v123
  %v167 = vld [vmem:[%s1] sm:$0xff]
  %v168 = vld [vmem:[%s1 + $0x8] sm:$0xff]
  %v169 = vld [vmem:[%s1 + $0x10] sm:$0xff]
  %v170 = vld [vmem:[%s1 + $0x18] sm:$0xff]
  %v171 = vld [vmem:[%s1 + $0x20] sm:$0xff]
  %v172 = vld [vmem:[%s1 + $0x28] sm:$0xff]
  %v173 = vld [vmem:[%s1 + $0x30] sm:$0xff]
  %v174 = vld [vmem:[%s1 + $0x38] sm:$0xff]
  %v175 = vld [vmem:[%s1 + $0x40] sm:$0xff]
  %v176 = vld [vmem:[%s1 + $0x48] sm:$0xff]
  %v177 = vld [vmem:[%s1 + $0x50] sm:$0xff]
  %v178 = vld [vmem:[%s1 + $0x58] sm:$0xff]
  %v179 = vld [vmem:[%s1 + $0x60] sm:$0xff]
  %v180 = vld [vmem:[%s1 + $0x68] sm:$0xff]
  %v181 = vld [vmem:[%s1 + $0x70] sm:$0xff]
  %v182 = vld [vmem:[%s1 + $0x78] sm:$0xff]
  %v183 = vld [vmem:[%s1 + $0x80] sm:$0xff]
  %v184 = vld [vmem:[%s1 + $0x88] sm:$0xff]
  %v185 = vld [vmem:[%s1 + $0x90] sm:$0xff]
  %v186 = vld [vmem:[%s1 + $0x98] sm:$0xff]
  %v187 = vld [vmem:[%s1 + $0xa0] sm:$0xff]
  %v188 = vld [vmem:[%s1 + $0xa8] sm:$0xff]
  %v189 = vld [vmem:[%s1 + $0xb0] sm:$0xff]
  %v190 = vld [vmem:[%s1 + $0xb8] sm:$0xff]
  %v191 = vld [vmem:[%s1 + $0xc0] sm:$0xff]
  %v192 = vld [vmem:[%s1 + $0xc8] sm:$0xff]
  %v193 = vld [vmem:[%s1 + $0xd0] sm:$0xff]
  %v194 = vld [vmem:[%s1 + $0xd8] sm:$0xff]
  %v195 = vld [vmem:[%s1 + $0xe0] sm:$0xff]
  %v196 = vld [vmem:[%s1 + $0xe8] sm:$0xff]
  %v197 = vld [vmem:[%s1 + $0xf0] sm:$0xff]
  %v198 = vld [vmem:[%s1 + $0xf8] sm:$0xff]
  %v199 = vld [vmem:[%s1 + $0x100] sm:$0xff]
  %v200 = vld [vmem:[%s1 + $0x108] sm:$0xff]
  %v201 = vld [vmem:[%s1 + $0x110] sm:$0xff]
  %v202 = vld [vmem:[%s1 + $0x118] sm:$0xff]
  %v203 = vld [vmem:[%s1 + $0x120] sm:$0xff]
  %v204 = vld [vmem:[%s1 + $0x128] sm:$0xff]
  %v205 = vld [vmem:[%s1 + $0x130] sm:$0xff]
  %v206 = vld [vmem:[%s1 + $0x138] sm:$0xff]
  %v207 = vld [vmem:[%s1 + $0x140] sm:$0xff]
  %v208 = vld [vmem:[%s1 + $0x148] sm:$0xff]
  %v209 = vld [vmem:[%s1 + $0x150] sm:$0xff]
  %v210 = vld [vmem:[%s1 + $0x158] sm:$0xff]
  %v211 = vld [vmem:[%s1 + $0x160] sm:$0xff]
  %v212 = vld [vmem:[%s1 + $0x168] sm:$0xff]
  %v213 = vld [vmem:[%s1 + $0x170] sm:$0xff]
  %v214 = vld [vmem:[%s1 + $0x178] sm:$0xff]
  %v215 = vld [vmem:[%s1 + $0x180] sm:$0xff]
  %v216 = vld [vmem:[%s1 + $0x188] sm:$0xff]
  %v217 = vld [vmem:[%s1 + $0x190] sm:$0xff]
  %v218 = vld [vmem:[%s1 + $0x198] sm:$0xff]
  %v219 = vld [vmem:[%s1 + $0x1a0] sm:$0xff]
  %v220 = vld [vmem:[%s1 + $0x1a8] sm:$0xff]
  %v221 = vld [vmem:[%s1 + $0x1b0] sm:$0xff]
  %v222 = vld [vmem:[%s1 + $0x1b8] sm:$0xff]
  %v223 = vld [vmem:[%s1 + $0x1c0] sm:$0xff]
  %v224 = vld [vmem:[%s1 + $0x1c8] sm:$0xff]
  %v225 = vld [vmem:[%s1 + $0x1d0] sm:$0xff]
  %v226 = vld [vmem:[%s1 + $0x1d8] sm:$0xff]
  %v227 = vld [vmem:[%s1 + $0x1e0] sm:$0xff]
  %v228 = vld [vmem:[%s1 + $0x1e8] sm:$0xff]
  %v229 = vld [vmem:[%s1 + $0x1f0] sm:$0xff]
  %v230 = vld [vmem:[%s1 + $0x1f8] sm:$0xff]
  %v231 = vld [vmem:[%s1 + $0x200] sm:$0xff]
  %v232 = vld [vmem:[%s1 + $0x208] sm:$0xff]
  %v233 = vld [vmem:[%s1 + $0x210] sm:$0xff]
  %v234 = vld [vmem:[%s1 + $0x218] sm:$0xff]
  %v235 = vld [vmem:[%s1 + $0x220] sm:$0xff]
  %v236 = vld [vmem:[%s1 + $0x228] sm:$0xff]
  %v237 = vld [vmem:[%s1 + $0x230] sm:$0xff]
  %v238 = vld [vmem:[%s1 + $0x238] sm:$0xff]
  %v239 = vld [vmem:[%s1 + $0x240] sm:$0xff]
  %v240 = vld [vmem:[%s1 + $0x248] sm:$0xff]
  %v241 = vld [vmem:[%s1 + $0x250] sm:$0xff]
  %v242 = vld [vmem:[%s1 + $0x258] sm:$0xff]
  %v243 = vld [vmem:[%s1 + $0x260] sm:$0xff]
  %v244 = vld [vmem:[%s1 + $0x268] sm:$0xff]
  %v245 = vld [vmem:[%s1 + $0x270] sm:$0xff]
  %v246 = vld [vmem:[%s1 + $0x278] sm:$0xff]
  %v247 = vld [vmem:[%s1 + $0x280] sm:$0xff]
  %v248 = vld [vmem:[%s1 + $0x288] sm:$0xff]
  %v249 = vld [vmem:[%s1 + $0x290] sm:$0xff]
  %v250 = vld [vmem:[%s1 + $0x298] sm:$0xff]
  %v251 = vld [vmem:[%s1 + $0x2a0] sm:$0xff]
  %v252 = vld [vmem:[%s1 + $0x2a8] sm:$0xff]
  %v253 = vld [vmem:[%s1 + $0x2b0] sm:$0xff]
  %v254 = vld [vmem:[%s1 + $0x2b8] sm:$0xff]
  %v255 = vld [vmem:[%s1 + $0x2c0] sm:$0xff]
  %v256 = vld [vmem:[%s1 + $0x2c8] sm:$0xff]
  %v257 = vld [vmem:[%s1 + $0x2d0] sm:$0xff]
  %v258 = vld [vmem:[%s1 + $0x2d8] sm:$0xff]
  %v259 = vld [vmem:[%s1 + $0x2e0] sm:$0xff]
  %v260 = vld [vmem:[%s1 + $0x2e8] sm:$0xff]
  %v261 = vld [vmem:[%s1 + $0x2f0] sm:$0xff]
  %v262 = vld [vmem:[%s1 + $0x2f8] sm:$0xff]
  %v263 = vld [vmem:[%s1 + $0x300] sm:$0xff]
  %v264 = vld [vmem:[%s1 + $0x308] sm:$0xff]
  %v265 = vld [vmem:[%s1 + $0x310] sm:$0xff]
  %v266 = vld [vmem:[%s1 + $0x318] sm:$0xff]
  %v267 = vld [vmem:[%s1 + $0x320] sm:$0xff]
  %v268 = vld [vmem:[%s1 + $0x328] sm:$0xff]
  %v269 = vld [vmem:[%s1 + $0x330] sm:$0xff]
  %v270 = vld [vmem:[%s1 + $0x338] sm:$0xff]
  %v271 = vld [vmem:[%s1 + $0x340] sm:$0xff]
  %v272 = vld [vmem:[%s1 + $0x348] sm:$0xff]
  %v273 = vld [vmem:[%s1 + $0x350] sm:$0xff]
  %v274 = vld [vmem:[%s1 + $0x358] sm:$0xff]
  %v275 = vld [vmem:[%s1 + $0x360] sm:$0xff]
  %v276 = vld [vmem:[%s1 + $0x368] sm:$0xff]
  %v277 = vld [vmem:[%s1 + $0x370] sm:$0xff]
  %v278 = vld [vmem:[%s1 + $0x378] sm:$0xff]
  %v279 = vld [vmem:[%s1 + $0x380] sm:$0xff]
  %v280 = vld [vmem:[%s1 + $0x388] sm:$0xff]
  %v281 = vld [vmem:[%s1 + $0x390] sm:$0xff]
  %v282 = vld [vmem:[%s1 + $0x398] sm:$0xff]
  %v283 = vld [vmem:[%s1 + $0x3a0] sm:$0xff]
  %v284 = vld [vmem:[%s1 + $0x3a8] sm:$0xff]
  %v285 = vld [vmem:[%s1 + $0x3b0] sm:$0xff]
  %v286 = vld [vmem:[%s1 + $0x3b8] sm:$0xff]
  %v287 = vld [vmem:[%s1 + $0x3c0] sm:$0xff]
  %v288 = vld [vmem:[%s1 + $0x3c8] sm:$0xff]
  %v289 = vld [vmem:[%s1 + $0x3d0] sm:$0xff]
  %v290 = vld [vmem:[%s1 + $0x3d8] sm:$0xff]
  %v291 = vld [vmem:[%s1 + $0x3e0] sm:$0xff]
  %v292 = vld [vmem:[%s1 + $0x3e8] sm:$0xff]
  %v293 = vld [vmem:[%s1 + $0x3f0] sm:$0xff]
  %v294 = vld [vmem:[%s1 + $0x3f8] sm:$0xff]
  %v295 = vld [vmem:[%s1 + $0x400] sm:$0xff]
  %v296 = vld [vmem:[%s1 + $0x408] sm:$0xff]
  %v297 = vld [vmem:[%s1 + $0x410] sm:$0xff]
  %v298 = vld [vmem:[%s1 + $0x418] sm:$0xff]
  %v299 = vld [vmem:[%s1 + $0x420] sm:$0xff]
  %v300 = vld [vmem:[%s1 + $0x428] sm:$0xff]
  %v301 = vld [vmem:[%s1 + $0x430] sm:$0xff]
  %v302 = vld [vmem:[%s1 + $0x438] sm:$0xff]
  %v303 = vld [vmem:[%s1 + $0x440] sm:$0xff]
  %v304 = vld [vmem:[%s1 + $0x448] sm:$0xff]
  %v305 = vld [vmem:[%s1 + $0x450] sm:$0xff]
  %v306 = vld [vmem:[%s1 + $0x458] sm:$0xff]
  %v307 = vld [vmem:[%s1 + $0x460] sm:$0xff]
  %v308 = vld [vmem:[%s1 + $0x468] sm:$0xff]
  %v309 = vld [vmem:[%s1 + $0x470] sm:$0xff]
  %v310 = vld [vmem:[%s1 + $0x478] sm:$0xff]
  %v311 = vld [vmem:[%s1 + $0x480] sm:$0xff]
  %v312 = vld [vmem:[%s1 + $0x488] sm:$0xff]
  %v313 = vld [vmem:[%s1 + $0x490] sm:$0xff]
  %v314 = vld [vmem:[%s1 + $0x498] sm:$0xff]
  %v315 = vld [vmem:[%s1 + $0x4a0] sm:$0xff]
  %v316 = vld [vmem:[%s1 + $0x4a8] sm:$0xff]
  %v317 = vld [vmem:[%s1 + $0x4b0] sm:$0xff]
  %v318 = vld [vmem:[%s1 + $0x4b8] sm:$0xff]
  %v319 = vld [vmem:[%s1 + $0x4c0] sm:$0xff]
  %v320 = vld [vmem:[%s1 + $0x4c8] sm:$0xff]
  %v321 = vld [vmem:[%s1 + $0x4d0] sm:$0xff]
  %v322 = vld [vmem:[%s1 + $0x4d8] sm:$0xff]
  %v323 = vld [vmem:[%s1 + $0x4e0] sm:$0xff]
  %v324 = vld [vmem:[%s1 + $0x4e8] sm:$0xff]
  %v325 = vld [vmem:[%s1 + $0x4f0] sm:$0xff]
  %v326 = vld [vmem:[%s1 + $0x4f8] sm:$0xff]
  %v327 = vld [vmem:[%s1 + $0x500] sm:$0xff]
  %v328 = vld [vmem:[%s1 + $0x508] sm:$0xff]
  %v329 = vld [vmem:[%s1 + $0x510] sm:$0xff]
  %v330 = vld [vmem:[%s1 + $0x518] sm:$0xff]
  %v331 = vld [vmem:[%s1 + $0x520] sm:$0xff]
  %v332 = vld [vmem:[%s1 + $0x528] sm:$0xff]
  %v333 = vld [vmem:[%s1 + $0x530] sm:$0xff]
  %v334 = vld [vmem:[%s1 + $0x538] sm:$0xff]
  %v335 = vld [vmem:[%s1 + $0x540] sm:$0xff]
  %v336 = vld [vmem:[%s1 + $0x548] sm:$0xff]
  %v337 = vld [vmem:[%s1 + $0x550] sm:$0xff]
  %v338 = vld [vmem:[%s1 + $0x558] sm:$0xff]
  %v339 = vld [vmem:[%s1 + $0x560] sm:$0xff]
  %v340 = vld [vmem:[%s1 + $0x568] sm:$0xff]
  %v341 = vld [vmem:[%s1 + $0x570] sm:$0xff]
  %v342 = vld [vmem:[%s1 + $0x578] sm:$0xff]
  %v343 = vld [vmem:[%s1 + $0x580] sm:$0xff]
  %v344 = vld [vmem:[%s1 + $0x588] sm:$0xff]
  %v345 = vld [vmem:[%s1 + $0x590] sm:$0xff]
  %v346 = vld [vmem:[%s1 + $0x598] sm:$0xff]
  %v347 = vld [vmem:[%s1 + $0x5a0] sm:$0xff]
  %v348 = vld [vmem:[%s1 + $0x5a8] sm:$0xff]
  %v349 = vld [vmem:[%s1 + $0x5b0] sm:$0xff]
  %v350 = vld [vmem:[%s1 + $0x5b8] sm:$0xff]
  %v351 = vld [vmem:[%s1 + $0x5c0] sm:$0xff]
  %v352 = vld [vmem:[%s1 + $0x5c8] sm:$0xff]
  %v353 = vld [vmem:[%s1 + $0x5d0] sm:$0xff]
  %v354 = vld [vmem:[%s1 + $0x5d8] sm:$0xff]
  %v355 = vld [vmem:[%s1 + $0x5e0] sm:$0xff]
  %v356 = vld [vmem:[%s1 + $0x5e8] sm:$0xff]
  %v357 = vld [vmem:[%s1 + $0x5f0] sm:$0xff]
  %v358 = vld [vmem:[%s1 + $0x5f8] sm:$0xff]
  %v359 = vld [vmem:[%s1 + $0x600] sm:$0xff]
  %v360 = vld [vmem:[%s1 + $0x608] sm:$0xff]
  %v361 = vld [vmem:[%s1 + $0x610] sm:$0xff]
  %v362 = vld [vmem:[%s1 + $0x618] sm:$0xff]
  %v363 = vld [vmem:[%s1 + $0x620] sm:$0xff]
  %v364 = vld [vmem:[%s1 + $0x628] sm:$0xff]
  %v365 = vld [vmem:[%s1 + $0x630] sm:$0xff]
  %v366 = vld [vmem:[%s1 + $0x638] sm:$0xff]
  %v367 = vld [vmem:[%s1 + $0x640] sm:$0xff]
  %v368 = vld [vmem:[%s1 + $0x648] sm:$0xff]
  %v369 = vld [vmem:[%s1 + $0x650] sm:$0xff]
  %v370 = vld [vmem:[%s1 + $0x658] sm:$0xff]
  %v371 = vld [vmem:[%s1 + $0x660] sm:$0xff]
  %v372 = vld [vmem:[%s1 + $0x668] sm:$0xff]
  %v373 = vld [vmem:[%s1 + $0x670] sm:$0xff]
  %v374 = vld [vmem:[%s1 + $0x678] sm:$0xff]
  %v375 = vld [vmem:[%s1 + $0x680] sm:$0xff]
  %v376 = vld [vmem:[%s1 + $0x688] sm:$0xff]
  %v377 = vld [vmem:[%s1 + $0x690] sm:$0xff]
  %v378 = vld [vmem:[%s1 + $0x698] sm:$0xff]
  %v379 = vld [vmem:[%s1 + $0x6a0] sm:$0xff]
  %v380 = vld [vmem:[%s1 + $0x6a8] sm:$0xff]
  %v381 = vld [vmem:[%s1 + $0x6b0] sm:$0xff]
  %v382 = vld [vmem:[%s1 + $0x6b8] sm:$0xff]
  %v383 = vld [vmem:[%s1 + $0x6c0] sm:$0xff]
  %v384 = vld [vmem:[%s1 + $0x6c8] sm:$0xff]
  %v385 = vld [vmem:[%s1 + $0x6d0] sm:$0xff]
  %v386 = vld [vmem:[%s1 + $0x6d8] sm:$0xff]
  %v387 = vld [vmem:[%s1 + $0x6e0] sm:$0xff]
  %v388 = vld [vmem:[%s1 + $0x6e8] sm:$0xff]
  %v389 = vld [vmem:[%s1 + $0x6f0] sm:$0xff]
  %v390 = vld [vmem:[%s1 + $0x6f8] sm:$0xff]
  %v391 = vld [vmem:[%s1 + $0x700] sm:$0xff]
  %v392 = vld [vmem:[%s1 + $0x708] sm:$0xff]
  %v393 = vld [vmem:[%s1 + $0x710] sm:$0xff]
  %v394 = vld [vmem:[%s1 + $0x718] sm:$0xff]
  %v395 = vld [vmem:[%s1 + $0x720] sm:$0xff]
  %v396 = vld [vmem:[%s1 + $0x728] sm:$0xff]
  %v397 = vld [vmem:[%s1 + $0x730] sm:$0xff]
  %v398 = vld [vmem:[%s1 + $0x738] sm:$0xff]
  %v399 = vld [vmem:[%s1 + $0x740] sm:$0xff]
  %v400 = vld [vmem:[%s1 + $0x748] sm:$0xff]
  %v401 = vld [vmem:[%s1 + $0x750] sm:$0xff]
  %v402 = vld [vmem:[%s1 + $0x758] sm:$0xff]
  %v403 = vld [vmem:[%s1 + $0x760] sm:$0xff]
  %v404 = vld [vmem:[%s1 + $0x768] sm:$0xff]
  %v405 = vld [vmem:[%s1 + $0x770] sm:$0xff]
  %v406 = vld [vmem:[%s1 + $0x778] sm:$0xff]
  %v407 = vld [vmem:[%s1 + $0x780] sm:$0xff]
  %v408 = vld [vmem:[%s1 + $0x788] sm:$0xff]
  %v409 = vld [vmem:[%s1 + $0x790] sm:$0xff]
  %v410 = vld [vmem:[%s1 + $0x798] sm:$0xff]
  %v411 = vld [vmem:[%s1 + $0x7a0] sm:$0xff]
  %v412 = vld [vmem:[%s1 + $0x7a8] sm:$0xff]
  %v413 = vld [vmem:[%s1 + $0x7b0] sm:$0xff]
  %v414 = vld [vmem:[%s1 + $0x7b8] sm:$0xff]
  %v415 = vld [vmem:[%s1 + $0x7c0] sm:$0xff]
  %v416 = vld [vmem:[%s1 + $0x7c8] sm:$0xff]
  %v417 = vld [vmem:[%s1 + $0x7d0] sm:$0xff]
  %v418 = vld [vmem:[%s1 + $0x7d8] sm:$0xff]
  %v419 = vld [vmem:[%s1 + $0x7e0] sm:$0xff]
  %v420 = vld [vmem:[%s1 + $0x7e8] sm:$0xff]
  %v421 = vld [vmem:[%s1 + $0x7f0] sm:$0xff]
  %v422 = vld [vmem:[%s1 + $0x7f8] sm:$0xff]
  %v423 = vld [vmem:[%s1 + $0x800] sm:$0xff]
  %v424 = vld [vmem:[%s1 + $0x808] sm:$0xff]
  %v425 = vld [vmem:[%s1 + $0x810] sm:$0xff]
  %v426 = vld [vmem:[%s1 + $0x818] sm:$0xff]
  %v427 = vld [vmem:[%s1 + $0x820] sm:$0xff]
  %v428 = vld [vmem:[%s1 + $0x828] sm:$0xff]
  %v429 = vld [vmem:[%s1 + $0x830] sm:$0xff]
  %v430 = vld [vmem:[%s1 + $0x838] sm:$0xff]
  %v431 = vld [vmem:[%s1 + $0x840] sm:$0xff]
  %v432 = vld [vmem:[%s1 + $0x848] sm:$0xff]
  %v433 = vld [vmem:[%s1 + $0x850] sm:$0xff]
  %v434 = vld [vmem:[%s1 + $0x858] sm:$0xff]
  %v435 = vld [vmem:[%s1 + $0x860] sm:$0xff]
  %v436 = vld [vmem:[%s1 + $0x868] sm:$0xff]
  %v437 = vld [vmem:[%s1 + $0x870] sm:$0xff]
  %v438 = vld [vmem:[%s1 + $0x878] sm:$0xff]
  %v439 = vld [vmem:[%s1 + $0x880] sm:$0xff]
  %v440 = vld [vmem:[%s1 + $0x888] sm:$0xff]
  %v441 = vld [vmem:[%s1 + $0x890] sm:$0xff]
  %v442 = vld [vmem:[%s1 + $0x898] sm:$0xff]
  %v443 = vld [vmem:[%s1 + $0x8a0] sm:$0xff]
  %v444 = vld [vmem:[%s1 + $0x8a8] sm:$0xff]
  %v445 = vld [vmem:[%s1 + $0x8b0] sm:$0xff]
  %v446 = vld [vmem:[%s1 + $0x8b8] sm:$0xff]
  %v447 = vld [vmem:[%s1 + $0x8c0] sm:$0xff]
  %v448 = vld [vmem:[%s1 + $0x8c8] sm:$0xff]
  %v449 = vld [vmem:[%s1 + $0x8d0] sm:$0xff]
  %v450 = vld [vmem:[%s1 + $0x8d8] sm:$0xff]
  %v451 = vld [vmem:[%s1 + $0x8e0] sm:$0xff]
  %v452 = vld [vmem:[%s1 + $0x8e8] sm:$0xff]
  %v453 = vld [vmem:[%s1 + $0x8f0] sm:$0xff]
  %v454 = vld [vmem:[%s1 + $0x8f8] sm:$0xff]
  %v455 = vld [vmem:[%s1 + $0x900] sm:$0xff]
  %v456 = vld [vmem:[%s1 + $0x908] sm:$0xff]
  %v457 = vld [vmem:[%s1 + $0x910] sm:$0xff]
  %v458 = vld [vmem:[%s1 + $0x918] sm:$0xff]
  %v459 = vld [vmem:[%s1 + $0x920] sm:$0xff]
  %v460 = vld [vmem:[%s1 + $0x928] sm:$0xff]
  %v461 = vld [vmem:[%s1 + $0x930] sm:$0xff]
  %v462 = vld [vmem:[%s1 + $0x938] sm:$0xff]
  %v463 = vld [vmem:[%s1 + $0x940] sm:$0xff]
  %v464 = vld [vmem:[%s1 + $0x948] sm:$0xff]
  %v465 = vld [vmem:[%s1 + $0x950] sm:$0xff]
  %v466 = vld [vmem:[%s1 + $0x958] sm:$0xff]
  %v467 = vld [vmem:[%s1 + $0x960] sm:$0xff]
  %v468 = vld [vmem:[%s1 + $0x968] sm:$0xff]
  %v469 = vld [vmem:[%s1 + $0x970] sm:$0xff]
  %v470 = vld [vmem:[%s1 + $0x978] sm:$0xff]
  %v471 = vld [vmem:[%s1 + $0x980] sm:$0xff]
  %v472 = vld [vmem:[%s1 + $0x988] sm:$0xff]
  %v473 = vld [vmem:[%s1 + $0x990] sm:$0xff]
  %v474 = vld [vmem:[%s1 + $0x998] sm:$0xff]
  %v475 = vld [vmem:[%s1 + $0x9a0] sm:$0xff]
  %v476 = vld [vmem:[%s1 + $0x9a8] sm:$0xff]
  %v477 = vld [vmem:[%s1 + $0x9b0] sm:$0xff]
  %v478 = vld [vmem:[%s1 + $0x9b8] sm:$0xff]
  %v479 = vld [vmem:[%s1 + $0x9c0] sm:$0xff]
  %v480 = vld [vmem:[%s1 + $0x9c8] sm:$0xff]
  %v481 = vld [vmem:[%s1 + $0x9d0] sm:$0xff]
  %v482 = vld [vmem:[%s1 + $0x9d8] sm:$0xff]
  %v483 = vld [vmem:[%s1 + $0x9e0] sm:$0xff]
  %v484 = vld [vmem:[%s1 + $0x9e8] sm:$0xff]
  %v485 = vld [vmem:[%s1 + $0x9f0] sm:$0xff]
  %v486 = vld [vmem:[%s1 + $0x9f8] sm:$0xff]
  %v487 = vld [vmem:[%s1 + $0xa00] sm:$0xff]
  %v488 = vld [vmem:[%s1 + $0xa08] sm:$0xff]
  %v489 = vld [vmem:[%s1 + $0xa10] sm:$0xff]
  %v490 = vld [vmem:[%s1 + $0xa18] sm:$0xff]
  %v491 = vld [vmem:[%s1 + $0xa20] sm:$0xff]
  %v492 = vld [vmem:[%s1 + $0xa28] sm:$0xff]
  %v493 = vld [vmem:[%s1 + $0xa30] sm:$0xff]
  %v494 = vld [vmem:[%s1 + $0xa38] sm:$0xff]
  %v495 = vld [vmem:[%s1 + $0xa40] sm:$0xff]
  %v496 = vld [vmem:[%s1 + $0xa48] sm:$0xff]
  %v497 = vld [vmem:[%s1 + $0xa50] sm:$0xff]
  %v498 = vld [vmem:[%s1 + $0xa58] sm:$0xff]
  %v499 = vld [vmem:[%s1 + $0xa60] sm:$0xff]
  %v500 = vld [vmem:[%s1 + $0xa68] sm:$0xff]
  %v501 = vld [vmem:[%s1 + $0xa70] sm:$0xff]
  %v502 = vld [vmem:[%s1 + $0xa78] sm:$0xff]
  %v503 = vld [vmem:[%s1 + $0xa80] sm:$0xff]
  %v504 = vld [vmem:[%s1 + $0xa88] sm:$0xff]
  %v505 = vld [vmem:[%s1 + $0xa90] sm:$0xff]
  %v506 = vld [vmem:[%s1 + $0xa98] sm:$0xff]
  %v507 = vld [vmem:[%s1 + $0xaa0] sm:$0xff]
  %v508 = vld [vmem:[%s1 + $0xaa8] sm:$0xff]
  %v509 = vld [vmem:[%s1 + $0xab0] sm:$0xff]
  %v510 = vld [vmem:[%s1 + $0xab8] sm:$0xff]
  %v511 = vld [vmem:[%s1 + $0xac0] sm:$0xff]
  %v512 = vld [vmem:[%s1 + $0xac8] sm:$0xff]
  %v513 = vld [vmem:[%s1 + $0xad0] sm:$0xff]
  %v514 = vld [vmem:[%s1 + $0xad8] sm:$0xff]
  %v515 = vld [vmem:[%s1 + $0xae0] sm:$0xff]
  %v516 = vld [vmem:[%s1 + $0xae8] sm:$0xff]
  %v517 = vld [vmem:[%s1 + $0xaf0] sm:$0xff]
  %v518 = vld [vmem:[%s1 + $0xaf8] sm:$0xff]
  %v519 = vld [vmem:[%s1 + $0xb00] sm:$0xff]
  %v520 = vld [vmem:[%s1 + $0xb08] sm:$0xff]
  %v521 = vld [vmem:[%s1 + $0xb10] sm:$0xff]
  %v522 = vld [vmem:[%s1 + $0xb18] sm:$0xff]
  %v523 = vld [vmem:[%s1 + $0xb20] sm:$0xff]
  %v524 = vld [vmem:[%s1 + $0xb28] sm:$0xff]
  %v525 = vld [vmem:[%s1 + $0xb30] sm:$0xff]
  %v526 = vld [vmem:[%s1 + $0xb38] sm:$0xff]
  %v527 = vld [vmem:[%s1 + $0xb40] sm:$0xff]
  %v528 = vld [vmem:[%s1 + $0xb48] sm:$0xff]
  %v529 = vld [vmem:[%s1 + $0xb50] sm:$0xff]
  %v530 = vld [vmem:[%s1 + $0xb58] sm:$0xff]
  %v531 = vld [vmem:[%s1 + $0xb60] sm:$0xff]
  %v532 = vld [vmem:[%s1 + $0xb68] sm:$0xff]
  %v533 = vld [vmem:[%s1 + $0xb70] sm:$0xff]
  %v534 = vld [vmem:[%s1 + $0xb78] sm:$0xff]
  %v535 = vld [vmem:[%s1 + $0xb80] sm:$0xff]
  %v536 = vld [vmem:[%s1 + $0xb88] sm:$0xff]
  %v537 = vld [vmem:[%s1 + $0xb90] sm:$0xff]
  %v538 = vld [vmem:[%s1 + $0xb98] sm:$0xff]
  %v539 = vld [vmem:[%s1 + $0xba0] sm:$0xff]
  %v540 = vld [vmem:[%s1 + $0xba8] sm:$0xff]
  %v541 = vld [vmem:[%s1 + $0xbb0] sm:$0xff]
  %v542 = vld [vmem:[%s1 + $0xbb8] sm:$0xff]
  %v543 = vld [vmem:[%s1 + $0xbc0] sm:$0xff]
  %v544 = vld [vmem:[%s1 + $0xbc8] sm:$0xff]
  %v545 = vld [vmem:[%s1 + $0xbd0] sm:$0xff]
  %v546 = vld [vmem:[%s1 + $0xbd8] sm:$0xff]
  %v547 = vld [vmem:[%s1 + $0xbe0] sm:$0xff]
  %v548 = vld [vmem:[%s1 + $0xbe8] sm:$0xff]
  %v549 = vld [vmem:[%s1 + $0xbf0] sm:$0xff]
  %v550 = vld [vmem:[%s1 + $0xbf8] sm:$0xff]
  %v551 = vld [vmem:[%s1 + $0xc00] sm:$0xff]
  %v552 = vld [vmem:[%s1 + $0xc08] sm:$0xff]
  %v553 = vld [vmem:[%s1 + $0xc10] sm:$0xff]
  %v554 = vld [vmem:[%s1 + $0xc18] sm:$0xff]
  %v555 = vld [vmem:[%s1 + $0xc20] sm:$0xff]
  %v556 = vld [vmem:[%s1 + $0xc28] sm:$0xff]
  %v557 = vld [vmem:[%s1 + $0xc30] sm:$0xff]
  %v558 = vld [vmem:[%s1 + $0xc38] sm:$0xff]
  %v559 = vld [vmem:[%s1 + $0xc40] sm:$0xff]
  %v560 = vld [vmem:[%s1 + $0xc48] sm:$0xff]
  %v561 = vld [vmem:[%s1 + $0xc50] sm:$0xff]
  %v562 = vld [vmem:[%s1 + $0xc58] sm:$0xff]
  %v563 = vld [vmem:[%s1 + $0xc60] sm:$0xff]
  %v564 = vld [vmem:[%s1 + $0xc68] sm:$0xff]
  %v565 = vld [vmem:[%s1 + $0xc70] sm:$0xff]
  %v566 = vld [vmem:[%s1 + $0xc78] sm:$0xff]
  %v567 = vld [vmem:[%s1 + $0xc80] sm:$0xff]
  %v568 = vld [vmem:[%s1 + $0xc88] sm:$0xff]
  %v569 = vld [vmem:[%s1 + $0xc90] sm:$0xff]
  %v570 = vld [vmem:[%s1 + $0xc98] sm:$0xff]
  %v571 = vld [vmem:[%s1 + $0xca0] sm:$0xff]
  %v572 = vld [vmem:[%s1 + $0xca8] sm:$0xff]
  %v573 = vld [vmem:[%s1 + $0xcb0] sm:$0xff]
  %v574 = vld [vmem:[%s1 + $0xcb8] sm:$0xff]
  %v575 = vld [vmem:[%s1 + $0xcc0] sm:$0xff]
  %v576 = vld [vmem:[%s1 + $0xcc8] sm:$0xff]
  %v577 = vld [vmem:[%s1 + $0xcd0] sm:$0xff]
  %v578 = vld [vmem:[%s1 + $0xcd8] sm:$0xff]
  %v579 = vld [vmem:[%s1 + $0xce0] sm:$0xff]
  %v580 = vld [vmem:[%s1 + $0xce8] sm:$0xff]
  %v581 = vld [vmem:[%s1 + $0xcf0] sm:$0xff]
  %v582 = vld [vmem:[%s1 + $0xcf8] sm:$0xff]
  %v583 = vld [vmem:[%s1 + $0xd00] sm:$0xff]
  %v584 = vld [vmem:[%s1 + $0xd08] sm:$0xff]
  %v585 = vld [vmem:[%s1 + $0xd10] sm:$0xff]
  %v586 = vld [vmem:[%s1 + $0xd18] sm:$0xff]
  %v587 = vld [vmem:[%s1 + $0xd20] sm:$0xff]
  %v588 = vld [vmem:[%s1 + $0xd28] sm:$0xff]
  %v589 = vld [vmem:[%s1 + $0xd30] sm:$0xff]
  %v590 = vld [vmem:[%s1 + $0xd38] sm:$0xff]
  %v591 = vld [vmem:[%s1 + $0xd40] sm:$0xff]
  %v592 = vld [vmem:[%s1 + $0xd48] sm:$0xff]
  %v593 = vld [vmem:[%s1 + $0xd50] sm:$0xff]
  %v594 = vld [vmem:[%s1 + $0xd58] sm:$0xff]
  %v595 = vld [vmem:[%s1 + $0xd60] sm:$0xff]
  %v596 = vld [vmem:[%s1 + $0xd68] sm:$0xff]
  %v597 = vld [vmem:[%s1 + $0xd70] sm:$0xff]
  %v598 = vld [vmem:[%s1 + $0xd78] sm:$0xff]
  %v599 = vld [vmem:[%s1 + $0xd80] sm:$0xff]
  %v600 = vld [vmem:[%s1 + $0xd88] sm:$0xff]
  %v601 = vld [vmem:[%s1 + $0xd90] sm:$0xff]
  %v602 = vld [vmem:[%s1 + $0xd98] sm:$0xff]
  %v603 = vld [vmem:[%s1 + $0xda0] sm:$0xff]
  %v604 = vld [vmem:[%s1 + $0xda8] sm:$0xff]
  %v605 = vld [vmem:[%s1 + $0xdb0] sm:$0xff]
  %v606 = vld [vmem:[%s1 + $0xdb8] sm:$0xff]
  %v607 = vld [vmem:[%s1 + $0xdc0] sm:$0xff]
  %v608 = vld [vmem:[%s1 + $0xdc8] sm:$0xff]
  %v609 = vld [vmem:[%s1 + $0xdd0] sm:$0xff]
  %v610 = vld [vmem:[%s1 + $0xdd8] sm:$0xff]
  %v611 = vld [vmem:[%s1 + $0xde0] sm:$0xff]
  %v612 = vld [vmem:[%s1 + $0xde8] sm:$0xff]
  %v613 = vld [vmem:[%s1 + $0xdf0] sm:$0xff]
  %v614 = vld [vmem:[%s1 + $0xdf8] sm:$0xff]
  %v615 = vld [vmem:[%s1 + $0xe00] sm:$0xff]
  %v616 = vld [vmem:[%s1 + $0xe08] sm:$0xff]
  %v617 = vld [vmem:[%s1 + $0xe10] sm:$0xff]
  %v618 = vld [vmem:[%s1 + $0xe18] sm:$0xff]
  %v619 = vld [vmem:[%s1 + $0xe20] sm:$0xff]
  %v620 = vld [vmem:[%s1 + $0xe28] sm:$0xff]
  %v621 = vld [vmem:[%s1 + $0xe30] sm:$0xff]
  %v622 = vld [vmem:[%s1 + $0xe38] sm:$0xff]
  %v623 = vld [vmem:[%s1 + $0xe40] sm:$0xff]
  %v624 = vld [vmem:[%s1 + $0xe48] sm:$0xff]
  %v625 = vld [vmem:[%s1 + $0xe50] sm:$0xff]
  %v626 = vld [vmem:[%s1 + $0xe58] sm:$0xff]
  %v627 = vld [vmem:[%s1 + $0xe60] sm:$0xff]
  %v628 = vld [vmem:[%s1 + $0xe68] sm:$0xff]
  %v629 = vld [vmem:[%s1 + $0xe70] sm:$0xff]
  %v630 = vld [vmem:[%s1 + $0xe78] sm:$0xff]
  %v631 = vld [vmem:[%s1 + $0xe80] sm:$0xff]
  %v632 = vld [vmem:[%s1 + $0xe88] sm:$0xff]
  %v633 = vld [vmem:[%s1 + $0xe90] sm:$0xff]
  %v634 = vld [vmem:[%s1 + $0xe98] sm:$0xff]
  %v635 = vld [vmem:[%s1 + $0xea0] sm:$0xff]
  %v636 = vld [vmem:[%s1 + $0xea8] sm:$0xff]
  %v637 = vld [vmem:[%s1 + $0xeb0] sm:$0xff]
  %v638 = vld [vmem:[%s1 + $0xeb8] sm:$0xff]
  %v639 = vld [vmem:[%s1 + $0xec0] sm:$0xff]
  %v640 = vld [vmem:[%s1 + $0xec8] sm:$0xff]
  %v641 = vld [vmem:[%s1 + $0xed0] sm:$0xff]
  %v642 = vld [vmem:[%s1 + $0xed8] sm:$0xff]
  %v643 = vld [vmem:[%s1 + $0xee0] sm:$0xff]
  %v644 = vld [vmem:[%s1 + $0xee8] sm:$0xff]
  %v645 = vld [vmem:[%s1 + $0xef0] sm:$0xff]
  %v646 = vld [vmem:[%s1 + $0xef8] sm:$0xff]
  %v647 = vld [vmem:[%s1 + $0xf00] sm:$0xff]
  %v648 = vld [vmem:[%s1 + $0xf08] sm:$0xff]
  %v649 = vld [vmem:[%s1 + $0xf10] sm:$0xff]
  %v650 = vld [vmem:[%s1 + $0xf18] sm:$0xff]
  %v651 = vld [vmem:[%s1 + $0xf20] sm:$0xff]
  %v652 = vld [vmem:[%s1 + $0xf28] sm:$0xff]
  %v653 = vld [vmem:[%s1 + $0xf30] sm:$0xff]
  %v654 = vld [vmem:[%s1 + $0xf38] sm:$0xff]
  %v655 = vld [vmem:[%s1 + $0xf40] sm:$0xff]
  %v656 = vld [vmem:[%s1 + $0xf48] sm:$0xff]
  %v657 = vld [vmem:[%s1 + $0xf50] sm:$0xff]
  %v658 = vld [vmem:[%s1 + $0xf58] sm:$0xff]
  %v659 = vld [vmem:[%s1 + $0xf60] sm:$0xff]
  %v660 = vld [vmem:[%s1 + $0xf68] sm:$0xff]
  %v661 = vld [vmem:[%s1 + $0xf70] sm:$0xff]
  %v662 = vld [vmem:[%s1 + $0xf78] sm:$0xff]
  %v663 = vld [vmem:[%s1 + $0xf80] sm:$0xff]
  %v664 = vld [vmem:[%s1 + $0xf88] sm:$0xff]
  %v665 = vld [vmem:[%s1 + $0xf90] sm:$0xff]
  %v666 = vld [vmem:[%s1 + $0xf98] sm:$0xff]
  %v667 = vld [vmem:[%s1 + $0xfa0] sm:$0xff]
  %v668 = vld [vmem:[%s1 + $0xfa8] sm:$0xff]
  %v669 = vld [vmem:[%s1 + $0xfb0] sm:$0xff]
  %v670 = vld [vmem:[%s1 + $0xfb8] sm:$0xff]
  %v671 = vld [vmem:[%s1 + $0xfc0] sm:$0xff]
  %v672 = vld [vmem:[%s1 + $0xfc8] sm:$0xff]
  %v673 = vld [vmem:[%s1 + $0xfd0] sm:$0xff]
  %v674 = vld [vmem:[%s1 + $0xfd8] sm:$0xff]
  %v675 = vld [vmem:[%s1 + $0xfe0] sm:$0xff]
  %v676 = vld [vmem:[%s1 + $0xfe8] sm:$0xff]
  %v677 = vld [vmem:[%s1 + $0xff0] sm:$0xff]
  %v678 = vld [vmem:[%s1 + $0xff8] sm:$0xff]
  %v679 = vld [vmem:[%s1 + $0x1000] sm:$0xff]
  %v680 = vld [vmem:[%s1 + $0x1008] sm:$0xff]
  %v681 = vld [vmem:[%s1 + $0x1010] sm:$0xff]
  %v682 = vld [vmem:[%s1 + $0x1018] sm:$0xff]
  %v683 = vld [vmem:[%s1 + $0x1020] sm:$0xff]
  %v684 = vld [vmem:[%s1 + $0x1028] sm:$0xff]
  %v685 = vld [vmem:[%s1 + $0x1030] sm:$0xff]
  %v686 = vld [vmem:[%s1 + $0x1038] sm:$0xff]
  %v687 = vld [vmem:[%s1 + $0x1040] sm:$0xff]
  %v688 = vld [vmem:[%s1 + $0x1048] sm:$0xff]
  %v689 = vld [vmem:[%s1 + $0x1050] sm:$0xff]
  %v690 = vld [vmem:[%s1 + $0x1058] sm:$0xff]
  %v691 = vld [vmem:[%s1 + $0x1060] sm:$0xff]
  %v692 = vld [vmem:[%s1 + $0x1068] sm:$0xff]
  %v693 = vld [vmem:[%s1 + $0x1070] sm:$0xff]
  %v694 = vld [vmem:[%s1 + $0x1078] sm:$0xff]
  %v695 = vld [vmem:[%s1 + $0x1080] sm:$0xff]
  %v696 = vld [vmem:[%s1 + $0x1088] sm:$0xff]
  %v697 = vld [vmem:[%s1 + $0x1090] sm:$0xff]
  %v698 = vld [vmem:[%s1 + $0x1098] sm:$0xff]
  %v699 = vld [vmem:[%s1 + $0x10a0] sm:$0xff]
  %v700 = vld [vmem:[%s1 + $0x10a8] sm:$0xff]
  %v701 = vld [vmem:[%s1 + $0x10b0] sm:$0xff]
  %v702 = vld [vmem:[%s1 + $0x10b8] sm:$0xff]
  %v703 = vld [vmem:[%s1 + $0x10c0] sm:$0xff]
  %v704 = vld [vmem:[%s1 + $0x10c8] sm:$0xff]
  %v705 = vld [vmem:[%s1 + $0x10d0] sm:$0xff]
  %v706 = vld [vmem:[%s1 + $0x10d8] sm:$0xff]
  %v707 = vld [vmem:[%s1 + $0x10e0] sm:$0xff]
  %v708 = vld [vmem:[%s1 + $0x10e8] sm:$0xff]
  %v709 = vld [vmem:[%s1 + $0x10f0] sm:$0xff]
  %v710 = vld [vmem:[%s1 + $0x10f8] sm:$0xff]
  %v711 = vld [vmem:[%s1 + $0x1100] sm:$0xff]
  %v712 = vld [vmem:[%s1 + $0x1108] sm:$0xff]
  %v713 = vld [vmem:[%s1 + $0x1110] sm:$0xff]
  %v714 = vld [vmem:[%s1 + $0x1118] sm:$0xff]
  %v715 = vld [vmem:[%s1 + $0x1120] sm:$0xff]
  %v716 = vld [vmem:[%s1 + $0x1128] sm:$0xff]
  %v717 = vld [vmem:[%s1 + $0x1130] sm:$0xff]
  %v718 = vld [vmem:[%s1 + $0x1138] sm:$0xff]
  %v719 = vld [vmem:[%s1 + $0x1140] sm:$0xff]
  %v720 = vld [vmem:[%s1 + $0x1148] sm:$0xff]
  %v721 = vld [vmem:[%s1 + $0x1150] sm:$0xff]
  %v722 = vld [vmem:[%s1 + $0x1158] sm:$0xff]
  %v723 = vld [vmem:[%s1 + $0x1160] sm:$0xff]
  %v724 = vld [vmem:[%s1 + $0x1168] sm:$0xff]
  %v725 = vld [vmem:[%s1 + $0x1170] sm:$0xff]
  %v726 = vld [vmem:[%s1 + $0x1178] sm:$0xff]
  %v727 = vld [vmem:[%s1 + $0x1180] sm:$0xff]
  %v728 = vld [vmem:[%s1 + $0x1188] sm:$0xff]
  %v729 = vld [vmem:[%s1 + $0x1190] sm:$0xff]
  %v730 = vld [vmem:[%s1 + $0x1198] sm:$0xff]
  %v731 = vld [vmem:[%s1 + $0x11a0] sm:$0xff]
  %v732 = vld [vmem:[%s1 + $0x11a8] sm:$0xff]
  %v733 = vld [vmem:[%s1 + $0x11b0] sm:$0xff]
  %v734 = vld [vmem:[%s1 + $0x11b8] sm:$0xff]
  %v735 = vld [vmem:[%s1 + $0x11c0] sm:$0xff]
  %v736 = vld [vmem:[%s1 + $0x11c8] sm:$0xff]
  %v737 = vld [vmem:[%s1 + $0x11d0] sm:$0xff]
  %v738 = vld [vmem:[%s1 + $0x11d8] sm:$0xff]
  %v739 = vld [vmem:[%s1 + $0x11e0] sm:$0xff]
  %v740 = vld [vmem:[%s1 + $0x11e8] sm:$0xff]
  %v741 = vld [vmem:[%s1 + $0x11f0] sm:$0xff]
  %v742 = vld [vmem:[%s1 + $0x11f8] sm:$0xff]
  %v743 = vld [vmem:[%s1 + $0x1200] sm:$0xff]
  %v744 = vld [vmem:[%s1 + $0x1208] sm:$0xff]
  %v745 = vld [vmem:[%s1 + $0x1210] sm:$0xff]
  %v746 = vld [vmem:[%s1 + $0x1218] sm:$0xff]
  %v747 = vld [vmem:[%s1 + $0x1220] sm:$0xff]
  %v748 = vld [vmem:[%s1 + $0x1228] sm:$0xff]
  %v749 = vld [vmem:[%s1 + $0x1230] sm:$0xff]
  %v750 = vld [vmem:[%s1 + $0x1238] sm:$0xff]
  %v751 = vld [vmem:[%s1 + $0x1240] sm:$0xff]
  %v752 = vld [vmem:[%s1 + $0x1248] sm:$0xff]
  %v753 = vld [vmem:[%s1 + $0x1250] sm:$0xff]
  %v754 = vld [vmem:[%s1 + $0x1258] sm:$0xff]
  %v755 = vld [vmem:[%s1 + $0x1260] sm:$0xff]
  %v756 = vld [vmem:[%s1 + $0x1268] sm:$0xff]
  %v757 = vld [vmem:[%s1 + $0x1270] sm:$0xff]
  %v758 = vld [vmem:[%s1 + $0x1278] sm:$0xff]
  %v759 = vld [vmem:[%s1 + $0x1280] sm:$0xff]
  %v760 = vld [vmem:[%s1 + $0x1288] sm:$0xff]
  %v761 = vld [vmem:[%s1 + $0x1290] sm:$0xff]
  %v762 = vld [vmem:[%s1 + $0x1298] sm:$0xff]
  %v763 = vld [vmem:[%s1 + $0x12a0] sm:$0xff]
  %v764 = vld [vmem:[%s1 + $0x12a8] sm:$0xff]
  %v765 = vld [vmem:[%s1 + $0x12b0] sm:$0xff]
  %v766 = vld [vmem:[%s1 + $0x12b8] sm:$0xff]
  %v767 = vld [vmem:[%s1 + $0x12c0] sm:$0xff]
  %v768 = vld [vmem:[%s1 + $0x12c8] sm:$0xff]
  %v769 = vld [vmem:[%s1 + $0x12d0] sm:$0xff]
  %v770 = vld [vmem:[%s1 + $0x12d8] sm:$0xff]
  %v771 = vld [vmem:[%s1 + $0x12e0] sm:$0xff]
  %v772 = vld [vmem:[%s1 + $0x12e8] sm:$0xff]
  %v773 = vld [vmem:[%s1 + $0x12f0] sm:$0xff]
  %v774 = vld [vmem:[%s1 + $0x12f8] sm:$0xff]
  %v775 = vld [vmem:[%s1 + $0x1300] sm:$0xff]
  %v776 = vld [vmem:[%s1 + $0x1308] sm:$0xff]
  %v777 = vld [vmem:[%s1 + $0x1310] sm:$0xff]
  %v778 = vld [vmem:[%s1 + $0x1318] sm:$0xff]
  %v779 = vld [vmem:[%s1 + $0x1320] sm:$0xff]
  %v780 = vld [vmem:[%s1 + $0x1328] sm:$0xff]
  %v781 = vld [vmem:[%s1 + $0x1330] sm:$0xff]
  %v782 = vld [vmem:[%s1 + $0x1338] sm:$0xff]
  %v783 = vld [vmem:[%s1 + $0x1340] sm:$0xff]
  %v784 = vld [vmem:[%s1 + $0x1348] sm:$0xff]
  %v785 = vld [vmem:[%s1 + $0x1350] sm:$0xff]
  %v786 = vld [vmem:[%s1 + $0x1358] sm:$0xff]
  %v787 = vld [vmem:[%s1 + $0x1360] sm:$0xff]
  %v788 = vld [vmem:[%s1 + $0x1368] sm:$0xff]
  %v789 = vld [vmem:[%s1 + $0x1370] sm:$0xff]
  %v790 = vld [vmem:[%s1 + $0x1378] sm:$0xff]
  %v791 = vld [vmem:[%s1 + $0x1380] sm:$0xff]
  %v792 = vld [vmem:[%s1 + $0x1388] sm:$0xff]
  %v793 = vld [vmem:[%s1 + $0x1390] sm:$0xff]
  %v794 = vld [vmem:[%s1 + $0x1398] sm:$0xff]
  %v795 = vld [vmem:[%s1 + $0x13a0] sm:$0xff]
  %v796 = vld [vmem:[%s1 + $0x13a8] sm:$0xff]
  %v797 = vld [vmem:[%s1 + $0x13b0] sm:$0xff]
  %v798 = vld [vmem:[%s1 + $0x13b8] sm:$0xff]
  %v799 = vld [vmem:[%s1 + $0x13c0] sm:$0xff]
  %v800 = vld [vmem:[%s1 + $0x13c8] sm:$0xff]
  %v801 = vld [vmem:[%s1 + $0x13d0] sm:$0xff]
  %v802 = vld [vmem:[%s1 + $0x13d8] sm:$0xff]
  %v803 = vld [vmem:[%s1 + $0x13e0] sm:$0xff]
  %v804 = vld [vmem:[%s1 + $0x13e8] sm:$0xff]
  %v805 = vld [vmem:[%s1 + $0x13f0] sm:$0xff]
  %v806 = vld [vmem:[%s1 + $0x13f8] sm:$0xff]
  %v807 = vld [vmem:[%s1 + $0x1400] sm:$0xff]
  %v808 = vld [vmem:[%s1 + $0x1408] sm:$0xff]
  %v809 = vld [vmem:[%s1 + $0x1410] sm:$0xff]
  %v810 = vld [vmem:[%s1 + $0x1418] sm:$0xff]
  %v811 = vld [vmem:[%s1 + $0x1420] sm:$0xff]
  %v812 = vld [vmem:[%s1 + $0x1428] sm:$0xff]
  %v813 = vld [vmem:[%s1 + $0x1430] sm:$0xff]
  %v814 = vld [vmem:[%s1 + $0x1438] sm:$0xff]
  %v815 = vld [vmem:[%s1 + $0x1440] sm:$0xff]
  %v816 = vld [vmem:[%s1 + $0x1448] sm:$0xff]
  %v817 = vld [vmem:[%s1 + $0x1450] sm:$0xff]
  %v818 = vld [vmem:[%s1 + $0x1458] sm:$0xff]
  %v819 = vld [vmem:[%s1 + $0x1460] sm:$0xff]
  %v820 = vld [vmem:[%s1 + $0x1468] sm:$0xff]
  %v821 = vld [vmem:[%s1 + $0x1470] sm:$0xff]
  %v822 = vld [vmem:[%s1 + $0x1478] sm:$0xff]
  %v823 = vld [vmem:[%s1 + $0x1480] sm:$0xff]
  %v824 = vld [vmem:[%s1 + $0x1488] sm:$0xff]
  %v825 = vld [vmem:[%s1 + $0x1490] sm:$0xff]
  %v826 = vld [vmem:[%s1 + $0x1498] sm:$0xff]
  %v827 = vld [vmem:[%s1 + $0x14a0] sm:$0xff]
  %v828 = vld [vmem:[%s1 + $0x14a8] sm:$0xff]
  %v829 = vld [vmem:[%s1 + $0x14b0] sm:$0xff]
  %v830 = vld [vmem:[%s1 + $0x14b8] sm:$0xff]
  %v831 = vld [vmem:[%s1 + $0x14c0] sm:$0xff]
  %v832 = vld [vmem:[%s1 + $0x14c8] sm:$0xff]
  %v833 = vld [vmem:[%s1 + $0x14d0] sm:$0xff]
  %v834 = vld [vmem:[%s1 + $0x14d8] sm:$0xff]
  %v835 = vld [vmem:[%s1 + $0x14e0] sm:$0xff]
  %v836 = vld [vmem:[%s1 + $0x14e8] sm:$0xff]
  %v837 = vld [vmem:[%s1 + $0x14f0] sm:$0xff]
  %v838 = vld [vmem:[%s1 + $0x14f8] sm:$0xff]
  %v839 = vld [vmem:[%s1 + $0x1500] sm:$0xff]
  %v840 = vld [vmem:[%s1 + $0x1508] sm:$0xff]
  %v841 = vld [vmem:[%s1 + $0x1510] sm:$0xff]
  %v842 = vld [vmem:[%s1 + $0x1518] sm:$0xff]
  %v843 = vld [vmem:[%s1 + $0x1520] sm:$0xff]
  %v844 = vld [vmem:[%s1 + $0x1528] sm:$0xff]
  %v845 = vld [vmem:[%s1 + $0x1530] sm:$0xff]
  %v846 = vld [vmem:[%s1 + $0x1538] sm:$0xff]
  %v847 = vld [vmem:[%s1 + $0x1540] sm:$0xff]
  %v848 = vld [vmem:[%s1 + $0x1548] sm:$0xff]
  %v849 = vld [vmem:[%s1 + $0x1550] sm:$0xff]
  %v850 = vld [vmem:[%s1 + $0x1558] sm:$0xff]
  %v851 = vld [vmem:[%s1 + $0x1560] sm:$0xff]
  %v852 = vld [vmem:[%s1 + $0x1568] sm:$0xff]
  %v853 = vld [vmem:[%s1 + $0x1570] sm:$0xff]
  %v854 = vld [vmem:[%s1 + $0x1578] sm:$0xff]
  %v855 = vld [vmem:[%s1 + $0x1580] sm:$0xff]
  %v856 = vld [vmem:[%s1 + $0x1588] sm:$0xff]
  %v857 = vld [vmem:[%s1 + $0x1590] sm:$0xff]
  %v858 = vld [vmem:[%s1 + $0x1598] sm:$0xff]
  %v859 = vld [vmem:[%s1 + $0x15a0] sm:$0xff]
  %v860 = vld [vmem:[%s1 + $0x15a8] sm:$0xff]
  %v861 = vld [vmem:[%s1 + $0x15b0] sm:$0xff]
  %v862 = vld [vmem:[%s1 + $0x15b8] sm:$0xff]
  %v863 = vld [vmem:[%s1 + $0x15c0] sm:$0xff]
  %v864 = vld [vmem:[%s1 + $0x15c8] sm:$0xff]
  %v865 = vld [vmem:[%s1 + $0x15d0] sm:$0xff]
  %v866 = vld [vmem:[%s1 + $0x15d8] sm:$0xff]
  %v867 = vld [vmem:[%s1 + $0x15e0] sm:$0xff]
  %v868 = vld [vmem:[%s1 + $0x15e8] sm:$0xff]
  %v869 = vld [vmem:[%s1 + $0x15f0] sm:$0xff]
  %v870 = vld [vmem:[%s1 + $0x15f8] sm:$0xff]
  %v871 = vld [vmem:[%s1 + $0x1600] sm:$0xff]
  %v872 = vld [vmem:[%s1 + $0x1608] sm:$0xff]
  %v873 = vld [vmem:[%s1 + $0x1610] sm:$0xff]
  %v874 = vld [vmem:[%s1 + $0x1618] sm:$0xff]
  %v875 = vld [vmem:[%s1 + $0x1620] sm:$0xff]
  %v876 = vld [vmem:[%s1 + $0x1628] sm:$0xff]
  %v877 = vld [vmem:[%s1 + $0x1630] sm:$0xff]
  %v878 = vld [vmem:[%s1 + $0x1638] sm:$0xff]
  %v879 = vld [vmem:[%s1 + $0x1640] sm:$0xff]
  %v880 = vld [vmem:[%s1 + $0x1648] sm:$0xff]
  %v881 = vld [vmem:[%s1 + $0x1650] sm:$0xff]
  %v882 = vld [vmem:[%s1 + $0x1658] sm:$0xff]
  %v883 = vld [vmem:[%s1 + $0x1660] sm:$0xff]
  %v884 = vld [vmem:[%s1 + $0x1668] sm:$0xff]
  %v885 = vld [vmem:[%s1 + $0x1670] sm:$0xff]
  %v886 = vld [vmem:[%s1 + $0x1678] sm:$0xff]
  %v887 = vld [vmem:[%s1 + $0x1680] sm:$0xff]
  %v888 = vld [vmem:[%s1 + $0x1688] sm:$0xff]
  %v889 = vld [vmem:[%s1 + $0x1690] sm:$0xff]
  %v890 = vld [vmem:[%s1 + $0x1698] sm:$0xff]
  %v891 = vld [vmem:[%s1 + $0x16a0] sm:$0xff]
  %v892 = vld [vmem:[%s1 + $0x16a8] sm:$0xff]
  %v893 = vld [vmem:[%s1 + $0x16b0] sm:$0xff]
  %v894 = vld [vmem:[%s1 + $0x16b8] sm:$0xff]
  %v895 = vld [vmem:[%s1 + $0x16c0] sm:$0xff]
  %v896 = vld [vmem:[%s1 + $0x16c8] sm:$0xff]
  %v897 = vld [vmem:[%s1 + $0x16d0] sm:$0xff]
  %v898 = vld [vmem:[%s1 + $0x16d8] sm:$0xff]
  %v899 = vld [vmem:[%s1 + $0x16e0] sm:$0xff]
  %v900 = vld [vmem:[%s1 + $0x16e8] sm:$0xff]
  %v901 = vld [vmem:[%s1 + $0x16f0] sm:$0xff]
  %v902 = vld [vmem:[%s1 + $0x16f8] sm:$0xff]
  %v903 = vld [vmem:[%s1 + $0x1700] sm:$0xff]
  %v904 = vld [vmem:[%s1 + $0x1708] sm:$0xff]
  %v905 = vld [vmem:[%s1 + $0x1710] sm:$0xff]
  %v906 = vld [vmem:[%s1 + $0x1718] sm:$0xff]
  %v907 = vld [vmem:[%s1 + $0x1720] sm:$0xff]
  %v908 = vld [vmem:[%s1 + $0x1728] sm:$0xff]
  %v909 = vld [vmem:[%s1 + $0x1730] sm:$0xff]
  %v910 = vld [vmem:[%s1 + $0x1738] sm:$0xff]
  %v911 = vld [vmem:[%s1 + $0x1740] sm:$0xff]
  %v912 = vld [vmem:[%s1 + $0x1748] sm:$0xff]
  %v913 = vld [vmem:[%s1 + $0x1750] sm:$0xff]
  %v914 = vld [vmem:[%s1 + $0x1758] sm:$0xff]
  %v915 = vld [vmem:[%s1 + $0x1760] sm:$0xff]
  %v916 = vld [vmem:[%s1 + $0x1768] sm:$0xff]
  %v917 = vld [vmem:[%s1 + $0x1770] sm:$0xff]
  %v918 = vld [vmem:[%s1 + $0x1778] sm:$0xff]
  %v919 = vld [vmem:[%s1 + $0x1780] sm:$0xff]
  %v920 = vld [vmem:[%s1 + $0x1788] sm:$0xff]
  %v921 = vld [vmem:[%s1 + $0x1790] sm:$0xff]
  %v922 = vld [vmem:[%s1 + $0x1798] sm:$0xff]
  %v923 = vld [vmem:[%s1 + $0x17a0] sm:$0xff]
  %v924 = vld [vmem:[%s1 + $0x17a8] sm:$0xff]
  %v925 = vld [vmem:[%s1 + $0x17b0] sm:$0xff]
  %v926 = vld [vmem:[%s1 + $0x17b8] sm:$0xff]
  %v927 = vld [vmem:[%s1 + $0x17c0] sm:$0xff]
  %v928 = vld [vmem:[%s1 + $0x17c8] sm:$0xff]
  %v929 = vld [vmem:[%s1 + $0x17d0] sm:$0xff]
  %v930 = vld [vmem:[%s1 + $0x17d8] sm:$0xff]
  %v931 = vld [vmem:[%s1 + $0x17e0] sm:$0xff]
  %v932 = vld [vmem:[%s1 + $0x17e8] sm:$0xff]
  %v933 = vld [vmem:[%s1 + $0x17f0] sm:$0xff]
  %v934 = vld [vmem:[%s1 + $0x17f8] sm:$0xff]
  %v935 = vld [vmem:[%s1 + $0x1800] sm:$0xff]
  %v936 = vld [vmem:[%s1 + $0x1808] sm:$0xff]
  %v937 = vld [vmem:[%s1 + $0x1810] sm:$0xff]
  %v938 = vld [vmem:[%s1 + $0x1818] sm:$0xff]
  %v939 = vld [vmem:[%s1 + $0x1820] sm:$0xff]
  %v940 = vld [vmem:[%s1 + $0x1828] sm:$0xff]
  %v941 = vld [vmem:[%s1 + $0x1830] sm:$0xff]
  %v942 = vld [vmem:[%s1 + $0x1838] sm:$0xff]
  %v943 = vld [vmem:[%s1 + $0x1840] sm:$0xff]
  %v944 = vld [vmem:[%s1 + $0x1848] sm:$0xff]
  %v945 = vld [vmem:[%s1 + $0x1850] sm:$0xff]
  %v946 = vld [vmem:[%s1 + $0x1858] sm:$0xff]
  %v947 = vld [vmem:[%s1 + $0x1860] sm:$0xff]
  %v948 = vld [vmem:[%s1 + $0x1868] sm:$0xff]
  %v949 = vld [vmem:[%s1 + $0x1870] sm:$0xff]
  %v950 = vld [vmem:[%s1 + $0x1878] sm:$0xff]
  %v951 = vld [vmem:[%s1 + $0x1880] sm:$0xff]
  %v952 = vld [vmem:[%s1 + $0x1888] sm:$0xff]
  %v953 = vld [vmem:[%s1 + $0x1890] sm:$0xff]
  %v954 = vld [vmem:[%s1 + $0x1898] sm:$0xff]
  %v955 = vld [vmem:[%s1 + $0x18a0] sm:$0xff]
  %v956 = vld [vmem:[%s1 + $0x18a8] sm:$0xff]
  %v957 = vld [vmem:[%s1 + $0x18b0] sm:$0xff]
  %v958 = vld [vmem:[%s1 + $0x18b8] sm:$0xff]
  %v959 = vld [vmem:[%s1 + $0x18c0] sm:$0xff]
  %v960 = vld [vmem:[%s1 + $0x18c8] sm:$0xff]
  %v961 = vld [vmem:[%s1 + $0x18d0] sm:$0xff]
  %v962 = vld [vmem:[%s1 + $0x18d8] sm:$0xff]
  %v963 = vld [vmem:[%s1 + $0x18e0] sm:$0xff]
  %v964 = vld [vmem:[%s1 + $0x18e8] sm:$0xff]
  %v965 = vld [vmem:[%s1 + $0x18f0] sm:$0xff]
  %v966 = vld [vmem:[%s1 + $0x18f8] sm:$0xff]
  %v967 = vld [vmem:[%s1 + $0x1900] sm:$0xff]
  %v968 = vld [vmem:[%s1 + $0x1908] sm:$0xff]
  %v969 = vld [vmem:[%s1 + $0x1910] sm:$0xff]
  %v970 = vld [vmem:[%s1 + $0x1918] sm:$0xff]
  %v971 = vld [vmem:[%s1 + $0x1920] sm:$0xff]
  %v972 = vld [vmem:[%s1 + $0x1928] sm:$0xff]
  %v973 = vld [vmem:[%s1 + $0x1930] sm:$0xff]
  %v974 = vld [vmem:[%s1 + $0x1938] sm:$0xff]
  %v975 = vld [vmem:[%s1 + $0x1940] sm:$0xff]
  %v976 = vld [vmem:[%s1 + $0x1948] sm:$0xff]
  %v977 = vld [vmem:[%s1 + $0x1950] sm:$0xff]
  %v978 = vld [vmem:[%s1 + $0x1958] sm:$0xff]
  %v979 = vld [vmem:[%s1 + $0x1960] sm:$0xff]
  %v980 = vld [vmem:[%s1 + $0x1968] sm:$0xff]
  %v981 = vld [vmem:[%s1 + $0x1970] sm:$0xff]
  %v982 = vld [vmem:[%s1 + $0x1978] sm:$0xff]
  %v983 = vld [vmem:[%s1 + $0x1980] sm:$0xff]
  %v984 = vld [vmem:[%s1 + $0x1988] sm:$0xff]
  %v985 = vld [vmem:[%s1 + $0x1990] sm:$0xff]
  %v986 = vld [vmem:[%s1 + $0x1998] sm:$0xff]
  %v987 = vld [vmem:[%s1 + $0x19a0] sm:$0xff]
  %v988 = vld [vmem:[%s1 + $0x19a8] sm:$0xff]
  %v989 = vld [vmem:[%s1 + $0x19b0] sm:$0xff]
  %v990 = vld [vmem:[%s1 + $0x19b8] sm:$0xff]
  %v991 = vld [vmem:[%s1 + $0x19c0] sm:$0xff]
  %v992 = vld [vmem:[%s1 + $0x19c8] sm:$0xff]
  %v993 = vld [vmem:[%s1 + $0x19d0] sm:$0xff]
  %v994 = vld [vmem:[%s1 + $0x19d8] sm:$0xff]
  %v995 = vld [vmem:[%s1 + $0x19e0] sm:$0xff]
  %v996 = vld [vmem:[%s1 + $0x19e8] sm:$0xff]
  %v997 = vld [vmem:[%s1 + $0x19f0] sm:$0xff]
  %v998 = vld [vmem:[%s1 + $0x19f8] sm:$0xff]
  %v999 = vld [vmem:[%s1 + $0x1a00] sm:$0xff]
  %v1000 = vld [vmem:[%s1 + $0x1a08] sm:$0xff]
  %v1001 = vld [vmem:[%s1 + $0x1a10] sm:$0xff]
  %v1002 = vld [vmem:[%s1 + $0x1a18] sm:$0xff]
  %v1003 = vld [vmem:[%s1 + $0x1a20] sm:$0xff]
  %v1004 = vld [vmem:[%s1 + $0x1a28] sm:$0xff]
  %v1005 = vld [vmem:[%s1 + $0x1a30] sm:$0xff]
  %v1006 = vld [vmem:[%s1 + $0x1a38] sm:$0xff]
  %v1007 = vld [vmem:[%s1 + $0x1a40] sm:$0xff]
  %v1008 = vld [vmem:[%s1 + $0x1a48] sm:$0xff]
  %v1009 = vld [vmem:[%s1 + $0x1a50] sm:$0xff]
  %v1010 = vld [vmem:[%s1 + $0x1a58] sm:$0xff]
  %v1011 = vld [vmem:[%s1 + $0x1a60] sm:$0xff]
  %v1012 = vld [vmem:[%s1 + $0x1a68] sm:$0xff]
  %v1013 = vld [vmem:[%s1 + $0x1a70] sm:$0xff]
  %v1014 = vld [vmem:[%s1 + $0x1a78] sm:$0xff]
  %v1015 = vld [vmem:[%s1 + $0x1a80] sm:$0xff]
  %v1016 = vld [vmem:[%s1 + $0x1a88] sm:$0xff]
  %v1017 = vld [vmem:[%s1 + $0x1a90] sm:$0xff]
  %v1018 = vld [vmem:[%s1 + $0x1a98] sm:$0xff]
  %v1019 = vld [vmem:[%s1 + $0x1aa0] sm:$0xff]
  %v1020 = vld [vmem:[%s1 + $0x1aa8] sm:$0xff]
  %v1021 = vld [vmem:[%s1 + $0x1ab0] sm:$0xff]
  %v1022 = vld [vmem:[%s1 + $0x1ab8] sm:$0xff]
  %v1023 = vld [vmem:[%s1 + $0x1ac0] sm:$0xff]
  %v1024 = vld [vmem:[%s1 + $0x1ac8] sm:$0xff]
  %v1025 = vld [vmem:[%s1 + $0x1ad0] sm:$0xff]
  %v1026 = vld [vmem:[%s1 + $0x1ad8] sm:$0xff]
  %v1027 = vld [vmem:[%s1 + $0x1ae0] sm:$0xff]
  %v1028 = vld [vmem:[%s1 + $0x1ae8] sm:$0xff]
  %v1029 = vld [vmem:[%s1 + $0x1af0] sm:$0xff]
  %v1030 = vld [vmem:[%s1 + $0x1af8] sm:$0xff]
  %v1031 = vld [vmem:[%s1 + $0x1b00] sm:$0xff]
  %v1032 = vld [vmem:[%s1 + $0x1b08] sm:$0xff]
  %v1033 = vld [vmem:[%s1 + $0x1b10] sm:$0xff]
  %v1034 = vld [vmem:[%s1 + $0x1b18] sm:$0xff]
  %v1035 = vld [vmem:[%s1 + $0x1b20] sm:$0xff]
  %v1036 = vld [vmem:[%s1 + $0x1b28] sm:$0xff]
  %v1037 = vld [vmem:[%s1 + $0x1b30] sm:$0xff]
  %v1038 = vld [vmem:[%s1 + $0x1b38] sm:$0xff]
  %v1039 = vld [vmem:[%s1 + $0x1b40] sm:$0xff]
  %v1040 = vld [vmem:[%s1 + $0x1b48] sm:$0xff]
  %v1041 = vld [vmem:[%s1 + $0x1b50] sm:$0xff]
  %v1042 = vld [vmem:[%s1 + $0x1b58] sm:$0xff]
  %v1043 = vld [vmem:[%s1 + $0x1b60] sm:$0xff]
  %v1044 = vld [vmem:[%s1 + $0x1b68] sm:$0xff]
  %v1045 = vld [vmem:[%s1 + $0x1b70] sm:$0xff]
  %v1046 = vld [vmem:[%s1 + $0x1b78] sm:$0xff]
  %v1047 = vld [vmem:[%s1 + $0x1b80] sm:$0xff]
  %v1048 = vld [vmem:[%s1 + $0x1b88] sm:$0xff]
  %v1049 = vld [vmem:[%s1 + $0x1b90] sm:$0xff]
  %v1050 = vld [vmem:[%s1 + $0x1b98] sm:$0xff]
  %v1051 = vld [vmem:[%s1 + $0x1ba0] sm:$0xff]
  %v1052 = vld [vmem:[%s1 + $0x1ba8] sm:$0xff]
  %v1053 = vld [vmem:[%s1 + $0x1bb0] sm:$0xff]
  %v1054 = vld [vmem:[%s1 + $0x1bb8] sm:$0xff]
  %v1055 = vld [vmem:[%s1 + $0x1bc0] sm:$0xff]
  %v1056 = vld [vmem:[%s1 + $0x1bc8] sm:$0xff]
  %v1057 = vld [vmem:[%s1 + $0x1bd0] sm:$0xff]
  %v1058 = vld [vmem:[%s1 + $0x1bd8] sm:$0xff]
  %v1059 = vld [vmem:[%s1 + $0x1be0] sm:$0xff]
  %v1060 = vld [vmem:[%s1 + $0x1be8] sm:$0xff]
  %v1061 = vld [vmem:[%s1 + $0x1bf0] sm:$0xff]
  %v1062 = vld [vmem:[%s1 + $0x1bf8] sm:$0xff]
  %v1063 = vld [vmem:[%s1 + $0x1c00] sm:$0xff]
  %v1064 = vld [vmem:[%s1 + $0x1c08] sm:$0xff]
  %v1065 = vld [vmem:[%s1 + $0x1c10] sm:$0xff]
  %v1066 = vld [vmem:[%s1 + $0x1c18] sm:$0xff]
  %v1967 = vunpack.c.l.b16 %v167
  %v1968 = vunpack.c.h.b16 %v167
  %v1969 = vunpack.c.l.b16 %v168
  %v1970 = vunpack.c.h.b16 %v168
  %v1971 = vunpack.c.l.b16 %v169
  %v1972 = vunpack.c.h.b16 %v169
  %v1973 = vunpack.c.l.b16 %v170
  %v1974 = vunpack.c.h.b16 %v170
  %v1975 = vunpack.c.l.b16 %v171
  %v1976 = vunpack.c.h.b16 %v171
  %v1977 = vunpack.c.l.b16 %v172
  %v1978 = vunpack.c.h.b16 %v172
  %v1979 = vunpack.c.l.b16 %v173
  %v1980 = vunpack.c.h.b16 %v173
  %v1981 = vunpack.c.l.b16 %v174
  %v1982 = vunpack.c.h.b16 %v174
  %v1983 = vunpack.c.l.b16 %v175
  %v1984 = vunpack.c.h.b16 %v175
  %v1985 = vunpack.c.l.b16 %v176
  %v1986 = vunpack.c.h.b16 %v176
  %v1987 = vunpack.c.l.b16 %v177
  %v1988 = vunpack.c.h.b16 %v177
  %v1989 = vunpack.c.l.b16 %v178
  %v1990 = vunpack.c.h.b16 %v178
  %v1991 = vunpack.c.l.b16 %v179
  %v1992 = vunpack.c.h.b16 %v179
  %v1993 = vunpack.c.l.b16 %v180
  %v1994 = vunpack.c.h.b16 %v180
  %v1995 = vunpack.c.l.b16 %v181
  %v1996 = vunpack.c.h.b16 %v181
  %v1997 = vunpack.c.l.b16 %v182
  %v1998 = vunpack.c.h.b16 %v182
  %v1999 = vunpack.c.l.b16 %v183
  %v2000 = vunpack.c.h.b16 %v183
  %v2001 = vunpack.c.l.b16 %v184
  %v2002 = vunpack.c.h.b16 %v184
  %v2003 = vunpack.c.l.b16 %v185
  %v2004 = vunpack.c.h.b16 %v185
  %v2005 = vunpack.c.l.b16 %v186
  %v2006 = vunpack.c.h.b16 %v186
  %v2007 = vunpack.c.l.b16 %v187
  %v2008 = vunpack.c.h.b16 %v187
  %v2009 = vunpack.c.l.b16 %v188
  %v2010 = vunpack.c.h.b16 %v188
  %v2011 = vunpack.c.l.b16 %v189
  %v2012 = vunpack.c.h.b16 %v189
  %v2013 = vunpack.c.l.b16 %v190
  %v2014 = vunpack.c.h.b16 %v190
  %v2015 = vunpack.c.l.b16 %v191
  %v2016 = vunpack.c.h.b16 %v191
  %v2017 = vunpack.c.l.b16 %v192
  %v2018 = vunpack.c.h.b16 %v192
  %v2019 = vunpack.c.l.b16 %v193
  %v2020 = vunpack.c.h.b16 %v193
  %v2021 = vunpack.c.l.b16 %v194
  %v2022 = vunpack.c.h.b16 %v194
  %v2023 = vunpack.c.l.b16 %v195
  %v2024 = vunpack.c.h.b16 %v195
  %v2025 = vunpack.c.l.b16 %v196
  %v2026 = vunpack.c.h.b16 %v196
  %v2027 = vunpack.c.l.b16 %v197
  %v2028 = vunpack.c.h.b16 %v197
  %v2029 = vunpack.c.l.b16 %v198
  %v2030 = vunpack.c.h.b16 %v198
  %v2031 = vunpack.c.l.b16 %v199
  %v2032 = vunpack.c.h.b16 %v199
  %v2033 = vunpack.c.l.b16 %v200
  %v2034 = vunpack.c.h.b16 %v200
  %v2035 = vunpack.c.l.b16 %v201
  %v2036 = vunpack.c.h.b16 %v201
  %v2037 = vunpack.c.l.b16 %v202
  %v2038 = vunpack.c.h.b16 %v202
  %v2039 = vunpack.c.l.b16 %v203
  %v2040 = vunpack.c.h.b16 %v203
  %v2041 = vunpack.c.l.b16 %v204
  %v2042 = vunpack.c.h.b16 %v204
  %v2043 = vunpack.c.l.b16 %v205
  %v2044 = vunpack.c.h.b16 %v205
  %v2045 = vunpack.c.l.b16 %v206
  %v2046 = vunpack.c.h.b16 %v206
  %v2047 = vunpack.c.l.b16 %v207
  %v2048 = vunpack.c.h.b16 %v207
  %v2049 = vunpack.c.l.b16 %v208
  %v2050 = vunpack.c.h.b16 %v208
  %v2051 = vunpack.c.l.b16 %v209
  %v2052 = vunpack.c.h.b16 %v209
  %v2053 = vunpack.c.l.b16 %v210
  %v2054 = vunpack.c.h.b16 %v210
  %v2055 = vunpack.c.l.b16 %v211
  %v2056 = vunpack.c.h.b16 %v211
  %v2057 = vunpack.c.l.b16 %v212
  %v2058 = vunpack.c.h.b16 %v212
  %v2059 = vunpack.c.l.b16 %v213
  %v2060 = vunpack.c.h.b16 %v213
  %v2061 = vunpack.c.l.b16 %v214
  %v2062 = vunpack.c.h.b16 %v214
  %v2063 = vunpack.c.l.b16 %v215
  %v2064 = vunpack.c.h.b16 %v215
  %v2065 = vunpack.c.l.b16 %v216
  %v2066 = vunpack.c.h.b16 %v216
  %v2067 = vunpack.c.l.b16 %v217
  %v2068 = vunpack.c.h.b16 %v217
  %v2069 = vunpack.c.l.b16 %v218
  %v2070 = vunpack.c.h.b16 %v218
  %v2071 = vunpack.c.l.b16 %v219
  %v2072 = vunpack.c.h.b16 %v219
  %v2073 = vunpack.c.l.b16 %v220
  %v2074 = vunpack.c.h.b16 %v220
  %v2075 = vunpack.c.l.b16 %v221
  %v2076 = vunpack.c.h.b16 %v221
  %v2077 = vunpack.c.l.b16 %v222
  %v2078 = vunpack.c.h.b16 %v222
  %v2079 = vunpack.c.l.b16 %v223
  %v2080 = vunpack.c.h.b16 %v223
  %v2081 = vunpack.c.l.b16 %v224
  %v2082 = vunpack.c.h.b16 %v224
  %v2083 = vunpack.c.l.b16 %v225
  %v2084 = vunpack.c.h.b16 %v225
  %v2085 = vunpack.c.l.b16 %v226
  %v2086 = vunpack.c.h.b16 %v226
  %v2087 = vunpack.c.l.b16 %v227
  %v2088 = vunpack.c.h.b16 %v227
  %v2089 = vunpack.c.l.b16 %v228
  %v2090 = vunpack.c.h.b16 %v228
  %v2091 = vunpack.c.l.b16 %v229
  %v2092 = vunpack.c.h.b16 %v229
  %v2093 = vunpack.c.l.b16 %v230
  %v2094 = vunpack.c.h.b16 %v230
  %v2095 = vunpack.c.l.b16 %v231
  %v2096 = vunpack.c.h.b16 %v231
  %v2097 = vunpack.c.l.b16 %v232
  %v2098 = vunpack.c.h.b16 %v232
  %v2099 = vunpack.c.l.b16 %v233
  %v2100 = vunpack.c.h.b16 %v233
  %v2101 = vunpack.c.l.b16 %v234
  %v2102 = vunpack.c.h.b16 %v234
  %v2103 = vunpack.c.l.b16 %v235
  %v2104 = vunpack.c.h.b16 %v235
  %v2105 = vunpack.c.l.b16 %v236
  %v2106 = vunpack.c.h.b16 %v236
  %v2107 = vunpack.c.l.b16 %v237
  %v2108 = vunpack.c.h.b16 %v237
  %v2109 = vunpack.c.l.b16 %v238
  %v2110 = vunpack.c.h.b16 %v238
  %v2111 = vunpack.c.l.b16 %v239
  %v2112 = vunpack.c.h.b16 %v239
  %v2113 = vunpack.c.l.b16 %v240
  %v2114 = vunpack.c.h.b16 %v240
  %v2115 = vunpack.c.l.b16 %v241
  %v2116 = vunpack.c.h.b16 %v241
  %v2117 = vunpack.c.l.b16 %v242
  %v2118 = vunpack.c.h.b16 %v242
  %v2119 = vunpack.c.l.b16 %v243
  %v2120 = vunpack.c.h.b16 %v243
  %v2121 = vunpack.c.l.b16 %v244
  %v2122 = vunpack.c.h.b16 %v244
  %v2123 = vunpack.c.l.b16 %v245
  %v2124 = vunpack.c.h.b16 %v245
  %v2125 = vunpack.c.l.b16 %v246
  %v2126 = vunpack.c.h.b16 %v246
  %v2127 = vunpack.c.l.b16 %v247
  %v2128 = vunpack.c.h.b16 %v247
  %v2129 = vunpack.c.l.b16 %v248
  %v2130 = vunpack.c.h.b16 %v248
  %v2131 = vunpack.c.l.b16 %v249
  %v2132 = vunpack.c.h.b16 %v249
  %v2133 = vunpack.c.l.b16 %v250
  %v2134 = vunpack.c.h.b16 %v250
  %v2135 = vunpack.c.l.b16 %v251
  %v2136 = vunpack.c.h.b16 %v251
  %v2137 = vunpack.c.l.b16 %v252
  %v2138 = vunpack.c.h.b16 %v252
  %v2139 = vunpack.c.l.b16 %v253
  %v2140 = vunpack.c.h.b16 %v253
  %v2141 = vunpack.c.l.b16 %v254
  %v2142 = vunpack.c.h.b16 %v254
  %v2143 = vunpack.c.l.b16 %v255
  %v2144 = vunpack.c.h.b16 %v255
  %v2145 = vunpack.c.l.b16 %v256
  %v2146 = vunpack.c.h.b16 %v256
  %v2147 = vunpack.c.l.b16 %v257
  %v2148 = vunpack.c.h.b16 %v257
  %v2149 = vunpack.c.l.b16 %v258
  %v2150 = vunpack.c.h.b16 %v258
  %v2151 = vunpack.c.l.b16 %v259
  %v2152 = vunpack.c.h.b16 %v259
  %v2153 = vunpack.c.l.b16 %v260
  %v2154 = vunpack.c.h.b16 %v260
  %v2155 = vunpack.c.l.b16 %v261
  %v2156 = vunpack.c.h.b16 %v261
  %v2157 = vunpack.c.l.b16 %v262
  %v2158 = vunpack.c.h.b16 %v262
  %v2159 = vunpack.c.l.b16 %v263
  %v2160 = vunpack.c.h.b16 %v263
  %v2161 = vunpack.c.l.b16 %v264
  %v2162 = vunpack.c.h.b16 %v264
  %v2163 = vunpack.c.l.b16 %v265
  %v2164 = vunpack.c.h.b16 %v265
  %v2165 = vunpack.c.l.b16 %v266
  %v2166 = vunpack.c.h.b16 %v266
  %v2167 = vunpack.c.l.b16 %v267
  %v2168 = vunpack.c.h.b16 %v267
  %v2169 = vunpack.c.l.b16 %v268
  %v2170 = vunpack.c.h.b16 %v268
  %v2171 = vunpack.c.l.b16 %v269
  %v2172 = vunpack.c.h.b16 %v269
  %v2173 = vunpack.c.l.b16 %v270
  %v2174 = vunpack.c.h.b16 %v270
  %v2175 = vunpack.c.l.b16 %v271
  %v2176 = vunpack.c.h.b16 %v271
  %v2177 = vunpack.c.l.b16 %v272
  %v2178 = vunpack.c.h.b16 %v272
  %v2179 = vunpack.c.l.b16 %v273
  %v2180 = vunpack.c.h.b16 %v273
  %v2181 = vunpack.c.l.b16 %v274
  %v2182 = vunpack.c.h.b16 %v274
  %v2183 = vunpack.c.l.b16 %v275
  %v2184 = vunpack.c.h.b16 %v275
  %v2185 = vunpack.c.l.b16 %v276
  %v2186 = vunpack.c.h.b16 %v276
  %v2187 = vunpack.c.l.b16 %v277
  %v2188 = vunpack.c.h.b16 %v277
  %v2189 = vunpack.c.l.b16 %v278
  %v2190 = vunpack.c.h.b16 %v278
  %v2191 = vunpack.c.l.b16 %v279
  %v2192 = vunpack.c.h.b16 %v279
  %v2193 = vunpack.c.l.b16 %v280
  %v2194 = vunpack.c.h.b16 %v280
  %v2195 = vunpack.c.l.b16 %v281
  %v2196 = vunpack.c.h.b16 %v281
  %v2197 = vunpack.c.l.b16 %v282
  %v2198 = vunpack.c.h.b16 %v282
  %v2199 = vunpack.c.l.b16 %v283
  %v2200 = vunpack.c.h.b16 %v283
  %v2201 = vunpack.c.l.b16 %v284
  %v2202 = vunpack.c.h.b16 %v284
  %v2203 = vunpack.c.l.b16 %v285
  %v2204 = vunpack.c.h.b16 %v285
  %v2205 = vunpack.c.l.b16 %v286
  %v2206 = vunpack.c.h.b16 %v286
  %v2207 = vunpack.c.l.b16 %v287
  %v2208 = vunpack.c.h.b16 %v287
  %v2209 = vunpack.c.l.b16 %v288
  %v2210 = vunpack.c.h.b16 %v288
  %v2211 = vunpack.c.l.b16 %v289
  %v2212 = vunpack.c.h.b16 %v289
  %v2213 = vunpack.c.l.b16 %v290
  %v2214 = vunpack.c.h.b16 %v290
  %v2215 = vunpack.c.l.b16 %v291
  %v2216 = vunpack.c.h.b16 %v291
  %v2217 = vunpack.c.l.b16 %v292
  %v2218 = vunpack.c.h.b16 %v292
  %v2219 = vunpack.c.l.b16 %v293
  %v2220 = vunpack.c.h.b16 %v293
  %v2221 = vunpack.c.l.b16 %v294
  %v2222 = vunpack.c.h.b16 %v294
  %v2223 = vunpack.c.l.b16 %v295
  %v2224 = vunpack.c.h.b16 %v295
  %v2225 = vunpack.c.l.b16 %v296
  %v2226 = vunpack.c.h.b16 %v296
  %v2227 = vunpack.c.l.b16 %v297
  %v2228 = vunpack.c.h.b16 %v297
  %v2229 = vunpack.c.l.b16 %v298
  %v2230 = vunpack.c.h.b16 %v298
  %v2231 = vunpack.c.l.b16 %v299
  %v2232 = vunpack.c.h.b16 %v299
  %v2233 = vunpack.c.l.b16 %v300
  %v2234 = vunpack.c.h.b16 %v300
  %v2235 = vunpack.c.l.b16 %v301
  %v2236 = vunpack.c.h.b16 %v301
  %v2237 = vunpack.c.l.b16 %v302
  %v2238 = vunpack.c.h.b16 %v302
  %v2239 = vunpack.c.l.b16 %v303
  %v2240 = vunpack.c.h.b16 %v303
  %v2241 = vunpack.c.l.b16 %v304
  %v2242 = vunpack.c.h.b16 %v304
  %v2243 = vunpack.c.l.b16 %v305
  %v2244 = vunpack.c.h.b16 %v305
  %v2245 = vunpack.c.l.b16 %v306
  %v2246 = vunpack.c.h.b16 %v306
  %v2247 = vunpack.c.l.b16 %v307
  %v2248 = vunpack.c.h.b16 %v307
  %v2249 = vunpack.c.l.b16 %v308
  %v2250 = vunpack.c.h.b16 %v308
  %v2251 = vunpack.c.l.b16 %v309
  %v2252 = vunpack.c.h.b16 %v309
  %v2253 = vunpack.c.l.b16 %v310
  %v2254 = vunpack.c.h.b16 %v310
  %v2255 = vunpack.c.l.b16 %v311
  %v2256 = vunpack.c.h.b16 %v311
  %v2257 = vunpack.c.l.b16 %v312
  %v2258 = vunpack.c.h.b16 %v312
  %v2259 = vunpack.c.l.b16 %v313
  %v2260 = vunpack.c.h.b16 %v313
  %v2261 = vunpack.c.l.b16 %v314
  %v2262 = vunpack.c.h.b16 %v314
  %v2263 = vunpack.c.l.b16 %v315
  %v2264 = vunpack.c.h.b16 %v315
  %v2265 = vunpack.c.l.b16 %v316
  %v2266 = vunpack.c.h.b16 %v316
  %v2267 = vunpack.c.l.b16 %v317
  %v2268 = vunpack.c.h.b16 %v317
  %v2269 = vunpack.c.l.b16 %v318
  %v2270 = vunpack.c.h.b16 %v318
  %v2271 = vunpack.c.l.b16 %v319
  %v2272 = vunpack.c.h.b16 %v319
  %v2273 = vunpack.c.l.b16 %v320
  %v2274 = vunpack.c.h.b16 %v320
  %v2275 = vunpack.c.l.b16 %v321
  %v2276 = vunpack.c.h.b16 %v321
  %v2277 = vunpack.c.l.b16 %v322
  %v2278 = vunpack.c.h.b16 %v322
  %v2279 = vunpack.c.l.b16 %v323
  %v2280 = vunpack.c.h.b16 %v323
  %v2281 = vunpack.c.l.b16 %v324
  %v2282 = vunpack.c.h.b16 %v324
  %v2283 = vunpack.c.l.b16 %v325
  %v2284 = vunpack.c.h.b16 %v325
  %v2285 = vunpack.c.l.b16 %v326
  %v2286 = vunpack.c.h.b16 %v326
  %v2287 = vunpack.c.l.b16 %v327
  %v2288 = vunpack.c.h.b16 %v327
  %v2289 = vunpack.c.l.b16 %v328
  %v2290 = vunpack.c.h.b16 %v328
  %v2291 = vunpack.c.l.b16 %v329
  %v2292 = vunpack.c.h.b16 %v329
  %v2293 = vunpack.c.l.b16 %v330
  %v2294 = vunpack.c.h.b16 %v330
  %v2295 = vunpack.c.l.b16 %v331
  %v2296 = vunpack.c.h.b16 %v331
  %v2297 = vunpack.c.l.b16 %v332
  %v2298 = vunpack.c.h.b16 %v332
  %v2299 = vunpack.c.l.b16 %v333
  %v2300 = vunpack.c.h.b16 %v333
  %v2301 = vunpack.c.l.b16 %v334
  %v2302 = vunpack.c.h.b16 %v334
  %v2303 = vunpack.c.l.b16 %v335
  %v2304 = vunpack.c.h.b16 %v335
  %v2305 = vunpack.c.l.b16 %v336
  %v2306 = vunpack.c.h.b16 %v336
  %v2307 = vunpack.c.l.b16 %v337
  %v2308 = vunpack.c.h.b16 %v337
  %v2309 = vunpack.c.l.b16 %v338
  %v2310 = vunpack.c.h.b16 %v338
  %v2311 = vunpack.c.l.b16 %v339
  %v2312 = vunpack.c.h.b16 %v339
  %v2313 = vunpack.c.l.b16 %v340
  %v2314 = vunpack.c.h.b16 %v340
  %v2315 = vunpack.c.l.b16 %v341
  %v2316 = vunpack.c.h.b16 %v341
  %v2317 = vunpack.c.l.b16 %v342
  %v2318 = vunpack.c.h.b16 %v342
  %v2319 = vunpack.c.l.b16 %v343
  %v2320 = vunpack.c.h.b16 %v343
  %v2321 = vunpack.c.l.b16 %v344
  %v2322 = vunpack.c.h.b16 %v344
  %v2323 = vunpack.c.l.b16 %v345
  %v2324 = vunpack.c.h.b16 %v345
  %v2325 = vunpack.c.l.b16 %v346
  %v2326 = vunpack.c.h.b16 %v346
  %v2327 = vunpack.c.l.b16 %v347
  %v2328 = vunpack.c.h.b16 %v347
  %v2329 = vunpack.c.l.b16 %v348
  %v2330 = vunpack.c.h.b16 %v348
  %v2331 = vunpack.c.l.b16 %v349
  %v2332 = vunpack.c.h.b16 %v349
  %v2333 = vunpack.c.l.b16 %v350
  %v2334 = vunpack.c.h.b16 %v350
  %v2335 = vunpack.c.l.b16 %v351
  %v2336 = vunpack.c.h.b16 %v351
  %v2337 = vunpack.c.l.b16 %v352
  %v2338 = vunpack.c.h.b16 %v352
  %v2339 = vunpack.c.l.b16 %v353
  %v2340 = vunpack.c.h.b16 %v353
  %v2341 = vunpack.c.l.b16 %v354
  %v2342 = vunpack.c.h.b16 %v354
  %v2343 = vunpack.c.l.b16 %v355
  %v2344 = vunpack.c.h.b16 %v355
  %v2345 = vunpack.c.l.b16 %v356
  %v2346 = vunpack.c.h.b16 %v356
  %v2347 = vunpack.c.l.b16 %v357
  %v2348 = vunpack.c.h.b16 %v357
  %v2349 = vunpack.c.l.b16 %v358
  %v2350 = vunpack.c.h.b16 %v358
  %v2351 = vunpack.c.l.b16 %v359
  %v2352 = vunpack.c.h.b16 %v359
  %v2353 = vunpack.c.l.b16 %v360
  %v2354 = vunpack.c.h.b16 %v360
  %v2355 = vunpack.c.l.b16 %v361
  %v2356 = vunpack.c.h.b16 %v361
  %v2357 = vunpack.c.l.b16 %v362
  %v2358 = vunpack.c.h.b16 %v362
  %v2359 = vunpack.c.l.b16 %v363
  %v2360 = vunpack.c.h.b16 %v363
  %v2361 = vunpack.c.l.b16 %v364
  %v2362 = vunpack.c.h.b16 %v364
  %v2363 = vunpack.c.l.b16 %v365
  %v2364 = vunpack.c.h.b16 %v365
  %v2365 = vunpack.c.l.b16 %v366
  %v2366 = vunpack.c.h.b16 %v366
  %v2367 = vunpack.c.l.b16 %v367
  %v2368 = vunpack.c.h.b16 %v367
  %v2369 = vunpack.c.l.b16 %v368
  %v2370 = vunpack.c.h.b16 %v368
  %v2371 = vunpack.c.l.b16 %v369
  %v2372 = vunpack.c.h.b16 %v369
  %v2373 = vunpack.c.l.b16 %v370
  %v2374 = vunpack.c.h.b16 %v370
  %v2375 = vunpack.c.l.b16 %v371
  %v2376 = vunpack.c.h.b16 %v371
  %v2377 = vunpack.c.l.b16 %v372
  %v2378 = vunpack.c.h.b16 %v372
  %v2379 = vunpack.c.l.b16 %v373
  %v2380 = vunpack.c.h.b16 %v373
  %v2381 = vunpack.c.l.b16 %v374
  %v2382 = vunpack.c.h.b16 %v374
  %v2383 = vunpack.c.l.b16 %v375
  %v2384 = vunpack.c.h.b16 %v375
  %v2385 = vunpack.c.l.b16 %v376
  %v2386 = vunpack.c.h.b16 %v376
  %v2387 = vunpack.c.l.b16 %v377
  %v2388 = vunpack.c.h.b16 %v377
  %v2389 = vunpack.c.l.b16 %v378
  %v2390 = vunpack.c.h.b16 %v378
  %v2391 = vunpack.c.l.b16 %v379
  %v2392 = vunpack.c.h.b16 %v379
  %v2393 = vunpack.c.l.b16 %v380
  %v2394 = vunpack.c.h.b16 %v380
  %v2395 = vunpack.c.l.b16 %v381
  %v2396 = vunpack.c.h.b16 %v381
  %v2397 = vunpack.c.l.b16 %v382
  %v2398 = vunpack.c.h.b16 %v382
  %v2399 = vunpack.c.l.b16 %v383
  %v2400 = vunpack.c.h.b16 %v383
  %v2401 = vunpack.c.l.b16 %v384
  %v2402 = vunpack.c.h.b16 %v384
  %v2403 = vunpack.c.l.b16 %v385
  %v2404 = vunpack.c.h.b16 %v385
  %v2405 = vunpack.c.l.b16 %v386
  %v2406 = vunpack.c.h.b16 %v386
  %v2407 = vunpack.c.l.b16 %v387
  %v2408 = vunpack.c.h.b16 %v387
  %v2409 = vunpack.c.l.b16 %v388
  %v2410 = vunpack.c.h.b16 %v388
  %v2411 = vunpack.c.l.b16 %v389
  %v2412 = vunpack.c.h.b16 %v389
  %v2413 = vunpack.c.l.b16 %v390
  %v2414 = vunpack.c.h.b16 %v390
  %v2415 = vunpack.c.l.b16 %v391
  %v2416 = vunpack.c.h.b16 %v391
  %v2417 = vunpack.c.l.b16 %v392
  %v2418 = vunpack.c.h.b16 %v392
  %v2419 = vunpack.c.l.b16 %v393
  %v2420 = vunpack.c.h.b16 %v393
  %v2421 = vunpack.c.l.b16 %v394
  %v2422 = vunpack.c.h.b16 %v394
  %v2423 = vunpack.c.l.b16 %v395
  %v2424 = vunpack.c.h.b16 %v395
  %v2425 = vunpack.c.l.b16 %v396
  %v2426 = vunpack.c.h.b16 %v396
  %v2427 = vunpack.c.l.b16 %v397
  %v2428 = vunpack.c.h.b16 %v397
  %v2429 = vunpack.c.l.b16 %v398
  %v2430 = vunpack.c.h.b16 %v398
  %v2431 = vunpack.c.l.b16 %v399
  %v2432 = vunpack.c.h.b16 %v399
  %v2433 = vunpack.c.l.b16 %v400
  %v2434 = vunpack.c.h.b16 %v400
  %v2435 = vunpack.c.l.b16 %v401
  %v2436 = vunpack.c.h.b16 %v401
  %v2437 = vunpack.c.l.b16 %v402
  %v2438 = vunpack.c.h.b16 %v402
  %v2439 = vunpack.c.l.b16 %v403
  %v2440 = vunpack.c.h.b16 %v403
  %v2441 = vunpack.c.l.b16 %v404
  %v2442 = vunpack.c.h.b16 %v404
  %v2443 = vunpack.c.l.b16 %v405
  %v2444 = vunpack.c.h.b16 %v405
  %v2445 = vunpack.c.l.b16 %v406
  %v2446 = vunpack.c.h.b16 %v406
  %v2447 = vunpack.c.l.b16 %v407
  %v2448 = vunpack.c.h.b16 %v407
  %v2449 = vunpack.c.l.b16 %v408
  %v2450 = vunpack.c.h.b16 %v408
  %v2451 = vunpack.c.l.b16 %v409
  %v2452 = vunpack.c.h.b16 %v409
  %v2453 = vunpack.c.l.b16 %v410
  %v2454 = vunpack.c.h.b16 %v410
  %v2455 = vunpack.c.l.b16 %v411
  %v2456 = vunpack.c.h.b16 %v411
  %v2457 = vunpack.c.l.b16 %v412
  %v2458 = vunpack.c.h.b16 %v412
  %v2459 = vunpack.c.l.b16 %v413
  %v2460 = vunpack.c.h.b16 %v413
  %v2461 = vunpack.c.l.b16 %v414
  %v2462 = vunpack.c.h.b16 %v414
  %v2463 = vunpack.c.l.b16 %v415
  %v2464 = vunpack.c.h.b16 %v415
  %v2465 = vunpack.c.l.b16 %v416
  %v2466 = vunpack.c.h.b16 %v416
  %v2467 = vunpack.c.l.b16 %v417
  %v2468 = vunpack.c.h.b16 %v417
  %v2469 = vunpack.c.l.b16 %v418
  %v2470 = vunpack.c.h.b16 %v418
  %v2471 = vunpack.c.l.b16 %v419
  %v2472 = vunpack.c.h.b16 %v419
  %v2473 = vunpack.c.l.b16 %v420
  %v2474 = vunpack.c.h.b16 %v420
  %v2475 = vunpack.c.l.b16 %v421
  %v2476 = vunpack.c.h.b16 %v421
  %v2477 = vunpack.c.l.b16 %v422
  %v2478 = vunpack.c.h.b16 %v422
  %v2479 = vunpack.c.l.b16 %v423
  %v2480 = vunpack.c.h.b16 %v423
  %v2481 = vunpack.c.l.b16 %v424
  %v2482 = vunpack.c.h.b16 %v424
  %v2483 = vunpack.c.l.b16 %v425
  %v2484 = vunpack.c.h.b16 %v425
  %v2485 = vunpack.c.l.b16 %v426
  %v2486 = vunpack.c.h.b16 %v426
  %v2487 = vunpack.c.l.b16 %v427
  %v2488 = vunpack.c.h.b16 %v427
  %v2489 = vunpack.c.l.b16 %v428
  %v2490 = vunpack.c.h.b16 %v428
  %v2491 = vunpack.c.l.b16 %v429
  %v2492 = vunpack.c.h.b16 %v429
  %v2493 = vunpack.c.l.b16 %v430
  %v2494 = vunpack.c.h.b16 %v430
  %v2495 = vunpack.c.l.b16 %v431
  %v2496 = vunpack.c.h.b16 %v431
  %v2497 = vunpack.c.l.b16 %v432
  %v2498 = vunpack.c.h.b16 %v432
  %v2499 = vunpack.c.l.b16 %v433
  %v2500 = vunpack.c.h.b16 %v433
  %v2501 = vunpack.c.l.b16 %v434
  %v2502 = vunpack.c.h.b16 %v434
  %v2503 = vunpack.c.l.b16 %v435
  %v2504 = vunpack.c.h.b16 %v435
  %v2505 = vunpack.c.l.b16 %v436
  %v2506 = vunpack.c.h.b16 %v436
  %v2507 = vunpack.c.l.b16 %v437
  %v2508 = vunpack.c.h.b16 %v437
  %v2509 = vunpack.c.l.b16 %v438
  %v2510 = vunpack.c.h.b16 %v438
  %v2511 = vunpack.c.l.b16 %v439
  %v2512 = vunpack.c.h.b16 %v439
  %v2513 = vunpack.c.l.b16 %v440
  %v2514 = vunpack.c.h.b16 %v440
  %v2515 = vunpack.c.l.b16 %v441
  %v2516 = vunpack.c.h.b16 %v441
  %v2517 = vunpack.c.l.b16 %v442
  %v2518 = vunpack.c.h.b16 %v442
  %v2519 = vunpack.c.l.b16 %v443
  %v2520 = vunpack.c.h.b16 %v443
  %v2521 = vunpack.c.l.b16 %v444
  %v2522 = vunpack.c.h.b16 %v444
  %v2523 = vunpack.c.l.b16 %v445
  %v2524 = vunpack.c.h.b16 %v445
  %v2525 = vunpack.c.l.b16 %v446
  %v2526 = vunpack.c.h.b16 %v446
  %v2527 = vunpack.c.l.b16 %v447
  %v2528 = vunpack.c.h.b16 %v447
  %v2529 = vunpack.c.l.b16 %v448
  %v2530 = vunpack.c.h.b16 %v448
  %v2531 = vunpack.c.l.b16 %v449
  %v2532 = vunpack.c.h.b16 %v449
  %v2533 = vunpack.c.l.b16 %v450
  %v2534 = vunpack.c.h.b16 %v450
  %v2535 = vunpack.c.l.b16 %v451
  %v2536 = vunpack.c.h.b16 %v451
  %v2537 = vunpack.c.l.b16 %v452
  %v2538 = vunpack.c.h.b16 %v452
  %v2539 = vunpack.c.l.b16 %v453
  %v2540 = vunpack.c.h.b16 %v453
  %v2541 = vunpack.c.l.b16 %v454
  %v2542 = vunpack.c.h.b16 %v454
  %v2543 = vunpack.c.l.b16 %v455
  %v2544 = vunpack.c.h.b16 %v455
  %v2545 = vunpack.c.l.b16 %v456
  %v2546 = vunpack.c.h.b16 %v456
  %v2547 = vunpack.c.l.b16 %v457
  %v2548 = vunpack.c.h.b16 %v457
  %v2549 = vunpack.c.l.b16 %v458
  %v2550 = vunpack.c.h.b16 %v458
  %v2551 = vunpack.c.l.b16 %v459
  %v2552 = vunpack.c.h.b16 %v459
  %v2553 = vunpack.c.l.b16 %v460
  %v2554 = vunpack.c.h.b16 %v460
  %v2555 = vunpack.c.l.b16 %v461
  %v2556 = vunpack.c.h.b16 %v461
  %v2557 = vunpack.c.l.b16 %v462
  %v2558 = vunpack.c.h.b16 %v462
  %v2559 = vunpack.c.l.b16 %v463
  %v2560 = vunpack.c.h.b16 %v463
  %v2561 = vunpack.c.l.b16 %v464
  %v2562 = vunpack.c.h.b16 %v464
  %v2563 = vunpack.c.l.b16 %v465
  %v2564 = vunpack.c.h.b16 %v465
  %v2565 = vunpack.c.l.b16 %v466
  %v2566 = vunpack.c.h.b16 %v466
  %v2567 = vunpack.c.l.b16 %v467
  %v2568 = vunpack.c.h.b16 %v467
  %v2569 = vunpack.c.l.b16 %v468
  %v2570 = vunpack.c.h.b16 %v468
  %v2571 = vunpack.c.l.b16 %v469
  %v2572 = vunpack.c.h.b16 %v469
  %v2573 = vunpack.c.l.b16 %v470
  %v2574 = vunpack.c.h.b16 %v470
  %v2575 = vunpack.c.l.b16 %v471
  %v2576 = vunpack.c.h.b16 %v471
  %v2577 = vunpack.c.l.b16 %v472
  %v2578 = vunpack.c.h.b16 %v472
  %v2579 = vunpack.c.l.b16 %v473
  %v2580 = vunpack.c.h.b16 %v473
  %v2581 = vunpack.c.l.b16 %v474
  %v2582 = vunpack.c.h.b16 %v474
  %v2583 = vunpack.c.l.b16 %v475
  %v2584 = vunpack.c.h.b16 %v475
  %v2585 = vunpack.c.l.b16 %v476
  %v2586 = vunpack.c.h.b16 %v476
  %v2587 = vunpack.c.l.b16 %v477
  %v2588 = vunpack.c.h.b16 %v477
  %v2589 = vunpack.c.l.b16 %v478
  %v2590 = vunpack.c.h.b16 %v478
  %v2591 = vunpack.c.l.b16 %v479
  %v2592 = vunpack.c.h.b16 %v479
  %v2593 = vunpack.c.l.b16 %v480
  %v2594 = vunpack.c.h.b16 %v480
  %v2595 = vunpack.c.l.b16 %v481
  %v2596 = vunpack.c.h.b16 %v481
  %v2597 = vunpack.c.l.b16 %v482
  %v2598 = vunpack.c.h.b16 %v482
  %v2599 = vunpack.c.l.b16 %v483
  %v2600 = vunpack.c.h.b16 %v483
  %v2601 = vunpack.c.l.b16 %v484
  %v2602 = vunpack.c.h.b16 %v484
  %v2603 = vunpack.c.l.b16 %v485
  %v2604 = vunpack.c.h.b16 %v485
  %v2605 = vunpack.c.l.b16 %v486
  %v2606 = vunpack.c.h.b16 %v486
  %v2607 = vunpack.c.l.b16 %v487
  %v2608 = vunpack.c.h.b16 %v487
  %v2609 = vunpack.c.l.b16 %v488
  %v2610 = vunpack.c.h.b16 %v488
  %v2611 = vunpack.c.l.b16 %v489
  %v2612 = vunpack.c.h.b16 %v489
  %v2613 = vunpack.c.l.b16 %v490
  %v2614 = vunpack.c.h.b16 %v490
  %v2615 = vunpack.c.l.b16 %v491
  %v2616 = vunpack.c.h.b16 %v491
  %v2617 = vunpack.c.l.b16 %v492
  %v2618 = vunpack.c.h.b16 %v492
  %v2619 = vunpack.c.l.b16 %v493
  %v2620 = vunpack.c.h.b16 %v493
  %v2621 = vunpack.c.l.b16 %v494
  %v2622 = vunpack.c.h.b16 %v494
  %v2623 = vunpack.c.l.b16 %v495
  %v2624 = vunpack.c.h.b16 %v495
  %v2625 = vunpack.c.l.b16 %v496
  %v2626 = vunpack.c.h.b16 %v496
  %v2627 = vunpack.c.l.b16 %v497
  %v2628 = vunpack.c.h.b16 %v497
  %v2629 = vunpack.c.l.b16 %v498
  %v2630 = vunpack.c.h.b16 %v498
  %v2631 = vunpack.c.l.b16 %v499
  %v2632 = vunpack.c.h.b16 %v499
  %v2633 = vunpack.c.l.b16 %v500
  %v2634 = vunpack.c.h.b16 %v500
  %v2635 = vunpack.c.l.b16 %v501
  %v2636 = vunpack.c.h.b16 %v501
  %v2637 = vunpack.c.l.b16 %v502
  %v2638 = vunpack.c.h.b16 %v502
  %v2639 = vunpack.c.l.b16 %v503
  %v2640 = vunpack.c.h.b16 %v503
  %v2641 = vunpack.c.l.b16 %v504
  %v2642 = vunpack.c.h.b16 %v504
  %v2643 = vunpack.c.l.b16 %v505
  %v2644 = vunpack.c.h.b16 %v505
  %v2645 = vunpack.c.l.b16 %v506
  %v2646 = vunpack.c.h.b16 %v506
  %v2647 = vunpack.c.l.b16 %v507
  %v2648 = vunpack.c.h.b16 %v507
  %v2649 = vunpack.c.l.b16 %v508
  %v2650 = vunpack.c.h.b16 %v508
  %v2651 = vunpack.c.l.b16 %v509
  %v2652 = vunpack.c.h.b16 %v509
  %v2653 = vunpack.c.l.b16 %v510
  %v2654 = vunpack.c.h.b16 %v510
  %v2655 = vunpack.c.l.b16 %v511
  %v2656 = vunpack.c.h.b16 %v511
  %v2657 = vunpack.c.l.b16 %v512
  %v2658 = vunpack.c.h.b16 %v512
  %v2659 = vunpack.c.l.b16 %v513
  %v2660 = vunpack.c.h.b16 %v513
  %v2661 = vunpack.c.l.b16 %v514
  %v2662 = vunpack.c.h.b16 %v514
  %v2663 = vunpack.c.l.b16 %v515
  %v2664 = vunpack.c.h.b16 %v515
  %v2665 = vunpack.c.l.b16 %v516
  %v2666 = vunpack.c.h.b16 %v516
  %v2667 = vunpack.c.l.b16 %v517
  %v2668 = vunpack.c.h.b16 %v517
  %v2669 = vunpack.c.l.b16 %v518
  %v2670 = vunpack.c.h.b16 %v518
  %v2671 = vunpack.c.l.b16 %v519
  %v2672 = vunpack.c.h.b16 %v519
  %v2673 = vunpack.c.l.b16 %v520
  %v2674 = vunpack.c.h.b16 %v520
  %v2675 = vunpack.c.l.b16 %v521
  %v2676 = vunpack.c.h.b16 %v521
  %v2677 = vunpack.c.l.b16 %v522
  %v2678 = vunpack.c.h.b16 %v522
  %v2679 = vunpack.c.l.b16 %v523
  %v2680 = vunpack.c.h.b16 %v523
  %v2681 = vunpack.c.l.b16 %v524
  %v2682 = vunpack.c.h.b16 %v524
  %v2683 = vunpack.c.l.b16 %v525
  %v2684 = vunpack.c.h.b16 %v525
  %v2685 = vunpack.c.l.b16 %v526
  %v2686 = vunpack.c.h.b16 %v526
  %v2687 = vunpack.c.l.b16 %v527
  %v2688 = vunpack.c.h.b16 %v527
  %v2689 = vunpack.c.l.b16 %v528
  %v2690 = vunpack.c.h.b16 %v528
  %v2691 = vunpack.c.l.b16 %v529
  %v2692 = vunpack.c.h.b16 %v529
  %v2693 = vunpack.c.l.b16 %v530
  %v2694 = vunpack.c.h.b16 %v530
  %v2695 = vunpack.c.l.b16 %v531
  %v2696 = vunpack.c.h.b16 %v531
  %v2697 = vunpack.c.l.b16 %v532
  %v2698 = vunpack.c.h.b16 %v532
  %v2699 = vunpack.c.l.b16 %v533
  %v2700 = vunpack.c.h.b16 %v533
  %v2701 = vunpack.c.l.b16 %v534
  %v2702 = vunpack.c.h.b16 %v534
  %v2703 = vunpack.c.l.b16 %v535
  %v2704 = vunpack.c.h.b16 %v535
  %v2705 = vunpack.c.l.b16 %v536
  %v2706 = vunpack.c.h.b16 %v536
  %v2707 = vunpack.c.l.b16 %v537
  %v2708 = vunpack.c.h.b16 %v537
  %v2709 = vunpack.c.l.b16 %v538
  %v2710 = vunpack.c.h.b16 %v538
  %v2711 = vunpack.c.l.b16 %v539
  %v2712 = vunpack.c.h.b16 %v539
  %v2713 = vunpack.c.l.b16 %v540
  %v2714 = vunpack.c.h.b16 %v540
  %v2715 = vunpack.c.l.b16 %v541
  %v2716 = vunpack.c.h.b16 %v541
  %v2717 = vunpack.c.l.b16 %v542
  %v2718 = vunpack.c.h.b16 %v542
  %v2719 = vunpack.c.l.b16 %v543
  %v2720 = vunpack.c.h.b16 %v543
  %v2721 = vunpack.c.l.b16 %v544
  %v2722 = vunpack.c.h.b16 %v544
  %v2723 = vunpack.c.l.b16 %v545
  %v2724 = vunpack.c.h.b16 %v545
  %v2725 = vunpack.c.l.b16 %v546
  %v2726 = vunpack.c.h.b16 %v546
  %v2727 = vunpack.c.l.b16 %v547
  %v2728 = vunpack.c.h.b16 %v547
  %v2729 = vunpack.c.l.b16 %v548
  %v2730 = vunpack.c.h.b16 %v548
  %v2731 = vunpack.c.l.b16 %v549
  %v2732 = vunpack.c.h.b16 %v549
  %v2733 = vunpack.c.l.b16 %v550
  %v2734 = vunpack.c.h.b16 %v550
  %v2735 = vunpack.c.l.b16 %v551
  %v2736 = vunpack.c.h.b16 %v551
  %v2737 = vunpack.c.l.b16 %v552
  %v2738 = vunpack.c.h.b16 %v552
  %v2739 = vunpack.c.l.b16 %v553
  %v2740 = vunpack.c.h.b16 %v553
  %v2741 = vunpack.c.l.b16 %v554
  %v2742 = vunpack.c.h.b16 %v554
  %v2743 = vunpack.c.l.b16 %v555
  %v2744 = vunpack.c.h.b16 %v555
  %v2745 = vunpack.c.l.b16 %v556
  %v2746 = vunpack.c.h.b16 %v556
  %v2747 = vunpack.c.l.b16 %v557
  %v2748 = vunpack.c.h.b16 %v557
  %v2749 = vunpack.c.l.b16 %v558
  %v2750 = vunpack.c.h.b16 %v558
  %v2751 = vunpack.c.l.b16 %v559
  %v2752 = vunpack.c.h.b16 %v559
  %v2753 = vunpack.c.l.b16 %v560
  %v2754 = vunpack.c.h.b16 %v560
  %v2755 = vunpack.c.l.b16 %v561
  %v2756 = vunpack.c.h.b16 %v561
  %v2757 = vunpack.c.l.b16 %v562
  %v2758 = vunpack.c.h.b16 %v562
  %v2759 = vunpack.c.l.b16 %v563
  %v2760 = vunpack.c.h.b16 %v563
  %v2761 = vunpack.c.l.b16 %v564
  %v2762 = vunpack.c.h.b16 %v564
  %v2763 = vunpack.c.l.b16 %v565
  %v2764 = vunpack.c.h.b16 %v565
  %v2765 = vunpack.c.l.b16 %v566
  %v2766 = vunpack.c.h.b16 %v566
  %v2767 = vunpack.c.l.b16 %v567
  %v2768 = vunpack.c.h.b16 %v567
  %v2769 = vunpack.c.l.b16 %v568
  %v2770 = vunpack.c.h.b16 %v568
  %v2771 = vunpack.c.l.b16 %v569
  %v2772 = vunpack.c.h.b16 %v569
  %v2773 = vunpack.c.l.b16 %v570
  %v2774 = vunpack.c.h.b16 %v570
  %v2775 = vunpack.c.l.b16 %v571
  %v2776 = vunpack.c.h.b16 %v571
  %v2777 = vunpack.c.l.b16 %v572
  %v2778 = vunpack.c.h.b16 %v572
  %v2779 = vunpack.c.l.b16 %v573
  %v2780 = vunpack.c.h.b16 %v573
  %v2781 = vunpack.c.l.b16 %v574
  %v2782 = vunpack.c.h.b16 %v574
  %v2783 = vunpack.c.l.b16 %v575
  %v2784 = vunpack.c.h.b16 %v575
  %v2785 = vunpack.c.l.b16 %v576
  %v2786 = vunpack.c.h.b16 %v576
  %v2787 = vunpack.c.l.b16 %v577
  %v2788 = vunpack.c.h.b16 %v577
  %v2789 = vunpack.c.l.b16 %v578
  %v2790 = vunpack.c.h.b16 %v578
  %v2791 = vunpack.c.l.b16 %v579
  %v2792 = vunpack.c.h.b16 %v579
  %v2793 = vunpack.c.l.b16 %v580
  %v2794 = vunpack.c.h.b16 %v580
  %v2795 = vunpack.c.l.b16 %v581
  %v2796 = vunpack.c.h.b16 %v581
  %v2797 = vunpack.c.l.b16 %v582
  %v2798 = vunpack.c.h.b16 %v582
  %v2799 = vunpack.c.l.b16 %v583
  %v2800 = vunpack.c.h.b16 %v583
  %v2801 = vunpack.c.l.b16 %v584
  %v2802 = vunpack.c.h.b16 %v584
  %v2803 = vunpack.c.l.b16 %v585
  %v2804 = vunpack.c.h.b16 %v585
  %v2805 = vunpack.c.l.b16 %v586
  %v2806 = vunpack.c.h.b16 %v586
  %v2807 = vunpack.c.l.b16 %v587
  %v2808 = vunpack.c.h.b16 %v587
  %v2809 = vunpack.c.l.b16 %v588
  %v2810 = vunpack.c.h.b16 %v588
  %v2811 = vunpack.c.l.b16 %v589
  %v2812 = vunpack.c.h.b16 %v589
  %v2813 = vunpack.c.l.b16 %v590
  %v2814 = vunpack.c.h.b16 %v590
  %v2815 = vunpack.c.l.b16 %v591
  %v2816 = vunpack.c.h.b16 %v591
  %v2817 = vunpack.c.l.b16 %v592
  %v2818 = vunpack.c.h.b16 %v592
  %v2819 = vunpack.c.l.b16 %v593
  %v2820 = vunpack.c.h.b16 %v593
  %v2821 = vunpack.c.l.b16 %v594
  %v2822 = vunpack.c.h.b16 %v594
  %v2823 = vunpack.c.l.b16 %v595
  %v2824 = vunpack.c.h.b16 %v595
  %v2825 = vunpack.c.l.b16 %v596
  %v2826 = vunpack.c.h.b16 %v596
  %v2827 = vunpack.c.l.b16 %v597
  %v2828 = vunpack.c.h.b16 %v597
  %v2829 = vunpack.c.l.b16 %v598
  %v2830 = vunpack.c.h.b16 %v598
  %v2831 = vunpack.c.l.b16 %v599
  %v2832 = vunpack.c.h.b16 %v599
  %v2833 = vunpack.c.l.b16 %v600
  %v2834 = vunpack.c.h.b16 %v600
  %v2835 = vunpack.c.l.b16 %v601
  %v2836 = vunpack.c.h.b16 %v601
  %v2837 = vunpack.c.l.b16 %v602
  %v2838 = vunpack.c.h.b16 %v602
  %v2839 = vunpack.c.l.b16 %v603
  %v2840 = vunpack.c.h.b16 %v603
  %v2841 = vunpack.c.l.b16 %v604
  %v2842 = vunpack.c.h.b16 %v604
  %v2843 = vunpack.c.l.b16 %v605
  %v2844 = vunpack.c.h.b16 %v605
  %v2845 = vunpack.c.l.b16 %v606
  %v2846 = vunpack.c.h.b16 %v606
  %v2847 = vunpack.c.l.b16 %v607
  %v2848 = vunpack.c.h.b16 %v607
  %v2849 = vunpack.c.l.b16 %v608
  %v2850 = vunpack.c.h.b16 %v608
  %v2851 = vunpack.c.l.b16 %v609
  %v2852 = vunpack.c.h.b16 %v609
  %v2853 = vunpack.c.l.b16 %v610
  %v2854 = vunpack.c.h.b16 %v610
  %v2855 = vunpack.c.l.b16 %v611
  %v2856 = vunpack.c.h.b16 %v611
  %v2857 = vunpack.c.l.b16 %v612
  %v2858 = vunpack.c.h.b16 %v612
  %v2859 = vunpack.c.l.b16 %v613
  %v2860 = vunpack.c.h.b16 %v613
  %v2861 = vunpack.c.l.b16 %v614
  %v2862 = vunpack.c.h.b16 %v614
  %v2863 = vunpack.c.l.b16 %v615
  %v2864 = vunpack.c.h.b16 %v615
  %v2865 = vunpack.c.l.b16 %v616
  %v2866 = vunpack.c.h.b16 %v616
  %v2867 = vunpack.c.l.b16 %v617
  %v2868 = vunpack.c.h.b16 %v617
  %v2869 = vunpack.c.l.b16 %v618
  %v2870 = vunpack.c.h.b16 %v618
  %v2871 = vunpack.c.l.b16 %v619
  %v2872 = vunpack.c.h.b16 %v619
  %v2873 = vunpack.c.l.b16 %v620
  %v2874 = vunpack.c.h.b16 %v620
  %v2875 = vunpack.c.l.b16 %v621
  %v2876 = vunpack.c.h.b16 %v621
  %v2877 = vunpack.c.l.b16 %v622
  %v2878 = vunpack.c.h.b16 %v622
  %v2879 = vunpack.c.l.b16 %v623
  %v2880 = vunpack.c.h.b16 %v623
  %v2881 = vunpack.c.l.b16 %v624
  %v2882 = vunpack.c.h.b16 %v624
  %v2883 = vunpack.c.l.b16 %v625
  %v2884 = vunpack.c.h.b16 %v625
  %v2885 = vunpack.c.l.b16 %v626
  %v2886 = vunpack.c.h.b16 %v626
  %v2887 = vunpack.c.l.b16 %v627
  %v2888 = vunpack.c.h.b16 %v627
  %v2889 = vunpack.c.l.b16 %v628
  %v2890 = vunpack.c.h.b16 %v628
  %v2891 = vunpack.c.l.b16 %v629
  %v2892 = vunpack.c.h.b16 %v629
  %v2893 = vunpack.c.l.b16 %v630
  %v2894 = vunpack.c.h.b16 %v630
  %v2895 = vunpack.c.l.b16 %v631
  %v2896 = vunpack.c.h.b16 %v631
  %v2897 = vunpack.c.l.b16 %v632
  %v2898 = vunpack.c.h.b16 %v632
  %v2899 = vunpack.c.l.b16 %v633
  %v2900 = vunpack.c.h.b16 %v633
  %v2901 = vunpack.c.l.b16 %v634
  %v2902 = vunpack.c.h.b16 %v634
  %v2903 = vunpack.c.l.b16 %v635
  %v2904 = vunpack.c.h.b16 %v635
  %v2905 = vunpack.c.l.b16 %v636
  %v2906 = vunpack.c.h.b16 %v636
  %v2907 = vunpack.c.l.b16 %v637
  %v2908 = vunpack.c.h.b16 %v637
  %v2909 = vunpack.c.l.b16 %v638
  %v2910 = vunpack.c.h.b16 %v638
  %v2911 = vunpack.c.l.b16 %v639
  %v2912 = vunpack.c.h.b16 %v639
  %v2913 = vunpack.c.l.b16 %v640
  %v2914 = vunpack.c.h.b16 %v640
  %v2915 = vunpack.c.l.b16 %v641
  %v2916 = vunpack.c.h.b16 %v641
  %v2917 = vunpack.c.l.b16 %v642
  %v2918 = vunpack.c.h.b16 %v642
  %v2919 = vunpack.c.l.b16 %v643
  %v2920 = vunpack.c.h.b16 %v643
  %v2921 = vunpack.c.l.b16 %v644
  %v2922 = vunpack.c.h.b16 %v644
  %v2923 = vunpack.c.l.b16 %v645
  %v2924 = vunpack.c.h.b16 %v645
  %v2925 = vunpack.c.l.b16 %v646
  %v2926 = vunpack.c.h.b16 %v646
  %v2927 = vunpack.c.l.b16 %v647
  %v2928 = vunpack.c.h.b16 %v647
  %v2929 = vunpack.c.l.b16 %v648
  %v2930 = vunpack.c.h.b16 %v648
  %v2931 = vunpack.c.l.b16 %v649
  %v2932 = vunpack.c.h.b16 %v649
  %v2933 = vunpack.c.l.b16 %v650
  %v2934 = vunpack.c.h.b16 %v650
  %v2935 = vunpack.c.l.b16 %v651
  %v2936 = vunpack.c.h.b16 %v651
  %v2937 = vunpack.c.l.b16 %v652
  %v2938 = vunpack.c.h.b16 %v652
  %v2939 = vunpack.c.l.b16 %v653
  %v2940 = vunpack.c.h.b16 %v653
  %v2941 = vunpack.c.l.b16 %v654
  %v2942 = vunpack.c.h.b16 %v654
  %v2943 = vunpack.c.l.b16 %v655
  %v2944 = vunpack.c.h.b16 %v655
  %v2945 = vunpack.c.l.b16 %v656
  %v2946 = vunpack.c.h.b16 %v656
  %v2947 = vunpack.c.l.b16 %v657
  %v2948 = vunpack.c.h.b16 %v657
  %v2949 = vunpack.c.l.b16 %v658
  %v2950 = vunpack.c.h.b16 %v658
  %v2951 = vunpack.c.l.b16 %v659
  %v2952 = vunpack.c.h.b16 %v659
  %v2953 = vunpack.c.l.b16 %v660
  %v2954 = vunpack.c.h.b16 %v660
  %v2955 = vunpack.c.l.b16 %v661
  %v2956 = vunpack.c.h.b16 %v661
  %v2957 = vunpack.c.l.b16 %v662
  %v2958 = vunpack.c.h.b16 %v662
  %v2959 = vunpack.c.l.b16 %v663
  %v2960 = vunpack.c.h.b16 %v663
  %v2961 = vunpack.c.l.b16 %v664
  %v2962 = vunpack.c.h.b16 %v664
  %v2963 = vunpack.c.l.b16 %v665
  %v2964 = vunpack.c.h.b16 %v665
  %v2965 = vunpack.c.l.b16 %v666
  %v2966 = vunpack.c.h.b16 %v666
  %v2967 = vunpack.c.l.b16 %v667
  %v2968 = vunpack.c.h.b16 %v667
  %v2969 = vunpack.c.l.b16 %v668
  %v2970 = vunpack.c.h.b16 %v668
  %v2971 = vunpack.c.l.b16 %v669
  %v2972 = vunpack.c.h.b16 %v669
  %v2973 = vunpack.c.l.b16 %v670
  %v2974 = vunpack.c.h.b16 %v670
  %v2975 = vunpack.c.l.b16 %v671
  %v2976 = vunpack.c.h.b16 %v671
  %v2977 = vunpack.c.l.b16 %v672
  %v2978 = vunpack.c.h.b16 %v672
  %v2979 = vunpack.c.l.b16 %v673
  %v2980 = vunpack.c.h.b16 %v673
  %v2981 = vunpack.c.l.b16 %v674
  %v2982 = vunpack.c.h.b16 %v674
  %v2983 = vunpack.c.l.b16 %v675
  %v2984 = vunpack.c.h.b16 %v675
  %v2985 = vunpack.c.l.b16 %v676
  %v2986 = vunpack.c.h.b16 %v676
  %v2987 = vunpack.c.l.b16 %v677
  %v2988 = vunpack.c.h.b16 %v677
  %v2989 = vunpack.c.l.b16 %v678
  %v2990 = vunpack.c.h.b16 %v678
  %v2991 = vunpack.c.l.b16 %v679
  %v2992 = vunpack.c.h.b16 %v679
  %v2993 = vunpack.c.l.b16 %v680
  %v2994 = vunpack.c.h.b16 %v680
  %v2995 = vunpack.c.l.b16 %v681
  %v2996 = vunpack.c.h.b16 %v681
  %v2997 = vunpack.c.l.b16 %v682
  %v2998 = vunpack.c.h.b16 %v682
  %v2999 = vunpack.c.l.b16 %v683
  %v3000 = vunpack.c.h.b16 %v683
  %v3001 = vunpack.c.l.b16 %v684
  %v3002 = vunpack.c.h.b16 %v684
  %v3003 = vunpack.c.l.b16 %v685
  %v3004 = vunpack.c.h.b16 %v685
  %v3005 = vunpack.c.l.b16 %v686
  %v3006 = vunpack.c.h.b16 %v686
  %v3007 = vunpack.c.l.b16 %v687
  %v3008 = vunpack.c.h.b16 %v687
  %v3009 = vunpack.c.l.b16 %v688
  %v3010 = vunpack.c.h.b16 %v688
  %v3011 = vunpack.c.l.b16 %v689
  %v3012 = vunpack.c.h.b16 %v689
  %v3013 = vunpack.c.l.b16 %v690
  %v3014 = vunpack.c.h.b16 %v690
  %v3015 = vunpack.c.l.b16 %v691
  %v3016 = vunpack.c.h.b16 %v691
  %v3017 = vunpack.c.l.b16 %v692
  %v3018 = vunpack.c.h.b16 %v692
  %v3019 = vunpack.c.l.b16 %v693
  %v3020 = vunpack.c.h.b16 %v693
  %v3021 = vunpack.c.l.b16 %v694
  %v3022 = vunpack.c.h.b16 %v694
  %v3023 = vunpack.c.l.b16 %v695
  %v3024 = vunpack.c.h.b16 %v695
  %v3025 = vunpack.c.l.b16 %v696
  %v3026 = vunpack.c.h.b16 %v696
  %v3027 = vunpack.c.l.b16 %v697
  %v3028 = vunpack.c.h.b16 %v697
  %v3029 = vunpack.c.l.b16 %v698
  %v3030 = vunpack.c.h.b16 %v698
  %v3031 = vunpack.c.l.b16 %v699
  %v3032 = vunpack.c.h.b16 %v699
  %v3033 = vunpack.c.l.b16 %v700
  %v3034 = vunpack.c.h.b16 %v700
  %v3035 = vunpack.c.l.b16 %v701
  %v3036 = vunpack.c.h.b16 %v701
  %v3037 = vunpack.c.l.b16 %v702
  %v3038 = vunpack.c.h.b16 %v702
  %v3039 = vunpack.c.l.b16 %v703
  %v3040 = vunpack.c.h.b16 %v703
  %v3041 = vunpack.c.l.b16 %v704
  %v3042 = vunpack.c.h.b16 %v704
  %v3043 = vunpack.c.l.b16 %v705
  %v3044 = vunpack.c.h.b16 %v705
  %v3045 = vunpack.c.l.b16 %v706
  %v3046 = vunpack.c.h.b16 %v706
  %v3047 = vunpack.c.l.b16 %v707
  %v3048 = vunpack.c.h.b16 %v707
  %v3049 = vunpack.c.l.b16 %v708
  %v3050 = vunpack.c.h.b16 %v708
  %v3051 = vunpack.c.l.b16 %v709
  %v3052 = vunpack.c.h.b16 %v709
  %v3053 = vunpack.c.l.b16 %v710
  %v3054 = vunpack.c.h.b16 %v710
  %v3055 = vunpack.c.l.b16 %v711
  %v3056 = vunpack.c.h.b16 %v711
  %v3057 = vunpack.c.l.b16 %v712
  %v3058 = vunpack.c.h.b16 %v712
  %v3059 = vunpack.c.l.b16 %v713
  %v3060 = vunpack.c.h.b16 %v713
  %v3061 = vunpack.c.l.b16 %v714
  %v3062 = vunpack.c.h.b16 %v714
  %v3063 = vunpack.c.l.b16 %v715
  %v3064 = vunpack.c.h.b16 %v715
  %v3065 = vunpack.c.l.b16 %v716
  %v3066 = vunpack.c.h.b16 %v716
  %v3067 = vunpack.c.l.b16 %v717
  %v3068 = vunpack.c.h.b16 %v717
  %v3069 = vunpack.c.l.b16 %v718
  %v3070 = vunpack.c.h.b16 %v718
  %v3071 = vunpack.c.l.b16 %v719
  %v3072 = vunpack.c.h.b16 %v719
  %v3073 = vunpack.c.l.b16 %v720
  %v3074 = vunpack.c.h.b16 %v720
  %v3075 = vunpack.c.l.b16 %v721
  %v3076 = vunpack.c.h.b16 %v721
  %v3077 = vunpack.c.l.b16 %v722
  %v3078 = vunpack.c.h.b16 %v722
  %v3079 = vunpack.c.l.b16 %v723
  %v3080 = vunpack.c.h.b16 %v723
  %v3081 = vunpack.c.l.b16 %v724
  %v3082 = vunpack.c.h.b16 %v724
  %v3083 = vunpack.c.l.b16 %v725
  %v3084 = vunpack.c.h.b16 %v725
  %v3085 = vunpack.c.l.b16 %v726
  %v3086 = vunpack.c.h.b16 %v726
  %v3087 = vunpack.c.l.b16 %v727
  %v3088 = vunpack.c.h.b16 %v727
  %v3089 = vunpack.c.l.b16 %v728
  %v3090 = vunpack.c.h.b16 %v728
  %v3091 = vunpack.c.l.b16 %v729
  %v3092 = vunpack.c.h.b16 %v729
  %v3093 = vunpack.c.l.b16 %v730
  %v3094 = vunpack.c.h.b16 %v730
  %v3095 = vunpack.c.l.b16 %v731
  %v3096 = vunpack.c.h.b16 %v731
  %v3097 = vunpack.c.l.b16 %v732
  %v3098 = vunpack.c.h.b16 %v732
  %v3099 = vunpack.c.l.b16 %v733
  %v3100 = vunpack.c.h.b16 %v733
  %v3101 = vunpack.c.l.b16 %v734
  %v3102 = vunpack.c.h.b16 %v734
  %v3103 = vunpack.c.l.b16 %v735
  %v3104 = vunpack.c.h.b16 %v735
  %v3105 = vunpack.c.l.b16 %v736
  %v3106 = vunpack.c.h.b16 %v736
  %v3107 = vunpack.c.l.b16 %v737
  %v3108 = vunpack.c.h.b16 %v737
  %v3109 = vunpack.c.l.b16 %v738
  %v3110 = vunpack.c.h.b16 %v738
  %v3111 = vunpack.c.l.b16 %v739
  %v3112 = vunpack.c.h.b16 %v739
  %v3113 = vunpack.c.l.b16 %v740
  %v3114 = vunpack.c.h.b16 %v740
  %v3115 = vunpack.c.l.b16 %v741
  %v3116 = vunpack.c.h.b16 %v741
  %v3117 = vunpack.c.l.b16 %v742
  %v3118 = vunpack.c.h.b16 %v742
  %v3119 = vunpack.c.l.b16 %v743
  %v3120 = vunpack.c.h.b16 %v743
  %v3121 = vunpack.c.l.b16 %v744
  %v3122 = vunpack.c.h.b16 %v744
  %v3123 = vunpack.c.l.b16 %v745
  %v3124 = vunpack.c.h.b16 %v745
  %v3125 = vunpack.c.l.b16 %v746
  %v3126 = vunpack.c.h.b16 %v746
  %v3127 = vunpack.c.l.b16 %v747
  %v3128 = vunpack.c.h.b16 %v747
  %v3129 = vunpack.c.l.b16 %v748
  %v3130 = vunpack.c.h.b16 %v748
  %v3131 = vunpack.c.l.b16 %v749
  %v3132 = vunpack.c.h.b16 %v749
  %v3133 = vunpack.c.l.b16 %v750
  %v3134 = vunpack.c.h.b16 %v750
  %v3135 = vunpack.c.l.b16 %v751
  %v3136 = vunpack.c.h.b16 %v751
  %v3137 = vunpack.c.l.b16 %v752
  %v3138 = vunpack.c.h.b16 %v752
  %v3139 = vunpack.c.l.b16 %v753
  %v3140 = vunpack.c.h.b16 %v753
  %v3141 = vunpack.c.l.b16 %v754
  %v3142 = vunpack.c.h.b16 %v754
  %v3143 = vunpack.c.l.b16 %v755
  %v3144 = vunpack.c.h.b16 %v755
  %v3145 = vunpack.c.l.b16 %v756
  %v3146 = vunpack.c.h.b16 %v756
  %v3147 = vunpack.c.l.b16 %v757
  %v3148 = vunpack.c.h.b16 %v757
  %v3149 = vunpack.c.l.b16 %v758
  %v3150 = vunpack.c.h.b16 %v758
  %v3151 = vunpack.c.l.b16 %v759
  %v3152 = vunpack.c.h.b16 %v759
  %v3153 = vunpack.c.l.b16 %v760
  %v3154 = vunpack.c.h.b16 %v760
  %v3155 = vunpack.c.l.b16 %v761
  %v3156 = vunpack.c.h.b16 %v761
  %v3157 = vunpack.c.l.b16 %v762
  %v3158 = vunpack.c.h.b16 %v762
  %v3159 = vunpack.c.l.b16 %v763
  %v3160 = vunpack.c.h.b16 %v763
  %v3161 = vunpack.c.l.b16 %v764
  %v3162 = vunpack.c.h.b16 %v764
  %v3163 = vunpack.c.l.b16 %v765
  %v3164 = vunpack.c.h.b16 %v765
  %v3165 = vunpack.c.l.b16 %v766
  %v3166 = vunpack.c.h.b16 %v766
  %v3167 = vunpack.c.l.b16 %v767
  %v3168 = vunpack.c.h.b16 %v767
  %v3169 = vunpack.c.l.b16 %v768
  %v3170 = vunpack.c.h.b16 %v768
  %v3171 = vunpack.c.l.b16 %v769
  %v3172 = vunpack.c.h.b16 %v769
  %v3173 = vunpack.c.l.b16 %v770
  %v3174 = vunpack.c.h.b16 %v770
  %v3175 = vunpack.c.l.b16 %v771
  %v3176 = vunpack.c.h.b16 %v771
  %v3177 = vunpack.c.l.b16 %v772
  %v3178 = vunpack.c.h.b16 %v772
  %v3179 = vunpack.c.l.b16 %v773
  %v3180 = vunpack.c.h.b16 %v773
  %v3181 = vunpack.c.l.b16 %v774
  %v3182 = vunpack.c.h.b16 %v774
  %v3183 = vunpack.c.l.b16 %v775
  %v3184 = vunpack.c.h.b16 %v775
  %v3185 = vunpack.c.l.b16 %v776
  %v3186 = vunpack.c.h.b16 %v776
  %v3187 = vunpack.c.l.b16 %v777
  %v3188 = vunpack.c.h.b16 %v777
  %v3189 = vunpack.c.l.b16 %v778
  %v3190 = vunpack.c.h.b16 %v778
  %v3191 = vunpack.c.l.b16 %v779
  %v3192 = vunpack.c.h.b16 %v779
  %v3193 = vunpack.c.l.b16 %v780
  %v3194 = vunpack.c.h.b16 %v780
  %v3195 = vunpack.c.l.b16 %v781
  %v3196 = vunpack.c.h.b16 %v781
  %v3197 = vunpack.c.l.b16 %v782
  %v3198 = vunpack.c.h.b16 %v782
  %v3199 = vunpack.c.l.b16 %v783
  %v3200 = vunpack.c.h.b16 %v783
  %v3201 = vunpack.c.l.b16 %v784
  %v3202 = vunpack.c.h.b16 %v784
  %v3203 = vunpack.c.l.b16 %v785
  %v3204 = vunpack.c.h.b16 %v785
  %v3205 = vunpack.c.l.b16 %v786
  %v3206 = vunpack.c.h.b16 %v786
  %v3207 = vunpack.c.l.b16 %v787
  %v3208 = vunpack.c.h.b16 %v787
  %v3209 = vunpack.c.l.b16 %v788
  %v3210 = vunpack.c.h.b16 %v788
  %v3211 = vunpack.c.l.b16 %v789
  %v3212 = vunpack.c.h.b16 %v789
  %v3213 = vunpack.c.l.b16 %v790
  %v3214 = vunpack.c.h.b16 %v790
  %v3215 = vunpack.c.l.b16 %v791
  %v3216 = vunpack.c.h.b16 %v791
  %v3217 = vunpack.c.l.b16 %v792
  %v3218 = vunpack.c.h.b16 %v792
  %v3219 = vunpack.c.l.b16 %v793
  %v3220 = vunpack.c.h.b16 %v793
  %v3221 = vunpack.c.l.b16 %v794
  %v3222 = vunpack.c.h.b16 %v794
  %v3223 = vunpack.c.l.b16 %v795
  %v3224 = vunpack.c.h.b16 %v795
  %v3225 = vunpack.c.l.b16 %v796
  %v3226 = vunpack.c.h.b16 %v796
  %v3227 = vunpack.c.l.b16 %v797
  %v3228 = vunpack.c.h.b16 %v797
  %v3229 = vunpack.c.l.b16 %v798
  %v3230 = vunpack.c.h.b16 %v798
  %v3231 = vunpack.c.l.b16 %v799
  %v3232 = vunpack.c.h.b16 %v799
  %v3233 = vunpack.c.l.b16 %v800
  %v3234 = vunpack.c.h.b16 %v800
  %v3235 = vunpack.c.l.b16 %v801
  %v3236 = vunpack.c.h.b16 %v801
  %v3237 = vunpack.c.l.b16 %v802
  %v3238 = vunpack.c.h.b16 %v802
  %v3239 = vunpack.c.l.b16 %v803
  %v3240 = vunpack.c.h.b16 %v803
  %v3241 = vunpack.c.l.b16 %v804
  %v3242 = vunpack.c.h.b16 %v804
  %v3243 = vunpack.c.l.b16 %v805
  %v3244 = vunpack.c.h.b16 %v805
  %v3245 = vunpack.c.l.b16 %v806
  %v3246 = vunpack.c.h.b16 %v806
  %v3247 = vunpack.c.l.b16 %v807
  %v3248 = vunpack.c.h.b16 %v807
  %v3249 = vunpack.c.l.b16 %v808
  %v3250 = vunpack.c.h.b16 %v808
  %v3251 = vunpack.c.l.b16 %v809
  %v3252 = vunpack.c.h.b16 %v809
  %v3253 = vunpack.c.l.b16 %v810
  %v3254 = vunpack.c.h.b16 %v810
  %v3255 = vunpack.c.l.b16 %v811
  %v3256 = vunpack.c.h.b16 %v811
  %v3257 = vunpack.c.l.b16 %v812
  %v3258 = vunpack.c.h.b16 %v812
  %v3259 = vunpack.c.l.b16 %v813
  %v3260 = vunpack.c.h.b16 %v813
  %v3261 = vunpack.c.l.b16 %v814
  %v3262 = vunpack.c.h.b16 %v814
  %v3263 = vunpack.c.l.b16 %v815
  %v3264 = vunpack.c.h.b16 %v815
  %v3265 = vunpack.c.l.b16 %v816
  %v3266 = vunpack.c.h.b16 %v816
  %v3267 = vunpack.c.l.b16 %v817
  %v3268 = vunpack.c.h.b16 %v817
  %v3269 = vunpack.c.l.b16 %v818
  %v3270 = vunpack.c.h.b16 %v818
  %v3271 = vunpack.c.l.b16 %v819
  %v3272 = vunpack.c.h.b16 %v819
  %v3273 = vunpack.c.l.b16 %v820
  %v3274 = vunpack.c.h.b16 %v820
  %v3275 = vunpack.c.l.b16 %v821
  %v3276 = vunpack.c.h.b16 %v821
  %v3277 = vunpack.c.l.b16 %v822
  %v3278 = vunpack.c.h.b16 %v822
  %v3279 = vunpack.c.l.b16 %v823
  %v3280 = vunpack.c.h.b16 %v823
  %v3281 = vunpack.c.l.b16 %v824
  %v3282 = vunpack.c.h.b16 %v824
  %v3283 = vunpack.c.l.b16 %v825
  %v3284 = vunpack.c.h.b16 %v825
  %v3285 = vunpack.c.l.b16 %v826
  %v3286 = vunpack.c.h.b16 %v826
  %v3287 = vunpack.c.l.b16 %v827
  %v3288 = vunpack.c.h.b16 %v827
  %v3289 = vunpack.c.l.b16 %v828
  %v3290 = vunpack.c.h.b16 %v828
  %v3291 = vunpack.c.l.b16 %v829
  %v3292 = vunpack.c.h.b16 %v829
  %v3293 = vunpack.c.l.b16 %v830
  %v3294 = vunpack.c.h.b16 %v830
  %v3295 = vunpack.c.l.b16 %v831
  %v3296 = vunpack.c.h.b16 %v831
  %v3297 = vunpack.c.l.b16 %v832
  %v3298 = vunpack.c.h.b16 %v832
  %v3299 = vunpack.c.l.b16 %v833
  %v3300 = vunpack.c.h.b16 %v833
  %v3301 = vunpack.c.l.b16 %v834
  %v3302 = vunpack.c.h.b16 %v834
  %v3303 = vunpack.c.l.b16 %v835
  %v3304 = vunpack.c.h.b16 %v835
  %v3305 = vunpack.c.l.b16 %v836
  %v3306 = vunpack.c.h.b16 %v836
  %v3307 = vunpack.c.l.b16 %v837
  %v3308 = vunpack.c.h.b16 %v837
  %v3309 = vunpack.c.l.b16 %v838
  %v3310 = vunpack.c.h.b16 %v838
  %v3311 = vunpack.c.l.b16 %v839
  %v3312 = vunpack.c.h.b16 %v839
  %v3313 = vunpack.c.l.b16 %v840
  %v3314 = vunpack.c.h.b16 %v840
  %v3315 = vunpack.c.l.b16 %v841
  %v3316 = vunpack.c.h.b16 %v841
  %v3317 = vunpack.c.l.b16 %v842
  %v3318 = vunpack.c.h.b16 %v842
  %v3319 = vunpack.c.l.b16 %v843
  %v3320 = vunpack.c.h.b16 %v843
  %v3321 = vunpack.c.l.b16 %v844
  %v3322 = vunpack.c.h.b16 %v844
  %v3323 = vunpack.c.l.b16 %v845
  %v3324 = vunpack.c.h.b16 %v845
  %v3325 = vunpack.c.l.b16 %v846
  %v3326 = vunpack.c.h.b16 %v846
  %v3327 = vunpack.c.l.b16 %v847
  %v3328 = vunpack.c.h.b16 %v847
  %v3329 = vunpack.c.l.b16 %v848
  %v3330 = vunpack.c.h.b16 %v848
  %v3331 = vunpack.c.l.b16 %v849
  %v3332 = vunpack.c.h.b16 %v849
  %v3333 = vunpack.c.l.b16 %v850
  %v3334 = vunpack.c.h.b16 %v850
  %v3335 = vunpack.c.l.b16 %v851
  %v3336 = vunpack.c.h.b16 %v851
  %v3337 = vunpack.c.l.b16 %v852
  %v3338 = vunpack.c.h.b16 %v852
  %v3339 = vunpack.c.l.b16 %v853
  %v3340 = vunpack.c.h.b16 %v853
  %v3341 = vunpack.c.l.b16 %v854
  %v3342 = vunpack.c.h.b16 %v854
  %v3343 = vunpack.c.l.b16 %v855
  %v3344 = vunpack.c.h.b16 %v855
  %v3345 = vunpack.c.l.b16 %v856
  %v3346 = vunpack.c.h.b16 %v856
  %v3347 = vunpack.c.l.b16 %v857
  %v3348 = vunpack.c.h.b16 %v857
  %v3349 = vunpack.c.l.b16 %v858
  %v3350 = vunpack.c.h.b16 %v858
  %v3351 = vunpack.c.l.b16 %v859
  %v3352 = vunpack.c.h.b16 %v859
  %v3353 = vunpack.c.l.b16 %v860
  %v3354 = vunpack.c.h.b16 %v860
  %v3355 = vunpack.c.l.b16 %v861
  %v3356 = vunpack.c.h.b16 %v861
  %v3357 = vunpack.c.l.b16 %v862
  %v3358 = vunpack.c.h.b16 %v862
  %v3359 = vunpack.c.l.b16 %v863
  %v3360 = vunpack.c.h.b16 %v863
  %v3361 = vunpack.c.l.b16 %v864
  %v3362 = vunpack.c.h.b16 %v864
  %v3363 = vunpack.c.l.b16 %v865
  %v3364 = vunpack.c.h.b16 %v865
  %v3365 = vunpack.c.l.b16 %v866
  %v3366 = vunpack.c.h.b16 %v866
  %v3367 = vunpack.c.l.b16 %v867
  %v3368 = vunpack.c.h.b16 %v867
  %v3369 = vunpack.c.l.b16 %v868
  %v3370 = vunpack.c.h.b16 %v868
  %v3371 = vunpack.c.l.b16 %v869
  %v3372 = vunpack.c.h.b16 %v869
  %v3373 = vunpack.c.l.b16 %v870
  %v3374 = vunpack.c.h.b16 %v870
  %v3375 = vunpack.c.l.b16 %v871
  %v3376 = vunpack.c.h.b16 %v871
  %v3377 = vunpack.c.l.b16 %v872
  %v3378 = vunpack.c.h.b16 %v872
  %v3379 = vunpack.c.l.b16 %v873
  %v3380 = vunpack.c.h.b16 %v873
  %v3381 = vunpack.c.l.b16 %v874
  %v3382 = vunpack.c.h.b16 %v874
  %v3383 = vunpack.c.l.b16 %v875
  %v3384 = vunpack.c.h.b16 %v875
  %v3385 = vunpack.c.l.b16 %v876
  %v3386 = vunpack.c.h.b16 %v876
  %v3387 = vunpack.c.l.b16 %v877
  %v3388 = vunpack.c.h.b16 %v877
  %v3389 = vunpack.c.l.b16 %v878
  %v3390 = vunpack.c.h.b16 %v878
  %v3391 = vunpack.c.l.b16 %v879
  %v3392 = vunpack.c.h.b16 %v879
  %v3393 = vunpack.c.l.b16 %v880
  %v3394 = vunpack.c.h.b16 %v880
  %v3395 = vunpack.c.l.b16 %v881
  %v3396 = vunpack.c.h.b16 %v881
  %v3397 = vunpack.c.l.b16 %v882
  %v3398 = vunpack.c.h.b16 %v882
  %v3399 = vunpack.c.l.b16 %v883
  %v3400 = vunpack.c.h.b16 %v883
  %v3401 = vunpack.c.l.b16 %v884
  %v3402 = vunpack.c.h.b16 %v884
  %v3403 = vunpack.c.l.b16 %v885
  %v3404 = vunpack.c.h.b16 %v885
  %v3405 = vunpack.c.l.b16 %v886
  %v3406 = vunpack.c.h.b16 %v886
  %v3407 = vunpack.c.l.b16 %v887
  %v3408 = vunpack.c.h.b16 %v887
  %v3409 = vunpack.c.l.b16 %v888
  %v3410 = vunpack.c.h.b16 %v888
  %v3411 = vunpack.c.l.b16 %v889
  %v3412 = vunpack.c.h.b16 %v889
  %v3413 = vunpack.c.l.b16 %v890
  %v3414 = vunpack.c.h.b16 %v890
  %v3415 = vunpack.c.l.b16 %v891
  %v3416 = vunpack.c.h.b16 %v891
  %v3417 = vunpack.c.l.b16 %v892
  %v3418 = vunpack.c.h.b16 %v892
  %v3419 = vunpack.c.l.b16 %v893
  %v3420 = vunpack.c.h.b16 %v893
  %v3421 = vunpack.c.l.b16 %v894
  %v3422 = vunpack.c.h.b16 %v894
  %v3423 = vunpack.c.l.b16 %v895
  %v3424 = vunpack.c.h.b16 %v895
  %v3425 = vunpack.c.l.b16 %v896
  %v3426 = vunpack.c.h.b16 %v896
  %v3427 = vunpack.c.l.b16 %v897
  %v3428 = vunpack.c.h.b16 %v897
  %v3429 = vunpack.c.l.b16 %v898
  %v3430 = vunpack.c.h.b16 %v898
  %v3431 = vunpack.c.l.b16 %v899
  %v3432 = vunpack.c.h.b16 %v899
  %v3433 = vunpack.c.l.b16 %v900
  %v3434 = vunpack.c.h.b16 %v900
  %v3435 = vunpack.c.l.b16 %v901
  %v3436 = vunpack.c.h.b16 %v901
  %v3437 = vunpack.c.l.b16 %v902
  %v3438 = vunpack.c.h.b16 %v902
  %v3439 = vunpack.c.l.b16 %v903
  %v3440 = vunpack.c.h.b16 %v903
  %v3441 = vunpack.c.l.b16 %v904
  %v3442 = vunpack.c.h.b16 %v904
  %v3443 = vunpack.c.l.b16 %v905
  %v3444 = vunpack.c.h.b16 %v905
  %v3445 = vunpack.c.l.b16 %v906
  %v3446 = vunpack.c.h.b16 %v906
  %v3447 = vunpack.c.l.b16 %v907
  %v3448 = vunpack.c.h.b16 %v907
  %v3449 = vunpack.c.l.b16 %v908
  %v3450 = vunpack.c.h.b16 %v908
  %v3451 = vunpack.c.l.b16 %v909
  %v3452 = vunpack.c.h.b16 %v909
  %v3453 = vunpack.c.l.b16 %v910
  %v3454 = vunpack.c.h.b16 %v910
  %v3455 = vunpack.c.l.b16 %v911
  %v3456 = vunpack.c.h.b16 %v911
  %v3457 = vunpack.c.l.b16 %v912
  %v3458 = vunpack.c.h.b16 %v912
  %v3459 = vunpack.c.l.b16 %v913
  %v3460 = vunpack.c.h.b16 %v913
  %v3461 = vunpack.c.l.b16 %v914
  %v3462 = vunpack.c.h.b16 %v914
  %v3463 = vunpack.c.l.b16 %v915
  %v3464 = vunpack.c.h.b16 %v915
  %v3465 = vunpack.c.l.b16 %v916
  %v3466 = vunpack.c.h.b16 %v916
  %v3467 = vunpack.c.l.b16 %v917
  %v3468 = vunpack.c.h.b16 %v917
  %v3469 = vunpack.c.l.b16 %v918
  %v3470 = vunpack.c.h.b16 %v918
  %v3471 = vunpack.c.l.b16 %v919
  %v3472 = vunpack.c.h.b16 %v919
  %v3473 = vunpack.c.l.b16 %v920
  %v3474 = vunpack.c.h.b16 %v920
  %v3475 = vunpack.c.l.b16 %v921
  %v3476 = vunpack.c.h.b16 %v921
  %v3477 = vunpack.c.l.b16 %v922
  %v3478 = vunpack.c.h.b16 %v922
  %v3479 = vunpack.c.l.b16 %v923
  %v3480 = vunpack.c.h.b16 %v923
  %v3481 = vunpack.c.l.b16 %v924
  %v3482 = vunpack.c.h.b16 %v924
  %v3483 = vunpack.c.l.b16 %v925
  %v3484 = vunpack.c.h.b16 %v925
  %v3485 = vunpack.c.l.b16 %v926
  %v3486 = vunpack.c.h.b16 %v926
  %v3487 = vunpack.c.l.b16 %v927
  %v3488 = vunpack.c.h.b16 %v927
  %v3489 = vunpack.c.l.b16 %v928
  %v3490 = vunpack.c.h.b16 %v928
  %v3491 = vunpack.c.l.b16 %v929
  %v3492 = vunpack.c.h.b16 %v929
  %v3493 = vunpack.c.l.b16 %v930
  %v3494 = vunpack.c.h.b16 %v930
  %v3495 = vunpack.c.l.b16 %v931
  %v3496 = vunpack.c.h.b16 %v931
  %v3497 = vunpack.c.l.b16 %v932
  %v3498 = vunpack.c.h.b16 %v932
  %v3499 = vunpack.c.l.b16 %v933
  %v3500 = vunpack.c.h.b16 %v933
  %v3501 = vunpack.c.l.b16 %v934
  %v3502 = vunpack.c.h.b16 %v934
  %v3503 = vunpack.c.l.b16 %v935
  %v3504 = vunpack.c.h.b16 %v935
  %v3505 = vunpack.c.l.b16 %v936
  %v3506 = vunpack.c.h.b16 %v936
  %v3507 = vunpack.c.l.b16 %v937
  %v3508 = vunpack.c.h.b16 %v937
  %v3509 = vunpack.c.l.b16 %v938
  %v3510 = vunpack.c.h.b16 %v938
  %v3511 = vunpack.c.l.b16 %v939
  %v3512 = vunpack.c.h.b16 %v939
  %v3513 = vunpack.c.l.b16 %v940
  %v3514 = vunpack.c.h.b16 %v940
  %v3515 = vunpack.c.l.b16 %v941
  %v3516 = vunpack.c.h.b16 %v941
  %v3517 = vunpack.c.l.b16 %v942
  %v3518 = vunpack.c.h.b16 %v942
  %v3519 = vunpack.c.l.b16 %v943
  %v3520 = vunpack.c.h.b16 %v943
  %v3521 = vunpack.c.l.b16 %v944
  %v3522 = vunpack.c.h.b16 %v944
  %v3523 = vunpack.c.l.b16 %v945
  %v3524 = vunpack.c.h.b16 %v945
  %v3525 = vunpack.c.l.b16 %v946
  %v3526 = vunpack.c.h.b16 %v946
  %v3527 = vunpack.c.l.b16 %v947
  %v3528 = vunpack.c.h.b16 %v947
  %v3529 = vunpack.c.l.b16 %v948
  %v3530 = vunpack.c.h.b16 %v948
  %v3531 = vunpack.c.l.b16 %v949
  %v3532 = vunpack.c.h.b16 %v949
  %v3533 = vunpack.c.l.b16 %v950
  %v3534 = vunpack.c.h.b16 %v950
  %v3535 = vunpack.c.l.b16 %v951
  %v3536 = vunpack.c.h.b16 %v951
  %v3537 = vunpack.c.l.b16 %v952
  %v3538 = vunpack.c.h.b16 %v952
  %v3539 = vunpack.c.l.b16 %v953
  %v3540 = vunpack.c.h.b16 %v953
  %v3541 = vunpack.c.l.b16 %v954
  %v3542 = vunpack.c.h.b16 %v954
  %v3543 = vunpack.c.l.b16 %v955
  %v3544 = vunpack.c.h.b16 %v955
  %v3545 = vunpack.c.l.b16 %v956
  %v3546 = vunpack.c.h.b16 %v956
  %v3547 = vunpack.c.l.b16 %v957
  %v3548 = vunpack.c.h.b16 %v957
  %v3549 = vunpack.c.l.b16 %v958
  %v3550 = vunpack.c.h.b16 %v958
  %v3551 = vunpack.c.l.b16 %v959
  %v3552 = vunpack.c.h.b16 %v959
  %v3553 = vunpack.c.l.b16 %v960
  %v3554 = vunpack.c.h.b16 %v960
  %v3555 = vunpack.c.l.b16 %v961
  %v3556 = vunpack.c.h.b16 %v961
  %v3557 = vunpack.c.l.b16 %v962
  %v3558 = vunpack.c.h.b16 %v962
  %v3559 = vunpack.c.l.b16 %v963
  %v3560 = vunpack.c.h.b16 %v963
  %v3561 = vunpack.c.l.b16 %v964
  %v3562 = vunpack.c.h.b16 %v964
  %v3563 = vunpack.c.l.b16 %v965
  %v3564 = vunpack.c.h.b16 %v965
  %v3565 = vunpack.c.l.b16 %v966
  %v3566 = vunpack.c.h.b16 %v966
  %v3567 = vunpack.c.l.b16 %v967
  %v3568 = vunpack.c.h.b16 %v967
  %v3569 = vunpack.c.l.b16 %v968
  %v3570 = vunpack.c.h.b16 %v968
  %v3571 = vunpack.c.l.b16 %v969
  %v3572 = vunpack.c.h.b16 %v969
  %v3573 = vunpack.c.l.b16 %v970
  %v3574 = vunpack.c.h.b16 %v970
  %v3575 = vunpack.c.l.b16 %v971
  %v3576 = vunpack.c.h.b16 %v971
  %v3577 = vunpack.c.l.b16 %v972
  %v3578 = vunpack.c.h.b16 %v972
  %v3579 = vunpack.c.l.b16 %v973
  %v3580 = vunpack.c.h.b16 %v973
  %v3581 = vunpack.c.l.b16 %v974
  %v3582 = vunpack.c.h.b16 %v974
  %v3583 = vunpack.c.l.b16 %v975
  %v3584 = vunpack.c.h.b16 %v975
  %v3585 = vunpack.c.l.b16 %v976
  %v3586 = vunpack.c.h.b16 %v976
  %v3587 = vunpack.c.l.b16 %v977
  %v3588 = vunpack.c.h.b16 %v977
  %v3589 = vunpack.c.l.b16 %v978
  %v3590 = vunpack.c.h.b16 %v978
  %v3591 = vunpack.c.l.b16 %v979
  %v3592 = vunpack.c.h.b16 %v979
  %v3593 = vunpack.c.l.b16 %v980
  %v3594 = vunpack.c.h.b16 %v980
  %v3595 = vunpack.c.l.b16 %v981
  %v3596 = vunpack.c.h.b16 %v981
  %v3597 = vunpack.c.l.b16 %v982
  %v3598 = vunpack.c.h.b16 %v982
  %v3599 = vunpack.c.l.b16 %v983
  %v3600 = vunpack.c.h.b16 %v983
  %v3601 = vunpack.c.l.b16 %v984
  %v3602 = vunpack.c.h.b16 %v984
  %v3603 = vunpack.c.l.b16 %v985
  %v3604 = vunpack.c.h.b16 %v985
  %v3605 = vunpack.c.l.b16 %v986
  %v3606 = vunpack.c.h.b16 %v986
  %v3607 = vunpack.c.l.b16 %v987
  %v3608 = vunpack.c.h.b16 %v987
  %v3609 = vunpack.c.l.b16 %v988
  %v3610 = vunpack.c.h.b16 %v988
  %v3611 = vunpack.c.l.b16 %v989
  %v3612 = vunpack.c.h.b16 %v989
  %v3613 = vunpack.c.l.b16 %v990
  %v3614 = vunpack.c.h.b16 %v990
  %v3615 = vunpack.c.l.b16 %v991
  %v3616 = vunpack.c.h.b16 %v991
  %v3617 = vunpack.c.l.b16 %v992
  %v3618 = vunpack.c.h.b16 %v992
  %v3619 = vunpack.c.l.b16 %v993
  %v3620 = vunpack.c.h.b16 %v993
  %v3621 = vunpack.c.l.b16 %v994
  %v3622 = vunpack.c.h.b16 %v994
  %v3623 = vunpack.c.l.b16 %v995
  %v3624 = vunpack.c.h.b16 %v995
  %v3625 = vunpack.c.l.b16 %v996
  %v3626 = vunpack.c.h.b16 %v996
  %v3627 = vunpack.c.l.b16 %v997
  %v3628 = vunpack.c.h.b16 %v997
  %v3629 = vunpack.c.l.b16 %v998
  %v3630 = vunpack.c.h.b16 %v998
  %v3631 = vunpack.c.l.b16 %v999
  %v3632 = vunpack.c.h.b16 %v999
  %v3633 = vunpack.c.l.b16 %v1000
  %v3634 = vunpack.c.h.b16 %v1000
  %v3635 = vunpack.c.l.b16 %v1001
  %v3636 = vunpack.c.h.b16 %v1001
  %v3637 = vunpack.c.l.b16 %v1002
  %v3638 = vunpack.c.h.b16 %v1002
  %v3639 = vunpack.c.l.b16 %v1003
  %v3640 = vunpack.c.h.b16 %v1003
  %v3641 = vunpack.c.l.b16 %v1004
  %v3642 = vunpack.c.h.b16 %v1004
  %v3643 = vunpack.c.l.b16 %v1005
  %v3644 = vunpack.c.h.b16 %v1005
  %v3645 = vunpack.c.l.b16 %v1006
  %v3646 = vunpack.c.h.b16 %v1006
  %v3647 = vunpack.c.l.b16 %v1007
  %v3648 = vunpack.c.h.b16 %v1007
  %v3649 = vunpack.c.l.b16 %v1008
  %v3650 = vunpack.c.h.b16 %v1008
  %v3651 = vunpack.c.l.b16 %v1009
  %v3652 = vunpack.c.h.b16 %v1009
  %v3653 = vunpack.c.l.b16 %v1010
  %v3654 = vunpack.c.h.b16 %v1010
  %v3655 = vunpack.c.l.b16 %v1011
  %v3656 = vunpack.c.h.b16 %v1011
  %v3657 = vunpack.c.l.b16 %v1012
  %v3658 = vunpack.c.h.b16 %v1012
  %v3659 = vunpack.c.l.b16 %v1013
  %v3660 = vunpack.c.h.b16 %v1013
  %v3661 = vunpack.c.l.b16 %v1014
  %v3662 = vunpack.c.h.b16 %v1014
  %v3663 = vunpack.c.l.b16 %v1015
  %v3664 = vunpack.c.h.b16 %v1015
  %v3665 = vunpack.c.l.b16 %v1016
  %v3666 = vunpack.c.h.b16 %v1016
  %v3667 = vunpack.c.l.b16 %v1017
  %v3668 = vunpack.c.h.b16 %v1017
  %v3669 = vunpack.c.l.b16 %v1018
  %v3670 = vunpack.c.h.b16 %v1018
  %v3671 = vunpack.c.l.b16 %v1019
  %v3672 = vunpack.c.h.b16 %v1019
  %v3673 = vunpack.c.l.b16 %v1020
  %v3674 = vunpack.c.h.b16 %v1020
  %v3675 = vunpack.c.l.b16 %v1021
  %v3676 = vunpack.c.h.b16 %v1021
  %v3677 = vunpack.c.l.b16 %v1022
  %v3678 = vunpack.c.h.b16 %v1022
  %v3679 = vunpack.c.l.b16 %v1023
  %v3680 = vunpack.c.h.b16 %v1023
  %v3681 = vunpack.c.l.b16 %v1024
  %v3682 = vunpack.c.h.b16 %v1024
  %v3683 = vunpack.c.l.b16 %v1025
  %v3684 = vunpack.c.h.b16 %v1025
  %v3685 = vunpack.c.l.b16 %v1026
  %v3686 = vunpack.c.h.b16 %v1026
  %v3687 = vunpack.c.l.b16 %v1027
  %v3688 = vunpack.c.h.b16 %v1027
  %v3689 = vunpack.c.l.b16 %v1028
  %v3690 = vunpack.c.h.b16 %v1028
  %v3691 = vunpack.c.l.b16 %v1029
  %v3692 = vunpack.c.h.b16 %v1029
  %v3693 = vunpack.c.l.b16 %v1030
  %v3694 = vunpack.c.h.b16 %v1030
  %v3695 = vunpack.c.l.b16 %v1031
  %v3696 = vunpack.c.h.b16 %v1031
  %v3697 = vunpack.c.l.b16 %v1032
  %v3698 = vunpack.c.h.b16 %v1032
  %v3699 = vunpack.c.l.b16 %v1033
  %v3700 = vunpack.c.h.b16 %v1033
  %v3701 = vunpack.c.l.b16 %v1034
  %v3702 = vunpack.c.h.b16 %v1034
  %v3703 = vunpack.c.l.b16 %v1035
  %v3704 = vunpack.c.h.b16 %v1035
  %v3705 = vunpack.c.l.b16 %v1036
  %v3706 = vunpack.c.h.b16 %v1036
  %v3707 = vunpack.c.l.b16 %v1037
  %v3708 = vunpack.c.h.b16 %v1037
  %v3709 = vunpack.c.l.b16 %v1038
  %v3710 = vunpack.c.h.b16 %v1038
  %v3711 = vunpack.c.l.b16 %v1039
  %v3712 = vunpack.c.h.b16 %v1039
  %v3713 = vunpack.c.l.b16 %v1040
  %v3714 = vunpack.c.h.b16 %v1040
  %v3715 = vunpack.c.l.b16 %v1041
  %v3716 = vunpack.c.h.b16 %v1041
  %v3717 = vunpack.c.l.b16 %v1042
  %v3718 = vunpack.c.h.b16 %v1042
  %v3719 = vunpack.c.l.b16 %v1043
  %v3720 = vunpack.c.h.b16 %v1043
  %v3721 = vunpack.c.l.b16 %v1044
  %v3722 = vunpack.c.h.b16 %v1044
  %v3723 = vunpack.c.l.b16 %v1045
  %v3724 = vunpack.c.h.b16 %v1045
  %v3725 = vunpack.c.l.b16 %v1046
  %v3726 = vunpack.c.h.b16 %v1046
  %v3727 = vunpack.c.l.b16 %v1047
  %v3728 = vunpack.c.h.b16 %v1047
  %v3729 = vunpack.c.l.b16 %v1048
  %v3730 = vunpack.c.h.b16 %v1048
  %v3731 = vunpack.c.l.b16 %v1049
  %v3732 = vunpack.c.h.b16 %v1049
  %v3733 = vunpack.c.l.b16 %v1050
  %v3734 = vunpack.c.h.b16 %v1050
  %v3735 = vunpack.c.l.b16 %v1051
  %v3736 = vunpack.c.h.b16 %v1051
  %v3737 = vunpack.c.l.b16 %v1052
  %v3738 = vunpack.c.h.b16 %v1052
  %v3739 = vunpack.c.l.b16 %v1053
  %v3740 = vunpack.c.h.b16 %v1053
  %v3741 = vunpack.c.l.b16 %v1054
  %v3742 = vunpack.c.h.b16 %v1054
  %v3743 = vunpack.c.l.b16 %v1055
  %v3744 = vunpack.c.h.b16 %v1055
  %v3745 = vunpack.c.l.b16 %v1056
  %v3746 = vunpack.c.h.b16 %v1056
  %v3747 = vunpack.c.l.b16 %v1057
  %v3748 = vunpack.c.h.b16 %v1057
  %v3749 = vunpack.c.l.b16 %v1058
  %v3750 = vunpack.c.h.b16 %v1058
  %v3751 = vunpack.c.l.b16 %v1059
  %v3752 = vunpack.c.h.b16 %v1059
  %v3753 = vunpack.c.l.b16 %v1060
  %v3754 = vunpack.c.h.b16 %v1060
  %v3755 = vunpack.c.l.b16 %v1061
  %v3756 = vunpack.c.h.b16 %v1061
  %v3757 = vunpack.c.l.b16 %v1062
  %v3758 = vunpack.c.h.b16 %v1062
  %v3759 = vunpack.c.l.b16 %v1063
  %v3760 = vunpack.c.h.b16 %v1063
  %v3761 = vunpack.c.l.b16 %v1064
  %v3762 = vunpack.c.h.b16 %v1064
  %v3763 = vunpack.c.l.b16 %v1065
  %v3764 = vunpack.c.h.b16 %v1065
  %v3765 = vunpack.c.l.b16 %v1066
  %v3766 = vunpack.c.h.b16 %v1066
  %v3767 = vpack.c.b16 %v1973, %v1967
  %v3768 = vpack.c.b16 %v1974, %v1968
  %v3769 = vpack.c.b16 %v1975, %v1969
  %v3770 = vpack.c.b16 %v1976, %v1970
  %v3771 = vpack.c.b16 %v1977, %v1971
  %v3772 = vpack.c.b16 %v1978, %v1972
  %v3773 = vpack.c.b16 %v1985, %v1979
  %v3774 = vpack.c.b16 %v1986, %v1980
  %v3775 = vpack.c.b16 %v1987, %v1981
  %v3776 = vpack.c.b16 %v1988, %v1982
  %v3777 = vpack.c.b16 %v1989, %v1983
  %v3778 = vpack.c.b16 %v1990, %v1984
  %v3779 = vpack.c.b16 %v1997, %v1991
  %v3780 = vpack.c.b16 %v1998, %v1992
  %v3781 = vpack.c.b16 %v1999, %v1993
  %v3782 = vpack.c.b16 %v2000, %v1994
  %v3783 = vpack.c.b16 %v2001, %v1995
  %v3784 = vpack.c.b16 %v2002, %v1996
  %v3785 = vpack.c.b16 %v2009, %v2003
  %v3786 = vpack.c.b16 %v2010, %v2004
  %v3787 = vpack.c.b16 %v2011, %v2005
  %v3788 = vpack.c.b16 %v2012, %v2006
  %v3789 = vpack.c.b16 %v2013, %v2007
  %v3790 = vpack.c.b16 %v2014, %v2008
  %v3791 = vpack.c.b16 %v2021, %v2015
  %v3792 = vpack.c.b16 %v2022, %v2016
  %v3793 = vpack.c.b16 %v2023, %v2017
  %v3794 = vpack.c.b16 %v2024, %v2018
  %v3795 = vpack.c.b16 %v2025, %v2019
  %v3796 = vpack.c.b16 %v2026, %v2020
  %v3797 = vpack.c.b16 %v2033, %v2027
  %v3798 = vpack.c.b16 %v2034, %v2028
  %v3799 = vpack.c.b16 %v2035, %v2029
  %v3800 = vpack.c.b16 %v2036, %v2030
  %v3801 = vpack.c.b16 %v2037, %v2031
  %v3802 = vpack.c.b16 %v2038, %v2032
  %v3803 = vpack.c.b16 %v2045, %v2039
  %v3804 = vpack.c.b16 %v2046, %v2040
  %v3805 = vpack.c.b16 %v2047, %v2041
  %v3806 = vpack.c.b16 %v2048, %v2042
  %v3807 = vpack.c.b16 %v2049, %v2043
  %v3808 = vpack.c.b16 %v2050, %v2044
  %v3809 = vpack.c.b16 %v2057, %v2051
  %v3810 = vpack.c.b16 %v2058, %v2052
  %v3811 = vpack.c.b16 %v2059, %v2053
  %v3812 = vpack.c.b16 %v2060, %v2054
  %v3813 = vpack.c.b16 %v2061, %v2055
  %v3814 = vpack.c.b16 %v2062, %v2056
  %v3815 = vpack.c.b16 %v2069, %v2063
  %v3816 = vpack.c.b16 %v2070, %v2064
  %v3817 = vpack.c.b16 %v2071, %v2065
  %v3818 = vpack.c.b16 %v2072, %v2066
  %v3819 = vpack.c.b16 %v2073, %v2067
  %v3820 = vpack.c.b16 %v2074, %v2068
  %v3821 = vpack.c.b16 %v2081, %v2075
  %v3822 = vpack.c.b16 %v2082, %v2076
  %v3823 = vpack.c.b16 %v2083, %v2077
  %v3824 = vpack.c.b16 %v2084, %v2078
  %v3825 = vpack.c.b16 %v2085, %v2079
  %v3826 = vpack.c.b16 %v2086, %v2080
  %v3827 = vpack.c.b16 %v2093, %v2087
  %v3828 = vpack.c.b16 %v2094, %v2088
  %v3829 = vpack.c.b16 %v2095, %v2089
  %v3830 = vpack.c.b16 %v2096, %v2090
  %v3831 = vpack.c.b16 %v2097, %v2091
  %v3832 = vpack.c.b16 %v2098, %v2092
  %v3833 = vpack.c.b16 %v2105, %v2099
  %v3834 = vpack.c.b16 %v2106, %v2100
  %v3835 = vpack.c.b16 %v2107, %v2101
  %v3836 = vpack.c.b16 %v2108, %v2102
  %v3837 = vpack.c.b16 %v2109, %v2103
  %v3838 = vpack.c.b16 %v2110, %v2104
  %v3839 = vpack.c.b16 %v2117, %v2111
  %v3840 = vpack.c.b16 %v2118, %v2112
  %v3841 = vpack.c.b16 %v2119, %v2113
  %v3842 = vpack.c.b16 %v2120, %v2114
  %v3843 = vpack.c.b16 %v2121, %v2115
  %v3844 = vpack.c.b16 %v2122, %v2116
  %v3845 = vpack.c.b16 %v2129, %v2123
  %v3846 = vpack.c.b16 %v2130, %v2124
  %v3847 = vpack.c.b16 %v2131, %v2125
  %v3848 = vpack.c.b16 %v2132, %v2126
  %v3849 = vpack.c.b16 %v2133, %v2127
  %v3850 = vpack.c.b16 %v2134, %v2128
  %v3851 = vpack.c.b16 %v2141, %v2135
  %v3852 = vpack.c.b16 %v2142, %v2136
  %v3853 = vpack.c.b16 %v2143, %v2137
  %v3854 = vpack.c.b16 %v2144, %v2138
  %v3855 = vpack.c.b16 %v2145, %v2139
  %v3856 = vpack.c.b16 %v2146, %v2140
  %v3857 = vpack.c.b16 %v2153, %v2147
  %v3858 = vpack.c.b16 %v2154, %v2148
  %v3859 = vpack.c.b16 %v2155, %v2149
  %v3860 = vpack.c.b16 %v2156, %v2150
  %v3861 = vpack.c.b16 %v2157, %v2151
  %v3862 = vpack.c.b16 %v2158, %v2152
  %v3863 = vpack.c.b16 %v2165, %v2159
  %v3864 = vpack.c.b16 %v2166, %v2160
  %v3865 = vpack.c.b16 %v2167, %v2161
  %v3866 = vpack.c.b16 %v2168, %v2162
  %v3867 = vpack.c.b16 %v2169, %v2163
  %v3868 = vpack.c.b16 %v2170, %v2164
  %v3869 = vpack.c.b16 %v2177, %v2171
  %v3870 = vpack.c.b16 %v2178, %v2172
  %v3871 = vpack.c.b16 %v2179, %v2173
  %v3872 = vpack.c.b16 %v2180, %v2174
  %v3873 = vpack.c.b16 %v2181, %v2175
  %v3874 = vpack.c.b16 %v2182, %v2176
  %v3875 = vpack.c.b16 %v2189, %v2183
  %v3876 = vpack.c.b16 %v2190, %v2184
  %v3877 = vpack.c.b16 %v2191, %v2185
  %v3878 = vpack.c.b16 %v2192, %v2186
  %v3879 = vpack.c.b16 %v2193, %v2187
  %v3880 = vpack.c.b16 %v2194, %v2188
  %v3881 = vpack.c.b16 %v2201, %v2195
  %v3882 = vpack.c.b16 %v2202, %v2196
  %v3883 = vpack.c.b16 %v2203, %v2197
  %v3884 = vpack.c.b16 %v2204, %v2198
  %v3885 = vpack.c.b16 %v2205, %v2199
  %v3886 = vpack.c.b16 %v2206, %v2200
  %v3887 = vpack.c.b16 %v2213, %v2207
  %v3888 = vpack.c.b16 %v2214, %v2208
  %v3889 = vpack.c.b16 %v2215, %v2209
  %v3890 = vpack.c.b16 %v2216, %v2210
  %v3891 = vpack.c.b16 %v2217, %v2211
  %v3892 = vpack.c.b16 %v2218, %v2212
  %v3893 = vpack.c.b16 %v2225, %v2219
  %v3894 = vpack.c.b16 %v2226, %v2220
  %v3895 = vpack.c.b16 %v2227, %v2221
  %v3896 = vpack.c.b16 %v2228, %v2222
  %v3897 = vpack.c.b16 %v2229, %v2223
  %v3898 = vpack.c.b16 %v2230, %v2224
  %v3899 = vpack.c.b16 %v2237, %v2231
  %v3900 = vpack.c.b16 %v2238, %v2232
  %v3901 = vpack.c.b16 %v2239, %v2233
  %v3902 = vpack.c.b16 %v2240, %v2234
  %v3903 = vpack.c.b16 %v2241, %v2235
  %v3904 = vpack.c.b16 %v2242, %v2236
  %v3905 = vpack.c.b16 %v2249, %v2243
  %v3906 = vpack.c.b16 %v2250, %v2244
  %v3907 = vpack.c.b16 %v2251, %v2245
  %v3908 = vpack.c.b16 %v2252, %v2246
  %v3909 = vpack.c.b16 %v2253, %v2247
  %v3910 = vpack.c.b16 %v2254, %v2248
  %v3911 = vpack.c.b16 %v2261, %v2255
  %v3912 = vpack.c.b16 %v2262, %v2256
  %v3913 = vpack.c.b16 %v2263, %v2257
  %v3914 = vpack.c.b16 %v2264, %v2258
  %v3915 = vpack.c.b16 %v2265, %v2259
  %v3916 = vpack.c.b16 %v2266, %v2260
  %v3917 = vpack.c.b16 %v2273, %v2267
  %v3918 = vpack.c.b16 %v2274, %v2268
  %v3919 = vpack.c.b16 %v2275, %v2269
  %v3920 = vpack.c.b16 %v2276, %v2270
  %v3921 = vpack.c.b16 %v2277, %v2271
  %v3922 = vpack.c.b16 %v2278, %v2272
  %v3923 = vpack.c.b16 %v2285, %v2279
  %v3924 = vpack.c.b16 %v2286, %v2280
  %v3925 = vpack.c.b16 %v2287, %v2281
  %v3926 = vpack.c.b16 %v2288, %v2282
  %v3927 = vpack.c.b16 %v2289, %v2283
  %v3928 = vpack.c.b16 %v2290, %v2284
  %v3929 = vpack.c.b16 %v2297, %v2291
  %v3930 = vpack.c.b16 %v2298, %v2292
  %v3931 = vpack.c.b16 %v2299, %v2293
  %v3932 = vpack.c.b16 %v2300, %v2294
  %v3933 = vpack.c.b16 %v2301, %v2295
  %v3934 = vpack.c.b16 %v2302, %v2296
  %v3935 = vpack.c.b16 %v2309, %v2303
  %v3936 = vpack.c.b16 %v2310, %v2304
  %v3937 = vpack.c.b16 %v2311, %v2305
  %v3938 = vpack.c.b16 %v2312, %v2306
  %v3939 = vpack.c.b16 %v2313, %v2307
  %v3940 = vpack.c.b16 %v2314, %v2308
  %v3941 = vpack.c.b16 %v2321, %v2315
  %v3942 = vpack.c.b16 %v2322, %v2316
  %v3943 = vpack.c.b16 %v2323, %v2317
  %v3944 = vpack.c.b16 %v2324, %v2318
  %v3945 = vpack.c.b16 %v2325, %v2319
  %v3946 = vpack.c.b16 %v2326, %v2320
  %v3947 = vpack.c.b16 %v2333, %v2327
  %v3948 = vpack.c.b16 %v2334, %v2328
  %v3949 = vpack.c.b16 %v2335, %v2329
  %v3950 = vpack.c.b16 %v2336, %v2330
  %v3951 = vpack.c.b16 %v2337, %v2331
  %v3952 = vpack.c.b16 %v2338, %v2332
  %v3953 = vpack.c.b16 %v2345, %v2339
  %v3954 = vpack.c.b16 %v2346, %v2340
  %v3955 = vpack.c.b16 %v2347, %v2341
  %v3956 = vpack.c.b16 %v2348, %v2342
  %v3957 = vpack.c.b16 %v2349, %v2343
  %v3958 = vpack.c.b16 %v2350, %v2344
  %v3959 = vpack.c.b16 %v2357, %v2351
  %v3960 = vpack.c.b16 %v2358, %v2352
  %v3961 = vpack.c.b16 %v2359, %v2353
  %v3962 = vpack.c.b16 %v2360, %v2354
  %v3963 = vpack.c.b16 %v2361, %v2355
  %v3964 = vpack.c.b16 %v2362, %v2356
  %v3965 = vpack.c.b16 %v2369, %v2363
  %v3966 = vpack.c.b16 %v2370, %v2364
  %v3967 = vpack.c.b16 %v2371, %v2365
  %v3968 = vpack.c.b16 %v2372, %v2366
  %v3969 = vpack.c.b16 %v2373, %v2367
  %v3970 = vpack.c.b16 %v2374, %v2368
  %v3971 = vpack.c.b16 %v2381, %v2375
  %v3972 = vpack.c.b16 %v2382, %v2376
  %v3973 = vpack.c.b16 %v2383, %v2377
  %v3974 = vpack.c.b16 %v2384, %v2378
  %v3975 = vpack.c.b16 %v2385, %v2379
  %v3976 = vpack.c.b16 %v2386, %v2380
  %v3977 = vpack.c.b16 %v2393, %v2387
  %v3978 = vpack.c.b16 %v2394, %v2388
  %v3979 = vpack.c.b16 %v2395, %v2389
  %v3980 = vpack.c.b16 %v2396, %v2390
  %v3981 = vpack.c.b16 %v2397, %v2391
  %v3982 = vpack.c.b16 %v2398, %v2392
  %v3983 = vpack.c.b16 %v2405, %v2399
  %v3984 = vpack.c.b16 %v2406, %v2400
  %v3985 = vpack.c.b16 %v2407, %v2401
  %v3986 = vpack.c.b16 %v2408, %v2402
  %v3987 = vpack.c.b16 %v2409, %v2403
  %v3988 = vpack.c.b16 %v2410, %v2404
  %v3989 = vpack.c.b16 %v2417, %v2411
  %v3990 = vpack.c.b16 %v2418, %v2412
  %v3991 = vpack.c.b16 %v2419, %v2413
  %v3992 = vpack.c.b16 %v2420, %v2414
  %v3993 = vpack.c.b16 %v2421, %v2415
  %v3994 = vpack.c.b16 %v2422, %v2416
  %v3995 = vpack.c.b16 %v2429, %v2423
  %v3996 = vpack.c.b16 %v2430, %v2424
  %v3997 = vpack.c.b16 %v2431, %v2425
  %v3998 = vpack.c.b16 %v2432, %v2426
  %v3999 = vpack.c.b16 %v2433, %v2427
  %v4000 = vpack.c.b16 %v2434, %v2428
  %v4001 = vpack.c.b16 %v2441, %v2435
  %v4002 = vpack.c.b16 %v2442, %v2436
  %v4003 = vpack.c.b16 %v2443, %v2437
  %v4004 = vpack.c.b16 %v2444, %v2438
  %v4005 = vpack.c.b16 %v2445, %v2439
  %v4006 = vpack.c.b16 %v2446, %v2440
  %v4007 = vpack.c.b16 %v2453, %v2447
  %v4008 = vpack.c.b16 %v2454, %v2448
  %v4009 = vpack.c.b16 %v2455, %v2449
  %v4010 = vpack.c.b16 %v2456, %v2450
  %v4011 = vpack.c.b16 %v2457, %v2451
  %v4012 = vpack.c.b16 %v2458, %v2452
  %v4013 = vpack.c.b16 %v2465, %v2459
  %v4014 = vpack.c.b16 %v2466, %v2460
  %v4015 = vpack.c.b16 %v2467, %v2461
  %v4016 = vpack.c.b16 %v2468, %v2462
  %v4017 = vpack.c.b16 %v2469, %v2463
  %v4018 = vpack.c.b16 %v2470, %v2464
  %v4019 = vpack.c.b16 %v2477, %v2471
  %v4020 = vpack.c.b16 %v2478, %v2472
  %v4021 = vpack.c.b16 %v2479, %v2473
  %v4022 = vpack.c.b16 %v2480, %v2474
  %v4023 = vpack.c.b16 %v2481, %v2475
  %v4024 = vpack.c.b16 %v2482, %v2476
  %v4025 = vpack.c.b16 %v2489, %v2483
  %v4026 = vpack.c.b16 %v2490, %v2484
  %v4027 = vpack.c.b16 %v2491, %v2485
  %v4028 = vpack.c.b16 %v2492, %v2486
  %v4029 = vpack.c.b16 %v2493, %v2487
  %v4030 = vpack.c.b16 %v2494, %v2488
  %v4031 = vpack.c.b16 %v2501, %v2495
  %v4032 = vpack.c.b16 %v2502, %v2496
  %v4033 = vpack.c.b16 %v2503, %v2497
  %v4034 = vpack.c.b16 %v2504, %v2498
  %v4035 = vpack.c.b16 %v2505, %v2499
  %v4036 = vpack.c.b16 %v2506, %v2500
  %v4037 = vpack.c.b16 %v2513, %v2507
  %v4038 = vpack.c.b16 %v2514, %v2508
  %v4039 = vpack.c.b16 %v2515, %v2509
  %v4040 = vpack.c.b16 %v2516, %v2510
  %v4041 = vpack.c.b16 %v2517, %v2511
  %v4042 = vpack.c.b16 %v2518, %v2512
  %v4043 = vpack.c.b16 %v2525, %v2519
  %v4044 = vpack.c.b16 %v2526, %v2520
  %v4045 = vpack.c.b16 %v2527, %v2521
  %v4046 = vpack.c.b16 %v2528, %v2522
  %v4047 = vpack.c.b16 %v2529, %v2523
  %v4048 = vpack.c.b16 %v2530, %v2524
  %v4049 = vpack.c.b16 %v2537, %v2531
  %v4050 = vpack.c.b16 %v2538, %v2532
  %v4051 = vpack.c.b16 %v2539, %v2533
  %v4052 = vpack.c.b16 %v2540, %v2534
  %v4053 = vpack.c.b16 %v2541, %v2535
  %v4054 = vpack.c.b16 %v2542, %v2536
  %v4055 = vpack.c.b16 %v2549, %v2543
  %v4056 = vpack.c.b16 %v2550, %v2544
  %v4057 = vpack.c.b16 %v2551, %v2545
  %v4058 = vpack.c.b16 %v2552, %v2546
  %v4059 = vpack.c.b16 %v2553, %v2547
  %v4060 = vpack.c.b16 %v2554, %v2548
  %v4061 = vpack.c.b16 %v2561, %v2555
  %v4062 = vpack.c.b16 %v2562, %v2556
  %v4063 = vpack.c.b16 %v2563, %v2557
  %v4064 = vpack.c.b16 %v2564, %v2558
  %v4065 = vpack.c.b16 %v2565, %v2559
  %v4066 = vpack.c.b16 %v2566, %v2560
  %v4067 = vpack.c.b16 %v2573, %v2567
  %v4068 = vpack.c.b16 %v2574, %v2568
  %v4069 = vpack.c.b16 %v2575, %v2569
  %v4070 = vpack.c.b16 %v2576, %v2570
  %v4071 = vpack.c.b16 %v2577, %v2571
  %v4072 = vpack.c.b16 %v2578, %v2572
  %v4073 = vpack.c.b16 %v2585, %v2579
  %v4074 = vpack.c.b16 %v2586, %v2580
  %v4075 = vpack.c.b16 %v2587, %v2581
  %v4076 = vpack.c.b16 %v2588, %v2582
  %v4077 = vpack.c.b16 %v2589, %v2583
  %v4078 = vpack.c.b16 %v2590, %v2584
  %v4079 = vpack.c.b16 %v2597, %v2591
  %v4080 = vpack.c.b16 %v2598, %v2592
  %v4081 = vpack.c.b16 %v2599, %v2593
  %v4082 = vpack.c.b16 %v2600, %v2594
  %v4083 = vpack.c.b16 %v2601, %v2595
  %v4084 = vpack.c.b16 %v2602, %v2596
  %v4085 = vpack.c.b16 %v2609, %v2603
  %v4086 = vpack.c.b16 %v2610, %v2604
  %v4087 = vpack.c.b16 %v2611, %v2605
  %v4088 = vpack.c.b16 %v2612, %v2606
  %v4089 = vpack.c.b16 %v2613, %v2607
  %v4090 = vpack.c.b16 %v2614, %v2608
  %v4091 = vpack.c.b16 %v2621, %v2615
  %v4092 = vpack.c.b16 %v2622, %v2616
  %v4093 = vpack.c.b16 %v2623, %v2617
  %v4094 = vpack.c.b16 %v2624, %v2618
  %v4095 = vpack.c.b16 %v2625, %v2619
  %v4096 = vpack.c.b16 %v2626, %v2620
  %v4097 = vpack.c.b16 %v2633, %v2627
  %v4098 = vpack.c.b16 %v2634, %v2628
  %v4099 = vpack.c.b16 %v2635, %v2629
  %v4100 = vpack.c.b16 %v2636, %v2630
  %v4101 = vpack.c.b16 %v2637, %v2631
  %v4102 = vpack.c.b16 %v2638, %v2632
  %v4103 = vpack.c.b16 %v2645, %v2639
  %v4104 = vpack.c.b16 %v2646, %v2640
  %v4105 = vpack.c.b16 %v2647, %v2641
  %v4106 = vpack.c.b16 %v2648, %v2642
  %v4107 = vpack.c.b16 %v2649, %v2643
  %v4108 = vpack.c.b16 %v2650, %v2644
  %v4109 = vpack.c.b16 %v2657, %v2651
  %v4110 = vpack.c.b16 %v2658, %v2652
  %v4111 = vpack.c.b16 %v2659, %v2653
  %v4112 = vpack.c.b16 %v2660, %v2654
  %v4113 = vpack.c.b16 %v2661, %v2655
  %v4114 = vpack.c.b16 %v2662, %v2656
  %v4115 = vpack.c.b16 %v2669, %v2663
  %v4116 = vpack.c.b16 %v2670, %v2664
  %v4117 = vpack.c.b16 %v2671, %v2665
  %v4118 = vpack.c.b16 %v2672, %v2666
  %v4119 = vpack.c.b16 %v2673, %v2667
  %v4120 = vpack.c.b16 %v2674, %v2668
  %v4121 = vpack.c.b16 %v2681, %v2675
  %v4122 = vpack.c.b16 %v2682, %v2676
  %v4123 = vpack.c.b16 %v2683, %v2677
  %v4124 = vpack.c.b16 %v2684, %v2678
  %v4125 = vpack.c.b16 %v2685, %v2679
  %v4126 = vpack.c.b16 %v2686, %v2680
  %v4127 = vpack.c.b16 %v2693, %v2687
  %v4128 = vpack.c.b16 %v2694, %v2688
  %v4129 = vpack.c.b16 %v2695, %v2689
  %v4130 = vpack.c.b16 %v2696, %v2690
  %v4131 = vpack.c.b16 %v2697, %v2691
  %v4132 = vpack.c.b16 %v2698, %v2692
  %v4133 = vpack.c.b16 %v2705, %v2699
  %v4134 = vpack.c.b16 %v2706, %v2700
  %v4135 = vpack.c.b16 %v2707, %v2701
  %v4136 = vpack.c.b16 %v2708, %v2702
  %v4137 = vpack.c.b16 %v2709, %v2703
  %v4138 = vpack.c.b16 %v2710, %v2704
  %v4139 = vpack.c.b16 %v2717, %v2711
  %v4140 = vpack.c.b16 %v2718, %v2712
  %v4141 = vpack.c.b16 %v2719, %v2713
  %v4142 = vpack.c.b16 %v2720, %v2714
  %v4143 = vpack.c.b16 %v2721, %v2715
  %v4144 = vpack.c.b16 %v2722, %v2716
  %v4145 = vpack.c.b16 %v2729, %v2723
  %v4146 = vpack.c.b16 %v2730, %v2724
  %v4147 = vpack.c.b16 %v2731, %v2725
  %v4148 = vpack.c.b16 %v2732, %v2726
  %v4149 = vpack.c.b16 %v2733, %v2727
  %v4150 = vpack.c.b16 %v2734, %v2728
  %v4151 = vpack.c.b16 %v2741, %v2735
  %v4152 = vpack.c.b16 %v2742, %v2736
  %v4153 = vpack.c.b16 %v2743, %v2737
  %v4154 = vpack.c.b16 %v2744, %v2738
  %v4155 = vpack.c.b16 %v2745, %v2739
  %v4156 = vpack.c.b16 %v2746, %v2740
  %v4157 = vpack.c.b16 %v2753, %v2747
  %v4158 = vpack.c.b16 %v2754, %v2748
  %v4159 = vpack.c.b16 %v2755, %v2749
  %v4160 = vpack.c.b16 %v2756, %v2750
  %v4161 = vpack.c.b16 %v2757, %v2751
  %v4162 = vpack.c.b16 %v2758, %v2752
  %v4163 = vpack.c.b16 %v2765, %v2759
  %v4164 = vpack.c.b16 %v2766, %v2760
  %v4165 = vpack.c.b16 %v2767, %v2761
  %v4166 = vpack.c.b16 %v2768, %v2762
  %v4167 = vpack.c.b16 %v2769, %v2763
  %v4168 = vpack.c.b16 %v2770, %v2764
  %v4169 = vpack.c.b16 %v2777, %v2771
  %v4170 = vpack.c.b16 %v2778, %v2772
  %v4171 = vpack.c.b16 %v2779, %v2773
  %v4172 = vpack.c.b16 %v2780, %v2774
  %v4173 = vpack.c.b16 %v2781, %v2775
  %v4174 = vpack.c.b16 %v2782, %v2776
  %v4175 = vpack.c.b16 %v2789, %v2783
  %v4176 = vpack.c.b16 %v2790, %v2784
  %v4177 = vpack.c.b16 %v2791, %v2785
  %v4178 = vpack.c.b16 %v2792, %v2786
  %v4179 = vpack.c.b16 %v2793, %v2787
  %v4180 = vpack.c.b16 %v2794, %v2788
  %v4181 = vpack.c.b16 %v2801, %v2795
  %v4182 = vpack.c.b16 %v2802, %v2796
  %v4183 = vpack.c.b16 %v2803, %v2797
  %v4184 = vpack.c.b16 %v2804, %v2798
  %v4185 = vpack.c.b16 %v2805, %v2799
  %v4186 = vpack.c.b16 %v2806, %v2800
  %v4187 = vpack.c.b16 %v2813, %v2807
  %v4188 = vpack.c.b16 %v2814, %v2808
  %v4189 = vpack.c.b16 %v2815, %v2809
  %v4190 = vpack.c.b16 %v2816, %v2810
  %v4191 = vpack.c.b16 %v2817, %v2811
  %v4192 = vpack.c.b16 %v2818, %v2812
  %v4193 = vpack.c.b16 %v2825, %v2819
  %v4194 = vpack.c.b16 %v2826, %v2820
  %v4195 = vpack.c.b16 %v2827, %v2821
  %v4196 = vpack.c.b16 %v2828, %v2822
  %v4197 = vpack.c.b16 %v2829, %v2823
  %v4198 = vpack.c.b16 %v2830, %v2824
  %v4199 = vpack.c.b16 %v2837, %v2831
  %v4200 = vpack.c.b16 %v2838, %v2832
  %v4201 = vpack.c.b16 %v2839, %v2833
  %v4202 = vpack.c.b16 %v2840, %v2834
  %v4203 = vpack.c.b16 %v2841, %v2835
  %v4204 = vpack.c.b16 %v2842, %v2836
  %v4205 = vpack.c.b16 %v2849, %v2843
  %v4206 = vpack.c.b16 %v2850, %v2844
  %v4207 = vpack.c.b16 %v2851, %v2845
  %v4208 = vpack.c.b16 %v2852, %v2846
  %v4209 = vpack.c.b16 %v2853, %v2847
  %v4210 = vpack.c.b16 %v2854, %v2848
  %v4211 = vpack.c.b16 %v2861, %v2855
  %v4212 = vpack.c.b16 %v2862, %v2856
  %v4213 = vpack.c.b16 %v2863, %v2857
  %v4214 = vpack.c.b16 %v2864, %v2858
  %v4215 = vpack.c.b16 %v2865, %v2859
  %v4216 = vpack.c.b16 %v2866, %v2860
  %v4217 = vpack.c.b16 %v2873, %v2867
  %v4218 = vpack.c.b16 %v2874, %v2868
  %v4219 = vpack.c.b16 %v2875, %v2869
  %v4220 = vpack.c.b16 %v2876, %v2870
  %v4221 = vpack.c.b16 %v2877, %v2871
  %v4222 = vpack.c.b16 %v2878, %v2872
  %v4223 = vpack.c.b16 %v2885, %v2879
  %v4224 = vpack.c.b16 %v2886, %v2880
  %v4225 = vpack.c.b16 %v2887, %v2881
  %v4226 = vpack.c.b16 %v2888, %v2882
  %v4227 = vpack.c.b16 %v2889, %v2883
  %v4228 = vpack.c.b16 %v2890, %v2884
  %v4229 = vpack.c.b16 %v2897, %v2891
  %v4230 = vpack.c.b16 %v2898, %v2892
  %v4231 = vpack.c.b16 %v2899, %v2893
  %v4232 = vpack.c.b16 %v2900, %v2894
  %v4233 = vpack.c.b16 %v2901, %v2895
  %v4234 = vpack.c.b16 %v2902, %v2896
  %v4235 = vpack.c.b16 %v2909, %v2903
  %v4236 = vpack.c.b16 %v2910, %v2904
  %v4237 = vpack.c.b16 %v2911, %v2905
  %v4238 = vpack.c.b16 %v2912, %v2906
  %v4239 = vpack.c.b16 %v2913, %v2907
  %v4240 = vpack.c.b16 %v2914, %v2908
  %v4241 = vpack.c.b16 %v2921, %v2915
  %v4242 = vpack.c.b16 %v2922, %v2916
  %v4243 = vpack.c.b16 %v2923, %v2917
  %v4244 = vpack.c.b16 %v2924, %v2918
  %v4245 = vpack.c.b16 %v2925, %v2919
  %v4246 = vpack.c.b16 %v2926, %v2920
  %v4247 = vpack.c.b16 %v2933, %v2927
  %v4248 = vpack.c.b16 %v2934, %v2928
  %v4249 = vpack.c.b16 %v2935, %v2929
  %v4250 = vpack.c.b16 %v2936, %v2930
  %v4251 = vpack.c.b16 %v2937, %v2931
  %v4252 = vpack.c.b16 %v2938, %v2932
  %v4253 = vpack.c.b16 %v2945, %v2939
  %v4254 = vpack.c.b16 %v2946, %v2940
  %v4255 = vpack.c.b16 %v2947, %v2941
  %v4256 = vpack.c.b16 %v2948, %v2942
  %v4257 = vpack.c.b16 %v2949, %v2943
  %v4258 = vpack.c.b16 %v2950, %v2944
  %v4259 = vpack.c.b16 %v2957, %v2951
  %v4260 = vpack.c.b16 %v2958, %v2952
  %v4261 = vpack.c.b16 %v2959, %v2953
  %v4262 = vpack.c.b16 %v2960, %v2954
  %v4263 = vpack.c.b16 %v2961, %v2955
  %v4264 = vpack.c.b16 %v2962, %v2956
  %v4265 = vpack.c.b16 %v2969, %v2963
  %v4266 = vpack.c.b16 %v2970, %v2964
  %v4267 = vpack.c.b16 %v2971, %v2965
  %v4268 = vpack.c.b16 %v2972, %v2966
  %v4269 = vpack.c.b16 %v2973, %v2967
  %v4270 = vpack.c.b16 %v2974, %v2968
  %v4271 = vpack.c.b16 %v2981, %v2975
  %v4272 = vpack.c.b16 %v2982, %v2976
  %v4273 = vpack.c.b16 %v2983, %v2977
  %v4274 = vpack.c.b16 %v2984, %v2978
  %v4275 = vpack.c.b16 %v2985, %v2979
  %v4276 = vpack.c.b16 %v2986, %v2980
  %v4277 = vpack.c.b16 %v2993, %v2987
  %v4278 = vpack.c.b16 %v2994, %v2988
  %v4279 = vpack.c.b16 %v2995, %v2989
  %v4280 = vpack.c.b16 %v2996, %v2990
  %v4281 = vpack.c.b16 %v2997, %v2991
  %v4282 = vpack.c.b16 %v2998, %v2992
  %v4283 = vpack.c.b16 %v3005, %v2999
  %v4284 = vpack.c.b16 %v3006, %v3000
  %v4285 = vpack.c.b16 %v3007, %v3001
  %v4286 = vpack.c.b16 %v3008, %v3002
  %v4287 = vpack.c.b16 %v3009, %v3003
  %v4288 = vpack.c.b16 %v3010, %v3004
  %v4289 = vpack.c.b16 %v3017, %v3011
  %v4290 = vpack.c.b16 %v3018, %v3012
  %v4291 = vpack.c.b16 %v3019, %v3013
  %v4292 = vpack.c.b16 %v3020, %v3014
  %v4293 = vpack.c.b16 %v3021, %v3015
  %v4294 = vpack.c.b16 %v3022, %v3016
  %v4295 = vpack.c.b16 %v3029, %v3023
  %v4296 = vpack.c.b16 %v3030, %v3024
  %v4297 = vpack.c.b16 %v3031, %v3025
  %v4298 = vpack.c.b16 %v3032, %v3026
  %v4299 = vpack.c.b16 %v3033, %v3027
  %v4300 = vpack.c.b16 %v3034, %v3028
  %v4301 = vpack.c.b16 %v3041, %v3035
  %v4302 = vpack.c.b16 %v3042, %v3036
  %v4303 = vpack.c.b16 %v3043, %v3037
  %v4304 = vpack.c.b16 %v3044, %v3038
  %v4305 = vpack.c.b16 %v3045, %v3039
  %v4306 = vpack.c.b16 %v3046, %v3040
  %v4307 = vpack.c.b16 %v3053, %v3047
  %v4308 = vpack.c.b16 %v3054, %v3048
  %v4309 = vpack.c.b16 %v3055, %v3049
  %v4310 = vpack.c.b16 %v3056, %v3050
  %v4311 = vpack.c.b16 %v3057, %v3051
  %v4312 = vpack.c.b16 %v3058, %v3052
  %v4313 = vpack.c.b16 %v3065, %v3059
  %v4314 = vpack.c.b16 %v3066, %v3060
  %v4315 = vpack.c.b16 %v3067, %v3061
  %v4316 = vpack.c.b16 %v3068, %v3062
  %v4317 = vpack.c.b16 %v3069, %v3063
  %v4318 = vpack.c.b16 %v3070, %v3064
  %v4319 = vpack.c.b16 %v3077, %v3071
  %v4320 = vpack.c.b16 %v3078, %v3072
  %v4321 = vpack.c.b16 %v3079, %v3073
  %v4322 = vpack.c.b16 %v3080, %v3074
  %v4323 = vpack.c.b16 %v3081, %v3075
  %v4324 = vpack.c.b16 %v3082, %v3076
  %v4325 = vpack.c.b16 %v3089, %v3083
  %v4326 = vpack.c.b16 %v3090, %v3084
  %v4327 = vpack.c.b16 %v3091, %v3085
  %v4328 = vpack.c.b16 %v3092, %v3086
  %v4329 = vpack.c.b16 %v3093, %v3087
  %v4330 = vpack.c.b16 %v3094, %v3088
  %v4331 = vpack.c.b16 %v3101, %v3095
  %v4332 = vpack.c.b16 %v3102, %v3096
  %v4333 = vpack.c.b16 %v3103, %v3097
  %v4334 = vpack.c.b16 %v3104, %v3098
  %v4335 = vpack.c.b16 %v3105, %v3099
  %v4336 = vpack.c.b16 %v3106, %v3100
  %v4337 = vpack.c.b16 %v3113, %v3107
  %v4338 = vpack.c.b16 %v3114, %v3108
  %v4339 = vpack.c.b16 %v3115, %v3109
  %v4340 = vpack.c.b16 %v3116, %v3110
  %v4341 = vpack.c.b16 %v3117, %v3111
  %v4342 = vpack.c.b16 %v3118, %v3112
  %v4343 = vpack.c.b16 %v3125, %v3119
  %v4344 = vpack.c.b16 %v3126, %v3120
  %v4345 = vpack.c.b16 %v3127, %v3121
  %v4346 = vpack.c.b16 %v3128, %v3122
  %v4347 = vpack.c.b16 %v3129, %v3123
  %v4348 = vpack.c.b16 %v3130, %v3124
  %v4349 = vpack.c.b16 %v3137, %v3131
  %v4350 = vpack.c.b16 %v3138, %v3132
  %v4351 = vpack.c.b16 %v3139, %v3133
  %v4352 = vpack.c.b16 %v3140, %v3134
  %v4353 = vpack.c.b16 %v3141, %v3135
  %v4354 = vpack.c.b16 %v3142, %v3136
  %v4355 = vpack.c.b16 %v3149, %v3143
  %v4356 = vpack.c.b16 %v3150, %v3144
  %v4357 = vpack.c.b16 %v3151, %v3145
  %v4358 = vpack.c.b16 %v3152, %v3146
  %v4359 = vpack.c.b16 %v3153, %v3147
  %v4360 = vpack.c.b16 %v3154, %v3148
  %v4361 = vpack.c.b16 %v3161, %v3155
  %v4362 = vpack.c.b16 %v3162, %v3156
  %v4363 = vpack.c.b16 %v3163, %v3157
  %v4364 = vpack.c.b16 %v3164, %v3158
  %v4365 = vpack.c.b16 %v3165, %v3159
  %v4366 = vpack.c.b16 %v3166, %v3160
  %v4367 = vpack.c.b16 %v3173, %v3167
  %v4368 = vpack.c.b16 %v3174, %v3168
  %v4369 = vpack.c.b16 %v3175, %v3169
  %v4370 = vpack.c.b16 %v3176, %v3170
  %v4371 = vpack.c.b16 %v3177, %v3171
  %v4372 = vpack.c.b16 %v3178, %v3172
  %v4373 = vpack.c.b16 %v3185, %v3179
  %v4374 = vpack.c.b16 %v3186, %v3180
  %v4375 = vpack.c.b16 %v3187, %v3181
  %v4376 = vpack.c.b16 %v3188, %v3182
  %v4377 = vpack.c.b16 %v3189, %v3183
  %v4378 = vpack.c.b16 %v3190, %v3184
  %v4379 = vpack.c.b16 %v3197, %v3191
  %v4380 = vpack.c.b16 %v3198, %v3192
  %v4381 = vpack.c.b16 %v3199, %v3193
  %v4382 = vpack.c.b16 %v3200, %v3194
  %v4383 = vpack.c.b16 %v3201, %v3195
  %v4384 = vpack.c.b16 %v3202, %v3196
  %v4385 = vpack.c.b16 %v3209, %v3203
  %v4386 = vpack.c.b16 %v3210, %v3204
  %v4387 = vpack.c.b16 %v3211, %v3205
  %v4388 = vpack.c.b16 %v3212, %v3206
  %v4389 = vpack.c.b16 %v3213, %v3207
  %v4390 = vpack.c.b16 %v3214, %v3208
  %v4391 = vpack.c.b16 %v3221, %v3215
  %v4392 = vpack.c.b16 %v3222, %v3216
  %v4393 = vpack.c.b16 %v3223, %v3217
  %v4394 = vpack.c.b16 %v3224, %v3218
  %v4395 = vpack.c.b16 %v3225, %v3219
  %v4396 = vpack.c.b16 %v3226, %v3220
  %v4397 = vpack.c.b16 %v3233, %v3227
  %v4398 = vpack.c.b16 %v3234, %v3228
  %v4399 = vpack.c.b16 %v3235, %v3229
  %v4400 = vpack.c.b16 %v3236, %v3230
  %v4401 = vpack.c.b16 %v3237, %v3231
  %v4402 = vpack.c.b16 %v3238, %v3232
  %v4403 = vpack.c.b16 %v3245, %v3239
  %v4404 = vpack.c.b16 %v3246, %v3240
  %v4405 = vpack.c.b16 %v3247, %v3241
  %v4406 = vpack.c.b16 %v3248, %v3242
  %v4407 = vpack.c.b16 %v3249, %v3243
  %v4408 = vpack.c.b16 %v3250, %v3244
  %v4409 = vpack.c.b16 %v3257, %v3251
  %v4410 = vpack.c.b16 %v3258, %v3252
  %v4411 = vpack.c.b16 %v3259, %v3253
  %v4412 = vpack.c.b16 %v3260, %v3254
  %v4413 = vpack.c.b16 %v3261, %v3255
  %v4414 = vpack.c.b16 %v3262, %v3256
  %v4415 = vpack.c.b16 %v3269, %v3263
  %v4416 = vpack.c.b16 %v3270, %v3264
  %v4417 = vpack.c.b16 %v3271, %v3265
  %v4418 = vpack.c.b16 %v3272, %v3266
  %v4419 = vpack.c.b16 %v3273, %v3267
  %v4420 = vpack.c.b16 %v3274, %v3268
  %v4421 = vpack.c.b16 %v3281, %v3275
  %v4422 = vpack.c.b16 %v3282, %v3276
  %v4423 = vpack.c.b16 %v3283, %v3277
  %v4424 = vpack.c.b16 %v3284, %v3278
  %v4425 = vpack.c.b16 %v3285, %v3279
  %v4426 = vpack.c.b16 %v3286, %v3280
  %v4427 = vpack.c.b16 %v3293, %v3287
  %v4428 = vpack.c.b16 %v3294, %v3288
  %v4429 = vpack.c.b16 %v3295, %v3289
  %v4430 = vpack.c.b16 %v3296, %v3290
  %v4431 = vpack.c.b16 %v3297, %v3291
  %v4432 = vpack.c.b16 %v3298, %v3292
  %v4433 = vpack.c.b16 %v3305, %v3299
  %v4434 = vpack.c.b16 %v3306, %v3300
  %v4435 = vpack.c.b16 %v3307, %v3301
  %v4436 = vpack.c.b16 %v3308, %v3302
  %v4437 = vpack.c.b16 %v3309, %v3303
  %v4438 = vpack.c.b16 %v3310, %v3304
  %v4439 = vpack.c.b16 %v3317, %v3311
  %v4440 = vpack.c.b16 %v3318, %v3312
  %v4441 = vpack.c.b16 %v3319, %v3313
  %v4442 = vpack.c.b16 %v3320, %v3314
  %v4443 = vpack.c.b16 %v3321, %v3315
  %v4444 = vpack.c.b16 %v3322, %v3316
  %v4445 = vpack.c.b16 %v3329, %v3323
  %v4446 = vpack.c.b16 %v3330, %v3324
  %v4447 = vpack.c.b16 %v3331, %v3325
  %v4448 = vpack.c.b16 %v3332, %v3326
  %v4449 = vpack.c.b16 %v3333, %v3327
  %v4450 = vpack.c.b16 %v3334, %v3328
  %v4451 = vpack.c.b16 %v3341, %v3335
  %v4452 = vpack.c.b16 %v3342, %v3336
  %v4453 = vpack.c.b16 %v3343, %v3337
  %v4454 = vpack.c.b16 %v3344, %v3338
  %v4455 = vpack.c.b16 %v3345, %v3339
  %v4456 = vpack.c.b16 %v3346, %v3340
  %v4457 = vpack.c.b16 %v3353, %v3347
  %v4458 = vpack.c.b16 %v3354, %v3348
  %v4459 = vpack.c.b16 %v3355, %v3349
  %v4460 = vpack.c.b16 %v3356, %v3350
  %v4461 = vpack.c.b16 %v3357, %v3351
  %v4462 = vpack.c.b16 %v3358, %v3352
  %v4463 = vpack.c.b16 %v3365, %v3359
  %v4464 = vpack.c.b16 %v3366, %v3360
  %v4465 = vpack.c.b16 %v3367, %v3361
  %v4466 = vpack.c.b16 %v3368, %v3362
  %v4467 = vpack.c.b16 %v3369, %v3363
  %v4468 = vpack.c.b16 %v3370, %v3364
  %v4469 = vpack.c.b16 %v3377, %v3371
  %v4470 = vpack.c.b16 %v3378, %v3372
  %v4471 = vpack.c.b16 %v3379, %v3373
  %v4472 = vpack.c.b16 %v3380, %v3374
  %v4473 = vpack.c.b16 %v3381, %v3375
  %v4474 = vpack.c.b16 %v3382, %v3376
  %v4475 = vpack.c.b16 %v3389, %v3383
  %v4476 = vpack.c.b16 %v3390, %v3384
  %v4477 = vpack.c.b16 %v3391, %v3385
  %v4478 = vpack.c.b16 %v3392, %v3386
  %v4479 = vpack.c.b16 %v3393, %v3387
  %v4480 = vpack.c.b16 %v3394, %v3388
  %v4481 = vpack.c.b16 %v3401, %v3395
  %v4482 = vpack.c.b16 %v3402, %v3396
  %v4483 = vpack.c.b16 %v3403, %v3397
  %v4484 = vpack.c.b16 %v3404, %v3398
  %v4485 = vpack.c.b16 %v3405, %v3399
  %v4486 = vpack.c.b16 %v3406, %v3400
  %v4487 = vpack.c.b16 %v3413, %v3407
  %v4488 = vpack.c.b16 %v3414, %v3408
  %v4489 = vpack.c.b16 %v3415, %v3409
  %v4490 = vpack.c.b16 %v3416, %v3410
  %v4491 = vpack.c.b16 %v3417, %v3411
  %v4492 = vpack.c.b16 %v3418, %v3412
  %v4493 = vpack.c.b16 %v3425, %v3419
  %v4494 = vpack.c.b16 %v3426, %v3420
  %v4495 = vpack.c.b16 %v3427, %v3421
  %v4496 = vpack.c.b16 %v3428, %v3422
  %v4497 = vpack.c.b16 %v3429, %v3423
  %v4498 = vpack.c.b16 %v3430, %v3424
  %v4499 = vpack.c.b16 %v3437, %v3431
  %v4500 = vpack.c.b16 %v3438, %v3432
  %v4501 = vpack.c.b16 %v3439, %v3433
  %v4502 = vpack.c.b16 %v3440, %v3434
  %v4503 = vpack.c.b16 %v3441, %v3435
  %v4504 = vpack.c.b16 %v3442, %v3436
  %v4505 = vpack.c.b16 %v3449, %v3443
  %v4506 = vpack.c.b16 %v3450, %v3444
  %v4507 = vpack.c.b16 %v3451, %v3445
  %v4508 = vpack.c.b16 %v3452, %v3446
  %v4509 = vpack.c.b16 %v3453, %v3447
  %v4510 = vpack.c.b16 %v3454, %v3448
  %v4511 = vpack.c.b16 %v3461, %v3455
  %v4512 = vpack.c.b16 %v3462, %v3456
  %v4513 = vpack.c.b16 %v3463, %v3457
  %v4514 = vpack.c.b16 %v3464, %v3458
  %v4515 = vpack.c.b16 %v3465, %v3459
  %v4516 = vpack.c.b16 %v3466, %v3460
  %v4517 = vpack.c.b16 %v3473, %v3467
  %v4518 = vpack.c.b16 %v3474, %v3468
  %v4519 = vpack.c.b16 %v3475, %v3469
  %v4520 = vpack.c.b16 %v3476, %v3470
  %v4521 = vpack.c.b16 %v3477, %v3471
  %v4522 = vpack.c.b16 %v3478, %v3472
  %v4523 = vpack.c.b16 %v3485, %v3479
  %v4524 = vpack.c.b16 %v3486, %v3480
  %v4525 = vpack.c.b16 %v3487, %v3481
  %v4526 = vpack.c.b16 %v3488, %v3482
  %v4527 = vpack.c.b16 %v3489, %v3483
  %v4528 = vpack.c.b16 %v3490, %v3484
  %v4529 = vpack.c.b16 %v3497, %v3491
  %v4530 = vpack.c.b16 %v3498, %v3492
  %v4531 = vpack.c.b16 %v3499, %v3493
  %v4532 = vpack.c.b16 %v3500, %v3494
  %v4533 = vpack.c.b16 %v3501, %v3495
  %v4534 = vpack.c.b16 %v3502, %v3496
  %v4535 = vpack.c.b16 %v3509, %v3503
  %v4536 = vpack.c.b16 %v3510, %v3504
  %v4537 = vpack.c.b16 %v3511, %v3505
  %v4538 = vpack.c.b16 %v3512, %v3506
  %v4539 = vpack.c.b16 %v3513, %v3507
  %v4540 = vpack.c.b16 %v3514, %v3508
  %v4541 = vpack.c.b16 %v3521, %v3515
  %v4542 = vpack.c.b16 %v3522, %v3516
  %v4543 = vpack.c.b16 %v3523, %v3517
  %v4544 = vpack.c.b16 %v3524, %v3518
  %v4545 = vpack.c.b16 %v3525, %v3519
  %v4546 = vpack.c.b16 %v3526, %v3520
  %v4547 = vpack.c.b16 %v3533, %v3527
  %v4548 = vpack.c.b16 %v3534, %v3528
  %v4549 = vpack.c.b16 %v3535, %v3529
  %v4550 = vpack.c.b16 %v3536, %v3530
  %v4551 = vpack.c.b16 %v3537, %v3531
  %v4552 = vpack.c.b16 %v3538, %v3532
  %v4553 = vpack.c.b16 %v3545, %v3539
  %v4554 = vpack.c.b16 %v3546, %v3540
  %v4555 = vpack.c.b16 %v3547, %v3541
  %v4556 = vpack.c.b16 %v3548, %v3542
  %v4557 = vpack.c.b16 %v3549, %v3543
  %v4558 = vpack.c.b16 %v3550, %v3544
  %v4559 = vpack.c.b16 %v3557, %v3551
  %v4560 = vpack.c.b16 %v3558, %v3552
  %v4561 = vpack.c.b16 %v3559, %v3553
  %v4562 = vpack.c.b16 %v3560, %v3554
  %v4563 = vpack.c.b16 %v3561, %v3555
  %v4564 = vpack.c.b16 %v3562, %v3556
  %v4565 = vpack.c.b16 %v3569, %v3563
  %v4566 = vpack.c.b16 %v3570, %v3564
  %v4567 = vpack.c.b16 %v3571, %v3565
  %v4568 = vpack.c.b16 %v3572, %v3566
  %v4569 = vpack.c.b16 %v3573, %v3567
  %v4570 = vpack.c.b16 %v3574, %v3568
  %v4571 = vpack.c.b16 %v3581, %v3575
  %v4572 = vpack.c.b16 %v3582, %v3576
  %v4573 = vpack.c.b16 %v3583, %v3577
  %v4574 = vpack.c.b16 %v3584, %v3578
  %v4575 = vpack.c.b16 %v3585, %v3579
  %v4576 = vpack.c.b16 %v3586, %v3580
  %v4577 = vpack.c.b16 %v3593, %v3587
  %v4578 = vpack.c.b16 %v3594, %v3588
  %v4579 = vpack.c.b16 %v3595, %v3589
  %v4580 = vpack.c.b16 %v3596, %v3590
  %v4581 = vpack.c.b16 %v3597, %v3591
  %v4582 = vpack.c.b16 %v3598, %v3592
  %v4583 = vpack.c.b16 %v3605, %v3599
  %v4584 = vpack.c.b16 %v3606, %v3600
  %v4585 = vpack.c.b16 %v3607, %v3601
  %v4586 = vpack.c.b16 %v3608, %v3602
  %v4587 = vpack.c.b16 %v3609, %v3603
  %v4588 = vpack.c.b16 %v3610, %v3604
  %v4589 = vpack.c.b16 %v3617, %v3611
  %v4590 = vpack.c.b16 %v3618, %v3612
  %v4591 = vpack.c.b16 %v3619, %v3613
  %v4592 = vpack.c.b16 %v3620, %v3614
  %v4593 = vpack.c.b16 %v3621, %v3615
  %v4594 = vpack.c.b16 %v3622, %v3616
  %v4595 = vpack.c.b16 %v3629, %v3623
  %v4596 = vpack.c.b16 %v3630, %v3624
  %v4597 = vpack.c.b16 %v3631, %v3625
  %v4598 = vpack.c.b16 %v3632, %v3626
  %v4599 = vpack.c.b16 %v3633, %v3627
  %v4600 = vpack.c.b16 %v3634, %v3628
  %v4601 = vpack.c.b16 %v3641, %v3635
  %v4602 = vpack.c.b16 %v3642, %v3636
  %v4603 = vpack.c.b16 %v3643, %v3637
  %v4604 = vpack.c.b16 %v3644, %v3638
  %v4605 = vpack.c.b16 %v3645, %v3639
  %v4606 = vpack.c.b16 %v3646, %v3640
  %v4607 = vpack.c.b16 %v3653, %v3647
  %v4608 = vpack.c.b16 %v3654, %v3648
  %v4609 = vpack.c.b16 %v3655, %v3649
  %v4610 = vpack.c.b16 %v3656, %v3650
  %v4611 = vpack.c.b16 %v3657, %v3651
  %v4612 = vpack.c.b16 %v3658, %v3652
  %v4613 = vpack.c.b16 %v3665, %v3659
  %v4614 = vpack.c.b16 %v3666, %v3660
  %v4615 = vpack.c.b16 %v3667, %v3661
  %v4616 = vpack.c.b16 %v3668, %v3662
  %v4617 = vpack.c.b16 %v3669, %v3663
  %v4618 = vpack.c.b16 %v3670, %v3664
  %v4619 = vpack.c.b16 %v3677, %v3671
  %v4620 = vpack.c.b16 %v3678, %v3672
  %v4621 = vpack.c.b16 %v3679, %v3673
  %v4622 = vpack.c.b16 %v3680, %v3674
  %v4623 = vpack.c.b16 %v3681, %v3675
  %v4624 = vpack.c.b16 %v3682, %v3676
  %v4625 = vpack.c.b16 %v3689, %v3683
  %v4626 = vpack.c.b16 %v3690, %v3684
  %v4627 = vpack.c.b16 %v3691, %v3685
  %v4628 = vpack.c.b16 %v3692, %v3686
  %v4629 = vpack.c.b16 %v3693, %v3687
  %v4630 = vpack.c.b16 %v3694, %v3688
  %v4631 = vpack.c.b16 %v3701, %v3695
  %v4632 = vpack.c.b16 %v3702, %v3696
  %v4633 = vpack.c.b16 %v3703, %v3697
  %v4634 = vpack.c.b16 %v3704, %v3698
  %v4635 = vpack.c.b16 %v3705, %v3699
  %v4636 = vpack.c.b16 %v3706, %v3700
  %v4637 = vpack.c.b16 %v3713, %v3707
  %v4638 = vpack.c.b16 %v3714, %v3708
  %v4639 = vpack.c.b16 %v3715, %v3709
  %v4640 = vpack.c.b16 %v3716, %v3710
  %v4641 = vpack.c.b16 %v3717, %v3711
  %v4642 = vpack.c.b16 %v3718, %v3712
  %v4643 = vpack.c.b16 %v3725, %v3719
  %v4644 = vpack.c.b16 %v3726, %v3720
  %v4645 = vpack.c.b16 %v3727, %v3721
  %v4646 = vpack.c.b16 %v3728, %v3722
  %v4647 = vpack.c.b16 %v3729, %v3723
  %v4648 = vpack.c.b16 %v3730, %v3724
  %v4649 = vpack.c.b16 %v3737, %v3731
  %v4650 = vpack.c.b16 %v3738, %v3732
  %v4651 = vpack.c.b16 %v3739, %v3733
  %v4652 = vpack.c.b16 %v3740, %v3734
  %v4653 = vpack.c.b16 %v3741, %v3735
  %v4654 = vpack.c.b16 %v3742, %v3736
  %v4655 = vpack.c.b16 %v3749, %v3743
  %v4656 = vpack.c.b16 %v3750, %v3744
  %v4657 = vpack.c.b16 %v3751, %v3745
  %v4658 = vpack.c.b16 %v3752, %v3746
  %v4659 = vpack.c.b16 %v3753, %v3747
  %v4660 = vpack.c.b16 %v3754, %v3748
  %v4661 = vpack.c.b16 %v3761, %v3755
  %v4662 = vpack.c.b16 %v3762, %v3756
  %v4663 = vpack.c.b16 %v3763, %v3757
  %v4664 = vpack.c.b16 %v3764, %v3758
  %v4665 = vpack.c.b16 %v3765, %v3759
  %v4666 = vpack.c.b16 %v3766, %v3760
  %vm5417 = vcmask 293888
  %v5419 = vsel %vm5417, %v3772, 0
  %v5422 = vsel %vm5417, %v3778, 0
  %v5425 = vsel %vm5417, %v3784, 0
  %v5428 = vsel %vm5417, %v3790, 0
  %v5431 = vsel %vm5417, %v3796, 0
  %v5434 = vsel %vm5417, %v3802, 0
  %v5437 = vsel %vm5417, %v3808, 0
  %v5440 = vsel %vm5417, %v3814, 0
  %v5443 = vsel %vm5417, %v3820, 0
  %v5446 = vsel %vm5417, %v3826, 0
  %v5449 = vsel %vm5417, %v3832, 0
  %v5452 = vsel %vm5417, %v3838, 0
  %v5455 = vsel %vm5417, %v3844, 0
  %v5458 = vsel %vm5417, %v3850, 0
  %v5461 = vsel %vm5417, %v3856, 0
  %v5464 = vsel %vm5417, %v3862, 0
  %v5467 = vsel %vm5417, %v3868, 0
  %v5470 = vsel %vm5417, %v3874, 0
  %v5473 = vsel %vm5417, %v3880, 0
  %v5476 = vsel %vm5417, %v3886, 0
  %v5479 = vsel %vm5417, %v3892, 0
  %v5482 = vsel %vm5417, %v3898, 0
  %v5485 = vsel %vm5417, %v3904, 0
  %v5488 = vsel %vm5417, %v3910, 0
  %v5491 = vsel %vm5417, %v3916, 0
  %v5494 = vsel %vm5417, %v3922, 0
  %v5497 = vsel %vm5417, %v3928, 0
  %v5500 = vsel %vm5417, %v3934, 0
  %v5503 = vsel %vm5417, %v3940, 0
  %v5506 = vsel %vm5417, %v3946, 0
  %v5509 = vsel %vm5417, %v3952, 0
  %v5512 = vsel %vm5417, %v3958, 0
  %v5515 = vsel %vm5417, %v3964, 0
  %v5518 = vsel %vm5417, %v3970, 0
  %v5521 = vsel %vm5417, %v3976, 0
  %v5524 = vsel %vm5417, %v3982, 0
  %v5527 = vsel %vm5417, %v3988, 0
  %v5530 = vsel %vm5417, %v3994, 0
  %v5533 = vsel %vm5417, %v4000, 0
  %v5536 = vsel %vm5417, %v4006, 0
  %v5539 = vsel %vm5417, %v4012, 0
  %v5542 = vsel %vm5417, %v4018, 0
  %v5545 = vsel %vm5417, %v4024, 0
  %v5548 = vsel %vm5417, %v4030, 0
  %v5551 = vsel %vm5417, %v4036, 0
  %v5554 = vsel %vm5417, %v4042, 0
  %v5557 = vsel %vm5417, %v4048, 0
  %v5560 = vsel %vm5417, %v4054, 0
  %v5563 = vsel %vm5417, %v4060, 0
  %v5566 = vsel %vm5417, %v4066, 0
  %v5569 = vsel %vm5417, %v4072, 0
  %v5572 = vsel %vm5417, %v4078, 0
  %v5575 = vsel %vm5417, %v4084, 0
  %v5578 = vsel %vm5417, %v4090, 0
  %v5581 = vsel %vm5417, %v4096, 0
  %v5584 = vsel %vm5417, %v4102, 0
  %v5587 = vsel %vm5417, %v4108, 0
  %v5590 = vsel %vm5417, %v4114, 0
  %v5593 = vsel %vm5417, %v4120, 0
  %v5596 = vsel %vm5417, %v4126, 0
  %v5599 = vsel %vm5417, %v4132, 0
  %v5602 = vsel %vm5417, %v4138, 0
  %v5605 = vsel %vm5417, %v4144, 0
  %v5608 = vsel %vm5417, %v4150, 0
  %v5611 = vsel %vm5417, %v4156, 0
  %v5614 = vsel %vm5417, %v4162, 0
  %v5617 = vsel %vm5417, %v4168, 0
  %v5620 = vsel %vm5417, %v4174, 0
  %v5623 = vsel %vm5417, %v4180, 0
  %v5626 = vsel %vm5417, %v4186, 0
  %v5629 = vsel %vm5417, %v4192, 0
  %v5632 = vsel %vm5417, %v4198, 0
  %v5635 = vsel %vm5417, %v4204, 0
  %v5638 = vsel %vm5417, %v4210, 0
  %v5641 = vsel %vm5417, %v4216, 0
  %v5644 = vsel %vm5417, %v4222, 0
  %v5647 = vsel %vm5417, %v4228, 0
  %v5650 = vsel %vm5417, %v4234, 0
  %v5653 = vsel %vm5417, %v4240, 0
  %v5656 = vsel %vm5417, %v4246, 0
  %v5659 = vsel %vm5417, %v4252, 0
  %v5662 = vsel %vm5417, %v4258, 0
  %v5665 = vsel %vm5417, %v4264, 0
  %v5668 = vsel %vm5417, %v4270, 0
  %v5671 = vsel %vm5417, %v4276, 0
  %v5674 = vsel %vm5417, %v4282, 0
  %v5677 = vsel %vm5417, %v4288, 0
  %v5680 = vsel %vm5417, %v4294, 0
  %v5683 = vsel %vm5417, %v4300, 0
  %v5686 = vsel %vm5417, %v4306, 0
  %v5689 = vsel %vm5417, %v4312, 0
  %v5692 = vsel %vm5417, %v4318, 0
  %v5695 = vsel %vm5417, %v4324, 0
  %v5698 = vsel %vm5417, %v4330, 0
  %v5701 = vsel %vm5417, %v4336, 0
  %v5704 = vsel %vm5417, %v4342, 0
  %v5707 = vsel %vm5417, %v4348, 0
  %v5710 = vsel %vm5417, %v4354, 0
  %v5713 = vsel %vm5417, %v4360, 0
  %v5716 = vsel %vm5417, %v4366, 0
  %v5719 = vsel %vm5417, %v4372, 0
  %v5722 = vsel %vm5417, %v4378, 0
  %v5725 = vsel %vm5417, %v4384, 0
  %v5728 = vsel %vm5417, %v4390, 0
  %v5731 = vsel %vm5417, %v4396, 0
  %v5734 = vsel %vm5417, %v4402, 0
  %v5737 = vsel %vm5417, %v4408, 0
  %v5740 = vsel %vm5417, %v4414, 0
  %v5743 = vsel %vm5417, %v4420, 0
  %v5746 = vsel %vm5417, %v4426, 0
  %v5749 = vsel %vm5417, %v4432, 0
  %v5752 = vsel %vm5417, %v4438, 0
  %v5755 = vsel %vm5417, %v4444, 0
  %v5758 = vsel %vm5417, %v4450, 0
  %v5761 = vsel %vm5417, %v4456, 0
  %v5764 = vsel %vm5417, %v4462, 0
  %v5767 = vsel %vm5417, %v4468, 0
  %v5770 = vsel %vm5417, %v4474, 0
  %v5773 = vsel %vm5417, %v4480, 0
  %v5776 = vsel %vm5417, %v4486, 0
  %v5779 = vsel %vm5417, %v4492, 0
  %v5782 = vsel %vm5417, %v4498, 0
  %v5785 = vsel %vm5417, %v4504, 0
  %v5788 = vsel %vm5417, %v4510, 0
  %v5791 = vsel %vm5417, %v4516, 0
  %v5794 = vsel %vm5417, %v4522, 0
  %v5797 = vsel %vm5417, %v4528, 0
  %v5800 = vsel %vm5417, %v4534, 0
  %v5803 = vsel %vm5417, %v4540, 0
  %v5806 = vsel %vm5417, %v4546, 0
  %v5809 = vsel %vm5417, %v4552, 0
  %v5812 = vsel %vm5417, %v4558, 0
  %v5815 = vsel %vm5417, %v4564, 0
  %v5818 = vsel %vm5417, %v4570, 0
  %v5821 = vsel %vm5417, %v4576, 0
  %v5824 = vsel %vm5417, %v4582, 0
  %v5827 = vsel %vm5417, %v4588, 0
  %v5830 = vsel %vm5417, %v4594, 0
  %v5833 = vsel %vm5417, %v4600, 0
  %v5836 = vsel %vm5417, %v4606, 0
  %v5839 = vsel %vm5417, %v4612, 0
  %v5842 = vsel %vm5417, %v4618, 0
  %v5845 = vsel %vm5417, %v4624, 0
  %v5848 = vsel %vm5417, %v4630, 0
  %v5851 = vsel %vm5417, %v4636, 0
  %v5854 = vsel %vm5417, %v4642, 0
  %v5857 = vsel %vm5417, %v4648, 0
  %v5860 = vsel %vm5417, %v4654, 0
  %v5863 = vsel %vm5417, %v4660, 0
  %v5866 = vsel %vm5417, %v4666, 0
  %vm5868 = vcmask 1041408
  %v5870 = vsel %vm5868, %v166, 0
  %5872 = vmatprep.subr.bf16.mxu0 0
  %5873 = vmatpush1.bf16.msra.mxu0 %v124
  %5874 = vmatprep.subr.bf16.mxu0 0
  %5875 = vmatpush1.bf16.msra.mxu0 %v125
  %5876 = vmatprep.subr.bf16.mxu0 0
  %5877 = vmatpush1.bf16.msra.mxu0 %v126
  %5878 = vmatprep.subr.bf16.mxu0 0
  %5879 = vmatpush1.bf16.msra.mxu0 %v127
  %5880 = vmatprep.subr.bf16.mxu0 0
  %5881 = vmatpush1.bf16.msra.mxu0 %v128
  %5882 = vmatprep.subr.bf16.mxu0 0
  %5883 = vmatpush1.bf16.msra.mxu0 %v129
  %5884 = vmatprep.subr.bf16.mxu0 0
  %5885 = vmatpush1.bf16.msra.mxu0 %v130
  %5886 = vmatprep.subr.bf16.mxu0 0
  %5887 = vmatpush1.bf16.msra.mxu0 %v131
  %5888 = vmatprep.subr.bf16.mxu0 0
  %5889 = vmatpush1.bf16.msra.mxu0 %v132
  %5890 = vmatprep.subr.bf16.mxu0 0
  %5891 = vmatpush1.bf16.msra.mxu0 %v133
  %5892 = vmatprep.subr.bf16.mxu0 0
  %5893 = vmatpush1.bf16.msra.mxu0 %v134
  %5894 = vmatprep.subr.bf16.mxu0 0
  %5895 = vmatpush1.bf16.msra.mxu0 %v135
  %5896 = vmatprep.subr.bf16.mxu0 0
  %5897 = vmatpush1.bf16.msra.mxu0 %v136
  %5898 = vmatprep.subr.bf16.mxu0 0
  %5899 = vmatpush1.bf16.msra.mxu0 %v137
  %5900 = vmatprep.subr.bf16.mxu0 0
  %5901 = vmatpush1.bf16.msra.mxu0 %v138
  %5902 = vmatprep.subr.bf16.mxu0 0
  %5903 = vmatpush1.bf16.msra.mxu0 %v139
  %5904 = vmatprep.mubr.bf16.mxu0 %v3768
  %5905 = vmatmul.mubr.bf16.gmra.mrb[0].mxu0 %v3767
  %v5906 = vpop.f32.mrb[0].mxu0
  %v5907 = vadd.f32 0.0, %v5906
  %v5908 = vpop.f32.mrb[0].mxu0
  %v5909 = vpop.f32.mrb[0].mxu0
  %v5910 = vadd.f32 0.0, %v5909
  %v5911 = vpop.f32.mrb[0].mxu0
  %5912 = vmatprep.mubr.bf16.mxu0 %v3774
  %5913 = vmatmul.mubr.bf16.gmra.mrb[0].mxu0 %v3773
  %v5914 = vpop.f32.mrb[0].mxu0
  %v5915 = vadd.f32 0.0, %v5914
  %v5916 = vpop.f32.mrb[0].mxu0
  %v5917 = vpop.f32.mrb[0].mxu0
  %v5918 = vadd.f32 0.0, %v5917
  %v5919 = vpop.f32.mrb[0].mxu0
  %5920 = vmatprep.mubr.bf16.mxu0 %v3780
  %5921 = vmatmul.mubr.bf16.gmra.mrb[0].mxu0 %v3779
  %v5922 = vpop.f32.mrb[0].mxu0
  %v5923 = vadd.f32 0.0, %v5922
  %v5924 = vpop.f32.mrb[0].mxu0
  %v5925 = vpop.f32.mrb[0].mxu0
  %v5926 = vadd.f32 0.0, %v5925
  %v5927 = vpop.f32.mrb[0].mxu0
  %5928 = vmatprep.mubr.bf16.mxu0 %v3786
  %5929 = vmatmul.mubr.bf16.gmra.mrb[0].mxu0 %v3785
  %v5930 = vpop.f32.mrb[0].mxu0
  %v5931 = vadd.f32 0.0, %v5930
  %v5932 = vpop.f32.mrb[0].mxu0
  %v5933 = vpop.f32.mrb[0].mxu0
  %v5934 = vadd.f32 0.0, %v5933
  %v5935 = vpop.f32.mrb[0].mxu0
  %5936 = vmatprep.mubr.bf16.mxu0 %v3792
  %5937 = vmatmul.mubr.bf16.gmra.mrb[0].mxu0 %v3791
  %v5938 = vpop.f32.mrb[0].mxu0
  %v5939 = vadd.f32 0.0, %v5938
  %v5940 = vpop.f32.mrb[0].mxu0
  %v5941 = vpop.f32.mrb[0].mxu0
  %v5942 = vadd.f32 0.0, %v5941
  %v5943 = vpop.f32.mrb[0].mxu0
  %5944 = vmatprep.mubr.bf16.mxu0 %v3798
  %5945 = vmatmul.mubr.bf16.gmra.mrb[0].mxu0 %v3797
  %v5946 = vpop.f32.mrb[0].mxu0
  %v5947 = vadd.f32 0.0, %v5946
  %v5948 = vpop.f32.mrb[0].mxu0
  %v5949 = vpop.f32.mrb[0].mxu0
  %v5950 = vadd.f32 0.0, %v5949
  %v5951 = vpop.f32.mrb[0].mxu0
  %5952 = vmatprep.mubr.bf16.mxu0 %v3804
  %5953 = vmatmul.mubr.bf16.gmra.mrb[0].mxu0 %v3803
  %v5954 = vpop.f32.mrb[0].mxu0
  %v5955 = vadd.f32 0.0, %v5954
  %v5956 = vpop.f32.mrb[0].mxu0
  %v5957 = vpop.f32.mrb[0].mxu0
  %v5958 = vadd.f32 0.0, %v5957
  %v5959 = vpop.f32.mrb[0].mxu0
  %5960 = vmatprep.mubr.bf16.mxu0 %v3810
  %5961 = vmatmul.mubr.bf16.gmra.mrb[0].mxu0 %v3809
  %v5962 = vpop.f32.mrb[0].mxu0
  %v5963 = vadd.f32 0.0, %v5962
  %v5964 = vpop.f32.mrb[0].mxu0
  %v5965 = vpop.f32.mrb[0].mxu0
  %v5966 = vadd.f32 0.0, %v5965
  %v5967 = vpop.f32.mrb[0].mxu0
  %5968 = vmatprep.mubr.bf16.mxu0 %v3816
  %5969 = vmatmul.mubr.bf16.gmra.mrb[0].mxu0 %v3815
  %v5970 = vpop.f32.mrb[0].mxu0
  %v5971 = vadd.f32 0.0, %v5970
  %v5972 = vpop.f32.mrb[0].mxu0
  %v5973 = vpop.f32.mrb[0].mxu0
  %v5974 = vadd.f32 0.0, %v5973
  %v5975 = vpop.f32.mrb[0].mxu0
  %5976 = vmatprep.mubr.bf16.mxu0 %v3822
  %5977 = vmatmul.mubr.bf16.gmra.mrb[0].mxu0 %v3821
  %v5978 = vpop.f32.mrb[0].mxu0
  %v5979 = vadd.f32 0.0, %v5978
  %v5980 = vpop.f32.mrb[0].mxu0
  %v5981 = vpop.f32.mrb[0].mxu0
  %v5982 = vadd.f32 0.0, %v5981
  %v5983 = vpop.f32.mrb[0].mxu0
  %5984 = vmatprep.mubr.bf16.mxu0 %v3828
  %5985 = vmatmul.mubr.bf16.gmra.mrb[0].mxu0 %v3827
  %v5986 = vpop.f32.mrb[0].mxu0
  %v5987 = vadd.f32 0.0, %v5986
  %v5988 = vpop.f32.mrb[0].mxu0
  %v5989 = vpop.f32.mrb[0].mxu0
  %v5990 = vadd.f32 0.0, %v5989
  %v5991 = vpop.f32.mrb[0].mxu0
  %5992 = vmatprep.mubr.bf16.mxu0 %v3834
  %5993 = vmatmul.mubr.bf16.gmra.mrb[0].mxu0 %v3833
  %v5994 = vpop.f32.mrb[0].mxu0
  %v5995 = vadd.f32 0.0, %v5994
  %v5996 = vpop.f32.mrb[0].mxu0
  %v5997 = vpop.f32.mrb[0].mxu0
  %v5998 = vadd.f32 0.0, %v5997
  %v5999 = vpop.f32.mrb[0].mxu0
  %6000 = vmatprep.mubr.bf16.mxu0 %v3840
  %6001 = vmatmul.mubr.bf16.gmra.mrb[0].mxu0 %v3839
  %v6002 = vpop.f32.mrb[0].mxu0
  %v6003 = vadd.f32 0.0, %v6002
  %v6004 = vpop.f32.mrb[0].mxu0
  %v6005 = vpop.f32.mrb[0].mxu0
  %v6006 = vadd.f32 0.0, %v6005
  %v6007 = vpop.f32.mrb[0].mxu0
  %6008 = vmatprep.mubr.bf16.mxu0 %v3846
  %6009 = vmatmul.mubr.bf16.gmra.mrb[0].mxu0 %v3845
  %v6010 = vpop.f32.mrb[0].mxu0
  %v6011 = vadd.f32 0.0, %v6010
  %v6012 = vpop.f32.mrb[0].mxu0
  %v6013 = vpop.f32.mrb[0].mxu0
  %v6014 = vadd.f32 0.0, %v6013
  %v6015 = vpop.f32.mrb[0].mxu0
  %6016 = vmatprep.mubr.bf16.mxu0 %v3852
  %6017 = vmatmul.mubr.bf16.gmra.mrb[0].mxu0 %v3851
  %v6018 = vpop.f32.mrb[0].mxu0
  %v6019 = vadd.f32 0.0, %v6018
  %v6020 = vpop.f32.mrb[0].mxu0
  %v6021 = vpop.f32.mrb[0].mxu0
  %v6022 = vadd.f32 0.0, %v6021
  %v6023 = vpop.f32.mrb[0].mxu0
  %6024 = vmatprep.mubr.bf16.mxu0 %v3858
  %6025 = vmatmul.mubr.bf16.gmra.mrb[0].mxu0 %v3857
  %v6026 = vpop.f32.mrb[0].mxu0
  %v6027 = vadd.f32 0.0, %v6026
  %v6028 = vpop.f32.mrb[0].mxu0
  %v6029 = vpop.f32.mrb[0].mxu0
  %v6030 = vadd.f32 0.0, %v6029
  %v6031 = vpop.f32.mrb[0].mxu0
  %6032 = vmatprep.mubr.bf16.mxu0 %v3864
  %6033 = vmatmul.mubr.bf16.gmra.mrb[0].mxu0 %v3863
  %v6034 = vpop.f32.mrb[0].mxu0
  %v6035 = vadd.f32 0.0, %v6034
  %v6036 = vpop.f32.mrb[0].mxu0
  %v6037 = vpop.f32.mrb[0].mxu0
  %v6038 = vadd.f32 0.0, %v6037
  %v6039 = vpop.f32.mrb[0].mxu0
  %6040 = vmatprep.mubr.bf16.mxu0 %v3870
  %6041 = vmatmul.mubr.bf16.gmra.mrb[0].mxu0 %v3869
  %v6042 = vpop.f32.mrb[0].mxu0
  %v6043 = vadd.f32 0.0, %v6042
  %v6044 = vpop.f32.mrb[0].mxu0
  %v6045 = vpop.f32.mrb[0].mxu0
  %v6046 = vadd.f32 0.0, %v6045
  %v6047 = vpop.f32.mrb[0].mxu0
  %6048 = vmatprep.mubr.bf16.mxu0 %v3876
  %6049 = vmatmul.mubr.bf16.gmra.mrb[0].mxu0 %v3875
  %v6050 = vpop.f32.mrb[0].mxu0
  %v6051 = vadd.f32 0.0, %v6050
  %v6052 = vpop.f32.mrb[0].mxu0
  %v6053 = vpop.f32.mrb[0].mxu0
  %v6054 = vadd.f32 0.0, %v6053
  %v6055 = vpop.f32.mrb[0].mxu0
  %6056 = vmatprep.mubr.bf16.mxu0 %v3882
  %6057 = vmatmul.mubr.bf16.gmra.mrb[0].mxu0 %v3881
  %v6058 = vpop.f32.mrb[0].mxu0
  %v6059 = vadd.f32 0.0, %v6058
  %v6060 = vpop.f32.mrb[0].mxu0
  %v6061 = vpop.f32.mrb[0].mxu0
  %v6062 = vadd.f32 0.0, %v6061
  %v6063 = vpop.f32.mrb[0].mxu0
  %6064 = vmatprep.mubr.bf16.mxu0 %v3888
  %6065 = vmatmul.mubr.bf16.gmra.mrb[0].mxu0 %v3887
  %v6066 = vpop.f32.mrb[0].mxu0
  %v6067 = vadd.f32 0.0, %v6066
  %v6068 = vpop.f32.mrb[0].mxu0
  %v6069 = vpop.f32.mrb[0].mxu0
  %v6070 = vadd.f32 0.0, %v6069
  %v6071 = vpop.f32.mrb[0].mxu0
  %6072 = vmatprep.mubr.bf16.mxu0 %v3894
  %6073 = vmatmul.mubr.bf16.gmra.mrb[0].mxu0 %v3893
  %v6074 = vpop.f32.mrb[0].mxu0
  %v6075 = vadd.f32 0.0, %v6074
  %v6076 = vpop.f32.mrb[0].mxu0
  %v6077 = vpop.f32.mrb[0].mxu0
  %v6078 = vadd.f32 0.0, %v6077
  %v6079 = vpop.f32.mrb[0].mxu0
  %6080 = vmatprep.mubr.bf16.mxu0 %v3900
  %6081 = vmatmul.mubr.bf16.gmra.mrb[0].mxu0 %v3899
  %v6082 = vpop.f32.mrb[0].mxu0
  %v6083 = vadd.f32 0.0, %v6082
  %v6084 = vpop.f32.mrb[0].mxu0
  %v6085 = vpop.f32.mrb[0].mxu0
  %v6086 = vadd.f32 0.0, %v6085
  %v6087 = vpop.f32.mrb[0].mxu0
  %6088 = vmatprep.mubr.bf16.mxu0 %v3906
  %6089 = vmatmul.mubr.bf16.gmra.mrb[0].mxu0 %v3905
  %v6090 = vpop.f32.mrb[0].mxu0
  %v6091 = vadd.f32 0.0, %v6090
  %v6092 = vpop.f32.mrb[0].mxu0
  %v6093 = vpop.f32.mrb[0].mxu0
  %v6094 = vadd.f32 0.0, %v6093
  %v6095 = vpop.f32.mrb[0].mxu0
  %6096 = vmatprep.mubr.bf16.mxu0 %v3912
  %6097 = vmatmul.mubr.bf16.gmra.mrb[0].mxu0 %v3911
  %v6098 = vpop.f32.mrb[0].mxu0
  %v6099 = vadd.f32 0.0, %v6098
  %v6100 = vpop.f32.mrb[0].mxu0
  %v6101 = vpop.f32.mrb[0].mxu0
  %v6102 = vadd.f32 0.0, %v6101
  %v6103 = vpop.f32.mrb[0].mxu0
  %6104 = vmatprep.mubr.bf16.mxu0 %v3918
  %6105 = vmatmul.mubr.bf16.gmra.mrb[0].mxu0 %v3917
  %v6106 = vpop.f32.mrb[0].mxu0
  %v6107 = vadd.f32 0.0, %v6106
  %v6108 = vpop.f32.mrb[0].mxu0
  %v6109 = vpop.f32.mrb[0].mxu0
  %v6110 = vadd.f32 0.0, %v6109
  %v6111 = vpop.f32.mrb[0].mxu0
  %6112 = vmatprep.mubr.bf16.mxu0 %v3924
  %6113 = vmatmul.mubr.bf16.gmra.mrb[0].mxu0 %v3923
  %v6114 = vpop.f32.mrb[0].mxu0
  %v6115 = vadd.f32 0.0, %v6114
  %v6116 = vpop.f32.mrb[0].mxu0
  %v6117 = vpop.f32.mrb[0].mxu0
  %v6118 = vadd.f32 0.0, %v6117
  %v6119 = vpop.f32.mrb[0].mxu0
  %6120 = vmatprep.mubr.bf16.mxu0 %v3930
  %6121 = vmatmul.mubr.bf16.gmra.mrb[0].mxu0 %v3929
  %v6122 = vpop.f32.mrb[0].mxu0
  %v6123 = vadd.f32 0.0, %v6122
  %v6124 = vpop.f32.mrb[0].mxu0
  %v6125 = vpop.f32.mrb[0].mxu0
  %v6126 = vadd.f32 0.0, %v6125
  %v6127 = vpop.f32.mrb[0].mxu0
  %6128 = vmatprep.mubr.bf16.mxu0 %v3936
  %6129 = vmatmul.mubr.bf16.gmra.mrb[0].mxu0 %v3935
  %v6130 = vpop.f32.mrb[0].mxu0
  %v6131 = vadd.f32 0.0, %v6130
  %v6132 = vpop.f32.mrb[0].mxu0
  %v6133 = vpop.f32.mrb[0].mxu0
  %v6134 = vadd.f32 0.0, %v6133
  %v6135 = vpop.f32.mrb[0].mxu0
  %6136 = vmatprep.mubr.bf16.mxu0 %v3942
  %6137 = vmatmul.mubr.bf16.gmra.mrb[0].mxu0 %v3941
  %v6138 = vpop.f32.mrb[0].mxu0
  %v6139 = vadd.f32 0.0, %v6138
  %v6140 = vpop.f32.mrb[0].mxu0
  %v6141 = vpop.f32.mrb[0].mxu0
  %v6142 = vadd.f32 0.0, %v6141
  %v6143 = vpop.f32.mrb[0].mxu0
  %6144 = vmatprep.mubr.bf16.mxu0 %v3948
  %6145 = vmatmul.mubr.bf16.gmra.mrb[0].mxu0 %v3947
  %v6146 = vpop.f32.mrb[0].mxu0
  %v6147 = vadd.f32 0.0, %v6146
  %v6148 = vpop.f32.mrb[0].mxu0
  %v6149 = vpop.f32.mrb[0].mxu0
  %v6150 = vadd.f32 0.0, %v6149
  %v6151 = vpop.f32.mrb[0].mxu0
  %6152 = vmatprep.mubr.bf16.mxu0 %v3954
  %6153 = vmatmul.mubr.bf16.gmra.mrb[0].mxu0 %v3953
  %v6154 = vpop.f32.mrb[0].mxu0
  %v6155 = vadd.f32 0.0, %v6154
  %v6156 = vpop.f32.mrb[0].mxu0
  %v6157 = vpop.f32.mrb[0].mxu0
  %v6158 = vadd.f32 0.0, %v6157
  %v6159 = vpop.f32.mrb[0].mxu0
  %6160 = vmatprep.mubr.bf16.mxu0 %v3960
  %6161 = vmatmul.mubr.bf16.gmra.mrb[0].mxu0 %v3959
  %v6162 = vpop.f32.mrb[0].mxu0
  %v6163 = vadd.f32 0.0, %v6162
  %v6164 = vpop.f32.mrb[0].mxu0
  %v6165 = vpop.f32.mrb[0].mxu0
  %v6166 = vadd.f32 0.0, %v6165
  %v6167 = vpop.f32.mrb[0].mxu0
  %6168 = vmatprep.mubr.bf16.mxu0 %v3966
  %6169 = vmatmul.mubr.bf16.gmra.mrb[0].mxu0 %v3965
  %v6170 = vpop.f32.mrb[0].mxu0
  %v6171 = vadd.f32 0.0, %v6170
  %v6172 = vpop.f32.mrb[0].mxu0
  %v6173 = vpop.f32.mrb[0].mxu0
  %v6174 = vadd.f32 0.0, %v6173
  %v6175 = vpop.f32.mrb[0].mxu0
  %6176 = vmatprep.mubr.bf16.mxu0 %v3972
  %6177 = vmatmul.mubr.bf16.gmra.mrb[0].mxu0 %v3971
  %v6178 = vpop.f32.mrb[0].mxu0
  %v6179 = vadd.f32 0.0, %v6178
  %v6180 = vpop.f32.mrb[0].mxu0
  %v6181 = vpop.f32.mrb[0].mxu0
  %v6182 = vadd.f32 0.0, %v6181
  %v6183 = vpop.f32.mrb[0].mxu0
  %6184 = vmatprep.mubr.bf16.mxu0 %v3978
  %6185 = vmatmul.mubr.bf16.gmra.mrb[0].mxu0 %v3977
  %v6186 = vpop.f32.mrb[0].mxu0
  %v6187 = vadd.f32 0.0, %v6186
  %v6188 = vpop.f32.mrb[0].mxu0
  %v6189 = vpop.f32.mrb[0].mxu0
  %v6190 = vadd.f32 0.0, %v6189
  %v6191 = vpop.f32.mrb[0].mxu0
  %6192 = vmatprep.mubr.bf16.mxu0 %v3984
  %6193 = vmatmul.mubr.bf16.gmra.mrb[0].mxu0 %v3983
  %v6194 = vpop.f32.mrb[0].mxu0
  %v6195 = vadd.f32 0.0, %v6194
  %v6196 = vpop.f32.mrb[0].mxu0
  %v6197 = vpop.f32.mrb[0].mxu0
  %v6198 = vadd.f32 0.0, %v6197
  %v6199 = vpop.f32.mrb[0].mxu0
  %6200 = vmatprep.mubr.bf16.mxu0 %v3990
  %6201 = vmatmul.mubr.bf16.gmra.mrb[0].mxu0 %v3989
  %v6202 = vpop.f32.mrb[0].mxu0
  %v6203 = vadd.f32 0.0, %v6202
  %v6204 = vpop.f32.mrb[0].mxu0
  %v6205 = vpop.f32.mrb[0].mxu0
  %v6206 = vadd.f32 0.0, %v6205
  %v6207 = vpop.f32.mrb[0].mxu0
  %6208 = vmatprep.mubr.bf16.mxu0 %v3996
  %6209 = vmatmul.mubr.bf16.gmra.mrb[0].mxu0 %v3995
  %v6210 = vpop.f32.mrb[0].mxu0
  %v6211 = vadd.f32 0.0, %v6210
  %v6212 = vpop.f32.mrb[0].mxu0
  %v6213 = vpop.f32.mrb[0].mxu0
  %v6214 = vadd.f32 0.0, %v6213
  %v6215 = vpop.f32.mrb[0].mxu0
  %6216 = vmatprep.mubr.bf16.mxu0 %v4002
  %6217 = vmatmul.mubr.bf16.gmra.mrb[0].mxu0 %v4001
  %v6218 = vpop.f32.mrb[0].mxu0
  %v6219 = vadd.f32 0.0, %v6218
  %v6220 = vpop.f32.mrb[0].mxu0
  %v6221 = vpop.f32.mrb[0].mxu0
  %v6222 = vadd.f32 0.0, %v6221
  %v6223 = vpop.f32.mrb[0].mxu0
  %6224 = vmatprep.mubr.bf16.mxu0 %v4008
  %6225 = vmatmul.mubr.bf16.gmra.mrb[0].mxu0 %v4007
  %v6226 = vpop.f32.mrb[0].mxu0
  %v6227 = vadd.f32 0.0, %v6226
  %v6228 = vpop.f32.mrb[0].mxu0
  %v6229 = vpop.f32.mrb[0].mxu0
  %v6230 = vadd.f32 0.0, %v6229
  %v6231 = vpop.f32.mrb[0].mxu0
  %6232 = vmatprep.mubr.bf16.mxu0 %v4014
  %6233 = vmatmul.mubr.bf16.gmra.mrb[0].mxu0 %v4013
  %v6234 = vpop.f32.mrb[0].mxu0
  %v6235 = vadd.f32 0.0, %v6234
  %v6236 = vpop.f32.mrb[0].mxu0
  %v6237 = vpop.f32.mrb[0].mxu0
  %v6238 = vadd.f32 0.0, %v6237
  %v6239 = vpop.f32.mrb[0].mxu0
  %6240 = vmatprep.mubr.bf16.mxu0 %v4020
  %6241 = vmatmul.mubr.bf16.gmra.mrb[0].mxu0 %v4019
  %v6242 = vpop.f32.mrb[0].mxu0
  %v6243 = vadd.f32 0.0, %v6242
  %v6244 = vpop.f32.mrb[0].mxu0
  %v6245 = vpop.f32.mrb[0].mxu0
  %v6246 = vadd.f32 0.0, %v6245
  %v6247 = vpop.f32.mrb[0].mxu0
  %6248 = vmatprep.mubr.bf16.mxu0 %v4026
  %6249 = vmatmul.mubr.bf16.gmra.mrb[0].mxu0 %v4025
  %v6250 = vpop.f32.mrb[0].mxu0
  %v6251 = vadd.f32 0.0, %v6250
  %v6252 = vpop.f32.mrb[0].mxu0
  %v6253 = vpop.f32.mrb[0].mxu0
  %v6254 = vadd.f32 0.0, %v6253
  %v6255 = vpop.f32.mrb[0].mxu0
  %6256 = vmatprep.mubr.bf16.mxu0 %v4032
  %6257 = vmatmul.mubr.bf16.gmra.mrb[0].mxu0 %v4031
  %v6258 = vpop.f32.mrb[0].mxu0
  %v6259 = vadd.f32 0.0, %v6258
  %v6260 = vpop.f32.mrb[0].mxu0
  %v6261 = vpop.f32.mrb[0].mxu0
  %v6262 = vadd.f32 0.0, %v6261
  %v6263 = vpop.f32.mrb[0].mxu0
  %6264 = vmatprep.mubr.bf16.mxu0 %v4038
  %6265 = vmatmul.mubr.bf16.gmra.mrb[0].mxu0 %v4037
  %v6266 = vpop.f32.mrb[0].mxu0
  %v6267 = vadd.f32 0.0, %v6266
  %v6268 = vpop.f32.mrb[0].mxu0
  %v6269 = vpop.f32.mrb[0].mxu0
  %v6270 = vadd.f32 0.0, %v6269
  %v6271 = vpop.f32.mrb[0].mxu0
  %6272 = vmatprep.mubr.bf16.mxu0 %v4044
  %6273 = vmatmul.mubr.bf16.gmra.mrb[0].mxu0 %v4043
  %v6274 = vpop.f32.mrb[0].mxu0
  %v6275 = vadd.f32 0.0, %v6274
  %v6276 = vpop.f32.mrb[0].mxu0
  %v6277 = vpop.f32.mrb[0].mxu0
  %v6278 = vadd.f32 0.0, %v6277
  %v6279 = vpop.f32.mrb[0].mxu0
  %6280 = vmatprep.mubr.bf16.mxu0 %v4050
  %6281 = vmatmul.mubr.bf16.gmra.mrb[0].mxu0 %v4049
  %v6282 = vpop.f32.mrb[0].mxu0
  %v6283 = vadd.f32 0.0, %v6282
  %v6284 = vpop.f32.mrb[0].mxu0
  %v6285 = vpop.f32.mrb[0].mxu0
  %v6286 = vadd.f32 0.0, %v6285
  %v6287 = vpop.f32.mrb[0].mxu0
  %6288 = vmatprep.mubr.bf16.mxu0 %v4056
  %6289 = vmatmul.mubr.bf16.gmra.mrb[0].mxu0 %v4055
  %v6290 = vpop.f32.mrb[0].mxu0
  %v6291 = vadd.f32 0.0, %v6290
  %v6292 = vpop.f32.mrb[0].mxu0
  %v6293 = vpop.f32.mrb[0].mxu0
  %v6294 = vadd.f32 0.0, %v6293
  %v6295 = vpop.f32.mrb[0].mxu0
  %6296 = vmatprep.mubr.bf16.mxu0 %v4062
  %6297 = vmatmul.mubr.bf16.gmra.mrb[0].mxu0 %v4061
  %v6298 = vpop.f32.mrb[0].mxu0
  %v6299 = vadd.f32 0.0, %v6298
  %v6300 = vpop.f32.mrb[0].mxu0
  %v6301 = vpop.f32.mrb[0].mxu0
  %v6302 = vadd.f32 0.0, %v6301
  %v6303 = vpop.f32.mrb[0].mxu0
  %6304 = vmatprep.mubr.bf16.mxu0 %v4068
  %6305 = vmatmul.mubr.bf16.gmra.mrb[0].mxu0 %v4067
  %v6306 = vpop.f32.mrb[0].mxu0
  %v6307 = vadd.f32 0.0, %v6306
  %v6308 = vpop.f32.mrb[0].mxu0
  %v6309 = vpop.f32.mrb[0].mxu0
  %v6310 = vadd.f32 0.0, %v6309
  %v6311 = vpop.f32.mrb[0].mxu0
  %6312 = vmatprep.mubr.bf16.mxu0 %v4074
  %6313 = vmatmul.mubr.bf16.gmra.mrb[0].mxu0 %v4073
  %v6314 = vpop.f32.mrb[0].mxu0
  %v6315 = vadd.f32 0.0, %v6314
  %v6316 = vpop.f32.mrb[0].mxu0
  %v6317 = vpop.f32.mrb[0].mxu0
  %v6318 = vadd.f32 0.0, %v6317
  %v6319 = vpop.f32.mrb[0].mxu0
  %6320 = vmatprep.mubr.bf16.mxu0 %v4080
  %6321 = vmatmul.mubr.bf16.gmra.mrb[0].mxu0 %v4079
  %v6322 = vpop.f32.mrb[0].mxu0
  %v6323 = vadd.f32 0.0, %v6322
  %v6324 = vpop.f32.mrb[0].mxu0
  %v6325 = vpop.f32.mrb[0].mxu0
  %v6326 = vadd.f32 0.0, %v6325
  %v6327 = vpop.f32.mrb[0].mxu0
  %6328 = vmatprep.mubr.bf16.mxu0 %v4086
  %6329 = vmatmul.mubr.bf16.gmra.mrb[0].mxu0 %v4085
  %v6330 = vpop.f32.mrb[0].mxu0
  %v6331 = vadd.f32 0.0, %v6330
  %v6332 = vpop.f32.mrb[0].mxu0
  %v6333 = vpop.f32.mrb[0].mxu0
  %v6334 = vadd.f32 0.0, %v6333
  %v6335 = vpop.f32.mrb[0].mxu0
  %6336 = vmatprep.mubr.bf16.mxu0 %v4092
  %6337 = vmatmul.mubr.bf16.gmra.mrb[0].mxu0 %v4091
  %v6338 = vpop.f32.mrb[0].mxu0
  %v6339 = vadd.f32 0.0, %v6338
  %v6340 = vpop.f32.mrb[0].mxu0
  %v6341 = vpop.f32.mrb[0].mxu0
  %v6342 = vadd.f32 0.0, %v6341
  %v6343 = vpop.f32.mrb[0].mxu0
  %6344 = vmatprep.mubr.bf16.mxu0 %v4098
  %6345 = vmatmul.mubr.bf16.gmra.mrb[0].mxu0 %v4097
  %v6346 = vpop.f32.mrb[0].mxu0
  %v6347 = vadd.f32 0.0, %v6346
  %v6348 = vpop.f32.mrb[0].mxu0
  %v6349 = vpop.f32.mrb[0].mxu0
  %v6350 = vadd.f32 0.0, %v6349
  %v6351 = vpop.f32.mrb[0].mxu0
  %6352 = vmatprep.mubr.bf16.mxu0 %v4104
  %6353 = vmatmul.mubr.bf16.gmra.mrb[0].mxu0 %v4103
  %v6354 = vpop.f32.mrb[0].mxu0
  %v6355 = vadd.f32 0.0, %v6354
  %v6356 = vpop.f32.mrb[0].mxu0
  %v6357 = vpop.f32.mrb[0].mxu0
  %v6358 = vadd.f32 0.0, %v6357
  %v6359 = vpop.f32.mrb[0].mxu0
  %6360 = vmatprep.mubr.bf16.mxu0 %v4110
  %6361 = vmatmul.mubr.bf16.gmra.mrb[0].mxu0 %v4109
  %v6362 = vpop.f32.mrb[0].mxu0
  %v6363 = vadd.f32 0.0, %v6362
  %v6364 = vpop.f32.mrb[0].mxu0
  %v6365 = vpop.f32.mrb[0].mxu0
  %v6366 = vadd.f32 0.0, %v6365
  %v6367 = vpop.f32.mrb[0].mxu0
  %6368 = vmatprep.mubr.bf16.mxu0 %v4116
  %6369 = vmatmul.mubr.bf16.gmra.mrb[0].mxu0 %v4115
  %v6370 = vpop.f32.mrb[0].mxu0
  %v6371 = vadd.f32 0.0, %v6370
  %v6372 = vpop.f32.mrb[0].mxu0
  %v6373 = vpop.f32.mrb[0].mxu0
  %v6374 = vadd.f32 0.0, %v6373
  %v6375 = vpop.f32.mrb[0].mxu0
  %6376 = vmatprep.mubr.bf16.mxu0 %v4122
  %6377 = vmatmul.mubr.bf16.gmra.mrb[0].mxu0 %v4121
  %v6378 = vpop.f32.mrb[0].mxu0
  %v6379 = vadd.f32 0.0, %v6378
  %v6380 = vpop.f32.mrb[0].mxu0
  %v6381 = vpop.f32.mrb[0].mxu0
  %v6382 = vadd.f32 0.0, %v6381
  %v6383 = vpop.f32.mrb[0].mxu0
  %6384 = vmatprep.mubr.bf16.mxu0 %v4128
  %6385 = vmatmul.mubr.bf16.gmra.mrb[0].mxu0 %v4127
  %v6386 = vpop.f32.mrb[0].mxu0
  %v6387 = vadd.f32 0.0, %v6386
  %v6388 = vpop.f32.mrb[0].mxu0
  %v6389 = vpop.f32.mrb[0].mxu0
  %v6390 = vadd.f32 0.0, %v6389
  %v6391 = vpop.f32.mrb[0].mxu0
  %6392 = vmatprep.mubr.bf16.mxu0 %v4134
  %6393 = vmatmul.mubr.bf16.gmra.mrb[0].mxu0 %v4133
  %v6394 = vpop.f32.mrb[0].mxu0
  %v6395 = vadd.f32 0.0, %v6394
  %v6396 = vpop.f32.mrb[0].mxu0
  %v6397 = vpop.f32.mrb[0].mxu0
  %v6398 = vadd.f32 0.0, %v6397
  %v6399 = vpop.f32.mrb[0].mxu0
  %6400 = vmatprep.mubr.bf16.mxu0 %v4140
  %6401 = vmatmul.mubr.bf16.gmra.mrb[0].mxu0 %v4139
  %v6402 = vpop.f32.mrb[0].mxu0
  %v6403 = vadd.f32 0.0, %v6402
  %v6404 = vpop.f32.mrb[0].mxu0
  %v6405 = vpop.f32.mrb[0].mxu0
  %v6406 = vadd.f32 0.0, %v6405
  %v6407 = vpop.f32.mrb[0].mxu0
  %6408 = vmatprep.mubr.bf16.mxu0 %v4146
  %6409 = vmatmul.mubr.bf16.gmra.mrb[0].mxu0 %v4145
  %v6410 = vpop.f32.mrb[0].mxu0
  %v6411 = vadd.f32 0.0, %v6410
  %v6412 = vpop.f32.mrb[0].mxu0
  %v6413 = vpop.f32.mrb[0].mxu0
  %v6414 = vadd.f32 0.0, %v6413
  %v6415 = vpop.f32.mrb[0].mxu0
  %6416 = vmatprep.mubr.bf16.mxu0 %v4152
  %6417 = vmatmul.mubr.bf16.gmra.mrb[0].mxu0 %v4151
  %v6418 = vpop.f32.mrb[0].mxu0
  %v6419 = vadd.f32 0.0, %v6418
  %v6420 = vpop.f32.mrb[0].mxu0
  %v6421 = vpop.f32.mrb[0].mxu0
  %v6422 = vadd.f32 0.0, %v6421
  %v6423 = vpop.f32.mrb[0].mxu0
  %6424 = vmatprep.mubr.bf16.mxu0 %v4158
  %6425 = vmatmul.mubr.bf16.gmra.mrb[0].mxu0 %v4157
  %v6426 = vpop.f32.mrb[0].mxu0
  %v6427 = vadd.f32 0.0, %v6426
  %v6428 = vpop.f32.mrb[0].mxu0
  %v6429 = vpop.f32.mrb[0].mxu0
  %v6430 = vadd.f32 0.0, %v6429
  %v6431 = vpop.f32.mrb[0].mxu0
  %6432 = vmatprep.mubr.bf16.mxu0 %v4164
  %6433 = vmatmul.mubr.bf16.gmra.mrb[0].mxu0 %v4163
  %v6434 = vpop.f32.mrb[0].mxu0
  %v6435 = vadd.f32 0.0, %v6434
  %v6436 = vpop.f32.mrb[0].mxu0
  %v6437 = vpop.f32.mrb[0].mxu0
  %v6438 = vadd.f32 0.0, %v6437
  %v6439 = vpop.f32.mrb[0].mxu0
  %6440 = vmatprep.mubr.bf16.mxu0 %v4170
  %6441 = vmatmul.mubr.bf16.gmra.mrb[0].mxu0 %v4169
  %v6442 = vpop.f32.mrb[0].mxu0
  %v6443 = vadd.f32 0.0, %v6442
  %v6444 = vpop.f32.mrb[0].mxu0
  %v6445 = vpop.f32.mrb[0].mxu0
  %v6446 = vadd.f32 0.0, %v6445
  %v6447 = vpop.f32.mrb[0].mxu0
  %6448 = vmatprep.mubr.bf16.mxu0 %v4176
  %6449 = vmatmul.mubr.bf16.gmra.mrb[0].mxu0 %v4175
  %v6450 = vpop.f32.mrb[0].mxu0
  %v6451 = vadd.f32 0.0, %v6450
  %v6452 = vpop.f32.mrb[0].mxu0
  %v6453 = vpop.f32.mrb[0].mxu0
  %v6454 = vadd.f32 0.0, %v6453
  %v6455 = vpop.f32.mrb[0].mxu0
  %6456 = vmatprep.mubr.bf16.mxu0 %v4182
  %6457 = vmatmul.mubr.bf16.gmra.mrb[0].mxu0 %v4181
  %v6458 = vpop.f32.mrb[0].mxu0
  %v6459 = vadd.f32 0.0, %v6458
  %v6460 = vpop.f32.mrb[0].mxu0
  %v6461 = vpop.f32.mrb[0].mxu0
  %v6462 = vadd.f32 0.0, %v6461
  %v6463 = vpop.f32.mrb[0].mxu0
  %6464 = vmatprep.mubr.bf16.mxu0 %v4188
  %6465 = vmatmul.mubr.bf16.gmra.mrb[0].mxu0 %v4187
  %v6466 = vpop.f32.mrb[0].mxu0
  %v6467 = vadd.f32 0.0, %v6466
  %v6468 = vpop.f32.mrb[0].mxu0
  %v6469 = vpop.f32.mrb[0].mxu0
  %v6470 = vadd.f32 0.0, %v6469
  %v6471 = vpop.f32.mrb[0].mxu0
  %6472 = vmatprep.mubr.bf16.mxu0 %v4194
  %6473 = vmatmul.mubr.bf16.gmra.mrb[0].mxu0 %v4193
  %v6474 = vpop.f32.mrb[0].mxu0
  %v6475 = vadd.f32 0.0, %v6474
  %v6476 = vpop.f32.mrb[0].mxu0
  %v6477 = vpop.f32.mrb[0].mxu0
  %v6478 = vadd.f32 0.0, %v6477
  %v6479 = vpop.f32.mrb[0].mxu0
  %6480 = vmatprep.mubr.bf16.mxu0 %v4200
  %6481 = vmatmul.mubr.bf16.gmra.mrb[0].mxu0 %v4199
  %v6482 = vpop.f32.mrb[0].mxu0
  %v6483 = vadd.f32 0.0, %v6482
  %v6484 = vpop.f32.mrb[0].mxu0
  %v6485 = vpop.f32.mrb[0].mxu0
  %v6486 = vadd.f32 0.0, %v6485
  %v6487 = vpop.f32.mrb[0].mxu0
  %6488 = vmatprep.mubr.bf16.mxu0 %v4206
  %6489 = vmatmul.mubr.bf16.gmra.mrb[0].mxu0 %v4205
  %v6490 = vpop.f32.mrb[0].mxu0
  %v6491 = vadd.f32 0.0, %v6490
  %v6492 = vpop.f32.mrb[0].mxu0
  %v6493 = vpop.f32.mrb[0].mxu0
  %v6494 = vadd.f32 0.0, %v6493
  %v6495 = vpop.f32.mrb[0].mxu0
  %6496 = vmatprep.mubr.bf16.mxu0 %v4212
  %6497 = vmatmul.mubr.bf16.gmra.mrb[0].mxu0 %v4211
  %v6498 = vpop.f32.mrb[0].mxu0
  %v6499 = vadd.f32 0.0, %v6498
  %v6500 = vpop.f32.mrb[0].mxu0
  %v6501 = vpop.f32.mrb[0].mxu0
  %v6502 = vadd.f32 0.0, %v6501
  %v6503 = vpop.f32.mrb[0].mxu0
  %6504 = vmatprep.mubr.bf16.mxu0 %v4218
  %6505 = vmatmul.mubr.bf16.gmra.mrb[0].mxu0 %v4217
  %v6506 = vpop.f32.mrb[0].mxu0
  %v6507 = vadd.f32 0.0, %v6506
  %v6508 = vpop.f32.mrb[0].mxu0
  %v6509 = vpop.f32.mrb[0].mxu0
  %v6510 = vadd.f32 0.0, %v6509
  %v6511 = vpop.f32.mrb[0].mxu0
  %6512 = vmatprep.mubr.bf16.mxu0 %v4224
  %6513 = vmatmul.mubr.bf16.gmra.mrb[0].mxu0 %v4223
  %v6514 = vpop.f32.mrb[0].mxu0
  %v6515 = vadd.f32 0.0, %v6514
  %v6516 = vpop.f32.mrb[0].mxu0
  %v6517 = vpop.f32.mrb[0].mxu0
  %v6518 = vadd.f32 0.0, %v6517
  %v6519 = vpop.f32.mrb[0].mxu0
  %6520 = vmatprep.mubr.bf16.mxu0 %v4230
  %6521 = vmatmul.mubr.bf16.gmra.mrb[0].mxu0 %v4229
  %v6522 = vpop.f32.mrb[0].mxu0
  %v6523 = vadd.f32 0.0, %v6522
  %v6524 = vpop.f32.mrb[0].mxu0
  %v6525 = vpop.f32.mrb[0].mxu0
  %v6526 = vadd.f32 0.0, %v6525
  %v6527 = vpop.f32.mrb[0].mxu0
  %6528 = vmatprep.mubr.bf16.mxu0 %v4236
  %6529 = vmatmul.mubr.bf16.gmra.mrb[0].mxu0 %v4235
  %v6530 = vpop.f32.mrb[0].mxu0
  %v6531 = vadd.f32 0.0, %v6530
  %v6532 = vpop.f32.mrb[0].mxu0
  %v6533 = vpop.f32.mrb[0].mxu0
  %v6534 = vadd.f32 0.0, %v6533
  %v6535 = vpop.f32.mrb[0].mxu0
  %6536 = vmatprep.mubr.bf16.mxu0 %v4242
  %6537 = vmatmul.mubr.bf16.gmra.mrb[0].mxu0 %v4241
  %v6538 = vpop.f32.mrb[0].mxu0
  %v6539 = vadd.f32 0.0, %v6538
  %v6540 = vpop.f32.mrb[0].mxu0
  %v6541 = vpop.f32.mrb[0].mxu0
  %v6542 = vadd.f32 0.0, %v6541
  %v6543 = vpop.f32.mrb[0].mxu0
  %6544 = vmatprep.mubr.bf16.mxu0 %v4248
  %6545 = vmatmul.mubr.bf16.gmra.mrb[0].mxu0 %v4247
  %v6546 = vpop.f32.mrb[0].mxu0
  %v6547 = vadd.f32 0.0, %v6546
  %v6548 = vpop.f32.mrb[0].mxu0
  %v6549 = vpop.f32.mrb[0].mxu0
  %v6550 = vadd.f32 0.0, %v6549
  %v6551 = vpop.f32.mrb[0].mxu0
  %6552 = vmatprep.mubr.bf16.mxu0 %v4254
  %6553 = vmatmul.mubr.bf16.gmra.mrb[0].mxu0 %v4253
  %v6554 = vpop.f32.mrb[0].mxu0
  %v6555 = vadd.f32 0.0, %v6554
  %v6556 = vpop.f32.mrb[0].mxu0
  %v6557 = vpop.f32.mrb[0].mxu0
  %v6558 = vadd.f32 0.0, %v6557
  %v6559 = vpop.f32.mrb[0].mxu0
  %6560 = vmatprep.mubr.bf16.mxu0 %v4260
  %6561 = vmatmul.mubr.bf16.gmra.mrb[0].mxu0 %v4259
  %v6562 = vpop.f32.mrb[0].mxu0
  %v6563 = vadd.f32 0.0, %v6562
  %v6564 = vpop.f32.mrb[0].mxu0
  %v6565 = vpop.f32.mrb[0].mxu0
  %v6566 = vadd.f32 0.0, %v6565
  %v6567 = vpop.f32.mrb[0].mxu0
  %6568 = vmatprep.mubr.bf16.mxu0 %v4266
  %6569 = vmatmul.mubr.bf16.gmra.mrb[0].mxu0 %v4265
  %v6570 = vpop.f32.mrb[0].mxu0
  %v6571 = vadd.f32 0.0, %v6570
  %v6572 = vpop.f32.mrb[0].mxu0
  %v6573 = vpop.f32.mrb[0].mxu0
  %v6574 = vadd.f32 0.0, %v6573
  %v6575 = vpop.f32.mrb[0].mxu0
  %6576 = vmatprep.mubr.bf16.mxu0 %v4272
  %6577 = vmatmul.mubr.bf16.gmra.mrb[0].mxu0 %v4271
  %v6578 = vpop.f32.mrb[0].mxu0
  %v6579 = vadd.f32 0.0, %v6578
  %v6580 = vpop.f32.mrb[0].mxu0
  %v6581 = vpop.f32.mrb[0].mxu0
  %v6582 = vadd.f32 0.0, %v6581
  %v6583 = vpop.f32.mrb[0].mxu0
  %6584 = vmatprep.mubr.bf16.mxu0 %v4278
  %6585 = vmatmul.mubr.bf16.gmra.mrb[0].mxu0 %v4277
  %v6586 = vpop.f32.mrb[0].mxu0
  %v6587 = vadd.f32 0.0, %v6586
  %v6588 = vpop.f32.mrb[0].mxu0
  %v6589 = vpop.f32.mrb[0].mxu0
  %v6590 = vadd.f32 0.0, %v6589
  %v6591 = vpop.f32.mrb[0].mxu0
  %6592 = vmatprep.mubr.bf16.mxu0 %v4284
  %6593 = vmatmul.mubr.bf16.gmra.mrb[0].mxu0 %v4283
  %v6594 = vpop.f32.mrb[0].mxu0
  %v6595 = vadd.f32 0.0, %v6594
  %v6596 = vpop.f32.mrb[0].mxu0
  %v6597 = vpop.f32.mrb[0].mxu0
  %v6598 = vadd.f32 0.0, %v6597
  %v6599 = vpop.f32.mrb[0].mxu0
  %6600 = vmatprep.mubr.bf16.mxu0 %v4290
  %6601 = vmatmul.mubr.bf16.gmra.mrb[0].mxu0 %v4289
  %v6602 = vpop.f32.mrb[0].mxu0
  %v6603 = vadd.f32 0.0, %v6602
  %v6604 = vpop.f32.mrb[0].mxu0
  %v6605 = vpop.f32.mrb[0].mxu0
  %v6606 = vadd.f32 0.0, %v6605
  %v6607 = vpop.f32.mrb[0].mxu0
  %6608 = vmatprep.mubr.bf16.mxu0 %v4296
  %6609 = vmatmul.mubr.bf16.gmra.mrb[0].mxu0 %v4295
  %v6610 = vpop.f32.mrb[0].mxu0
  %v6611 = vadd.f32 0.0, %v6610
  %v6612 = vpop.f32.mrb[0].mxu0
  %v6613 = vpop.f32.mrb[0].mxu0
  %v6614 = vadd.f32 0.0, %v6613
  %v6615 = vpop.f32.mrb[0].mxu0
  %6616 = vmatprep.mubr.bf16.mxu0 %v4302
  %6617 = vmatmul.mubr.bf16.gmra.mrb[0].mxu0 %v4301
  %v6618 = vpop.f32.mrb[0].mxu0
  %v6619 = vadd.f32 0.0, %v6618
  %v6620 = vpop.f32.mrb[0].mxu0
  %v6621 = vpop.f32.mrb[0].mxu0
  %v6622 = vadd.f32 0.0, %v6621
  %v6623 = vpop.f32.mrb[0].mxu0
  %6624 = vmatprep.mubr.bf16.mxu0 %v4308
  %6625 = vmatmul.mubr.bf16.gmra.mrb[0].mxu0 %v4307
  %v6626 = vpop.f32.mrb[0].mxu0
  %v6627 = vadd.f32 0.0, %v6626
  %v6628 = vpop.f32.mrb[0].mxu0
  %v6629 = vpop.f32.mrb[0].mxu0
  %v6630 = vadd.f32 0.0, %v6629
  %v6631 = vpop.f32.mrb[0].mxu0
  %6632 = vmatprep.mubr.bf16.mxu0 %v4314
  %6633 = vmatmul.mubr.bf16.gmra.mrb[0].mxu0 %v4313
  %v6634 = vpop.f32.mrb[0].mxu0
  %v6635 = vadd.f32 0.0, %v6634
  %v6636 = vpop.f32.mrb[0].mxu0
  %v6637 = vpop.f32.mrb[0].mxu0
  %v6638 = vadd.f32 0.0, %v6637
  %v6639 = vpop.f32.mrb[0].mxu0
  %6640 = vmatprep.mubr.bf16.mxu0 %v4320
  %6641 = vmatmul.mubr.bf16.gmra.mrb[0].mxu0 %v4319
  %v6642 = vpop.f32.mrb[0].mxu0
  %v6643 = vadd.f32 0.0, %v6642
  %v6644 = vpop.f32.mrb[0].mxu0
  %v6645 = vpop.f32.mrb[0].mxu0
  %v6646 = vadd.f32 0.0, %v6645
  %v6647 = vpop.f32.mrb[0].mxu0
  %6648 = vmatprep.mubr.bf16.mxu0 %v4326
  %6649 = vmatmul.mubr.bf16.gmra.mrb[0].mxu0 %v4325
  %v6650 = vpop.f32.mrb[0].mxu0
  %v6651 = vadd.f32 0.0, %v6650
  %v6652 = vpop.f32.mrb[0].mxu0
  %v6653 = vpop.f32.mrb[0].mxu0
  %v6654 = vadd.f32 0.0, %v6653
  %v6655 = vpop.f32.mrb[0].mxu0
  %6656 = vmatprep.mubr.bf16.mxu0 %v4332
  %6657 = vmatmul.mubr.bf16.gmra.mrb[0].mxu0 %v4331
  %v6658 = vpop.f32.mrb[0].mxu0
  %v6659 = vadd.f32 0.0, %v6658
  %v6660 = vpop.f32.mrb[0].mxu0
  %v6661 = vpop.f32.mrb[0].mxu0
  %v6662 = vadd.f32 0.0, %v6661
  %v6663 = vpop.f32.mrb[0].mxu0
  %6664 = vmatprep.mubr.bf16.mxu0 %v4338
  %6665 = vmatmul.mubr.bf16.gmra.mrb[0].mxu0 %v4337
  %v6666 = vpop.f32.mrb[0].mxu0
  %v6667 = vadd.f32 0.0, %v6666
  %v6668 = vpop.f32.mrb[0].mxu0
  %v6669 = vpop.f32.mrb[0].mxu0
  %v6670 = vadd.f32 0.0, %v6669
  %v6671 = vpop.f32.mrb[0].mxu0
  %6672 = vmatprep.mubr.bf16.mxu0 %v4344
  %6673 = vmatmul.mubr.bf16.gmra.mrb[0].mxu0 %v4343
  %v6674 = vpop.f32.mrb[0].mxu0
  %v6675 = vadd.f32 0.0, %v6674
  %v6676 = vpop.f32.mrb[0].mxu0
  %v6677 = vpop.f32.mrb[0].mxu0
  %v6678 = vadd.f32 0.0, %v6677
  %v6679 = vpop.f32.mrb[0].mxu0
  %6680 = vmatprep.mubr.bf16.mxu0 %v4350
  %6681 = vmatmul.mubr.bf16.gmra.mrb[0].mxu0 %v4349
  %v6682 = vpop.f32.mrb[0].mxu0
  %v6683 = vadd.f32 0.0, %v6682
  %v6684 = vpop.f32.mrb[0].mxu0
  %v6685 = vpop.f32.mrb[0].mxu0
  %v6686 = vadd.f32 0.0, %v6685
  %v6687 = vpop.f32.mrb[0].mxu0
  %6688 = vmatprep.mubr.bf16.mxu0 %v4356
  %6689 = vmatmul.mubr.bf16.gmra.mrb[0].mxu0 %v4355
  %v6690 = vpop.f32.mrb[0].mxu0
  %v6691 = vadd.f32 0.0, %v6690
  %v6692 = vpop.f32.mrb[0].mxu0
  %v6693 = vpop.f32.mrb[0].mxu0
  %v6694 = vadd.f32 0.0, %v6693
  %v6695 = vpop.f32.mrb[0].mxu0
  %6696 = vmatprep.mubr.bf16.mxu0 %v4362
  %6697 = vmatmul.mubr.bf16.gmra.mrb[0].mxu0 %v4361
  %v6698 = vpop.f32.mrb[0].mxu0
  %v6699 = vadd.f32 0.0, %v6698
  %v6700 = vpop.f32.mrb[0].mxu0
  %v6701 = vpop.f32.mrb[0].mxu0
  %v6702 = vadd.f32 0.0, %v6701
  %v6703 = vpop.f32.mrb[0].mxu0
  %6704 = vmatprep.mubr.bf16.mxu0 %v4368
  %6705 = vmatmul.mubr.bf16.gmra.mrb[0].mxu0 %v4367
  %v6706 = vpop.f32.mrb[0].mxu0
  %v6707 = vadd.f32 0.0, %v6706
  %v6708 = vpop.f32.mrb[0].mxu0
  %v6709 = vpop.f32.mrb[0].mxu0
  %v6710 = vadd.f32 0.0, %v6709
  %v6711 = vpop.f32.mrb[0].mxu0
  %6712 = vmatprep.mubr.bf16.mxu0 %v4374
  %6713 = vmatmul.mubr.bf16.gmra.mrb[0].mxu0 %v4373
  %v6714 = vpop.f32.mrb[0].mxu0
  %v6715 = vadd.f32 0.0, %v6714
  %v6716 = vpop.f32.mrb[0].mxu0
  %v6717 = vpop.f32.mrb[0].mxu0
  %v6718 = vadd.f32 0.0, %v6717
  %v6719 = vpop.f32.mrb[0].mxu0
  %6720 = vmatprep.mubr.bf16.mxu0 %v4380
  %6721 = vmatmul.mubr.bf16.gmra.mrb[0].mxu0 %v4379
  %v6722 = vpop.f32.mrb[0].mxu0
  %v6723 = vadd.f32 0.0, %v6722
  %v6724 = vpop.f32.mrb[0].mxu0
  %v6725 = vpop.f32.mrb[0].mxu0
  %v6726 = vadd.f32 0.0, %v6725
  %v6727 = vpop.f32.mrb[0].mxu0
  %6728 = vmatprep.mubr.bf16.mxu0 %v4386
  %6729 = vmatmul.mubr.bf16.gmra.mrb[0].mxu0 %v4385
  %v6730 = vpop.f32.mrb[0].mxu0
  %v6731 = vadd.f32 0.0, %v6730
  %v6732 = vpop.f32.mrb[0].mxu0
  %v6733 = vpop.f32.mrb[0].mxu0
  %v6734 = vadd.f32 0.0, %v6733
  %v6735 = vpop.f32.mrb[0].mxu0
  %6736 = vmatprep.mubr.bf16.mxu0 %v4392
  %6737 = vmatmul.mubr.bf16.gmra.mrb[0].mxu0 %v4391
  %v6738 = vpop.f32.mrb[0].mxu0
  %v6739 = vadd.f32 0.0, %v6738
  %v6740 = vpop.f32.mrb[0].mxu0
  %v6741 = vpop.f32.mrb[0].mxu0
  %v6742 = vadd.f32 0.0, %v6741
  %v6743 = vpop.f32.mrb[0].mxu0
  %6744 = vmatprep.mubr.bf16.mxu0 %v4398
  %6745 = vmatmul.mubr.bf16.gmra.mrb[0].mxu0 %v4397
  %v6746 = vpop.f32.mrb[0].mxu0
  %v6747 = vadd.f32 0.0, %v6746
  %v6748 = vpop.f32.mrb[0].mxu0
  %v6749 = vpop.f32.mrb[0].mxu0
  %v6750 = vadd.f32 0.0, %v6749
  %v6751 = vpop.f32.mrb[0].mxu0
  %6752 = vmatprep.mubr.bf16.mxu0 %v4404
  %6753 = vmatmul.mubr.bf16.gmra.mrb[0].mxu0 %v4403
  %v6754 = vpop.f32.mrb[0].mxu0
  %v6755 = vadd.f32 0.0, %v6754
  %v6756 = vpop.f32.mrb[0].mxu0
  %v6757 = vpop.f32.mrb[0].mxu0
  %v6758 = vadd.f32 0.0, %v6757
  %v6759 = vpop.f32.mrb[0].mxu0
  %6760 = vmatprep.mubr.bf16.mxu0 %v4410
  %6761 = vmatmul.mubr.bf16.gmra.mrb[0].mxu0 %v4409
  %v6762 = vpop.f32.mrb[0].mxu0
  %v6763 = vadd.f32 0.0, %v6762
  %v6764 = vpop.f32.mrb[0].mxu0
  %v6765 = vpop.f32.mrb[0].mxu0
  %v6766 = vadd.f32 0.0, %v6765
  %v6767 = vpop.f32.mrb[0].mxu0
  %6768 = vmatprep.mubr.bf16.mxu0 %v4416
  %6769 = vmatmul.mubr.bf16.gmra.mrb[0].mxu0 %v4415
  %v6770 = vpop.f32.mrb[0].mxu0
  %v6771 = vadd.f32 0.0, %v6770
  %v6772 = vpop.f32.mrb[0].mxu0
  %v6773 = vpop.f32.mrb[0].mxu0
  %v6774 = vadd.f32 0.0, %v6773
  %v6775 = vpop.f32.mrb[0].mxu0
  %6776 = vmatprep.mubr.bf16.mxu0 %v4422
  %6777 = vmatmul.mubr.bf16.gmra.mrb[0].mxu0 %v4421
  %v6778 = vpop.f32.mrb[0].mxu0
  %v6779 = vadd.f32 0.0, %v6778
  %v6780 = vpop.f32.mrb[0].mxu0
  %v6781 = vpop.f32.mrb[0].mxu0
  %v6782 = vadd.f32 0.0, %v6781
  %v6783 = vpop.f32.mrb[0].mxu0
  %6784 = vmatprep.mubr.bf16.mxu0 %v4428
  %6785 = vmatmul.mubr.bf16.gmra.mrb[0].mxu0 %v4427
  %v6786 = vpop.f32.mrb[0].mxu0
  %v6787 = vadd.f32 0.0, %v6786
  %v6788 = vpop.f32.mrb[0].mxu0
  %v6789 = vpop.f32.mrb[0].mxu0
  %v6790 = vadd.f32 0.0, %v6789
  %v6791 = vpop.f32.mrb[0].mxu0
  %6792 = vmatprep.mubr.bf16.mxu0 %v4434
  %6793 = vmatmul.mubr.bf16.gmra.mrb[0].mxu0 %v4433
  %v6794 = vpop.f32.mrb[0].mxu0
  %v6795 = vadd.f32 0.0, %v6794
  %v6796 = vpop.f32.mrb[0].mxu0
  %v6797 = vpop.f32.mrb[0].mxu0
  %v6798 = vadd.f32 0.0, %v6797
  %v6799 = vpop.f32.mrb[0].mxu0
  %6800 = vmatprep.mubr.bf16.mxu0 %v4440
  %6801 = vmatmul.mubr.bf16.gmra.mrb[0].mxu0 %v4439
  %v6802 = vpop.f32.mrb[0].mxu0
  %v6803 = vadd.f32 0.0, %v6802
  %v6804 = vpop.f32.mrb[0].mxu0
  %v6805 = vpop.f32.mrb[0].mxu0
  %v6806 = vadd.f32 0.0, %v6805
  %v6807 = vpop.f32.mrb[0].mxu0
  %6808 = vmatprep.mubr.bf16.mxu0 %v4446
  %6809 = vmatmul.mubr.bf16.gmra.mrb[0].mxu0 %v4445
  %v6810 = vpop.f32.mrb[0].mxu0
  %v6811 = vadd.f32 0.0, %v6810
  %v6812 = vpop.f32.mrb[0].mxu0
  %v6813 = vpop.f32.mrb[0].mxu0
  %v6814 = vadd.f32 0.0, %v6813
  %v6815 = vpop.f32.mrb[0].mxu0
  %6816 = vmatprep.mubr.bf16.mxu0 %v4452
  %6817 = vmatmul.mubr.bf16.gmra.mrb[0].mxu0 %v4451
  %v6818 = vpop.f32.mrb[0].mxu0
  %v6819 = vadd.f32 0.0, %v6818
  %v6820 = vpop.f32.mrb[0].mxu0
  %v6821 = vpop.f32.mrb[0].mxu0
  %v6822 = vadd.f32 0.0, %v6821
  %v6823 = vpop.f32.mrb[0].mxu0
  %6824 = vmatprep.mubr.bf16.mxu0 %v4458
  %6825 = vmatmul.mubr.bf16.gmra.mrb[0].mxu0 %v4457
  %v6826 = vpop.f32.mrb[0].mxu0
  %v6827 = vadd.f32 0.0, %v6826
  %v6828 = vpop.f32.mrb[0].mxu0
  %v6829 = vpop.f32.mrb[0].mxu0
  %v6830 = vadd.f32 0.0, %v6829
  %v6831 = vpop.f32.mrb[0].mxu0
  %6832 = vmatprep.mubr.bf16.mxu0 %v4464
  %6833 = vmatmul.mubr.bf16.gmra.mrb[0].mxu0 %v4463
  %v6834 = vpop.f32.mrb[0].mxu0
  %v6835 = vadd.f32 0.0, %v6834
  %v6836 = vpop.f32.mrb[0].mxu0
  %v6837 = vpop.f32.mrb[0].mxu0
  %v6838 = vadd.f32 0.0, %v6837
  %v6839 = vpop.f32.mrb[0].mxu0
  %6840 = vmatprep.mubr.bf16.mxu0 %v4470
  %6841 = vmatmul.mubr.bf16.gmra.mrb[0].mxu0 %v4469
  %v6842 = vpop.f32.mrb[0].mxu0
  %v6843 = vadd.f32 0.0, %v6842
  %v6844 = vpop.f32.mrb[0].mxu0
  %v6845 = vpop.f32.mrb[0].mxu0
  %v6846 = vadd.f32 0.0, %v6845
  %v6847 = vpop.f32.mrb[0].mxu0
  %6848 = vmatprep.mubr.bf16.mxu0 %v4476
  %6849 = vmatmul.mubr.bf16.gmra.mrb[0].mxu0 %v4475
  %v6850 = vpop.f32.mrb[0].mxu0
  %v6851 = vadd.f32 0.0, %v6850
  %v6852 = vpop.f32.mrb[0].mxu0
  %v6853 = vpop.f32.mrb[0].mxu0
  %v6854 = vadd.f32 0.0, %v6853
  %v6855 = vpop.f32.mrb[0].mxu0
  %6856 = vmatprep.mubr.bf16.mxu0 %v4482
  %6857 = vmatmul.mubr.bf16.gmra.mrb[0].mxu0 %v4481
  %v6858 = vpop.f32.mrb[0].mxu0
  %v6859 = vadd.f32 0.0, %v6858
  %v6860 = vpop.f32.mrb[0].mxu0
  %v6861 = vpop.f32.mrb[0].mxu0
  %v6862 = vadd.f32 0.0, %v6861
  %v6863 = vpop.f32.mrb[0].mxu0
  %6864 = vmatprep.mubr.bf16.mxu0 %v4488
  %6865 = vmatmul.mubr.bf16.gmra.mrb[0].mxu0 %v4487
  %v6866 = vpop.f32.mrb[0].mxu0
  %v6867 = vadd.f32 0.0, %v6866
  %v6868 = vpop.f32.mrb[0].mxu0
  %v6869 = vpop.f32.mrb[0].mxu0
  %v6870 = vadd.f32 0.0, %v6869
  %v6871 = vpop.f32.mrb[0].mxu0
  %6872 = vmatprep.mubr.bf16.mxu0 %v4494
  %6873 = vmatmul.mubr.bf16.gmra.mrb[0].mxu0 %v4493
  %v6874 = vpop.f32.mrb[0].mxu0
  %v6875 = vadd.f32 0.0, %v6874
  %v6876 = vpop.f32.mrb[0].mxu0
  %v6877 = vpop.f32.mrb[0].mxu0
  %v6878 = vadd.f32 0.0, %v6877
  %v6879 = vpop.f32.mrb[0].mxu0
  %6880 = vmatprep.mubr.bf16.mxu0 %v4500
  %6881 = vmatmul.mubr.bf16.gmra.mrb[0].mxu0 %v4499
  %v6882 = vpop.f32.mrb[0].mxu0
  %v6883 = vadd.f32 0.0, %v6882
  %v6884 = vpop.f32.mrb[0].mxu0
  %v6885 = vpop.f32.mrb[0].mxu0
  %v6886 = vadd.f32 0.0, %v6885
  %v6887 = vpop.f32.mrb[0].mxu0
  %6888 = vmatprep.mubr.bf16.mxu0 %v4506
  %6889 = vmatmul.mubr.bf16.gmra.mrb[0].mxu0 %v4505
  %v6890 = vpop.f32.mrb[0].mxu0
  %v6891 = vadd.f32 0.0, %v6890
  %v6892 = vpop.f32.mrb[0].mxu0
  %v6893 = vpop.f32.mrb[0].mxu0
  %v6894 = vadd.f32 0.0, %v6893
  %v6895 = vpop.f32.mrb[0].mxu0
  %6896 = vmatprep.mubr.bf16.mxu0 %v4512
  %6897 = vmatmul.mubr.bf16.gmra.mrb[0].mxu0 %v4511
  %v6898 = vpop.f32.mrb[0].mxu0
  %v6899 = vadd.f32 0.0, %v6898
  %v6900 = vpop.f32.mrb[0].mxu0
  %v6901 = vpop.f32.mrb[0].mxu0
  %v6902 = vadd.f32 0.0, %v6901
  %v6903 = vpop.f32.mrb[0].mxu0
  %6904 = vmatprep.mubr.bf16.mxu0 %v4518
  %6905 = vmatmul.mubr.bf16.gmra.mrb[0].mxu0 %v4517
  %v6906 = vpop.f32.mrb[0].mxu0
  %v6907 = vadd.f32 0.0, %v6906
  %v6908 = vpop.f32.mrb[0].mxu0
  %v6909 = vpop.f32.mrb[0].mxu0
  %v6910 = vadd.f32 0.0, %v6909
  %v6911 = vpop.f32.mrb[0].mxu0
  %6912 = vmatprep.mubr.bf16.mxu0 %v4524
  %6913 = vmatmul.mubr.bf16.gmra.mrb[0].mxu0 %v4523
  %v6914 = vpop.f32.mrb[0].mxu0
  %v6915 = vadd.f32 0.0, %v6914
  %v6916 = vpop.f32.mrb[0].mxu0
  %v6917 = vpop.f32.mrb[0].mxu0
  %v6918 = vadd.f32 0.0, %v6917
  %v6919 = vpop.f32.mrb[0].mxu0
  %6920 = vmatprep.mubr.bf16.mxu0 %v4530
  %6921 = vmatmul.mubr.bf16.gmra.mrb[0].mxu0 %v4529
  %v6922 = vpop.f32.mrb[0].mxu0
  %v6923 = vadd.f32 0.0, %v6922
  %v6924 = vpop.f32.mrb[0].mxu0
  %v6925 = vpop.f32.mrb[0].mxu0
  %v6926 = vadd.f32 0.0, %v6925
  %v6927 = vpop.f32.mrb[0].mxu0
  %6928 = vmatprep.mubr.bf16.mxu0 %v4536
  %6929 = vmatmul.mubr.bf16.gmra.mrb[0].mxu0 %v4535
  %v6930 = vpop.f32.mrb[0].mxu0
  %v6931 = vadd.f32 0.0, %v6930
  %v6932 = vpop.f32.mrb[0].mxu0
  %v6933 = vpop.f32.mrb[0].mxu0
  %v6934 = vadd.f32 0.0, %v6933
  %v6935 = vpop.f32.mrb[0].mxu0
  %6936 = vmatprep.mubr.bf16.mxu0 %v4542
  %6937 = vmatmul.mubr.bf16.gmra.mrb[0].mxu0 %v4541
  %v6938 = vpop.f32.mrb[0].mxu0
  %v6939 = vadd.f32 0.0, %v6938
  %v6940 = vpop.f32.mrb[0].mxu0
  %v6941 = vpop.f32.mrb[0].mxu0
  %v6942 = vadd.f32 0.0, %v6941
  %v6943 = vpop.f32.mrb[0].mxu0
  %6944 = vmatprep.mubr.bf16.mxu0 %v4548
  %6945 = vmatmul.mubr.bf16.gmra.mrb[0].mxu0 %v4547
  %v6946 = vpop.f32.mrb[0].mxu0
  %v6947 = vadd.f32 0.0, %v6946
  %v6948 = vpop.f32.mrb[0].mxu0
  %v6949 = vpop.f32.mrb[0].mxu0
  %v6950 = vadd.f32 0.0, %v6949
  %v6951 = vpop.f32.mrb[0].mxu0
  %6952 = vmatprep.mubr.bf16.mxu0 %v4554
  %6953 = vmatmul.mubr.bf16.gmra.mrb[0].mxu0 %v4553
  %v6954 = vpop.f32.mrb[0].mxu0
  %v6955 = vadd.f32 0.0, %v6954
  %v6956 = vpop.f32.mrb[0].mxu0
  %v6957 = vpop.f32.mrb[0].mxu0
  %v6958 = vadd.f32 0.0, %v6957
  %v6959 = vpop.f32.mrb[0].mxu0
  %6960 = vmatprep.mubr.bf16.mxu0 %v4560
  %6961 = vmatmul.mubr.bf16.gmra.mrb[0].mxu0 %v4559
  %v6962 = vpop.f32.mrb[0].mxu0
  %v6963 = vadd.f32 0.0, %v6962
  %v6964 = vpop.f32.mrb[0].mxu0
  %v6965 = vpop.f32.mrb[0].mxu0
  %v6966 = vadd.f32 0.0, %v6965
  %v6967 = vpop.f32.mrb[0].mxu0
  %6968 = vmatprep.mubr.bf16.mxu0 %v4566
  %6969 = vmatmul.mubr.bf16.gmra.mrb[0].mxu0 %v4565
  %v6970 = vpop.f32.mrb[0].mxu0
  %v6971 = vadd.f32 0.0, %v6970
  %v6972 = vpop.f32.mrb[0].mxu0
  %v6973 = vpop.f32.mrb[0].mxu0
  %v6974 = vadd.f32 0.0, %v6973
  %v6975 = vpop.f32.mrb[0].mxu0
  %6976 = vmatprep.mubr.bf16.mxu0 %v4572
  %6977 = vmatmul.mubr.bf16.gmra.mrb[0].mxu0 %v4571
  %v6978 = vpop.f32.mrb[0].mxu0
  %v6979 = vadd.f32 0.0, %v6978
  %v6980 = vpop.f32.mrb[0].mxu0
  %v6981 = vpop.f32.mrb[0].mxu0
  %v6982 = vadd.f32 0.0, %v6981
  %v6983 = vpop.f32.mrb[0].mxu0
  %6984 = vmatprep.mubr.bf16.mxu0 %v4578
  %6985 = vmatmul.mubr.bf16.gmra.mrb[0].mxu0 %v4577
  %v6986 = vpop.f32.mrb[0].mxu0
  %v6987 = vadd.f32 0.0, %v6986
  %v6988 = vpop.f32.mrb[0].mxu0
  %v6989 = vpop.f32.mrb[0].mxu0
  %v6990 = vadd.f32 0.0, %v6989
  %v6991 = vpop.f32.mrb[0].mxu0
  %6992 = vmatprep.mubr.bf16.mxu0 %v4584
  %6993 = vmatmul.mubr.bf16.gmra.mrb[0].mxu0 %v4583
  %v6994 = vpop.f32.mrb[0].mxu0
  %v6995 = vadd.f32 0.0, %v6994
  %v6996 = vpop.f32.mrb[0].mxu0
  %v6997 = vpop.f32.mrb[0].mxu0
  %v6998 = vadd.f32 0.0, %v6997
  %v6999 = vpop.f32.mrb[0].mxu0
  %7000 = vmatprep.mubr.bf16.mxu0 %v4590
  %7001 = vmatmul.mubr.bf16.gmra.mrb[0].mxu0 %v4589
  %v7002 = vpop.f32.mrb[0].mxu0
  %v7003 = vadd.f32 0.0, %v7002
  %v7004 = vpop.f32.mrb[0].mxu0
  %v7005 = vpop.f32.mrb[0].mxu0
  %v7006 = vadd.f32 0.0, %v7005
  %v7007 = vpop.f32.mrb[0].mxu0
  %7008 = vmatprep.mubr.bf16.mxu0 %v4596
  %7009 = vmatmul.mubr.bf16.gmra.mrb[0].mxu0 %v4595
  %v7010 = vpop.f32.mrb[0].mxu0
  %v7011 = vadd.f32 0.0, %v7010
  %v7012 = vpop.f32.mrb[0].mxu0
  %v7013 = vpop.f32.mrb[0].mxu0
  %v7014 = vadd.f32 0.0, %v7013
  %v7015 = vpop.f32.mrb[0].mxu0
  %7016 = vmatprep.mubr.bf16.mxu0 %v4602
  %7017 = vmatmul.mubr.bf16.gmra.mrb[0].mxu0 %v4601
  %v7018 = vpop.f32.mrb[0].mxu0
  %v7019 = vadd.f32 0.0, %v7018
  %v7020 = vpop.f32.mrb[0].mxu0
  %v7021 = vpop.f32.mrb[0].mxu0
  %v7022 = vadd.f32 0.0, %v7021
  %v7023 = vpop.f32.mrb[0].mxu0
  %7024 = vmatprep.mubr.bf16.mxu0 %v4608
  %7025 = vmatmul.mubr.bf16.gmra.mrb[0].mxu0 %v4607
  %v7026 = vpop.f32.mrb[0].mxu0
  %v7027 = vadd.f32 0.0, %v7026
  %v7028 = vpop.f32.mrb[0].mxu0
  %v7029 = vpop.f32.mrb[0].mxu0
  %v7030 = vadd.f32 0.0, %v7029
  %v7031 = vpop.f32.mrb[0].mxu0
  %7032 = vmatprep.mubr.bf16.mxu0 %v4614
  %7033 = vmatmul.mubr.bf16.gmra.mrb[0].mxu0 %v4613
  %v7034 = vpop.f32.mrb[0].mxu0
  %v7035 = vadd.f32 0.0, %v7034
  %v7036 = vpop.f32.mrb[0].mxu0
  %v7037 = vpop.f32.mrb[0].mxu0
  %v7038 = vadd.f32 0.0, %v7037
  %v7039 = vpop.f32.mrb[0].mxu0
  %7040 = vmatprep.mubr.bf16.mxu0 %v4620
  %7041 = vmatmul.mubr.bf16.gmra.mrb[0].mxu0 %v4619
  %v7042 = vpop.f32.mrb[0].mxu0
  %v7043 = vadd.f32 0.0, %v7042
  %v7044 = vpop.f32.mrb[0].mxu0
  %v7045 = vpop.f32.mrb[0].mxu0
  %v7046 = vadd.f32 0.0, %v7045
  %v7047 = vpop.f32.mrb[0].mxu0
  %7048 = vmatprep.mubr.bf16.mxu0 %v4626
  %7049 = vmatmul.mubr.bf16.gmra.mrb[0].mxu0 %v4625
  %v7050 = vpop.f32.mrb[0].mxu0
  %v7051 = vadd.f32 0.0, %v7050
  %v7052 = vpop.f32.mrb[0].mxu0
  %v7053 = vpop.f32.mrb[0].mxu0
  %v7054 = vadd.f32 0.0, %v7053
  %v7055 = vpop.f32.mrb[0].mxu0
  %7056 = vmatprep.mubr.bf16.mxu0 %v4632
  %7057 = vmatmul.mubr.bf16.gmra.mrb[0].mxu0 %v4631
  %v7058 = vpop.f32.mrb[0].mxu0
  %v7059 = vadd.f32 0.0, %v7058
  %v7060 = vpop.f32.mrb[0].mxu0
  %v7061 = vpop.f32.mrb[0].mxu0
  %v7062 = vadd.f32 0.0, %v7061
  %v7063 = vpop.f32.mrb[0].mxu0
  %7064 = vmatprep.mubr.bf16.mxu0 %v4638
  %7065 = vmatmul.mubr.bf16.gmra.mrb[0].mxu0 %v4637
  %v7066 = vpop.f32.mrb[0].mxu0
  %v7067 = vadd.f32 0.0, %v7066
  %v7068 = vpop.f32.mrb[0].mxu0
  %v7069 = vpop.f32.mrb[0].mxu0
  %v7070 = vadd.f32 0.0, %v7069
  %v7071 = vpop.f32.mrb[0].mxu0
  %7072 = vmatprep.mubr.bf16.mxu0 %v4644
  %7073 = vmatmul.mubr.bf16.gmra.mrb[0].mxu0 %v4643
  %v7074 = vpop.f32.mrb[0].mxu0
  %v7075 = vadd.f32 0.0, %v7074
  %v7076 = vpop.f32.mrb[0].mxu0
  %v7077 = vpop.f32.mrb[0].mxu0
  %v7078 = vadd.f32 0.0, %v7077
  %v7079 = vpop.f32.mrb[0].mxu0
  %7080 = vmatprep.mubr.bf16.mxu0 %v4650
  %7081 = vmatmul.mubr.bf16.gmra.mrb[0].mxu0 %v4649
  %v7082 = vpop.f32.mrb[0].mxu0
  %v7083 = vadd.f32 0.0, %v7082
  %v7084 = vpop.f32.mrb[0].mxu0
  %v7085 = vpop.f32.mrb[0].mxu0
  %v7086 = vadd.f32 0.0, %v7085
  %v7087 = vpop.f32.mrb[0].mxu0
  %7088 = vmatprep.mubr.bf16.mxu0 %v4656
  %7089 = vmatmul.mubr.bf16.gmra.mrb[0].mxu0 %v4655
  %v7090 = vpop.f32.mrb[0].mxu0
  %v7091 = vadd.f32 0.0, %v7090
  %v7092 = vpop.f32.mrb[0].mxu0
  %v7093 = vpop.f32.mrb[0].mxu0
  %v7094 = vadd.f32 0.0, %v7093
  %v7095 = vpop.f32.mrb[0].mxu0
  %7096 = vmatprep.mubr.bf16.mxu0 %v4662
  %7097 = vmatmul.mubr.bf16.gmra.mrb[0].mxu0 %v4661
  %v7098 = vpop.f32.mrb[0].mxu0
  %v7099 = vadd.f32 0.0, %v7098
  %v7100 = vpop.f32.mrb[0].mxu0
  %v7101 = vpop.f32.mrb[0].mxu0
  %v7102 = vadd.f32 0.0, %v7101
  %v7103 = vpop.f32.mrb[0].mxu0
  %7104 = vdwg.mxu0
  %7105 = vmatprep.subr.bf16.mxu0 0
  %7106 = vmatpush1.bf16.msra.mxu0 %v140
  %7107 = vmatprep.subr.bf16.mxu0 0
  %7108 = vmatpush1.bf16.msra.mxu0 %v141
  %7109 = vmatprep.subr.bf16.mxu0 0
  %7110 = vmatpush1.bf16.msra.mxu0 %v142
  %7111 = vmatprep.subr.bf16.mxu0 0
  %7112 = vmatpush1.bf16.msra.mxu0 %v143
  %7113 = vmatprep.subr.bf16.mxu0 0
  %7114 = vmatpush1.bf16.msra.mxu0 %v144
  %7115 = vmatprep.subr.bf16.mxu0 0
  %7116 = vmatpush1.bf16.msra.mxu0 %v145
  %7117 = vmatprep.subr.bf16.mxu0 0
  %7118 = vmatpush1.bf16.msra.mxu0 %v146
  %7119 = vmatprep.subr.bf16.mxu0 0
  %7120 = vmatpush1.bf16.msra.mxu0 %v147
  %7121 = vmatprep.subr.bf16.mxu0 0
  %7122 = vmatpush1.bf16.msra.mxu0 %v148
  %7123 = vmatprep.subr.bf16.mxu0 0
  %7124 = vmatpush1.bf16.msra.mxu0 %v149
  %7125 = vmatprep.subr.bf16.mxu0 0
  %7126 = vmatpush1.bf16.msra.mxu0 %v150
  %7127 = vmatprep.subr.bf16.mxu0 0
  %7128 = vmatpush1.bf16.msra.mxu0 %v151
  %7129 = vmatprep.subr.bf16.mxu0 0
  %7130 = vmatpush1.bf16.msra.mxu0 %v152
  %7131 = vmatprep.subr.bf16.mxu0 0
  %7132 = vmatpush1.bf16.msra.mxu0 %v153
  %7133 = vmatprep.subr.bf16.mxu0 0
  %7134 = vmatpush1.bf16.msra.mxu0 %v154
  %7135 = vmatprep.subr.bf16.mxu0 0
  %7136 = vmatpush1.bf16.msra.mxu0 %v155
  %7137 = vmatprep.mubr.bf16.mxu0 %v3770
  %7138 = vmatmul.mubr.bf16.gmra.mrb[0].mxu0 %v3769
  %v7139 = vpop.f32.mrb[0].mxu0
  %v7140 = vadd.f32 %v5907, %v7139
  %v7141 = vpop.f32.mrb[0].mxu0
  %v7142 = vpop.f32.mrb[0].mxu0
  %v7143 = vadd.f32 %v5910, %v7142
  %v7144 = vpop.f32.mrb[0].mxu0
  %7145 = vmatprep.mubr.bf16.mxu0 %v3776
  %7146 = vmatmul.mubr.bf16.gmra.mrb[0].mxu0 %v3775
  %v7147 = vpop.f32.mrb[0].mxu0
  %v7148 = vadd.f32 %v5915, %v7147
  %v7149 = vpop.f32.mrb[0].mxu0
  %v7150 = vpop.f32.mrb[0].mxu0
  %v7151 = vadd.f32 %v5918, %v7150
  %v7152 = vpop.f32.mrb[0].mxu0
  %7153 = vmatprep.mubr.bf16.mxu0 %v3782
  %7154 = vmatmul.mubr.bf16.gmra.mrb[0].mxu0 %v3781
  %v7155 = vpop.f32.mrb[0].mxu0
  %v7156 = vadd.f32 %v5923, %v7155
  %v7157 = vpop.f32.mrb[0].mxu0
  %v7158 = vpop.f32.mrb[0].mxu0
  %v7159 = vadd.f32 %v5926, %v7158
  %v7160 = vpop.f32.mrb[0].mxu0
  %7161 = vmatprep.mubr.bf16.mxu0 %v3788
  %7162 = vmatmul.mubr.bf16.gmra.mrb[0].mxu0 %v3787
  %v7163 = vpop.f32.mrb[0].mxu0
  %v7164 = vadd.f32 %v5931, %v7163
  %v7165 = vpop.f32.mrb[0].mxu0
  %v7166 = vpop.f32.mrb[0].mxu0
  %v7167 = vadd.f32 %v5934, %v7166
  %v7168 = vpop.f32.mrb[0].mxu0
  %7169 = vmatprep.mubr.bf16.mxu0 %v3794
  %7170 = vmatmul.mubr.bf16.gmra.mrb[0].mxu0 %v3793
  %v7171 = vpop.f32.mrb[0].mxu0
  %v7172 = vadd.f32 %v5939, %v7171
  %v7173 = vpop.f32.mrb[0].mxu0
  %v7174 = vpop.f32.mrb[0].mxu0
  %v7175 = vadd.f32 %v5942, %v7174
  %v7176 = vpop.f32.mrb[0].mxu0
  %7177 = vmatprep.mubr.bf16.mxu0 %v3800
  %7178 = vmatmul.mubr.bf16.gmra.mrb[0].mxu0 %v3799
  %v7179 = vpop.f32.mrb[0].mxu0
  %v7180 = vadd.f32 %v5947, %v7179
  %v7181 = vpop.f32.mrb[0].mxu0
  %v7182 = vpop.f32.mrb[0].mxu0
  %v7183 = vadd.f32 %v5950, %v7182
  %v7184 = vpop.f32.mrb[0].mxu0
  %7185 = vmatprep.mubr.bf16.mxu0 %v3806
  %7186 = vmatmul.mubr.bf16.gmra.mrb[0].mxu0 %v3805
  %v7187 = vpop.f32.mrb[0].mxu0
  %v7188 = vadd.f32 %v5955, %v7187
  %v7189 = vpop.f32.mrb[0].mxu0
  %v7190 = vpop.f32.mrb[0].mxu0
  %v7191 = vadd.f32 %v5958, %v7190
  %v7192 = vpop.f32.mrb[0].mxu0
  %7193 = vmatprep.mubr.bf16.mxu0 %v3812
  %7194 = vmatmul.mubr.bf16.gmra.mrb[0].mxu0 %v3811
  %v7195 = vpop.f32.mrb[0].mxu0
  %v7196 = vadd.f32 %v5963, %v7195
  %v7197 = vpop.f32.mrb[0].mxu0
  %v7198 = vpop.f32.mrb[0].mxu0
  %v7199 = vadd.f32 %v5966, %v7198
  %v7200 = vpop.f32.mrb[0].mxu0
  %7201 = vmatprep.mubr.bf16.mxu0 %v3818
  %7202 = vmatmul.mubr.bf16.gmra.mrb[0].mxu0 %v3817
  %v7203 = vpop.f32.mrb[0].mxu0
  %v7204 = vadd.f32 %v5971, %v7203
  %v7205 = vpop.f32.mrb[0].mxu0
  %v7206 = vpop.f32.mrb[0].mxu0
  %v7207 = vadd.f32 %v5974, %v7206
  %v7208 = vpop.f32.mrb[0].mxu0
  %7209 = vmatprep.mubr.bf16.mxu0 %v3824
  %7210 = vmatmul.mubr.bf16.gmra.mrb[0].mxu0 %v3823
  %v7211 = vpop.f32.mrb[0].mxu0
  %v7212 = vadd.f32 %v5979, %v7211
  %v7213 = vpop.f32.mrb[0].mxu0
  %v7214 = vpop.f32.mrb[0].mxu0
  %v7215 = vadd.f32 %v5982, %v7214
  %v7216 = vpop.f32.mrb[0].mxu0
  %7217 = vmatprep.mubr.bf16.mxu0 %v3830
  %7218 = vmatmul.mubr.bf16.gmra.mrb[0].mxu0 %v3829
  %v7219 = vpop.f32.mrb[0].mxu0
  %v7220 = vadd.f32 %v5987, %v7219
  %v7221 = vpop.f32.mrb[0].mxu0
  %v7222 = vpop.f32.mrb[0].mxu0
  %v7223 = vadd.f32 %v5990, %v7222
  %v7224 = vpop.f32.mrb[0].mxu0
  %7225 = vmatprep.mubr.bf16.mxu0 %v3836
  %7226 = vmatmul.mubr.bf16.gmra.mrb[0].mxu0 %v3835
  %v7227 = vpop.f32.mrb[0].mxu0
  %v7228 = vadd.f32 %v5995, %v7227
  %v7229 = vpop.f32.mrb[0].mxu0
  %v7230 = vpop.f32.mrb[0].mxu0
  %v7231 = vadd.f32 %v5998, %v7230
  %v7232 = vpop.f32.mrb[0].mxu0
  %7233 = vmatprep.mubr.bf16.mxu0 %v3842
  %7234 = vmatmul.mubr.bf16.gmra.mrb[0].mxu0 %v3841
  %v7235 = vpop.f32.mrb[0].mxu0
  %v7236 = vadd.f32 %v6003, %v7235
  %v7237 = vpop.f32.mrb[0].mxu0
  %v7238 = vpop.f32.mrb[0].mxu0
  %v7239 = vadd.f32 %v6006, %v7238
  %v7240 = vpop.f32.mrb[0].mxu0
  %7241 = vmatprep.mubr.bf16.mxu0 %v3848
  %7242 = vmatmul.mubr.bf16.gmra.mrb[0].mxu0 %v3847
  %v7243 = vpop.f32.mrb[0].mxu0
  %v7244 = vadd.f32 %v6011, %v7243
  %v7245 = vpop.f32.mrb[0].mxu0
  %v7246 = vpop.f32.mrb[0].mxu0
  %v7247 = vadd.f32 %v6014, %v7246
  %v7248 = vpop.f32.mrb[0].mxu0
  %7249 = vmatprep.mubr.bf16.mxu0 %v3854
  %7250 = vmatmul.mubr.bf16.gmra.mrb[0].mxu0 %v3853
  %v7251 = vpop.f32.mrb[0].mxu0
  %v7252 = vadd.f32 %v6019, %v7251
  %v7253 = vpop.f32.mrb[0].mxu0
  %v7254 = vpop.f32.mrb[0].mxu0
  %v7255 = vadd.f32 %v6022, %v7254
  %v7256 = vpop.f32.mrb[0].mxu0
  %7257 = vmatprep.mubr.bf16.mxu0 %v3860
  %7258 = vmatmul.mubr.bf16.gmra.mrb[0].mxu0 %v3859
  %v7259 = vpop.f32.mrb[0].mxu0
  %v7260 = vadd.f32 %v6027, %v7259
  %v7261 = vpop.f32.mrb[0].mxu0
  %v7262 = vpop.f32.mrb[0].mxu0
  %v7263 = vadd.f32 %v6030, %v7262
  %v7264 = vpop.f32.mrb[0].mxu0
  %7265 = vmatprep.mubr.bf16.mxu0 %v3866
  %7266 = vmatmul.mubr.bf16.gmra.mrb[0].mxu0 %v3865
  %v7267 = vpop.f32.mrb[0].mxu0
  %v7268 = vadd.f32 %v6035, %v7267
  %v7269 = vpop.f32.mrb[0].mxu0
  %v7270 = vpop.f32.mrb[0].mxu0
  %v7271 = vadd.f32 %v6038, %v7270
  %v7272 = vpop.f32.mrb[0].mxu0
  %7273 = vmatprep.mubr.bf16.mxu0 %v3872
  %7274 = vmatmul.mubr.bf16.gmra.mrb[0].mxu0 %v3871
  %v7275 = vpop.f32.mrb[0].mxu0
  %v7276 = vadd.f32 %v6043, %v7275
  %v7277 = vpop.f32.mrb[0].mxu0
  %v7278 = vpop.f32.mrb[0].mxu0
  %v7279 = vadd.f32 %v6046, %v7278
  %v7280 = vpop.f32.mrb[0].mxu0
  %7281 = vmatprep.mubr.bf16.mxu0 %v3878
  %7282 = vmatmul.mubr.bf16.gmra.mrb[0].mxu0 %v3877
  %v7283 = vpop.f32.mrb[0].mxu0
  %v7284 = vadd.f32 %v6051, %v7283
  %v7285 = vpop.f32.mrb[0].mxu0
  %v7286 = vpop.f32.mrb[0].mxu0
  %v7287 = vadd.f32 %v6054, %v7286
  %v7288 = vpop.f32.mrb[0].mxu0
  %7289 = vmatprep.mubr.bf16.mxu0 %v3884
  %7290 = vmatmul.mubr.bf16.gmra.mrb[0].mxu0 %v3883
  %v7291 = vpop.f32.mrb[0].mxu0
  %v7292 = vadd.f32 %v6059, %v7291
  %v7293 = vpop.f32.mrb[0].mxu0
  %v7294 = vpop.f32.mrb[0].mxu0
  %v7295 = vadd.f32 %v6062, %v7294
  %v7296 = vpop.f32.mrb[0].mxu0
  %7297 = vmatprep.mubr.bf16.mxu0 %v3890
  %7298 = vmatmul.mubr.bf16.gmra.mrb[0].mxu0 %v3889
  %v7299 = vpop.f32.mrb[0].mxu0
  %v7300 = vadd.f32 %v6067, %v7299
  %v7301 = vpop.f32.mrb[0].mxu0
  %v7302 = vpop.f32.mrb[0].mxu0
  %v7303 = vadd.f32 %v6070, %v7302
  %v7304 = vpop.f32.mrb[0].mxu0
  %7305 = vmatprep.mubr.bf16.mxu0 %v3896
  %7306 = vmatmul.mubr.bf16.gmra.mrb[0].mxu0 %v3895
  %v7307 = vpop.f32.mrb[0].mxu0
  %v7308 = vadd.f32 %v6075, %v7307
  %v7309 = vpop.f32.mrb[0].mxu0
  %v7310 = vpop.f32.mrb[0].mxu0
  %v7311 = vadd.f32 %v6078, %v7310
  %v7312 = vpop.f32.mrb[0].mxu0
  %7313 = vmatprep.mubr.bf16.mxu0 %v3902
  %7314 = vmatmul.mubr.bf16.gmra.mrb[0].mxu0 %v3901
  %v7315 = vpop.f32.mrb[0].mxu0
  %v7316 = vadd.f32 %v6083, %v7315
  %v7317 = vpop.f32.mrb[0].mxu0
  %v7318 = vpop.f32.mrb[0].mxu0
  %v7319 = vadd.f32 %v6086, %v7318
  %v7320 = vpop.f32.mrb[0].mxu0
  %7321 = vmatprep.mubr.bf16.mxu0 %v3908
  %7322 = vmatmul.mubr.bf16.gmra.mrb[0].mxu0 %v3907
  %v7323 = vpop.f32.mrb[0].mxu0
  %v7324 = vadd.f32 %v6091, %v7323
  %v7325 = vpop.f32.mrb[0].mxu0
  %v7326 = vpop.f32.mrb[0].mxu0
  %v7327 = vadd.f32 %v6094, %v7326
  %v7328 = vpop.f32.mrb[0].mxu0
  %7329 = vmatprep.mubr.bf16.mxu0 %v3914
  %7330 = vmatmul.mubr.bf16.gmra.mrb[0].mxu0 %v3913
  %v7331 = vpop.f32.mrb[0].mxu0
  %v7332 = vadd.f32 %v6099, %v7331
  %v7333 = vpop.f32.mrb[0].mxu0
  %v7334 = vpop.f32.mrb[0].mxu0
  %v7335 = vadd.f32 %v6102, %v7334
  %v7336 = vpop.f32.mrb[0].mxu0
  %7337 = vmatprep.mubr.bf16.mxu0 %v3920
  %7338 = vmatmul.mubr.bf16.gmra.mrb[0].mxu0 %v3919
  %v7339 = vpop.f32.mrb[0].mxu0
  %v7340 = vadd.f32 %v6107, %v7339
  %v7341 = vpop.f32.mrb[0].mxu0
  %v7342 = vpop.f32.mrb[0].mxu0
  %v7343 = vadd.f32 %v6110, %v7342
  %v7344 = vpop.f32.mrb[0].mxu0
  %7345 = vmatprep.mubr.bf16.mxu0 %v3926
  %7346 = vmatmul.mubr.bf16.gmra.mrb[0].mxu0 %v3925
  %v7347 = vpop.f32.mrb[0].mxu0
  %v7348 = vadd.f32 %v6115, %v7347
  %v7349 = vpop.f32.mrb[0].mxu0
  %v7350 = vpop.f32.mrb[0].mxu0
  %v7351 = vadd.f32 %v6118, %v7350
  %v7352 = vpop.f32.mrb[0].mxu0
  %7353 = vmatprep.mubr.bf16.mxu0 %v3932
  %7354 = vmatmul.mubr.bf16.gmra.mrb[0].mxu0 %v3931
  %v7355 = vpop.f32.mrb[0].mxu0
  %v7356 = vadd.f32 %v6123, %v7355
  %v7357 = vpop.f32.mrb[0].mxu0
  %v7358 = vpop.f32.mrb[0].mxu0
  %v7359 = vadd.f32 %v6126, %v7358
  %v7360 = vpop.f32.mrb[0].mxu0
  %7361 = vmatprep.mubr.bf16.mxu0 %v3938
  %7362 = vmatmul.mubr.bf16.gmra.mrb[0].mxu0 %v3937
  %v7363 = vpop.f32.mrb[0].mxu0
  %v7364 = vadd.f32 %v6131, %v7363
  %v7365 = vpop.f32.mrb[0].mxu0
  %v7366 = vpop.f32.mrb[0].mxu0
  %v7367 = vadd.f32 %v6134, %v7366
  %v7368 = vpop.f32.mrb[0].mxu0
  %7369 = vmatprep.mubr.bf16.mxu0 %v3944
  %7370 = vmatmul.mubr.bf16.gmra.mrb[0].mxu0 %v3943
  %v7371 = vpop.f32.mrb[0].mxu0
  %v7372 = vadd.f32 %v6139, %v7371
  %v7373 = vpop.f32.mrb[0].mxu0
  %v7374 = vpop.f32.mrb[0].mxu0
  %v7375 = vadd.f32 %v6142, %v7374
  %v7376 = vpop.f32.mrb[0].mxu0
  %7377 = vmatprep.mubr.bf16.mxu0 %v3950
  %7378 = vmatmul.mubr.bf16.gmra.mrb[0].mxu0 %v3949
  %v7379 = vpop.f32.mrb[0].mxu0
  %v7380 = vadd.f32 %v6147, %v7379
  %v7381 = vpop.f32.mrb[0].mxu0
  %v7382 = vpop.f32.mrb[0].mxu0
  %v7383 = vadd.f32 %v6150, %v7382
  %v7384 = vpop.f32.mrb[0].mxu0
  %7385 = vmatprep.mubr.bf16.mxu0 %v3956
  %7386 = vmatmul.mubr.bf16.gmra.mrb[0].mxu0 %v3955
  %v7387 = vpop.f32.mrb[0].mxu0
  %v7388 = vadd.f32 %v6155, %v7387
  %v7389 = vpop.f32.mrb[0].mxu0
  %v7390 = vpop.f32.mrb[0].mxu0
  %v7391 = vadd.f32 %v6158, %v7390
  %v7392 = vpop.f32.mrb[0].mxu0
  %7393 = vmatprep.mubr.bf16.mxu0 %v3962
  %7394 = vmatmul.mubr.bf16.gmra.mrb[0].mxu0 %v3961
  %v7395 = vpop.f32.mrb[0].mxu0
  %v7396 = vadd.f32 %v6163, %v7395
  %v7397 = vpop.f32.mrb[0].mxu0
  %v7398 = vpop.f32.mrb[0].mxu0
  %v7399 = vadd.f32 %v6166, %v7398
  %v7400 = vpop.f32.mrb[0].mxu0
  %7401 = vmatprep.mubr.bf16.mxu0 %v3968
  %7402 = vmatmul.mubr.bf16.gmra.mrb[0].mxu0 %v3967
  %v7403 = vpop.f32.mrb[0].mxu0
  %v7404 = vadd.f32 %v6171, %v7403
  %v7405 = vpop.f32.mrb[0].mxu0
  %v7406 = vpop.f32.mrb[0].mxu0
  %v7407 = vadd.f32 %v6174, %v7406
  %v7408 = vpop.f32.mrb[0].mxu0
  %7409 = vmatprep.mubr.bf16.mxu0 %v3974
  %7410 = vmatmul.mubr.bf16.gmra.mrb[0].mxu0 %v3973
  %v7411 = vpop.f32.mrb[0].mxu0
  %v7412 = vadd.f32 %v6179, %v7411
  %v7413 = vpop.f32.mrb[0].mxu0
  %v7414 = vpop.f32.mrb[0].mxu0
  %v7415 = vadd.f32 %v6182, %v7414
  %v7416 = vpop.f32.mrb[0].mxu0
  %7417 = vmatprep.mubr.bf16.mxu0 %v3980
  %7418 = vmatmul.mubr.bf16.gmra.mrb[0].mxu0 %v3979
  %v7419 = vpop.f32.mrb[0].mxu0
  %v7420 = vadd.f32 %v6187, %v7419
  %v7421 = vpop.f32.mrb[0].mxu0
  %v7422 = vpop.f32.mrb[0].mxu0
  %v7423 = vadd.f32 %v6190, %v7422
  %v7424 = vpop.f32.mrb[0].mxu0
  %7425 = vmatprep.mubr.bf16.mxu0 %v3986
  %7426 = vmatmul.mubr.bf16.gmra.mrb[0].mxu0 %v3985
  %v7427 = vpop.f32.mrb[0].mxu0
  %v7428 = vadd.f32 %v6195, %v7427
  %v7429 = vpop.f32.mrb[0].mxu0
  %v7430 = vpop.f32.mrb[0].mxu0
  %v7431 = vadd.f32 %v6198, %v7430
  %v7432 = vpop.f32.mrb[0].mxu0
  %7433 = vmatprep.mubr.bf16.mxu0 %v3992
  %7434 = vmatmul.mubr.bf16.gmra.mrb[0].mxu0 %v3991
  %v7435 = vpop.f32.mrb[0].mxu0
  %v7436 = vadd.f32 %v6203, %v7435
  %v7437 = vpop.f32.mrb[0].mxu0
  %v7438 = vpop.f32.mrb[0].mxu0
  %v7439 = vadd.f32 %v6206, %v7438
  %v7440 = vpop.f32.mrb[0].mxu0
  %7441 = vmatprep.mubr.bf16.mxu0 %v3998
  %7442 = vmatmul.mubr.bf16.gmra.mrb[0].mxu0 %v3997
  %v7443 = vpop.f32.mrb[0].mxu0
  %v7444 = vadd.f32 %v6211, %v7443
  %v7445 = vpop.f32.mrb[0].mxu0
  %v7446 = vpop.f32.mrb[0].mxu0
  %v7447 = vadd.f32 %v6214, %v7446
  %v7448 = vpop.f32.mrb[0].mxu0
  %7449 = vmatprep.mubr.bf16.mxu0 %v4004
  %7450 = vmatmul.mubr.bf16.gmra.mrb[0].mxu0 %v4003
  %v7451 = vpop.f32.mrb[0].mxu0
  %v7452 = vadd.f32 %v6219, %v7451
  %v7453 = vpop.f32.mrb[0].mxu0
  %v7454 = vpop.f32.mrb[0].mxu0
  %v7455 = vadd.f32 %v6222, %v7454
  %v7456 = vpop.f32.mrb[0].mxu0
  %7457 = vmatprep.mubr.bf16.mxu0 %v4010
  %7458 = vmatmul.mubr.bf16.gmra.mrb[0].mxu0 %v4009
  %v7459 = vpop.f32.mrb[0].mxu0
  %v7460 = vadd.f32 %v6227, %v7459
  %v7461 = vpop.f32.mrb[0].mxu0
  %v7462 = vpop.f32.mrb[0].mxu0
  %v7463 = vadd.f32 %v6230, %v7462
  %v7464 = vpop.f32.mrb[0].mxu0
  %7465 = vmatprep.mubr.bf16.mxu0 %v4016
  %7466 = vmatmul.mubr.bf16.gmra.mrb[0].mxu0 %v4015
  %v7467 = vpop.f32.mrb[0].mxu0
  %v7468 = vadd.f32 %v6235, %v7467
  %v7469 = vpop.f32.mrb[0].mxu0
  %v7470 = vpop.f32.mrb[0].mxu0
  %v7471 = vadd.f32 %v6238, %v7470
  %v7472 = vpop.f32.mrb[0].mxu0
  %7473 = vmatprep.mubr.bf16.mxu0 %v4022
  %7474 = vmatmul.mubr.bf16.gmra.mrb[0].mxu0 %v4021
  %v7475 = vpop.f32.mrb[0].mxu0
  %v7476 = vadd.f32 %v6243, %v7475
  %v7477 = vpop.f32.mrb[0].mxu0
  %v7478 = vpop.f32.mrb[0].mxu0
  %v7479 = vadd.f32 %v6246, %v7478
  %v7480 = vpop.f32.mrb[0].mxu0
  %7481 = vmatprep.mubr.bf16.mxu0 %v4028
  %7482 = vmatmul.mubr.bf16.gmra.mrb[0].mxu0 %v4027
  %v7483 = vpop.f32.mrb[0].mxu0
  %v7484 = vadd.f32 %v6251, %v7483
  %v7485 = vpop.f32.mrb[0].mxu0
  %v7486 = vpop.f32.mrb[0].mxu0
  %v7487 = vadd.f32 %v6254, %v7486
  %v7488 = vpop.f32.mrb[0].mxu0
  %7489 = vmatprep.mubr.bf16.mxu0 %v4034
  %7490 = vmatmul.mubr.bf16.gmra.mrb[0].mxu0 %v4033
  %v7491 = vpop.f32.mrb[0].mxu0
  %v7492 = vadd.f32 %v6259, %v7491
  %v7493 = vpop.f32.mrb[0].mxu0
  %v7494 = vpop.f32.mrb[0].mxu0
  %v7495 = vadd.f32 %v6262, %v7494
  %v7496 = vpop.f32.mrb[0].mxu0
  %7497 = vmatprep.mubr.bf16.mxu0 %v4040
  %7498 = vmatmul.mubr.bf16.gmra.mrb[0].mxu0 %v4039
  %v7499 = vpop.f32.mrb[0].mxu0
  %v7500 = vadd.f32 %v6267, %v7499
  %v7501 = vpop.f32.mrb[0].mxu0
  %v7502 = vpop.f32.mrb[0].mxu0
  %v7503 = vadd.f32 %v6270, %v7502
  %v7504 = vpop.f32.mrb[0].mxu0
  %7505 = vmatprep.mubr.bf16.mxu0 %v4046
  %7506 = vmatmul.mubr.bf16.gmra.mrb[0].mxu0 %v4045
  %v7507 = vpop.f32.mrb[0].mxu0
  %v7508 = vadd.f32 %v6275, %v7507
  %v7509 = vpop.f32.mrb[0].mxu0
  %v7510 = vpop.f32.mrb[0].mxu0
  %v7511 = vadd.f32 %v6278, %v7510
  %v7512 = vpop.f32.mrb[0].mxu0
  %7513 = vmatprep.mubr.bf16.mxu0 %v4052
  %7514 = vmatmul.mubr.bf16.gmra.mrb[0].mxu0 %v4051
  %v7515 = vpop.f32.mrb[0].mxu0
  %v7516 = vadd.f32 %v6283, %v7515
  %v7517 = vpop.f32.mrb[0].mxu0
  %v7518 = vpop.f32.mrb[0].mxu0
  %v7519 = vadd.f32 %v6286, %v7518
  %v7520 = vpop.f32.mrb[0].mxu0
  %7521 = vmatprep.mubr.bf16.mxu0 %v4058
  %7522 = vmatmul.mubr.bf16.gmra.mrb[0].mxu0 %v4057
  %v7523 = vpop.f32.mrb[0].mxu0
  %v7524 = vadd.f32 %v6291, %v7523
  %v7525 = vpop.f32.mrb[0].mxu0
  %v7526 = vpop.f32.mrb[0].mxu0
  %v7527 = vadd.f32 %v6294, %v7526
  %v7528 = vpop.f32.mrb[0].mxu0
  %7529 = vmatprep.mubr.bf16.mxu0 %v4064
  %7530 = vmatmul.mubr.bf16.gmra.mrb[0].mxu0 %v4063
  %v7531 = vpop.f32.mrb[0].mxu0
  %v7532 = vadd.f32 %v6299, %v7531
  %v7533 = vpop.f32.mrb[0].mxu0
  %v7534 = vpop.f32.mrb[0].mxu0
  %v7535 = vadd.f32 %v6302, %v7534
  %v7536 = vpop.f32.mrb[0].mxu0
  %7537 = vmatprep.mubr.bf16.mxu0 %v4070
  %7538 = vmatmul.mubr.bf16.gmra.mrb[0].mxu0 %v4069
  %v7539 = vpop.f32.mrb[0].mxu0
  %v7540 = vadd.f32 %v6307, %v7539
  %v7541 = vpop.f32.mrb[0].mxu0
  %v7542 = vpop.f32.mrb[0].mxu0
  %v7543 = vadd.f32 %v6310, %v7542
  %v7544 = vpop.f32.mrb[0].mxu0
  %7545 = vmatprep.mubr.bf16.mxu0 %v4076
  %7546 = vmatmul.mubr.bf16.gmra.mrb[0].mxu0 %v4075
  %v7547 = vpop.f32.mrb[0].mxu0
  %v7548 = vadd.f32 %v6315, %v7547
  %v7549 = vpop.f32.mrb[0].mxu0
  %v7550 = vpop.f32.mrb[0].mxu0
  %v7551 = vadd.f32 %v6318, %v7550
  %v7552 = vpop.f32.mrb[0].mxu0
  %7553 = vmatprep.mubr.bf16.mxu0 %v4082
  %7554 = vmatmul.mubr.bf16.gmra.mrb[0].mxu0 %v4081
  %v7555 = vpop.f32.mrb[0].mxu0
  %v7556 = vadd.f32 %v6323, %v7555
  %v7557 = vpop.f32.mrb[0].mxu0
  %v7558 = vpop.f32.mrb[0].mxu0
  %v7559 = vadd.f32 %v6326, %v7558
  %v7560 = vpop.f32.mrb[0].mxu0
  %7561 = vmatprep.mubr.bf16.mxu0 %v4088
  %7562 = vmatmul.mubr.bf16.gmra.mrb[0].mxu0 %v4087
  %v7563 = vpop.f32.mrb[0].mxu0
  %v7564 = vadd.f32 %v6331, %v7563
  %v7565 = vpop.f32.mrb[0].mxu0
  %v7566 = vpop.f32.mrb[0].mxu0
  %v7567 = vadd.f32 %v6334, %v7566
  %v7568 = vpop.f32.mrb[0].mxu0
  %7569 = vmatprep.mubr.bf16.mxu0 %v4094
  %7570 = vmatmul.mubr.bf16.gmra.mrb[0].mxu0 %v4093
  %v7571 = vpop.f32.mrb[0].mxu0
  %v7572 = vadd.f32 %v6339, %v7571
  %v7573 = vpop.f32.mrb[0].mxu0
  %v7574 = vpop.f32.mrb[0].mxu0
  %v7575 = vadd.f32 %v6342, %v7574
  %v7576 = vpop.f32.mrb[0].mxu0
  %7577 = vmatprep.mubr.bf16.mxu0 %v4100
  %7578 = vmatmul.mubr.bf16.gmra.mrb[0].mxu0 %v4099
  %v7579 = vpop.f32.mrb[0].mxu0
  %v7580 = vadd.f32 %v6347, %v7579
  %v7581 = vpop.f32.mrb[0].mxu0
  %v7582 = vpop.f32.mrb[0].mxu0
  %v7583 = vadd.f32 %v6350, %v7582
  %v7584 = vpop.f32.mrb[0].mxu0
  %7585 = vmatprep.mubr.bf16.mxu0 %v4106
  %7586 = vmatmul.mubr.bf16.gmra.mrb[0].mxu0 %v4105
  %v7587 = vpop.f32.mrb[0].mxu0
  %v7588 = vadd.f32 %v6355, %v7587
  %v7589 = vpop.f32.mrb[0].mxu0
  %v7590 = vpop.f32.mrb[0].mxu0
  %v7591 = vadd.f32 %v6358, %v7590
  %v7592 = vpop.f32.mrb[0].mxu0
  %7593 = vmatprep.mubr.bf16.mxu0 %v4112
  %7594 = vmatmul.mubr.bf16.gmra.mrb[0].mxu0 %v4111
  %v7595 = vpop.f32.mrb[0].mxu0
  %v7596 = vadd.f32 %v6363, %v7595
  %v7597 = vpop.f32.mrb[0].mxu0
  %v7598 = vpop.f32.mrb[0].mxu0
  %v7599 = vadd.f32 %v6366, %v7598
  %v7600 = vpop.f32.mrb[0].mxu0
  %7601 = vmatprep.mubr.bf16.mxu0 %v4118
  %7602 = vmatmul.mubr.bf16.gmra.mrb[0].mxu0 %v4117
  %v7603 = vpop.f32.mrb[0].mxu0
  %v7604 = vadd.f32 %v6371, %v7603
  %v7605 = vpop.f32.mrb[0].mxu0
  %v7606 = vpop.f32.mrb[0].mxu0
  %v7607 = vadd.f32 %v6374, %v7606
  %v7608 = vpop.f32.mrb[0].mxu0
  %7609 = vmatprep.mubr.bf16.mxu0 %v4124
  %7610 = vmatmul.mubr.bf16.gmra.mrb[0].mxu0 %v4123
  %v7611 = vpop.f32.mrb[0].mxu0
  %v7612 = vadd.f32 %v6379, %v7611
  %v7613 = vpop.f32.mrb[0].mxu0
  %v7614 = vpop.f32.mrb[0].mxu0
  %v7615 = vadd.f32 %v6382, %v7614
  %v7616 = vpop.f32.mrb[0].mxu0
  %7617 = vmatprep.mubr.bf16.mxu0 %v4130
  %7618 = vmatmul.mubr.bf16.gmra.mrb[0].mxu0 %v4129
  %v7619 = vpop.f32.mrb[0].mxu0
  %v7620 = vadd.f32 %v6387, %v7619
  %v7621 = vpop.f32.mrb[0].mxu0
  %v7622 = vpop.f32.mrb[0].mxu0
  %v7623 = vadd.f32 %v6390, %v7622
  %v7624 = vpop.f32.mrb[0].mxu0
  %7625 = vmatprep.mubr.bf16.mxu0 %v4136
  %7626 = vmatmul.mubr.bf16.gmra.mrb[0].mxu0 %v4135
  %v7627 = vpop.f32.mrb[0].mxu0
  %v7628 = vadd.f32 %v6395, %v7627
  %v7629 = vpop.f32.mrb[0].mxu0
  %v7630 = vpop.f32.mrb[0].mxu0
  %v7631 = vadd.f32 %v6398, %v7630
  %v7632 = vpop.f32.mrb[0].mxu0
  %7633 = vmatprep.mubr.bf16.mxu0 %v4142
  %7634 = vmatmul.mubr.bf16.gmra.mrb[0].mxu0 %v4141
  %v7635 = vpop.f32.mrb[0].mxu0
  %v7636 = vadd.f32 %v6403, %v7635
  %v7637 = vpop.f32.mrb[0].mxu0
  %v7638 = vpop.f32.mrb[0].mxu0
  %v7639 = vadd.f32 %v6406, %v7638
  %v7640 = vpop.f32.mrb[0].mxu0
  %7641 = vmatprep.mubr.bf16.mxu0 %v4148
  %7642 = vmatmul.mubr.bf16.gmra.mrb[0].mxu0 %v4147
  %v7643 = vpop.f32.mrb[0].mxu0
  %v7644 = vadd.f32 %v6411, %v7643
  %v7645 = vpop.f32.mrb[0].mxu0
  %v7646 = vpop.f32.mrb[0].mxu0
  %v7647 = vadd.f32 %v6414, %v7646
  %v7648 = vpop.f32.mrb[0].mxu0
  %7649 = vmatprep.mubr.bf16.mxu0 %v4154
  %7650 = vmatmul.mubr.bf16.gmra.mrb[0].mxu0 %v4153
  %v7651 = vpop.f32.mrb[0].mxu0
  %v7652 = vadd.f32 %v6419, %v7651
  %v7653 = vpop.f32.mrb[0].mxu0
  %v7654 = vpop.f32.mrb[0].mxu0
  %v7655 = vadd.f32 %v6422, %v7654
  %v7656 = vpop.f32.mrb[0].mxu0
  %7657 = vmatprep.mubr.bf16.mxu0 %v4160
  %7658 = vmatmul.mubr.bf16.gmra.mrb[0].mxu0 %v4159
  %v7659 = vpop.f32.mrb[0].mxu0
  %v7660 = vadd.f32 %v6427, %v7659
  %v7661 = vpop.f32.mrb[0].mxu0
  %v7662 = vpop.f32.mrb[0].mxu0
  %v7663 = vadd.f32 %v6430, %v7662
  %v7664 = vpop.f32.mrb[0].mxu0
  %7665 = vmatprep.mubr.bf16.mxu0 %v4166
  %7666 = vmatmul.mubr.bf16.gmra.mrb[0].mxu0 %v4165
  %v7667 = vpop.f32.mrb[0].mxu0
  %v7668 = vadd.f32 %v6435, %v7667
  %v7669 = vpop.f32.mrb[0].mxu0
  %v7670 = vpop.f32.mrb[0].mxu0
  %v7671 = vadd.f32 %v6438, %v7670
  %v7672 = vpop.f32.mrb[0].mxu0
  %7673 = vmatprep.mubr.bf16.mxu0 %v4172
  %7674 = vmatmul.mubr.bf16.gmra.mrb[0].mxu0 %v4171
  %v7675 = vpop.f32.mrb[0].mxu0
  %v7676 = vadd.f32 %v6443, %v7675
  %v7677 = vpop.f32.mrb[0].mxu0
  %v7678 = vpop.f32.mrb[0].mxu0
  %v7679 = vadd.f32 %v6446, %v7678
  %v7680 = vpop.f32.mrb[0].mxu0
  %7681 = vmatprep.mubr.bf16.mxu0 %v4178
  %7682 = vmatmul.mubr.bf16.gmra.mrb[0].mxu0 %v4177
  %v7683 = vpop.f32.mrb[0].mxu0
  %v7684 = vadd.f32 %v6451, %v7683
  %v7685 = vpop.f32.mrb[0].mxu0
  %v7686 = vpop.f32.mrb[0].mxu0
  %v7687 = vadd.f32 %v6454, %v7686
  %v7688 = vpop.f32.mrb[0].mxu0
  %7689 = vmatprep.mubr.bf16.mxu0 %v4184
  %7690 = vmatmul.mubr.bf16.gmra.mrb[0].mxu0 %v4183
  %v7691 = vpop.f32.mrb[0].mxu0
  %v7692 = vadd.f32 %v6459, %v7691
  %v7693 = vpop.f32.mrb[0].mxu0
  %v7694 = vpop.f32.mrb[0].mxu0
  %v7695 = vadd.f32 %v6462, %v7694
  %v7696 = vpop.f32.mrb[0].mxu0
  %7697 = vmatprep.mubr.bf16.mxu0 %v4190
  %7698 = vmatmul.mubr.bf16.gmra.mrb[0].mxu0 %v4189
  %v7699 = vpop.f32.mrb[0].mxu0
  %v7700 = vadd.f32 %v6467, %v7699
  %v7701 = vpop.f32.mrb[0].mxu0
  %v7702 = vpop.f32.mrb[0].mxu0
  %v7703 = vadd.f32 %v6470, %v7702
  %v7704 = vpop.f32.mrb[0].mxu0
  %7705 = vmatprep.mubr.bf16.mxu0 %v4196
  %7706 = vmatmul.mubr.bf16.gmra.mrb[0].mxu0 %v4195
  %v7707 = vpop.f32.mrb[0].mxu0
  %v7708 = vadd.f32 %v6475, %v7707
  %v7709 = vpop.f32.mrb[0].mxu0
  %v7710 = vpop.f32.mrb[0].mxu0
  %v7711 = vadd.f32 %v6478, %v7710
  %v7712 = vpop.f32.mrb[0].mxu0
  %7713 = vmatprep.mubr.bf16.mxu0 %v4202
  %7714 = vmatmul.mubr.bf16.gmra.mrb[0].mxu0 %v4201
  %v7715 = vpop.f32.mrb[0].mxu0
  %v7716 = vadd.f32 %v6483, %v7715
  %v7717 = vpop.f32.mrb[0].mxu0
  %v7718 = vpop.f32.mrb[0].mxu0
  %v7719 = vadd.f32 %v6486, %v7718
  %v7720 = vpop.f32.mrb[0].mxu0
  %7721 = vmatprep.mubr.bf16.mxu0 %v4208
  %7722 = vmatmul.mubr.bf16.gmra.mrb[0].mxu0 %v4207
  %v7723 = vpop.f32.mrb[0].mxu0
  %v7724 = vadd.f32 %v6491, %v7723
  %v7725 = vpop.f32.mrb[0].mxu0
  %v7726 = vpop.f32.mrb[0].mxu0
  %v7727 = vadd.f32 %v6494, %v7726
  %v7728 = vpop.f32.mrb[0].mxu0
  %7729 = vmatprep.mubr.bf16.mxu0 %v4214
  %7730 = vmatmul.mubr.bf16.gmra.mrb[0].mxu0 %v4213
  %v7731 = vpop.f32.mrb[0].mxu0
  %v7732 = vadd.f32 %v6499, %v7731
  %v7733 = vpop.f32.mrb[0].mxu0
  %v7734 = vpop.f32.mrb[0].mxu0
  %v7735 = vadd.f32 %v6502, %v7734
  %v7736 = vpop.f32.mrb[0].mxu0
  %7737 = vmatprep.mubr.bf16.mxu0 %v4220
  %7738 = vmatmul.mubr.bf16.gmra.mrb[0].mxu0 %v4219
  %v7739 = vpop.f32.mrb[0].mxu0
  %v7740 = vadd.f32 %v6507, %v7739
  %v7741 = vpop.f32.mrb[0].mxu0
  %v7742 = vpop.f32.mrb[0].mxu0
  %v7743 = vadd.f32 %v6510, %v7742
  %v7744 = vpop.f32.mrb[0].mxu0
  %7745 = vmatprep.mubr.bf16.mxu0 %v4226
  %7746 = vmatmul.mubr.bf16.gmra.mrb[0].mxu0 %v4225
  %v7747 = vpop.f32.mrb[0].mxu0
  %v7748 = vadd.f32 %v6515, %v7747
  %v7749 = vpop.f32.mrb[0].mxu0
  %v7750 = vpop.f32.mrb[0].mxu0
  %v7751 = vadd.f32 %v6518, %v7750
  %v7752 = vpop.f32.mrb[0].mxu0
  %7753 = vmatprep.mubr.bf16.mxu0 %v4232
  %7754 = vmatmul.mubr.bf16.gmra.mrb[0].mxu0 %v4231
  %v7755 = vpop.f32.mrb[0].mxu0
  %v7756 = vadd.f32 %v6523, %v7755
  %v7757 = vpop.f32.mrb[0].mxu0
  %v7758 = vpop.f32.mrb[0].mxu0
  %v7759 = vadd.f32 %v6526, %v7758
  %v7760 = vpop.f32.mrb[0].mxu0
  %7761 = vmatprep.mubr.bf16.mxu0 %v4238
  %7762 = vmatmul.mubr.bf16.gmra.mrb[0].mxu0 %v4237
  %v7763 = vpop.f32.mrb[0].mxu0
  %v7764 = vadd.f32 %v6531, %v7763
  %v7765 = vpop.f32.mrb[0].mxu0
  %v7766 = vpop.f32.mrb[0].mxu0
  %v7767 = vadd.f32 %v6534, %v7766
  %v7768 = vpop.f32.mrb[0].mxu0
  %7769 = vmatprep.mubr.bf16.mxu0 %v4244
  %7770 = vmatmul.mubr.bf16.gmra.mrb[0].mxu0 %v4243
  %v7771 = vpop.f32.mrb[0].mxu0
  %v7772 = vadd.f32 %v6539, %v7771
  %v7773 = vpop.f32.mrb[0].mxu0
  %v7774 = vpop.f32.mrb[0].mxu0
  %v7775 = vadd.f32 %v6542, %v7774
  %v7776 = vpop.f32.mrb[0].mxu0
  %7777 = vmatprep.mubr.bf16.mxu0 %v4250
  %7778 = vmatmul.mubr.bf16.gmra.mrb[0].mxu0 %v4249
  %v7779 = vpop.f32.mrb[0].mxu0
  %v7780 = vadd.f32 %v6547, %v7779
  %v7781 = vpop.f32.mrb[0].mxu0
  %v7782 = vpop.f32.mrb[0].mxu0
  %v7783 = vadd.f32 %v6550, %v7782
  %v7784 = vpop.f32.mrb[0].mxu0
  %7785 = vmatprep.mubr.bf16.mxu0 %v4256
  %7786 = vmatmul.mubr.bf16.gmra.mrb[0].mxu0 %v4255
  %v7787 = vpop.f32.mrb[0].mxu0
  %v7788 = vadd.f32 %v6555, %v7787
  %v7789 = vpop.f32.mrb[0].mxu0
  %v7790 = vpop.f32.mrb[0].mxu0
  %v7791 = vadd.f32 %v6558, %v7790
  %v7792 = vpop.f32.mrb[0].mxu0
  %7793 = vmatprep.mubr.bf16.mxu0 %v4262
  %7794 = vmatmul.mubr.bf16.gmra.mrb[0].mxu0 %v4261
  %v7795 = vpop.f32.mrb[0].mxu0
  %v7796 = vadd.f32 %v6563, %v7795
  %v7797 = vpop.f32.mrb[0].mxu0
  %v7798 = vpop.f32.mrb[0].mxu0
  %v7799 = vadd.f32 %v6566, %v7798
  %v7800 = vpop.f32.mrb[0].mxu0
  %7801 = vmatprep.mubr.bf16.mxu0 %v4268
  %7802 = vmatmul.mubr.bf16.gmra.mrb[0].mxu0 %v4267
  %v7803 = vpop.f32.mrb[0].mxu0
  %v7804 = vadd.f32 %v6571, %v7803
  %v7805 = vpop.f32.mrb[0].mxu0
  %v7806 = vpop.f32.mrb[0].mxu0
  %v7807 = vadd.f32 %v6574, %v7806
  %v7808 = vpop.f32.mrb[0].mxu0
  %7809 = vmatprep.mubr.bf16.mxu0 %v4274
  %7810 = vmatmul.mubr.bf16.gmra.mrb[0].mxu0 %v4273
  %v7811 = vpop.f32.mrb[0].mxu0
  %v7812 = vadd.f32 %v6579, %v7811
  %v7813 = vpop.f32.mrb[0].mxu0
  %v7814 = vpop.f32.mrb[0].mxu0
  %v7815 = vadd.f32 %v6582, %v7814
  %v7816 = vpop.f32.mrb[0].mxu0
  %7817 = vmatprep.mubr.bf16.mxu0 %v4280
  %7818 = vmatmul.mubr.bf16.gmra.mrb[0].mxu0 %v4279
  %v7819 = vpop.f32.mrb[0].mxu0
  %v7820 = vadd.f32 %v6587, %v7819
  %v7821 = vpop.f32.mrb[0].mxu0
  %v7822 = vpop.f32.mrb[0].mxu0
  %v7823 = vadd.f32 %v6590, %v7822
  %v7824 = vpop.f32.mrb[0].mxu0
  %7825 = vmatprep.mubr.bf16.mxu0 %v4286
  %7826 = vmatmul.mubr.bf16.gmra.mrb[0].mxu0 %v4285
  %v7827 = vpop.f32.mrb[0].mxu0
  %v7828 = vadd.f32 %v6595, %v7827
  %v7829 = vpop.f32.mrb[0].mxu0
  %v7830 = vpop.f32.mrb[0].mxu0
  %v7831 = vadd.f32 %v6598, %v7830
  %v7832 = vpop.f32.mrb[0].mxu0
  %7833 = vmatprep.mubr.bf16.mxu0 %v4292
  %7834 = vmatmul.mubr.bf16.gmra.mrb[0].mxu0 %v4291
  %v7835 = vpop.f32.mrb[0].mxu0
  %v7836 = vadd.f32 %v6603, %v7835
  %v7837 = vpop.f32.mrb[0].mxu0
  %v7838 = vpop.f32.mrb[0].mxu0
  %v7839 = vadd.f32 %v6606, %v7838
  %v7840 = vpop.f32.mrb[0].mxu0
  %7841 = vmatprep.mubr.bf16.mxu0 %v4298
  %7842 = vmatmul.mubr.bf16.gmra.mrb[0].mxu0 %v4297
  %v7843 = vpop.f32.mrb[0].mxu0
  %v7844 = vadd.f32 %v6611, %v7843
  %v7845 = vpop.f32.mrb[0].mxu0
  %v7846 = vpop.f32.mrb[0].mxu0
  %v7847 = vadd.f32 %v6614, %v7846
  %v7848 = vpop.f32.mrb[0].mxu0
  %7849 = vmatprep.mubr.bf16.mxu0 %v4304
  %7850 = vmatmul.mubr.bf16.gmra.mrb[0].mxu0 %v4303
  %v7851 = vpop.f32.mrb[0].mxu0
  %v7852 = vadd.f32 %v6619, %v7851
  %v7853 = vpop.f32.mrb[0].mxu0
  %v7854 = vpop.f32.mrb[0].mxu0
  %v7855 = vadd.f32 %v6622, %v7854
  %v7856 = vpop.f32.mrb[0].mxu0
  %7857 = vmatprep.mubr.bf16.mxu0 %v4310
  %7858 = vmatmul.mubr.bf16.gmra.mrb[0].mxu0 %v4309
  %v7859 = vpop.f32.mrb[0].mxu0
  %v7860 = vadd.f32 %v6627, %v7859
  %v7861 = vpop.f32.mrb[0].mxu0
  %v7862 = vpop.f32.mrb[0].mxu0
  %v7863 = vadd.f32 %v6630, %v7862
  %v7864 = vpop.f32.mrb[0].mxu0
  %7865 = vmatprep.mubr.bf16.mxu0 %v4316
  %7866 = vmatmul.mubr.bf16.gmra.mrb[0].mxu0 %v4315
  %v7867 = vpop.f32.mrb[0].mxu0
  %v7868 = vadd.f32 %v6635, %v7867
  %v7869 = vpop.f32.mrb[0].mxu0
  %v7870 = vpop.f32.mrb[0].mxu0
  %v7871 = vadd.f32 %v6638, %v7870
  %v7872 = vpop.f32.mrb[0].mxu0
  %7873 = vmatprep.mubr.bf16.mxu0 %v4322
  %7874 = vmatmul.mubr.bf16.gmra.mrb[0].mxu0 %v4321
  %v7875 = vpop.f32.mrb[0].mxu0
  %v7876 = vadd.f32 %v6643, %v7875
  %v7877 = vpop.f32.mrb[0].mxu0
  %v7878 = vpop.f32.mrb[0].mxu0
  %v7879 = vadd.f32 %v6646, %v7878
  %v7880 = vpop.f32.mrb[0].mxu0
  %7881 = vmatprep.mubr.bf16.mxu0 %v4328
  %7882 = vmatmul.mubr.bf16.gmra.mrb[0].mxu0 %v4327
  %v7883 = vpop.f32.mrb[0].mxu0
  %v7884 = vadd.f32 %v6651, %v7883
  %v7885 = vpop.f32.mrb[0].mxu0
  %v7886 = vpop.f32.mrb[0].mxu0
  %v7887 = vadd.f32 %v6654, %v7886
  %v7888 = vpop.f32.mrb[0].mxu0
  %7889 = vmatprep.mubr.bf16.mxu0 %v4334
  %7890 = vmatmul.mubr.bf16.gmra.mrb[0].mxu0 %v4333
  %v7891 = vpop.f32.mrb[0].mxu0
  %v7892 = vadd.f32 %v6659, %v7891
  %v7893 = vpop.f32.mrb[0].mxu0
  %v7894 = vpop.f32.mrb[0].mxu0
  %v7895 = vadd.f32 %v6662, %v7894
  %v7896 = vpop.f32.mrb[0].mxu0
  %7897 = vmatprep.mubr.bf16.mxu0 %v4340
  %7898 = vmatmul.mubr.bf16.gmra.mrb[0].mxu0 %v4339
  %v7899 = vpop.f32.mrb[0].mxu0
  %v7900 = vadd.f32 %v6667, %v7899
  %v7901 = vpop.f32.mrb[0].mxu0
  %v7902 = vpop.f32.mrb[0].mxu0
  %v7903 = vadd.f32 %v6670, %v7902
  %v7904 = vpop.f32.mrb[0].mxu0
  %7905 = vmatprep.mubr.bf16.mxu0 %v4346
  %7906 = vmatmul.mubr.bf16.gmra.mrb[0].mxu0 %v4345
  %v7907 = vpop.f32.mrb[0].mxu0
  %v7908 = vadd.f32 %v6675, %v7907
  %v7909 = vpop.f32.mrb[0].mxu0
  %v7910 = vpop.f32.mrb[0].mxu0
  %v7911 = vadd.f32 %v6678, %v7910
  %v7912 = vpop.f32.mrb[0].mxu0
  %7913 = vmatprep.mubr.bf16.mxu0 %v4352
  %7914 = vmatmul.mubr.bf16.gmra.mrb[0].mxu0 %v4351
  %v7915 = vpop.f32.mrb[0].mxu0
  %v7916 = vadd.f32 %v6683, %v7915
  %v7917 = vpop.f32.mrb[0].mxu0
  %v7918 = vpop.f32.mrb[0].mxu0
  %v7919 = vadd.f32 %v6686, %v7918
  %v7920 = vpop.f32.mrb[0].mxu0
  %7921 = vmatprep.mubr.bf16.mxu0 %v4358
  %7922 = vmatmul.mubr.bf16.gmra.mrb[0].mxu0 %v4357
  %v7923 = vpop.f32.mrb[0].mxu0
  %v7924 = vadd.f32 %v6691, %v7923
  %v7925 = vpop.f32.mrb[0].mxu0
  %v7926 = vpop.f32.mrb[0].mxu0
  %v7927 = vadd.f32 %v6694, %v7926
  %v7928 = vpop.f32.mrb[0].mxu0
  %7929 = vmatprep.mubr.bf16.mxu0 %v4364
  %7930 = vmatmul.mubr.bf16.gmra.mrb[0].mxu0 %v4363
  %v7931 = vpop.f32.mrb[0].mxu0
  %v7932 = vadd.f32 %v6699, %v7931
  %v7933 = vpop.f32.mrb[0].mxu0
  %v7934 = vpop.f32.mrb[0].mxu0
  %v7935 = vadd.f32 %v6702, %v7934
  %v7936 = vpop.f32.mrb[0].mxu0
  %7937 = vmatprep.mubr.bf16.mxu0 %v4370
  %7938 = vmatmul.mubr.bf16.gmra.mrb[0].mxu0 %v4369
  %v7939 = vpop.f32.mrb[0].mxu0
  %v7940 = vadd.f32 %v6707, %v7939
  %v7941 = vpop.f32.mrb[0].mxu0
  %v7942 = vpop.f32.mrb[0].mxu0
  %v7943 = vadd.f32 %v6710, %v7942
  %v7944 = vpop.f32.mrb[0].mxu0
  %7945 = vmatprep.mubr.bf16.mxu0 %v4376
  %7946 = vmatmul.mubr.bf16.gmra.mrb[0].mxu0 %v4375
  %v7947 = vpop.f32.mrb[0].mxu0
  %v7948 = vadd.f32 %v6715, %v7947
  %v7949 = vpop.f32.mrb[0].mxu0
  %v7950 = vpop.f32.mrb[0].mxu0
  %v7951 = vadd.f32 %v6718, %v7950
  %v7952 = vpop.f32.mrb[0].mxu0
  %7953 = vmatprep.mubr.bf16.mxu0 %v4382
  %7954 = vmatmul.mubr.bf16.gmra.mrb[0].mxu0 %v4381
  %v7955 = vpop.f32.mrb[0].mxu0
  %v7956 = vadd.f32 %v6723, %v7955
  %v7957 = vpop.f32.mrb[0].mxu0
  %v7958 = vpop.f32.mrb[0].mxu0
  %v7959 = vadd.f32 %v6726, %v7958
  %v7960 = vpop.f32.mrb[0].mxu0
  %7961 = vmatprep.mubr.bf16.mxu0 %v4388
  %7962 = vmatmul.mubr.bf16.gmra.mrb[0].mxu0 %v4387
  %v7963 = vpop.f32.mrb[0].mxu0
  %v7964 = vadd.f32 %v6731, %v7963
  %v7965 = vpop.f32.mrb[0].mxu0
  %v7966 = vpop.f32.mrb[0].mxu0
  %v7967 = vadd.f32 %v6734, %v7966
  %v7968 = vpop.f32.mrb[0].mxu0
  %7969 = vmatprep.mubr.bf16.mxu0 %v4394
  %7970 = vmatmul.mubr.bf16.gmra.mrb[0].mxu0 %v4393
  %v7971 = vpop.f32.mrb[0].mxu0
  %v7972 = vadd.f32 %v6739, %v7971
  %v7973 = vpop.f32.mrb[0].mxu0
  %v7974 = vpop.f32.mrb[0].mxu0
  %v7975 = vadd.f32 %v6742, %v7974
  %v7976 = vpop.f32.mrb[0].mxu0
  %7977 = vmatprep.mubr.bf16.mxu0 %v4400
  %7978 = vmatmul.mubr.bf16.gmra.mrb[0].mxu0 %v4399
  %v7979 = vpop.f32.mrb[0].mxu0
  %v7980 = vadd.f32 %v6747, %v7979
  %v7981 = vpop.f32.mrb[0].mxu0
  %v7982 = vpop.f32.mrb[0].mxu0
  %v7983 = vadd.f32 %v6750, %v7982
  %v7984 = vpop.f32.mrb[0].mxu0
  %7985 = vmatprep.mubr.bf16.mxu0 %v4406
  %7986 = vmatmul.mubr.bf16.gmra.mrb[0].mxu0 %v4405
  %v7987 = vpop.f32.mrb[0].mxu0
  %v7988 = vadd.f32 %v6755, %v7987
  %v7989 = vpop.f32.mrb[0].mxu0
  %v7990 = vpop.f32.mrb[0].mxu0
  %v7991 = vadd.f32 %v6758, %v7990
  %v7992 = vpop.f32.mrb[0].mxu0
  %7993 = vmatprep.mubr.bf16.mxu0 %v4412
  %7994 = vmatmul.mubr.bf16.gmra.mrb[0].mxu0 %v4411
  %v7995 = vpop.f32.mrb[0].mxu0
  %v7996 = vadd.f32 %v6763, %v7995
  %v7997 = vpop.f32.mrb[0].mxu0
  %v7998 = vpop.f32.mrb[0].mxu0
  %v7999 = vadd.f32 %v6766, %v7998
  %v8000 = vpop.f32.mrb[0].mxu0
  %8001 = vmatprep.mubr.bf16.mxu0 %v4418
  %8002 = vmatmul.mubr.bf16.gmra.mrb[0].mxu0 %v4417
  %v8003 = vpop.f32.mrb[0].mxu0
  %v8004 = vadd.f32 %v6771, %v8003
  %v8005 = vpop.f32.mrb[0].mxu0
  %v8006 = vpop.f32.mrb[0].mxu0
  %v8007 = vadd.f32 %v6774, %v8006
  %v8008 = vpop.f32.mrb[0].mxu0
  %8009 = vmatprep.mubr.bf16.mxu0 %v4424
  %8010 = vmatmul.mubr.bf16.gmra.mrb[0].mxu0 %v4423
  %v8011 = vpop.f32.mrb[0].mxu0
  %v8012 = vadd.f32 %v6779, %v8011
  %v8013 = vpop.f32.mrb[0].mxu0
  %v8014 = vpop.f32.mrb[0].mxu0
  %v8015 = vadd.f32 %v6782, %v8014
  %v8016 = vpop.f32.mrb[0].mxu0
  %8017 = vmatprep.mubr.bf16.mxu0 %v4430
  %8018 = vmatmul.mubr.bf16.gmra.mrb[0].mxu0 %v4429
  %v8019 = vpop.f32.mrb[0].mxu0
  %v8020 = vadd.f32 %v6787, %v8019
  %v8021 = vpop.f32.mrb[0].mxu0
  %v8022 = vpop.f32.mrb[0].mxu0
  %v8023 = vadd.f32 %v6790, %v8022
  %v8024 = vpop.f32.mrb[0].mxu0
  %8025 = vmatprep.mubr.bf16.mxu0 %v4436
  %8026 = vmatmul.mubr.bf16.gmra.mrb[0].mxu0 %v4435
  %v8027 = vpop.f32.mrb[0].mxu0
  %v8028 = vadd.f32 %v6795, %v8027
  %v8029 = vpop.f32.mrb[0].mxu0
  %v8030 = vpop.f32.mrb[0].mxu0
  %v8031 = vadd.f32 %v6798, %v8030
  %v8032 = vpop.f32.mrb[0].mxu0
  %8033 = vmatprep.mubr.bf16.mxu0 %v4442
  %8034 = vmatmul.mubr.bf16.gmra.mrb[0].mxu0 %v4441
  %v8035 = vpop.f32.mrb[0].mxu0
  %v8036 = vadd.f32 %v6803, %v8035
  %v8037 = vpop.f32.mrb[0].mxu0
  %v8038 = vpop.f32.mrb[0].mxu0
  %v8039 = vadd.f32 %v6806, %v8038
  %v8040 = vpop.f32.mrb[0].mxu0
  %8041 = vmatprep.mubr.bf16.mxu0 %v4448
  %8042 = vmatmul.mubr.bf16.gmra.mrb[0].mxu0 %v4447
  %v8043 = vpop.f32.mrb[0].mxu0
  %v8044 = vadd.f32 %v6811, %v8043
  %v8045 = vpop.f32.mrb[0].mxu0
  %v8046 = vpop.f32.mrb[0].mxu0
  %v8047 = vadd.f32 %v6814, %v8046
  %v8048 = vpop.f32.mrb[0].mxu0
  %8049 = vmatprep.mubr.bf16.mxu0 %v4454
  %8050 = vmatmul.mubr.bf16.gmra.mrb[0].mxu0 %v4453
  %v8051 = vpop.f32.mrb[0].mxu0
  %v8052 = vadd.f32 %v6819, %v8051
  %v8053 = vpop.f32.mrb[0].mxu0
  %v8054 = vpop.f32.mrb[0].mxu0
  %v8055 = vadd.f32 %v6822, %v8054
  %v8056 = vpop.f32.mrb[0].mxu0
  %8057 = vmatprep.mubr.bf16.mxu0 %v4460
  %8058 = vmatmul.mubr.bf16.gmra.mrb[0].mxu0 %v4459
  %v8059 = vpop.f32.mrb[0].mxu0
  %v8060 = vadd.f32 %v6827, %v8059
  %v8061 = vpop.f32.mrb[0].mxu0
  %v8062 = vpop.f32.mrb[0].mxu0
  %v8063 = vadd.f32 %v6830, %v8062
  %v8064 = vpop.f32.mrb[0].mxu0
  %8065 = vmatprep.mubr.bf16.mxu0 %v4466
  %8066 = vmatmul.mubr.bf16.gmra.mrb[0].mxu0 %v4465
  %v8067 = vpop.f32.mrb[0].mxu0
  %v8068 = vadd.f32 %v6835, %v8067
  %v8069 = vpop.f32.mrb[0].mxu0
  %v8070 = vpop.f32.mrb[0].mxu0
  %v8071 = vadd.f32 %v6838, %v8070
  %v8072 = vpop.f32.mrb[0].mxu0
  %8073 = vmatprep.mubr.bf16.mxu0 %v4472
  %8074 = vmatmul.mubr.bf16.gmra.mrb[0].mxu0 %v4471
  %v8075 = vpop.f32.mrb[0].mxu0
  %v8076 = vadd.f32 %v6843, %v8075
  %v8077 = vpop.f32.mrb[0].mxu0
  %v8078 = vpop.f32.mrb[0].mxu0
  %v8079 = vadd.f32 %v6846, %v8078
  %v8080 = vpop.f32.mrb[0].mxu0
  %8081 = vmatprep.mubr.bf16.mxu0 %v4478
  %8082 = vmatmul.mubr.bf16.gmra.mrb[0].mxu0 %v4477
  %v8083 = vpop.f32.mrb[0].mxu0
  %v8084 = vadd.f32 %v6851, %v8083
  %v8085 = vpop.f32.mrb[0].mxu0
  %v8086 = vpop.f32.mrb[0].mxu0
  %v8087 = vadd.f32 %v6854, %v8086
  %v8088 = vpop.f32.mrb[0].mxu0
  %8089 = vmatprep.mubr.bf16.mxu0 %v4484
  %8090 = vmatmul.mubr.bf16.gmra.mrb[0].mxu0 %v4483
  %v8091 = vpop.f32.mrb[0].mxu0
  %v8092 = vadd.f32 %v6859, %v8091
  %v8093 = vpop.f32.mrb[0].mxu0
  %v8094 = vpop.f32.mrb[0].mxu0
  %v8095 = vadd.f32 %v6862, %v8094
  %v8096 = vpop.f32.mrb[0].mxu0
  %8097 = vmatprep.mubr.bf16.mxu0 %v4490
  %8098 = vmatmul.mubr.bf16.gmra.mrb[0].mxu0 %v4489
  %v8099 = vpop.f32.mrb[0].mxu0
  %v8100 = vadd.f32 %v6867, %v8099
  %v8101 = vpop.f32.mrb[0].mxu0
  %v8102 = vpop.f32.mrb[0].mxu0
  %v8103 = vadd.f32 %v6870, %v8102
  %v8104 = vpop.f32.mrb[0].mxu0
  %8105 = vmatprep.mubr.bf16.mxu0 %v4496
  %8106 = vmatmul.mubr.bf16.gmra.mrb[0].mxu0 %v4495
  %v8107 = vpop.f32.mrb[0].mxu0
  %v8108 = vadd.f32 %v6875, %v8107
  %v8109 = vpop.f32.mrb[0].mxu0
  %v8110 = vpop.f32.mrb[0].mxu0
  %v8111 = vadd.f32 %v6878, %v8110
  %v8112 = vpop.f32.mrb[0].mxu0
  %8113 = vmatprep.mubr.bf16.mxu0 %v4502
  %8114 = vmatmul.mubr.bf16.gmra.mrb[0].mxu0 %v4501
  %v8115 = vpop.f32.mrb[0].mxu0
  %v8116 = vadd.f32 %v6883, %v8115
  %v8117 = vpop.f32.mrb[0].mxu0
  %v8118 = vpop.f32.mrb[0].mxu0
  %v8119 = vadd.f32 %v6886, %v8118
  %v8120 = vpop.f32.mrb[0].mxu0
  %8121 = vmatprep.mubr.bf16.mxu0 %v4508
  %8122 = vmatmul.mubr.bf16.gmra.mrb[0].mxu0 %v4507
  %v8123 = vpop.f32.mrb[0].mxu0
  %v8124 = vadd.f32 %v6891, %v8123
  %v8125 = vpop.f32.mrb[0].mxu0
  %v8126 = vpop.f32.mrb[0].mxu0
  %v8127 = vadd.f32 %v6894, %v8126
  %v8128 = vpop.f32.mrb[0].mxu0
  %8129 = vmatprep.mubr.bf16.mxu0 %v4514
  %8130 = vmatmul.mubr.bf16.gmra.mrb[0].mxu0 %v4513
  %v8131 = vpop.f32.mrb[0].mxu0
  %v8132 = vadd.f32 %v6899, %v8131
  %v8133 = vpop.f32.mrb[0].mxu0
  %v8134 = vpop.f32.mrb[0].mxu0
  %v8135 = vadd.f32 %v6902, %v8134
  %v8136 = vpop.f32.mrb[0].mxu0
  %8137 = vmatprep.mubr.bf16.mxu0 %v4520
  %8138 = vmatmul.mubr.bf16.gmra.mrb[0].mxu0 %v4519
  %v8139 = vpop.f32.mrb[0].mxu0
  %v8140 = vadd.f32 %v6907, %v8139
  %v8141 = vpop.f32.mrb[0].mxu0
  %v8142 = vpop.f32.mrb[0].mxu0
  %v8143 = vadd.f32 %v6910, %v8142
  %v8144 = vpop.f32.mrb[0].mxu0
  %8145 = vmatprep.mubr.bf16.mxu0 %v4526
  %8146 = vmatmul.mubr.bf16.gmra.mrb[0].mxu0 %v4525
  %v8147 = vpop.f32.mrb[0].mxu0
  %v8148 = vadd.f32 %v6915, %v8147
  %v8149 = vpop.f32.mrb[0].mxu0
  %v8150 = vpop.f32.mrb[0].mxu0
  %v8151 = vadd.f32 %v6918, %v8150
  %v8152 = vpop.f32.mrb[0].mxu0
  %8153 = vmatprep.mubr.bf16.mxu0 %v4532
  %8154 = vmatmul.mubr.bf16.gmra.mrb[0].mxu0 %v4531
  %v8155 = vpop.f32.mrb[0].mxu0
  %v8156 = vadd.f32 %v6923, %v8155
  %v8157 = vpop.f32.mrb[0].mxu0
  %v8158 = vpop.f32.mrb[0].mxu0
  %v8159 = vadd.f32 %v6926, %v8158
  %v8160 = vpop.f32.mrb[0].mxu0
  %8161 = vmatprep.mubr.bf16.mxu0 %v4538
  %8162 = vmatmul.mubr.bf16.gmra.mrb[0].mxu0 %v4537
  %v8163 = vpop.f32.mrb[0].mxu0
  %v8164 = vadd.f32 %v6931, %v8163
  %v8165 = vpop.f32.mrb[0].mxu0
  %v8166 = vpop.f32.mrb[0].mxu0
  %v8167 = vadd.f32 %v6934, %v8166
  %v8168 = vpop.f32.mrb[0].mxu0
  %8169 = vmatprep.mubr.bf16.mxu0 %v4544
  %8170 = vmatmul.mubr.bf16.gmra.mrb[0].mxu0 %v4543
  %v8171 = vpop.f32.mrb[0].mxu0
  %v8172 = vadd.f32 %v6939, %v8171
  %v8173 = vpop.f32.mrb[0].mxu0
  %v8174 = vpop.f32.mrb[0].mxu0
  %v8175 = vadd.f32 %v6942, %v8174
  %v8176 = vpop.f32.mrb[0].mxu0
  %8177 = vmatprep.mubr.bf16.mxu0 %v4550
  %8178 = vmatmul.mubr.bf16.gmra.mrb[0].mxu0 %v4549
  %v8179 = vpop.f32.mrb[0].mxu0
  %v8180 = vadd.f32 %v6947, %v8179
  %v8181 = vpop.f32.mrb[0].mxu0
  %v8182 = vpop.f32.mrb[0].mxu0
  %v8183 = vadd.f32 %v6950, %v8182
  %v8184 = vpop.f32.mrb[0].mxu0
  %8185 = vmatprep.mubr.bf16.mxu0 %v4556
  %8186 = vmatmul.mubr.bf16.gmra.mrb[0].mxu0 %v4555
  %v8187 = vpop.f32.mrb[0].mxu0
  %v8188 = vadd.f32 %v6955, %v8187
  %v8189 = vpop.f32.mrb[0].mxu0
  %v8190 = vpop.f32.mrb[0].mxu0
  %v8191 = vadd.f32 %v6958, %v8190
  %v8192 = vpop.f32.mrb[0].mxu0
  %8193 = vmatprep.mubr.bf16.mxu0 %v4562
  %8194 = vmatmul.mubr.bf16.gmra.mrb[0].mxu0 %v4561
  %v8195 = vpop.f32.mrb[0].mxu0
  %v8196 = vadd.f32 %v6963, %v8195
  %v8197 = vpop.f32.mrb[0].mxu0
  %v8198 = vpop.f32.mrb[0].mxu0
  %v8199 = vadd.f32 %v6966, %v8198
  %v8200 = vpop.f32.mrb[0].mxu0
  %8201 = vmatprep.mubr.bf16.mxu0 %v4568
  %8202 = vmatmul.mubr.bf16.gmra.mrb[0].mxu0 %v4567
  %v8203 = vpop.f32.mrb[0].mxu0
  %v8204 = vadd.f32 %v6971, %v8203
  %v8205 = vpop.f32.mrb[0].mxu0
  %v8206 = vpop.f32.mrb[0].mxu0
  %v8207 = vadd.f32 %v6974, %v8206
  %v8208 = vpop.f32.mrb[0].mxu0
  %8209 = vmatprep.mubr.bf16.mxu0 %v4574
  %8210 = vmatmul.mubr.bf16.gmra.mrb[0].mxu0 %v4573
  %v8211 = vpop.f32.mrb[0].mxu0
  %v8212 = vadd.f32 %v6979, %v8211
  %v8213 = vpop.f32.mrb[0].mxu0
  %v8214 = vpop.f32.mrb[0].mxu0
  %v8215 = vadd.f32 %v6982, %v8214
  %v8216 = vpop.f32.mrb[0].mxu0
  %8217 = vmatprep.mubr.bf16.mxu0 %v4580
  %8218 = vmatmul.mubr.bf16.gmra.mrb[0].mxu0 %v4579
  %v8219 = vpop.f32.mrb[0].mxu0
  %v8220 = vadd.f32 %v6987, %v8219
  %v8221 = vpop.f32.mrb[0].mxu0
  %v8222 = vpop.f32.mrb[0].mxu0
  %v8223 = vadd.f32 %v6990, %v8222
  %v8224 = vpop.f32.mrb[0].mxu0
  %8225 = vmatprep.mubr.bf16.mxu0 %v4586
  %8226 = vmatmul.mubr.bf16.gmra.mrb[0].mxu0 %v4585
  %v8227 = vpop.f32.mrb[0].mxu0
  %v8228 = vadd.f32 %v6995, %v8227
  %v8229 = vpop.f32.mrb[0].mxu0
  %v8230 = vpop.f32.mrb[0].mxu0
  %v8231 = vadd.f32 %v6998, %v8230
  %v8232 = vpop.f32.mrb[0].mxu0
  %8233 = vmatprep.mubr.bf16.mxu0 %v4592
  %8234 = vmatmul.mubr.bf16.gmra.mrb[0].mxu0 %v4591
  %v8235 = vpop.f32.mrb[0].mxu0
  %v8236 = vadd.f32 %v7003, %v8235
  %v8237 = vpop.f32.mrb[0].mxu0
  %v8238 = vpop.f32.mrb[0].mxu0
  %v8239 = vadd.f32 %v7006, %v8238
  %v8240 = vpop.f32.mrb[0].mxu0
  %8241 = vmatprep.mubr.bf16.mxu0 %v4598
  %8242 = vmatmul.mubr.bf16.gmra.mrb[0].mxu0 %v4597
  %v8243 = vpop.f32.mrb[0].mxu0
  %v8244 = vadd.f32 %v7011, %v8243
  %v8245 = vpop.f32.mrb[0].mxu0
  %v8246 = vpop.f32.mrb[0].mxu0
  %v8247 = vadd.f32 %v7014, %v8246
  %v8248 = vpop.f32.mrb[0].mxu0
  %8249 = vmatprep.mubr.bf16.mxu0 %v4604
  %8250 = vmatmul.mubr.bf16.gmra.mrb[0].mxu0 %v4603
  %v8251 = vpop.f32.mrb[0].mxu0
  %v8252 = vadd.f32 %v7019, %v8251
  %v8253 = vpop.f32.mrb[0].mxu0
  %v8254 = vpop.f32.mrb[0].mxu0
  %v8255 = vadd.f32 %v7022, %v8254
  %v8256 = vpop.f32.mrb[0].mxu0
  %8257 = vmatprep.mubr.bf16.mxu0 %v4610
  %8258 = vmatmul.mubr.bf16.gmra.mrb[0].mxu0 %v4609
  %v8259 = vpop.f32.mrb[0].mxu0
  %v8260 = vadd.f32 %v7027, %v8259
  %v8261 = vpop.f32.mrb[0].mxu0
  %v8262 = vpop.f32.mrb[0].mxu0
  %v8263 = vadd.f32 %v7030, %v8262
  %v8264 = vpop.f32.mrb[0].mxu0
  %8265 = vmatprep.mubr.bf16.mxu0 %v4616
  %8266 = vmatmul.mubr.bf16.gmra.mrb[0].mxu0 %v4615
  %v8267 = vpop.f32.mrb[0].mxu0
  %v8268 = vadd.f32 %v7035, %v8267
  %v8269 = vpop.f32.mrb[0].mxu0
  %v8270 = vpop.f32.mrb[0].mxu0
  %v8271 = vadd.f32 %v7038, %v8270
  %v8272 = vpop.f32.mrb[0].mxu0
  %8273 = vmatprep.mubr.bf16.mxu0 %v4622
  %8274 = vmatmul.mubr.bf16.gmra.mrb[0].mxu0 %v4621
  %v8275 = vpop.f32.mrb[0].mxu0
  %v8276 = vadd.f32 %v7043, %v8275
  %v8277 = vpop.f32.mrb[0].mxu0
  %v8278 = vpop.f32.mrb[0].mxu0
  %v8279 = vadd.f32 %v7046, %v8278
  %v8280 = vpop.f32.mrb[0].mxu0
  %8281 = vmatprep.mubr.bf16.mxu0 %v4628
  %8282 = vmatmul.mubr.bf16.gmra.mrb[0].mxu0 %v4627
  %v8283 = vpop.f32.mrb[0].mxu0
  %v8284 = vadd.f32 %v7051, %v8283
  %v8285 = vpop.f32.mrb[0].mxu0
  %v8286 = vpop.f32.mrb[0].mxu0
  %v8287 = vadd.f32 %v7054, %v8286
  %v8288 = vpop.f32.mrb[0].mxu0
  %8289 = vmatprep.mubr.bf16.mxu0 %v4634
  %8290 = vmatmul.mubr.bf16.gmra.mrb[0].mxu0 %v4633
  %v8291 = vpop.f32.mrb[0].mxu0
  %v8292 = vadd.f32 %v7059, %v8291
  %v8293 = vpop.f32.mrb[0].mxu0
  %v8294 = vpop.f32.mrb[0].mxu0
  %v8295 = vadd.f32 %v7062, %v8294
  %v8296 = vpop.f32.mrb[0].mxu0
  %8297 = vmatprep.mubr.bf16.mxu0 %v4640
  %8298 = vmatmul.mubr.bf16.gmra.mrb[0].mxu0 %v4639
  %v8299 = vpop.f32.mrb[0].mxu0
  %v8300 = vadd.f32 %v7067, %v8299
  %v8301 = vpop.f32.mrb[0].mxu0
  %v8302 = vpop.f32.mrb[0].mxu0
  %v8303 = vadd.f32 %v7070, %v8302
  %v8304 = vpop.f32.mrb[0].mxu0
  %8305 = vmatprep.mubr.bf16.mxu0 %v4646
  %8306 = vmatmul.mubr.bf16.gmra.mrb[0].mxu0 %v4645
  %v8307 = vpop.f32.mrb[0].mxu0
  %v8308 = vadd.f32 %v7075, %v8307
  %v8309 = vpop.f32.mrb[0].mxu0
  %v8310 = vpop.f32.mrb[0].mxu0
  %v8311 = vadd.f32 %v7078, %v8310
  %v8312 = vpop.f32.mrb[0].mxu0
  %8313 = vmatprep.mubr.bf16.mxu0 %v4652
  %8314 = vmatmul.mubr.bf16.gmra.mrb[0].mxu0 %v4651
  %v8315 = vpop.f32.mrb[0].mxu0
  %v8316 = vadd.f32 %v7083, %v8315
  %v8317 = vpop.f32.mrb[0].mxu0
  %v8318 = vpop.f32.mrb[0].mxu0
  %v8319 = vadd.f32 %v7086, %v8318
  %v8320 = vpop.f32.mrb[0].mxu0
  %8321 = vmatprep.mubr.bf16.mxu0 %v4658
  %8322 = vmatmul.mubr.bf16.gmra.mrb[0].mxu0 %v4657
  %v8323 = vpop.f32.mrb[0].mxu0
  %v8324 = vadd.f32 %v7091, %v8323
  %v8325 = vpop.f32.mrb[0].mxu0
  %v8326 = vpop.f32.mrb[0].mxu0
  %v8327 = vadd.f32 %v7094, %v8326
  %v8328 = vpop.f32.mrb[0].mxu0
  %8329 = vmatprep.mubr.bf16.mxu0 %v4664
  %8330 = vmatmul.mubr.bf16.gmra.mrb[0].mxu0 %v4663
  %v8331 = vpop.f32.mrb[0].mxu0
  %v8332 = vadd.f32 %v7099, %v8331
  %v8333 = vpop.f32.mrb[0].mxu0
  %v8334 = vpop.f32.mrb[0].mxu0
  %v8335 = vadd.f32 %v7102, %v8334
  %v8336 = vpop.f32.mrb[0].mxu0
  %8337 = vdwg.mxu0
  %8338 = vmatprep.subr.bf16.mxu0 0
  %8339 = vmatpush1.bf16.msra.mxu0 %v156
  %8340 = vmatprep.subr.bf16.mxu0 0
  %8341 = vmatpush1.bf16.msra.mxu0 %v157
  %8342 = vmatprep.subr.bf16.mxu0 0
  %8343 = vmatpush1.bf16.msra.mxu0 %v158
  %8344 = vmatprep.subr.bf16.mxu0 0
  %8345 = vmatpush1.bf16.msra.mxu0 %v159
  %8346 = vmatprep.subr.bf16.mxu0 0
  %8347 = vmatpush1.bf16.msra.mxu0 %v160
  %8348 = vmatprep.subr.bf16.mxu0 0
  %8349 = vmatpush1.bf16.msra.mxu0 %v161
  %8350 = vmatprep.subr.bf16.mxu0 0
  %8351 = vmatpush1.bf16.msra.mxu0 %v162
  %8352 = vmatprep.subr.bf16.mxu0 0
  %8353 = vmatpush1.bf16.msra.mxu0 %v163
  %8354 = vmatprep.subr.bf16.mxu0 0
  %8355 = vmatpush1.bf16.msra.mxu0 %v164
  %8356 = vmatprep.subr.bf16.mxu0 0
  %8357 = vmatpush1.bf16.msra.mxu0 %v165
  %8358 = vmatprep.subr.bf16.mxu0 0
  %8359 = vmatpush1.bf16.msra.mxu0 %v5870
  %8360 = vmatprep.subr.bf16.mxu0 0
  %8361 = vmatpush1.bf16.msra.mxu0 0
  %8362 = vmatprep.subr.bf16.mxu0 0
  %8363 = vmatpush1.bf16.msra.mxu0 0
  %8364 = vmatprep.subr.bf16.mxu0 0
  %8365 = vmatpush1.bf16.msra.mxu0 0
  %8366 = vmatprep.subr.bf16.mxu0 0
  %8367 = vmatpush1.bf16.msra.mxu0 0
  %8368 = vmatprep.subr.bf16.mxu0 0
  %8369 = vmatpush1.bf16.msra.mxu0 0
  %8370 = vmatprep.mubr.bf16.mxu0 %v5419
  %8371 = vmatmul.mubr.bf16.gmra.mrb[0].mxu0 %v3771
  %v8372 = vpop.f32.mrb[0].mxu0
  %v8373 = vadd.f32 %v7140, %v8372
  %v8374 = vpop.f32.mrb[0].mxu0
  %v8375 = vpop.f32.mrb[0].mxu0
  %v8376 = vadd.f32 %v7143, %v8375
  %v8377 = vpop.f32.mrb[0].mxu0
  %8378 = vmatprep.mubr.bf16.mxu0 %v5422
  %8379 = vmatmul.mubr.bf16.gmra.mrb[0].mxu0 %v3777
  %v8380 = vpop.f32.mrb[0].mxu0
  %v8381 = vadd.f32 %v7148, %v8380
  %v8382 = vpop.f32.mrb[0].mxu0
  %v8383 = vpop.f32.mrb[0].mxu0
  %v8384 = vadd.f32 %v7151, %v8383
  %v8385 = vpop.f32.mrb[0].mxu0
  %8386 = vmatprep.mubr.bf16.mxu0 %v5425
  %8387 = vmatmul.mubr.bf16.gmra.mrb[0].mxu0 %v3783
  %v8388 = vpop.f32.mrb[0].mxu0
  %v8389 = vadd.f32 %v7156, %v8388
  %v8390 = vpop.f32.mrb[0].mxu0
  %v8391 = vpop.f32.mrb[0].mxu0
  %v8392 = vadd.f32 %v7159, %v8391
  %v8393 = vpop.f32.mrb[0].mxu0
  %8394 = vmatprep.mubr.bf16.mxu0 %v5428
  %8395 = vmatmul.mubr.bf16.gmra.mrb[0].mxu0 %v3789
  %v8396 = vpop.f32.mrb[0].mxu0
  %v8397 = vadd.f32 %v7164, %v8396
  %v8398 = vpop.f32.mrb[0].mxu0
  %v8399 = vpop.f32.mrb[0].mxu0
  %v8400 = vadd.f32 %v7167, %v8399
  %v8401 = vpop.f32.mrb[0].mxu0
  %8402 = vmatprep.mubr.bf16.mxu0 %v5431
  %8403 = vmatmul.mubr.bf16.gmra.mrb[0].mxu0 %v3795
  %v8404 = vpop.f32.mrb[0].mxu0
  %v8405 = vadd.f32 %v7172, %v8404
  %v8406 = vpop.f32.mrb[0].mxu0
  %v8407 = vpop.f32.mrb[0].mxu0
  %v8408 = vadd.f32 %v7175, %v8407
  %v8409 = vpop.f32.mrb[0].mxu0
  %8410 = vmatprep.mubr.bf16.mxu0 %v5434
  %8411 = vmatmul.mubr.bf16.gmra.mrb[0].mxu0 %v3801
  %v8412 = vpop.f32.mrb[0].mxu0
  %v8413 = vadd.f32 %v7180, %v8412
  %v8414 = vpop.f32.mrb[0].mxu0
  %v8415 = vpop.f32.mrb[0].mxu0
  %v8416 = vadd.f32 %v7183, %v8415
  %v8417 = vpop.f32.mrb[0].mxu0
  %8418 = vmatprep.mubr.bf16.mxu0 %v5437
  %8419 = vmatmul.mubr.bf16.gmra.mrb[0].mxu0 %v3807
  %v8420 = vpop.f32.mrb[0].mxu0
  %v8421 = vadd.f32 %v7188, %v8420
  %v8422 = vpop.f32.mrb[0].mxu0
  %v8423 = vpop.f32.mrb[0].mxu0
  %v8424 = vadd.f32 %v7191, %v8423
  %v8425 = vpop.f32.mrb[0].mxu0
  %8426 = vmatprep.mubr.bf16.mxu0 %v5440
  %8427 = vmatmul.mubr.bf16.gmra.mrb[0].mxu0 %v3813
  %v8428 = vpop.f32.mrb[0].mxu0
  %v8429 = vadd.f32 %v7196, %v8428
  %v8430 = vpop.f32.mrb[0].mxu0
  %v8431 = vpop.f32.mrb[0].mxu0
  %v8432 = vadd.f32 %v7199, %v8431
  %v8433 = vpop.f32.mrb[0].mxu0
  %8434 = vmatprep.mubr.bf16.mxu0 %v5443
  %8435 = vmatmul.mubr.bf16.gmra.mrb[0].mxu0 %v3819
  %v8436 = vpop.f32.mrb[0].mxu0
  %v8437 = vadd.f32 %v7204, %v8436
  %v8438 = vpop.f32.mrb[0].mxu0
  %v8439 = vpop.f32.mrb[0].mxu0
  %v8440 = vadd.f32 %v7207, %v8439
  %v8441 = vpop.f32.mrb[0].mxu0
  %8442 = vmatprep.mubr.bf16.mxu0 %v5446
  %8443 = vmatmul.mubr.bf16.gmra.mrb[0].mxu0 %v3825
  %v8444 = vpop.f32.mrb[0].mxu0
  %v8445 = vadd.f32 %v7212, %v8444
  %v8446 = vpop.f32.mrb[0].mxu0
  %v8447 = vpop.f32.mrb[0].mxu0
  %v8448 = vadd.f32 %v7215, %v8447
  %v8449 = vpop.f32.mrb[0].mxu0
  %8450 = vmatprep.mubr.bf16.mxu0 %v5449
  %8451 = vmatmul.mubr.bf16.gmra.mrb[0].mxu0 %v3831
  %v8452 = vpop.f32.mrb[0].mxu0
  %v8453 = vadd.f32 %v7220, %v8452
  %v8454 = vpop.f32.mrb[0].mxu0
  %v8455 = vpop.f32.mrb[0].mxu0
  %v8456 = vadd.f32 %v7223, %v8455
  %v8457 = vpop.f32.mrb[0].mxu0
  %8458 = vmatprep.mubr.bf16.mxu0 %v5452
  %8459 = vmatmul.mubr.bf16.gmra.mrb[0].mxu0 %v3837
  %v8460 = vpop.f32.mrb[0].mxu0
  %v8461 = vadd.f32 %v7228, %v8460
  %v8462 = vpop.f32.mrb[0].mxu0
  %v8463 = vpop.f32.mrb[0].mxu0
  %v8464 = vadd.f32 %v7231, %v8463
  %v8465 = vpop.f32.mrb[0].mxu0
  %8466 = vmatprep.mubr.bf16.mxu0 %v5455
  %8467 = vmatmul.mubr.bf16.gmra.mrb[0].mxu0 %v3843
  %v8468 = vpop.f32.mrb[0].mxu0
  %v8469 = vadd.f32 %v7236, %v8468
  %v8470 = vpop.f32.mrb[0].mxu0
  %v8471 = vpop.f32.mrb[0].mxu0
  %v8472 = vadd.f32 %v7239, %v8471
  %v8473 = vpop.f32.mrb[0].mxu0
  %8474 = vmatprep.mubr.bf16.mxu0 %v5458
  %8475 = vmatmul.mubr.bf16.gmra.mrb[0].mxu0 %v3849
  %v8476 = vpop.f32.mrb[0].mxu0
  %v8477 = vadd.f32 %v7244, %v8476
  %v8478 = vpop.f32.mrb[0].mxu0
  %v8479 = vpop.f32.mrb[0].mxu0
  %v8480 = vadd.f32 %v7247, %v8479
  %v8481 = vpop.f32.mrb[0].mxu0
  %8482 = vmatprep.mubr.bf16.mxu0 %v5461
  %8483 = vmatmul.mubr.bf16.gmra.mrb[0].mxu0 %v3855
  %v8484 = vpop.f32.mrb[0].mxu0
  %v8485 = vadd.f32 %v7252, %v8484
  %v8486 = vpop.f32.mrb[0].mxu0
  %v8487 = vpop.f32.mrb[0].mxu0
  %v8488 = vadd.f32 %v7255, %v8487
  %v8489 = vpop.f32.mrb[0].mxu0
  %8490 = vmatprep.mubr.bf16.mxu0 %v5464
  %8491 = vmatmul.mubr.bf16.gmra.mrb[0].mxu0 %v3861
  %v8492 = vpop.f32.mrb[0].mxu0
  %v8493 = vadd.f32 %v7260, %v8492
  %v8494 = vpop.f32.mrb[0].mxu0
  %v8495 = vpop.f32.mrb[0].mxu0
  %v8496 = vadd.f32 %v7263, %v8495
  %v8497 = vpop.f32.mrb[0].mxu0
  %8498 = vmatprep.mubr.bf16.mxu0 %v5467
  %8499 = vmatmul.mubr.bf16.gmra.mrb[0].mxu0 %v3867
  %v8500 = vpop.f32.mrb[0].mxu0
  %v8501 = vadd.f32 %v7268, %v8500
  %v8502 = vpop.f32.mrb[0].mxu0
  %v8503 = vpop.f32.mrb[0].mxu0
  %v8504 = vadd.f32 %v7271, %v8503
  %v8505 = vpop.f32.mrb[0].mxu0
  %8506 = vmatprep.mubr.bf16.mxu0 %v5470
  %8507 = vmatmul.mubr.bf16.gmra.mrb[0].mxu0 %v3873
  %v8508 = vpop.f32.mrb[0].mxu0
  %v8509 = vadd.f32 %v7276, %v8508
  %v8510 = vpop.f32.mrb[0].mxu0
  %v8511 = vpop.f32.mrb[0].mxu0
  %v8512 = vadd.f32 %v7279, %v8511
  %v8513 = vpop.f32.mrb[0].mxu0
  %8514 = vmatprep.mubr.bf16.mxu0 %v5473
  %8515 = vmatmul.mubr.bf16.gmra.mrb[0].mxu0 %v3879
  %v8516 = vpop.f32.mrb[0].mxu0
  %v8517 = vadd.f32 %v7284, %v8516
  %v8518 = vpop.f32.mrb[0].mxu0
  %v8519 = vpop.f32.mrb[0].mxu0
  %v8520 = vadd.f32 %v7287, %v8519
  %v8521 = vpop.f32.mrb[0].mxu0
  %8522 = vmatprep.mubr.bf16.mxu0 %v5476
  %8523 = vmatmul.mubr.bf16.gmra.mrb[0].mxu0 %v3885
  %v8524 = vpop.f32.mrb[0].mxu0
  %v8525 = vadd.f32 %v7292, %v8524
  %v8526 = vpop.f32.mrb[0].mxu0
  %v8527 = vpop.f32.mrb[0].mxu0
  %v8528 = vadd.f32 %v7295, %v8527
  %v8529 = vpop.f32.mrb[0].mxu0
  %8530 = vmatprep.mubr.bf16.mxu0 %v5479
  %8531 = vmatmul.mubr.bf16.gmra.mrb[0].mxu0 %v3891
  %v8532 = vpop.f32.mrb[0].mxu0
  %v8533 = vadd.f32 %v7300, %v8532
  %v8534 = vpop.f32.mrb[0].mxu0
  %v8535 = vpop.f32.mrb[0].mxu0
  %v8536 = vadd.f32 %v7303, %v8535
  %v8537 = vpop.f32.mrb[0].mxu0
  %8538 = vmatprep.mubr.bf16.mxu0 %v5482
  %8539 = vmatmul.mubr.bf16.gmra.mrb[0].mxu0 %v3897
  %v8540 = vpop.f32.mrb[0].mxu0
  %v8541 = vadd.f32 %v7308, %v8540
  %v8542 = vpop.f32.mrb[0].mxu0
  %v8543 = vpop.f32.mrb[0].mxu0
  %v8544 = vadd.f32 %v7311, %v8543
  %v8545 = vpop.f32.mrb[0].mxu0
  %8546 = vmatprep.mubr.bf16.mxu0 %v5485
  %8547 = vmatmul.mubr.bf16.gmra.mrb[0].mxu0 %v3903
  %v8548 = vpop.f32.mrb[0].mxu0
  %v8549 = vadd.f32 %v7316, %v8548
  %v8550 = vpop.f32.mrb[0].mxu0
  %v8551 = vpop.f32.mrb[0].mxu0
  %v8552 = vadd.f32 %v7319, %v8551
  %v8553 = vpop.f32.mrb[0].mxu0
  %8554 = vmatprep.mubr.bf16.mxu0 %v5488
  %8555 = vmatmul.mubr.bf16.gmra.mrb[0].mxu0 %v3909
  %v8556 = vpop.f32.mrb[0].mxu0
  %v8557 = vadd.f32 %v7324, %v8556
  %v8558 = vpop.f32.mrb[0].mxu0
  %v8559 = vpop.f32.mrb[0].mxu0
  %v8560 = vadd.f32 %v7327, %v8559
  %v8561 = vpop.f32.mrb[0].mxu0
  %8562 = vmatprep.mubr.bf16.mxu0 %v5491
  %8563 = vmatmul.mubr.bf16.gmra.mrb[0].mxu0 %v3915
  %v8564 = vpop.f32.mrb[0].mxu0
  %v8565 = vadd.f32 %v7332, %v8564
  %v8566 = vpop.f32.mrb[0].mxu0
  %v8567 = vpop.f32.mrb[0].mxu0
  %v8568 = vadd.f32 %v7335, %v8567
  %v8569 = vpop.f32.mrb[0].mxu0
  %8570 = vmatprep.mubr.bf16.mxu0 %v5494
  %8571 = vmatmul.mubr.bf16.gmra.mrb[0].mxu0 %v3921
  %v8572 = vpop.f32.mrb[0].mxu0
  %v8573 = vadd.f32 %v7340, %v8572
  %v8574 = vpop.f32.mrb[0].mxu0
  %v8575 = vpop.f32.mrb[0].mxu0
  %v8576 = vadd.f32 %v7343, %v8575
  %v8577 = vpop.f32.mrb[0].mxu0
  %8578 = vmatprep.mubr.bf16.mxu0 %v5497
  %8579 = vmatmul.mubr.bf16.gmra.mrb[0].mxu0 %v3927
  %v8580 = vpop.f32.mrb[0].mxu0
  %v8581 = vadd.f32 %v7348, %v8580
  %v8582 = vpop.f32.mrb[0].mxu0
  %v8583 = vpop.f32.mrb[0].mxu0
  %v8584 = vadd.f32 %v7351, %v8583
  %v8585 = vpop.f32.mrb[0].mxu0
  %8586 = vmatprep.mubr.bf16.mxu0 %v5500
  %8587 = vmatmul.mubr.bf16.gmra.mrb[0].mxu0 %v3933
  %v8588 = vpop.f32.mrb[0].mxu0
  %v8589 = vadd.f32 %v7356, %v8588
  %v8590 = vpop.f32.mrb[0].mxu0
  %v8591 = vpop.f32.mrb[0].mxu0
  %v8592 = vadd.f32 %v7359, %v8591
  %v8593 = vpop.f32.mrb[0].mxu0
  %8594 = vmatprep.mubr.bf16.mxu0 %v5503
  %8595 = vmatmul.mubr.bf16.gmra.mrb[0].mxu0 %v3939
  %v8596 = vpop.f32.mrb[0].mxu0
  %v8597 = vadd.f32 %v7364, %v8596
  %v8598 = vpop.f32.mrb[0].mxu0
  %v8599 = vpop.f32.mrb[0].mxu0
  %v8600 = vadd.f32 %v7367, %v8599
  %v8601 = vpop.f32.mrb[0].mxu0
  %8602 = vmatprep.mubr.bf16.mxu0 %v5506
  %8603 = vmatmul.mubr.bf16.gmra.mrb[0].mxu0 %v3945
  %v8604 = vpop.f32.mrb[0].mxu0
  %v8605 = vadd.f32 %v7372, %v8604
  %v8606 = vpop.f32.mrb[0].mxu0
  %v8607 = vpop.f32.mrb[0].mxu0
  %v8608 = vadd.f32 %v7375, %v8607
  %v8609 = vpop.f32.mrb[0].mxu0
  %8610 = vmatprep.mubr.bf16.mxu0 %v5509
  %8611 = vmatmul.mubr.bf16.gmra.mrb[0].mxu0 %v3951
  %v8612 = vpop.f32.mrb[0].mxu0
  %v8613 = vadd.f32 %v7380, %v8612
  %v8614 = vpop.f32.mrb[0].mxu0
  %v8615 = vpop.f32.mrb[0].mxu0
  %v8616 = vadd.f32 %v7383, %v8615
  %v8617 = vpop.f32.mrb[0].mxu0
  %8618 = vmatprep.mubr.bf16.mxu0 %v5512
  %8619 = vmatmul.mubr.bf16.gmra.mrb[0].mxu0 %v3957
  %v8620 = vpop.f32.mrb[0].mxu0
  %v8621 = vadd.f32 %v7388, %v8620
  %v8622 = vpop.f32.mrb[0].mxu0
  %v8623 = vpop.f32.mrb[0].mxu0
  %v8624 = vadd.f32 %v7391, %v8623
  %v8625 = vpop.f32.mrb[0].mxu0
  %8626 = vmatprep.mubr.bf16.mxu0 %v5515
  %8627 = vmatmul.mubr.bf16.gmra.mrb[0].mxu0 %v3963
  %v8628 = vpop.f32.mrb[0].mxu0
  %v8629 = vadd.f32 %v7396, %v8628
  %v8630 = vpop.f32.mrb[0].mxu0
  %v8631 = vpop.f32.mrb[0].mxu0
  %v8632 = vadd.f32 %v7399, %v8631
  %v8633 = vpop.f32.mrb[0].mxu0
  %8634 = vmatprep.mubr.bf16.mxu0 %v5518
  %8635 = vmatmul.mubr.bf16.gmra.mrb[0].mxu0 %v3969
  %v8636 = vpop.f32.mrb[0].mxu0
  %v8637 = vadd.f32 %v7404, %v8636
  %v8638 = vpop.f32.mrb[0].mxu0
  %v8639 = vpop.f32.mrb[0].mxu0
  %v8640 = vadd.f32 %v7407, %v8639
  %v8641 = vpop.f32.mrb[0].mxu0
  %8642 = vmatprep.mubr.bf16.mxu0 %v5521
  %8643 = vmatmul.mubr.bf16.gmra.mrb[0].mxu0 %v3975
  %v8644 = vpop.f32.mrb[0].mxu0
  %v8645 = vadd.f32 %v7412, %v8644
  %v8646 = vpop.f32.mrb[0].mxu0
  %v8647 = vpop.f32.mrb[0].mxu0
  %v8648 = vadd.f32 %v7415, %v8647
  %v8649 = vpop.f32.mrb[0].mxu0
  %8650 = vmatprep.mubr.bf16.mxu0 %v5524
  %8651 = vmatmul.mubr.bf16.gmra.mrb[0].mxu0 %v3981
  %v8652 = vpop.f32.mrb[0].mxu0
  %v8653 = vadd.f32 %v7420, %v8652
  %v8654 = vpop.f32.mrb[0].mxu0
  %v8655 = vpop.f32.mrb[0].mxu0
  %v8656 = vadd.f32 %v7423, %v8655
  %v8657 = vpop.f32.mrb[0].mxu0
  %8658 = vmatprep.mubr.bf16.mxu0 %v5527
  %8659 = vmatmul.mubr.bf16.gmra.mrb[0].mxu0 %v3987
  %v8660 = vpop.f32.mrb[0].mxu0
  %v8661 = vadd.f32 %v7428, %v8660
  %v8662 = vpop.f32.mrb[0].mxu0
  %v8663 = vpop.f32.mrb[0].mxu0
  %v8664 = vadd.f32 %v7431, %v8663
  %v8665 = vpop.f32.mrb[0].mxu0
  %8666 = vmatprep.mubr.bf16.mxu0 %v5530
  %8667 = vmatmul.mubr.bf16.gmra.mrb[0].mxu0 %v3993
  %v8668 = vpop.f32.mrb[0].mxu0
  %v8669 = vadd.f32 %v7436, %v8668
  %v8670 = vpop.f32.mrb[0].mxu0
  %v8671 = vpop.f32.mrb[0].mxu0
  %v8672 = vadd.f32 %v7439, %v8671
  %v8673 = vpop.f32.mrb[0].mxu0
  %8674 = vmatprep.mubr.bf16.mxu0 %v5533
  %8675 = vmatmul.mubr.bf16.gmra.mrb[0].mxu0 %v3999
  %v8676 = vpop.f32.mrb[0].mxu0
  %v8677 = vadd.f32 %v7444, %v8676
  %v8678 = vpop.f32.mrb[0].mxu0
  %v8679 = vpop.f32.mrb[0].mxu0
  %v8680 = vadd.f32 %v7447, %v8679
  %v8681 = vpop.f32.mrb[0].mxu0
  %8682 = vmatprep.mubr.bf16.mxu0 %v5536
  %8683 = vmatmul.mubr.bf16.gmra.mrb[0].mxu0 %v4005
  %v8684 = vpop.f32.mrb[0].mxu0
  %v8685 = vadd.f32 %v7452, %v8684
  %v8686 = vpop.f32.mrb[0].mxu0
  %v8687 = vpop.f32.mrb[0].mxu0
  %v8688 = vadd.f32 %v7455, %v8687
  %v8689 = vpop.f32.mrb[0].mxu0
  %8690 = vmatprep.mubr.bf16.mxu0 %v5539
  %8691 = vmatmul.mubr.bf16.gmra.mrb[0].mxu0 %v4011
  %v8692 = vpop.f32.mrb[0].mxu0
  %v8693 = vadd.f32 %v7460, %v8692
  %v8694 = vpop.f32.mrb[0].mxu0
  %v8695 = vpop.f32.mrb[0].mxu0
  %v8696 = vadd.f32 %v7463, %v8695
  %v8697 = vpop.f32.mrb[0].mxu0
  %8698 = vmatprep.mubr.bf16.mxu0 %v5542
  %8699 = vmatmul.mubr.bf16.gmra.mrb[0].mxu0 %v4017
  %v8700 = vpop.f32.mrb[0].mxu0
  %v8701 = vadd.f32 %v7468, %v8700
  %v8702 = vpop.f32.mrb[0].mxu0
  %v8703 = vpop.f32.mrb[0].mxu0
  %v8704 = vadd.f32 %v7471, %v8703
  %v8705 = vpop.f32.mrb[0].mxu0
  %8706 = vmatprep.mubr.bf16.mxu0 %v5545
  %8707 = vmatmul.mubr.bf16.gmra.mrb[0].mxu0 %v4023
  %v8708 = vpop.f32.mrb[0].mxu0
  %v8709 = vadd.f32 %v7476, %v8708
  %v8710 = vpop.f32.mrb[0].mxu0
  %v8711 = vpop.f32.mrb[0].mxu0
  %v8712 = vadd.f32 %v7479, %v8711
  %v8713 = vpop.f32.mrb[0].mxu0
  %8714 = vmatprep.mubr.bf16.mxu0 %v5548
  %8715 = vmatmul.mubr.bf16.gmra.mrb[0].mxu0 %v4029
  %v8716 = vpop.f32.mrb[0].mxu0
  %v8717 = vadd.f32 %v7484, %v8716
  %v8718 = vpop.f32.mrb[0].mxu0
  %v8719 = vpop.f32.mrb[0].mxu0
  %v8720 = vadd.f32 %v7487, %v8719
  %v8721 = vpop.f32.mrb[0].mxu0
  %8722 = vmatprep.mubr.bf16.mxu0 %v5551
  %8723 = vmatmul.mubr.bf16.gmra.mrb[0].mxu0 %v4035
  %v8724 = vpop.f32.mrb[0].mxu0
  %v8725 = vadd.f32 %v7492, %v8724
  %v8726 = vpop.f32.mrb[0].mxu0
  %v8727 = vpop.f32.mrb[0].mxu0
  %v8728 = vadd.f32 %v7495, %v8727
  %v8729 = vpop.f32.mrb[0].mxu0
  %8730 = vmatprep.mubr.bf16.mxu0 %v5554
  %8731 = vmatmul.mubr.bf16.gmra.mrb[0].mxu0 %v4041
  %v8732 = vpop.f32.mrb[0].mxu0
  %v8733 = vadd.f32 %v7500, %v8732
  %v8734 = vpop.f32.mrb[0].mxu0
  %v8735 = vpop.f32.mrb[0].mxu0
  %v8736 = vadd.f32 %v7503, %v8735
  %v8737 = vpop.f32.mrb[0].mxu0
  %8738 = vmatprep.mubr.bf16.mxu0 %v5557
  %8739 = vmatmul.mubr.bf16.gmra.mrb[0].mxu0 %v4047
  %v8740 = vpop.f32.mrb[0].mxu0
  %v8741 = vadd.f32 %v7508, %v8740
  %v8742 = vpop.f32.mrb[0].mxu0
  %v8743 = vpop.f32.mrb[0].mxu0
  %v8744 = vadd.f32 %v7511, %v8743
  %v8745 = vpop.f32.mrb[0].mxu0
  %8746 = vmatprep.mubr.bf16.mxu0 %v5560
  %8747 = vmatmul.mubr.bf16.gmra.mrb[0].mxu0 %v4053
  %v8748 = vpop.f32.mrb[0].mxu0
  %v8749 = vadd.f32 %v7516, %v8748
  %v8750 = vpop.f32.mrb[0].mxu0
  %v8751 = vpop.f32.mrb[0].mxu0
  %v8752 = vadd.f32 %v7519, %v8751
  %v8753 = vpop.f32.mrb[0].mxu0
  %8754 = vmatprep.mubr.bf16.mxu0 %v5563
  %8755 = vmatmul.mubr.bf16.gmra.mrb[0].mxu0 %v4059
  %v8756 = vpop.f32.mrb[0].mxu0
  %v8757 = vadd.f32 %v7524, %v8756
  %v8758 = vpop.f32.mrb[0].mxu0
  %v8759 = vpop.f32.mrb[0].mxu0
  %v8760 = vadd.f32 %v7527, %v8759
  %v8761 = vpop.f32.mrb[0].mxu0
  %8762 = vmatprep.mubr.bf16.mxu0 %v5566
  %8763 = vmatmul.mubr.bf16.gmra.mrb[0].mxu0 %v4065
  %v8764 = vpop.f32.mrb[0].mxu0
  %v8765 = vadd.f32 %v7532, %v8764
  %v8766 = vpop.f32.mrb[0].mxu0
  %v8767 = vpop.f32.mrb[0].mxu0
  %v8768 = vadd.f32 %v7535, %v8767
  %v8769 = vpop.f32.mrb[0].mxu0
  %8770 = vmatprep.mubr.bf16.mxu0 %v5569
  %8771 = vmatmul.mubr.bf16.gmra.mrb[0].mxu0 %v4071
  %v8772 = vpop.f32.mrb[0].mxu0
  %v8773 = vadd.f32 %v7540, %v8772
  %v8774 = vpop.f32.mrb[0].mxu0
  %v8775 = vpop.f32.mrb[0].mxu0
  %v8776 = vadd.f32 %v7543, %v8775
  %v8777 = vpop.f32.mrb[0].mxu0
  %8778 = vmatprep.mubr.bf16.mxu0 %v5572
  %8779 = vmatmul.mubr.bf16.gmra.mrb[0].mxu0 %v4077
  %v8780 = vpop.f32.mrb[0].mxu0
  %v8781 = vadd.f32 %v7548, %v8780
  %v8782 = vpop.f32.mrb[0].mxu0
  %v8783 = vpop.f32.mrb[0].mxu0
  %v8784 = vadd.f32 %v7551, %v8783
  %v8785 = vpop.f32.mrb[0].mxu0
  %8786 = vmatprep.mubr.bf16.mxu0 %v5575
  %8787 = vmatmul.mubr.bf16.gmra.mrb[0].mxu0 %v4083
  %v8788 = vpop.f32.mrb[0].mxu0
  %v8789 = vadd.f32 %v7556, %v8788
  %v8790 = vpop.f32.mrb[0].mxu0
  %v8791 = vpop.f32.mrb[0].mxu0
  %v8792 = vadd.f32 %v7559, %v8791
  %v8793 = vpop.f32.mrb[0].mxu0
  %8794 = vmatprep.mubr.bf16.mxu0 %v5578
  %8795 = vmatmul.mubr.bf16.gmra.mrb[0].mxu0 %v4089
  %v8796 = vpop.f32.mrb[0].mxu0
  %v8797 = vadd.f32 %v7564, %v8796
  %v8798 = vpop.f32.mrb[0].mxu0
  %v8799 = vpop.f32.mrb[0].mxu0
  %v8800 = vadd.f32 %v7567, %v8799
  %v8801 = vpop.f32.mrb[0].mxu0
  %8802 = vmatprep.mubr.bf16.mxu0 %v5581
  %8803 = vmatmul.mubr.bf16.gmra.mrb[0].mxu0 %v4095
  %v8804 = vpop.f32.mrb[0].mxu0
  %v8805 = vadd.f32 %v7572, %v8804
  %v8806 = vpop.f32.mrb[0].mxu0
  %v8807 = vpop.f32.mrb[0].mxu0
  %v8808 = vadd.f32 %v7575, %v8807
  %v8809 = vpop.f32.mrb[0].mxu0
  %8810 = vmatprep.mubr.bf16.mxu0 %v5584
  %8811 = vmatmul.mubr.bf16.gmra.mrb[0].mxu0 %v4101
  %v8812 = vpop.f32.mrb[0].mxu0
  %v8813 = vadd.f32 %v7580, %v8812
  %v8814 = vpop.f32.mrb[0].mxu0
  %v8815 = vpop.f32.mrb[0].mxu0
  %v8816 = vadd.f32 %v7583, %v8815
  %v8817 = vpop.f32.mrb[0].mxu0
  %8818 = vmatprep.mubr.bf16.mxu0 %v5587
  %8819 = vmatmul.mubr.bf16.gmra.mrb[0].mxu0 %v4107
  %v8820 = vpop.f32.mrb[0].mxu0
  %v8821 = vadd.f32 %v7588, %v8820
  %v8822 = vpop.f32.mrb[0].mxu0
  %v8823 = vpop.f32.mrb[0].mxu0
  %v8824 = vadd.f32 %v7591, %v8823
  %v8825 = vpop.f32.mrb[0].mxu0
  %8826 = vmatprep.mubr.bf16.mxu0 %v5590
  %8827 = vmatmul.mubr.bf16.gmra.mrb[0].mxu0 %v4113
  %v8828 = vpop.f32.mrb[0].mxu0
  %v8829 = vadd.f32 %v7596, %v8828
  %v8830 = vpop.f32.mrb[0].mxu0
  %v8831 = vpop.f32.mrb[0].mxu0
  %v8832 = vadd.f32 %v7599, %v8831
  %v8833 = vpop.f32.mrb[0].mxu0
  %8834 = vmatprep.mubr.bf16.mxu0 %v5593
  %8835 = vmatmul.mubr.bf16.gmra.mrb[0].mxu0 %v4119
  %v8836 = vpop.f32.mrb[0].mxu0
  %v8837 = vadd.f32 %v7604, %v8836
  %v8838 = vpop.f32.mrb[0].mxu0
  %v8839 = vpop.f32.mrb[0].mxu0
  %v8840 = vadd.f32 %v7607, %v8839
  %v8841 = vpop.f32.mrb[0].mxu0
  %8842 = vmatprep.mubr.bf16.mxu0 %v5596
  %8843 = vmatmul.mubr.bf16.gmra.mrb[0].mxu0 %v4125
  %v8844 = vpop.f32.mrb[0].mxu0
  %v8845 = vadd.f32 %v7612, %v8844
  %v8846 = vpop.f32.mrb[0].mxu0
  %v8847 = vpop.f32.mrb[0].mxu0
  %v8848 = vadd.f32 %v7615, %v8847
  %v8849 = vpop.f32.mrb[0].mxu0
  %8850 = vmatprep.mubr.bf16.mxu0 %v5599
  %8851 = vmatmul.mubr.bf16.gmra.mrb[0].mxu0 %v4131
  %v8852 = vpop.f32.mrb[0].mxu0
  %v8853 = vadd.f32 %v7620, %v8852
  %v8854 = vpop.f32.mrb[0].mxu0
  %v8855 = vpop.f32.mrb[0].mxu0
  %v8856 = vadd.f32 %v7623, %v8855
  %v8857 = vpop.f32.mrb[0].mxu0
  %8858 = vmatprep.mubr.bf16.mxu0 %v5602
  %8859 = vmatmul.mubr.bf16.gmra.mrb[0].mxu0 %v4137
  %v8860 = vpop.f32.mrb[0].mxu0
  %v8861 = vadd.f32 %v7628, %v8860
  %v8862 = vpop.f32.mrb[0].mxu0
  %v8863 = vpop.f32.mrb[0].mxu0
  %v8864 = vadd.f32 %v7631, %v8863
  %v8865 = vpop.f32.mrb[0].mxu0
  %8866 = vmatprep.mubr.bf16.mxu0 %v5605
  %8867 = vmatmul.mubr.bf16.gmra.mrb[0].mxu0 %v4143
  %v8868 = vpop.f32.mrb[0].mxu0
  %v8869 = vadd.f32 %v7636, %v8868
  %v8870 = vpop.f32.mrb[0].mxu0
  %v8871 = vpop.f32.mrb[0].mxu0
  %v8872 = vadd.f32 %v7639, %v8871
  %v8873 = vpop.f32.mrb[0].mxu0
  %8874 = vmatprep.mubr.bf16.mxu0 %v5608
  %8875 = vmatmul.mubr.bf16.gmra.mrb[0].mxu0 %v4149
  %v8876 = vpop.f32.mrb[0].mxu0
  %v8877 = vadd.f32 %v7644, %v8876
  %v8878 = vpop.f32.mrb[0].mxu0
  %v8879 = vpop.f32.mrb[0].mxu0
  %v8880 = vadd.f32 %v7647, %v8879
  %v8881 = vpop.f32.mrb[0].mxu0
  %8882 = vmatprep.mubr.bf16.mxu0 %v5611
  %8883 = vmatmul.mubr.bf16.gmra.mrb[0].mxu0 %v4155
  %v8884 = vpop.f32.mrb[0].mxu0
  %v8885 = vadd.f32 %v7652, %v8884
  %v8886 = vpop.f32.mrb[0].mxu0
  %v8887 = vpop.f32.mrb[0].mxu0
  %v8888 = vadd.f32 %v7655, %v8887
  %v8889 = vpop.f32.mrb[0].mxu0
  %8890 = vmatprep.mubr.bf16.mxu0 %v5614
  %8891 = vmatmul.mubr.bf16.gmra.mrb[0].mxu0 %v4161
  %v8892 = vpop.f32.mrb[0].mxu0
  %v8893 = vadd.f32 %v7660, %v8892
  %v8894 = vpop.f32.mrb[0].mxu0
  %v8895 = vpop.f32.mrb[0].mxu0
  %v8896 = vadd.f32 %v7663, %v8895
  %v8897 = vpop.f32.mrb[0].mxu0
  %8898 = vmatprep.mubr.bf16.mxu0 %v5617
  %8899 = vmatmul.mubr.bf16.gmra.mrb[0].mxu0 %v4167
  %v8900 = vpop.f32.mrb[0].mxu0
  %v8901 = vadd.f32 %v7668, %v8900
  %v8902 = vpop.f32.mrb[0].mxu0
  %v8903 = vpop.f32.mrb[0].mxu0
  %v8904 = vadd.f32 %v7671, %v8903
  %v8905 = vpop.f32.mrb[0].mxu0
  %8906 = vmatprep.mubr.bf16.mxu0 %v5620
  %8907 = vmatmul.mubr.bf16.gmra.mrb[0].mxu0 %v4173
  %v8908 = vpop.f32.mrb[0].mxu0
  %v8909 = vadd.f32 %v7676, %v8908
  %v8910 = vpop.f32.mrb[0].mxu0
  %v8911 = vpop.f32.mrb[0].mxu0
  %v8912 = vadd.f32 %v7679, %v8911
  %v8913 = vpop.f32.mrb[0].mxu0
  %8914 = vmatprep.mubr.bf16.mxu0 %v5623
  %8915 = vmatmul.mubr.bf16.gmra.mrb[0].mxu0 %v4179
  %v8916 = vpop.f32.mrb[0].mxu0
  %v8917 = vadd.f32 %v7684, %v8916
  %v8918 = vpop.f32.mrb[0].mxu0
  %v8919 = vpop.f32.mrb[0].mxu0
  %v8920 = vadd.f32 %v7687, %v8919
  %v8921 = vpop.f32.mrb[0].mxu0
  %8922 = vmatprep.mubr.bf16.mxu0 %v5626
  %8923 = vmatmul.mubr.bf16.gmra.mrb[0].mxu0 %v4185
  %v8924 = vpop.f32.mrb[0].mxu0
  %v8925 = vadd.f32 %v7692, %v8924
  %v8926 = vpop.f32.mrb[0].mxu0
  %v8927 = vpop.f32.mrb[0].mxu0
  %v8928 = vadd.f32 %v7695, %v8927
  %v8929 = vpop.f32.mrb[0].mxu0
  %8930 = vmatprep.mubr.bf16.mxu0 %v5629
  %8931 = vmatmul.mubr.bf16.gmra.mrb[0].mxu0 %v4191
  %v8932 = vpop.f32.mrb[0].mxu0
  %v8933 = vadd.f32 %v7700, %v8932
  %v8934 = vpop.f32.mrb[0].mxu0
  %v8935 = vpop.f32.mrb[0].mxu0
  %v8936 = vadd.f32 %v7703, %v8935
  %v8937 = vpop.f32.mrb[0].mxu0
  %8938 = vmatprep.mubr.bf16.mxu0 %v5632
  %8939 = vmatmul.mubr.bf16.gmra.mrb[0].mxu0 %v4197
  %v8940 = vpop.f32.mrb[0].mxu0
  %v8941 = vadd.f32 %v7708, %v8940
  %v8942 = vpop.f32.mrb[0].mxu0
  %v8943 = vpop.f32.mrb[0].mxu0
  %v8944 = vadd.f32 %v7711, %v8943
  %v8945 = vpop.f32.mrb[0].mxu0
  %8946 = vmatprep.mubr.bf16.mxu0 %v5635
  %8947 = vmatmul.mubr.bf16.gmra.mrb[0].mxu0 %v4203
  %v8948 = vpop.f32.mrb[0].mxu0
  %v8949 = vadd.f32 %v7716, %v8948
  %v8950 = vpop.f32.mrb[0].mxu0
  %v8951 = vpop.f32.mrb[0].mxu0
  %v8952 = vadd.f32 %v7719, %v8951
  %v8953 = vpop.f32.mrb[0].mxu0
  %8954 = vmatprep.mubr.bf16.mxu0 %v5638
  %8955 = vmatmul.mubr.bf16.gmra.mrb[0].mxu0 %v4209
  %v8956 = vpop.f32.mrb[0].mxu0
  %v8957 = vadd.f32 %v7724, %v8956
  %v8958 = vpop.f32.mrb[0].mxu0
  %v8959 = vpop.f32.mrb[0].mxu0
  %v8960 = vadd.f32 %v7727, %v8959
  %v8961 = vpop.f32.mrb[0].mxu0
  %8962 = vmatprep.mubr.bf16.mxu0 %v5641
  %8963 = vmatmul.mubr.bf16.gmra.mrb[0].mxu0 %v4215
  %v8964 = vpop.f32.mrb[0].mxu0
  %v8965 = vadd.f32 %v7732, %v8964
  %v8966 = vpop.f32.mrb[0].mxu0
  %v8967 = vpop.f32.mrb[0].mxu0
  %v8968 = vadd.f32 %v7735, %v8967
  %v8969 = vpop.f32.mrb[0].mxu0
  %8970 = vmatprep.mubr.bf16.mxu0 %v5644
  %8971 = vmatmul.mubr.bf16.gmra.mrb[0].mxu0 %v4221
  %v8972 = vpop.f32.mrb[0].mxu0
  %v8973 = vadd.f32 %v7740, %v8972
  %v8974 = vpop.f32.mrb[0].mxu0
  %v8975 = vpop.f32.mrb[0].mxu0
  %v8976 = vadd.f32 %v7743, %v8975
  %v8977 = vpop.f32.mrb[0].mxu0
  %8978 = vmatprep.mubr.bf16.mxu0 %v5647
  %8979 = vmatmul.mubr.bf16.gmra.mrb[0].mxu0 %v4227
  %v8980 = vpop.f32.mrb[0].mxu0
  %v8981 = vadd.f32 %v7748, %v8980
  %v8982 = vpop.f32.mrb[0].mxu0
  %v8983 = vpop.f32.mrb[0].mxu0
  %v8984 = vadd.f32 %v7751, %v8983
  %v8985 = vpop.f32.mrb[0].mxu0
  %8986 = vmatprep.mubr.bf16.mxu0 %v5650
  %8987 = vmatmul.mubr.bf16.gmra.mrb[0].mxu0 %v4233
  %v8988 = vpop.f32.mrb[0].mxu0
  %v8989 = vadd.f32 %v7756, %v8988
  %v8990 = vpop.f32.mrb[0].mxu0
  %v8991 = vpop.f32.mrb[0].mxu0
  %v8992 = vadd.f32 %v7759, %v8991
  %v8993 = vpop.f32.mrb[0].mxu0
  %8994 = vmatprep.mubr.bf16.mxu0 %v5653
  %8995 = vmatmul.mubr.bf16.gmra.mrb[0].mxu0 %v4239
  %v8996 = vpop.f32.mrb[0].mxu0
  %v8997 = vadd.f32 %v7764, %v8996
  %v8998 = vpop.f32.mrb[0].mxu0
  %v8999 = vpop.f32.mrb[0].mxu0
  %v9000 = vadd.f32 %v7767, %v8999
  %v9001 = vpop.f32.mrb[0].mxu0
  %9002 = vmatprep.mubr.bf16.mxu0 %v5656
  %9003 = vmatmul.mubr.bf16.gmra.mrb[0].mxu0 %v4245
  %v9004 = vpop.f32.mrb[0].mxu0
  %v9005 = vadd.f32 %v7772, %v9004
  %v9006 = vpop.f32.mrb[0].mxu0
  %v9007 = vpop.f32.mrb[0].mxu0
  %v9008 = vadd.f32 %v7775, %v9007
  %v9009 = vpop.f32.mrb[0].mxu0
  %9010 = vmatprep.mubr.bf16.mxu0 %v5659
  %9011 = vmatmul.mubr.bf16.gmra.mrb[0].mxu0 %v4251
  %v9012 = vpop.f32.mrb[0].mxu0
  %v9013 = vadd.f32 %v7780, %v9012
  %v9014 = vpop.f32.mrb[0].mxu0
  %v9015 = vpop.f32.mrb[0].mxu0
  %v9016 = vadd.f32 %v7783, %v9015
  %v9017 = vpop.f32.mrb[0].mxu0
  %9018 = vmatprep.mubr.bf16.mxu0 %v5662
  %9019 = vmatmul.mubr.bf16.gmra.mrb[0].mxu0 %v4257
  %v9020 = vpop.f32.mrb[0].mxu0
  %v9021 = vadd.f32 %v7788, %v9020
  %v9022 = vpop.f32.mrb[0].mxu0
  %v9023 = vpop.f32.mrb[0].mxu0
  %v9024 = vadd.f32 %v7791, %v9023
  %v9025 = vpop.f32.mrb[0].mxu0
  %9026 = vmatprep.mubr.bf16.mxu0 %v5665
  %9027 = vmatmul.mubr.bf16.gmra.mrb[0].mxu0 %v4263
  %v9028 = vpop.f32.mrb[0].mxu0
  %v9029 = vadd.f32 %v7796, %v9028
  %v9030 = vpop.f32.mrb[0].mxu0
  %v9031 = vpop.f32.mrb[0].mxu0
  %v9032 = vadd.f32 %v7799, %v9031
  %v9033 = vpop.f32.mrb[0].mxu0
  %9034 = vmatprep.mubr.bf16.mxu0 %v5668
  %9035 = vmatmul.mubr.bf16.gmra.mrb[0].mxu0 %v4269
  %v9036 = vpop.f32.mrb[0].mxu0
  %v9037 = vadd.f32 %v7804, %v9036
  %v9038 = vpop.f32.mrb[0].mxu0
  %v9039 = vpop.f32.mrb[0].mxu0
  %v9040 = vadd.f32 %v7807, %v9039
  %v9041 = vpop.f32.mrb[0].mxu0
  %9042 = vmatprep.mubr.bf16.mxu0 %v5671
  %9043 = vmatmul.mubr.bf16.gmra.mrb[0].mxu0 %v4275
  %v9044 = vpop.f32.mrb[0].mxu0
  %v9045 = vadd.f32 %v7812, %v9044
  %v9046 = vpop.f32.mrb[0].mxu0
  %v9047 = vpop.f32.mrb[0].mxu0
  %v9048 = vadd.f32 %v7815, %v9047
  %v9049 = vpop.f32.mrb[0].mxu0
  %9050 = vmatprep.mubr.bf16.mxu0 %v5674
  %9051 = vmatmul.mubr.bf16.gmra.mrb[0].mxu0 %v4281
  %v9052 = vpop.f32.mrb[0].mxu0
  %v9053 = vadd.f32 %v7820, %v9052
  %v9054 = vpop.f32.mrb[0].mxu0
  %v9055 = vpop.f32.mrb[0].mxu0
  %v9056 = vadd.f32 %v7823, %v9055
  %v9057 = vpop.f32.mrb[0].mxu0
  %9058 = vmatprep.mubr.bf16.mxu0 %v5677
  %9059 = vmatmul.mubr.bf16.gmra.mrb[0].mxu0 %v4287
  %v9060 = vpop.f32.mrb[0].mxu0
  %v9061 = vadd.f32 %v7828, %v9060
  %v9062 = vpop.f32.mrb[0].mxu0
  %v9063 = vpop.f32.mrb[0].mxu0
  %v9064 = vadd.f32 %v7831, %v9063
  %v9065 = vpop.f32.mrb[0].mxu0
  %9066 = vmatprep.mubr.bf16.mxu0 %v5680
  %9067 = vmatmul.mubr.bf16.gmra.mrb[0].mxu0 %v4293
  %v9068 = vpop.f32.mrb[0].mxu0
  %v9069 = vadd.f32 %v7836, %v9068
  %v9070 = vpop.f32.mrb[0].mxu0
  %v9071 = vpop.f32.mrb[0].mxu0
  %v9072 = vadd.f32 %v7839, %v9071
  %v9073 = vpop.f32.mrb[0].mxu0
  %9074 = vmatprep.mubr.bf16.mxu0 %v5683
  %9075 = vmatmul.mubr.bf16.gmra.mrb[0].mxu0 %v4299
  %v9076 = vpop.f32.mrb[0].mxu0
  %v9077 = vadd.f32 %v7844, %v9076
  %v9078 = vpop.f32.mrb[0].mxu0
  %v9079 = vpop.f32.mrb[0].mxu0
  %v9080 = vadd.f32 %v7847, %v9079
  %v9081 = vpop.f32.mrb[0].mxu0
  %9082 = vmatprep.mubr.bf16.mxu0 %v5686
  %9083 = vmatmul.mubr.bf16.gmra.mrb[0].mxu0 %v4305
  %v9084 = vpop.f32.mrb[0].mxu0
  %v9085 = vadd.f32 %v7852, %v9084
  %v9086 = vpop.f32.mrb[0].mxu0
  %v9087 = vpop.f32.mrb[0].mxu0
  %v9088 = vadd.f32 %v7855, %v9087
  %v9089 = vpop.f32.mrb[0].mxu0
  %9090 = vmatprep.mubr.bf16.mxu0 %v5689
  %9091 = vmatmul.mubr.bf16.gmra.mrb[0].mxu0 %v4311
  %v9092 = vpop.f32.mrb[0].mxu0
  %v9093 = vadd.f32 %v7860, %v9092
  %v9094 = vpop.f32.mrb[0].mxu0
  %v9095 = vpop.f32.mrb[0].mxu0
  %v9096 = vadd.f32 %v7863, %v9095
  %v9097 = vpop.f32.mrb[0].mxu0
  %9098 = vmatprep.mubr.bf16.mxu0 %v5692
  %9099 = vmatmul.mubr.bf16.gmra.mrb[0].mxu0 %v4317
  %v9100 = vpop.f32.mrb[0].mxu0
  %v9101 = vadd.f32 %v7868, %v9100
  %v9102 = vpop.f32.mrb[0].mxu0
  %v9103 = vpop.f32.mrb[0].mxu0
  %v9104 = vadd.f32 %v7871, %v9103
  %v9105 = vpop.f32.mrb[0].mxu0
  %9106 = vmatprep.mubr.bf16.mxu0 %v5695
  %9107 = vmatmul.mubr.bf16.gmra.mrb[0].mxu0 %v4323
  %v9108 = vpop.f32.mrb[0].mxu0
  %v9109 = vadd.f32 %v7876, %v9108
  %v9110 = vpop.f32.mrb[0].mxu0
  %v9111 = vpop.f32.mrb[0].mxu0
  %v9112 = vadd.f32 %v7879, %v9111
  %v9113 = vpop.f32.mrb[0].mxu0
  %9114 = vmatprep.mubr.bf16.mxu0 %v5698
  %9115 = vmatmul.mubr.bf16.gmra.mrb[0].mxu0 %v4329
  %v9116 = vpop.f32.mrb[0].mxu0
  %v9117 = vadd.f32 %v7884, %v9116
  %v9118 = vpop.f32.mrb[0].mxu0
  %v9119 = vpop.f32.mrb[0].mxu0
  %v9120 = vadd.f32 %v7887, %v9119
  %v9121 = vpop.f32.mrb[0].mxu0
  %9122 = vmatprep.mubr.bf16.mxu0 %v5701
  %9123 = vmatmul.mubr.bf16.gmra.mrb[0].mxu0 %v4335
  %v9124 = vpop.f32.mrb[0].mxu0
  %v9125 = vadd.f32 %v7892, %v9124
  %v9126 = vpop.f32.mrb[0].mxu0
  %v9127 = vpop.f32.mrb[0].mxu0
  %v9128 = vadd.f32 %v7895, %v9127
  %v9129 = vpop.f32.mrb[0].mxu0
  %9130 = vmatprep.mubr.bf16.mxu0 %v5704
  %9131 = vmatmul.mubr.bf16.gmra.mrb[0].mxu0 %v4341
  %v9132 = vpop.f32.mrb[0].mxu0
  %v9133 = vadd.f32 %v7900, %v9132
  %v9134 = vpop.f32.mrb[0].mxu0
  %v9135 = vpop.f32.mrb[0].mxu0
  %v9136 = vadd.f32 %v7903, %v9135
  %v9137 = vpop.f32.mrb[0].mxu0
  %9138 = vmatprep.mubr.bf16.mxu0 %v5707
  %9139 = vmatmul.mubr.bf16.gmra.mrb[0].mxu0 %v4347
  %v9140 = vpop.f32.mrb[0].mxu0
  %v9141 = vadd.f32 %v7908, %v9140
  %v9142 = vpop.f32.mrb[0].mxu0
  %v9143 = vpop.f32.mrb[0].mxu0
  %v9144 = vadd.f32 %v7911, %v9143
  %v9145 = vpop.f32.mrb[0].mxu0
  %9146 = vmatprep.mubr.bf16.mxu0 %v5710
  %9147 = vmatmul.mubr.bf16.gmra.mrb[0].mxu0 %v4353
  %v9148 = vpop.f32.mrb[0].mxu0
  %v9149 = vadd.f32 %v7916, %v9148
  %v9150 = vpop.f32.mrb[0].mxu0
  %v9151 = vpop.f32.mrb[0].mxu0
  %v9152 = vadd.f32 %v7919, %v9151
  %v9153 = vpop.f32.mrb[0].mxu0
  %9154 = vmatprep.mubr.bf16.mxu0 %v5713
  %9155 = vmatmul.mubr.bf16.gmra.mrb[0].mxu0 %v4359
  %v9156 = vpop.f32.mrb[0].mxu0
  %v9157 = vadd.f32 %v7924, %v9156
  %v9158 = vpop.f32.mrb[0].mxu0
  %v9159 = vpop.f32.mrb[0].mxu0
  %v9160 = vadd.f32 %v7927, %v9159
  %v9161 = vpop.f32.mrb[0].mxu0
  %9162 = vmatprep.mubr.bf16.mxu0 %v5716
  %9163 = vmatmul.mubr.bf16.gmra.mrb[0].mxu0 %v4365
  %v9164 = vpop.f32.mrb[0].mxu0
  %v9165 = vadd.f32 %v7932, %v9164
  %v9166 = vpop.f32.mrb[0].mxu0
  %v9167 = vpop.f32.mrb[0].mxu0
  %v9168 = vadd.f32 %v7935, %v9167
  %v9169 = vpop.f32.mrb[0].mxu0
  %9170 = vmatprep.mubr.bf16.mxu0 %v5719
  %9171 = vmatmul.mubr.bf16.gmra.mrb[0].mxu0 %v4371
  %v9172 = vpop.f32.mrb[0].mxu0
  %v9173 = vadd.f32 %v7940, %v9172
  %v9174 = vpop.f32.mrb[0].mxu0
  %v9175 = vpop.f32.mrb[0].mxu0
  %v9176 = vadd.f32 %v7943, %v9175
  %v9177 = vpop.f32.mrb[0].mxu0
  %9178 = vmatprep.mubr.bf16.mxu0 %v5722
  %9179 = vmatmul.mubr.bf16.gmra.mrb[0].mxu0 %v4377
  %v9180 = vpop.f32.mrb[0].mxu0
  %v9181 = vadd.f32 %v7948, %v9180
  %v9182 = vpop.f32.mrb[0].mxu0
  %v9183 = vpop.f32.mrb[0].mxu0
  %v9184 = vadd.f32 %v7951, %v9183
  %v9185 = vpop.f32.mrb[0].mxu0
  %9186 = vmatprep.mubr.bf16.mxu0 %v5725
  %9187 = vmatmul.mubr.bf16.gmra.mrb[0].mxu0 %v4383
  %v9188 = vpop.f32.mrb[0].mxu0
  %v9189 = vadd.f32 %v7956, %v9188
  %v9190 = vpop.f32.mrb[0].mxu0
  %v9191 = vpop.f32.mrb[0].mxu0
  %v9192 = vadd.f32 %v7959, %v9191
  %v9193 = vpop.f32.mrb[0].mxu0
  %9194 = vmatprep.mubr.bf16.mxu0 %v5728
  %9195 = vmatmul.mubr.bf16.gmra.mrb[0].mxu0 %v4389
  %v9196 = vpop.f32.mrb[0].mxu0
  %v9197 = vadd.f32 %v7964, %v9196
  %v9198 = vpop.f32.mrb[0].mxu0
  %v9199 = vpop.f32.mrb[0].mxu0
  %v9200 = vadd.f32 %v7967, %v9199
  %v9201 = vpop.f32.mrb[0].mxu0
  %9202 = vmatprep.mubr.bf16.mxu0 %v5731
  %9203 = vmatmul.mubr.bf16.gmra.mrb[0].mxu0 %v4395
  %v9204 = vpop.f32.mrb[0].mxu0
  %v9205 = vadd.f32 %v7972, %v9204
  %v9206 = vpop.f32.mrb[0].mxu0
  %v9207 = vpop.f32.mrb[0].mxu0
  %v9208 = vadd.f32 %v7975, %v9207
  %v9209 = vpop.f32.mrb[0].mxu0
  %9210 = vmatprep.mubr.bf16.mxu0 %v5734
  %9211 = vmatmul.mubr.bf16.gmra.mrb[0].mxu0 %v4401
  %v9212 = vpop.f32.mrb[0].mxu0
  %v9213 = vadd.f32 %v7980, %v9212
  %v9214 = vpop.f32.mrb[0].mxu0
  %v9215 = vpop.f32.mrb[0].mxu0
  %v9216 = vadd.f32 %v7983, %v9215
  %v9217 = vpop.f32.mrb[0].mxu0
  %9218 = vmatprep.mubr.bf16.mxu0 %v5737
  %9219 = vmatmul.mubr.bf16.gmra.mrb[0].mxu0 %v4407
  %v9220 = vpop.f32.mrb[0].mxu0
  %v9221 = vadd.f32 %v7988, %v9220
  %v9222 = vpop.f32.mrb[0].mxu0
  %v9223 = vpop.f32.mrb[0].mxu0
  %v9224 = vadd.f32 %v7991, %v9223
  %v9225 = vpop.f32.mrb[0].mxu0
  %9226 = vmatprep.mubr.bf16.mxu0 %v5740
  %9227 = vmatmul.mubr.bf16.gmra.mrb[0].mxu0 %v4413
  %v9228 = vpop.f32.mrb[0].mxu0
  %v9229 = vadd.f32 %v7996, %v9228
  %v9230 = vpop.f32.mrb[0].mxu0
  %v9231 = vpop.f32.mrb[0].mxu0
  %v9232 = vadd.f32 %v7999, %v9231
  %v9233 = vpop.f32.mrb[0].mxu0
  %9234 = vmatprep.mubr.bf16.mxu0 %v5743
  %9235 = vmatmul.mubr.bf16.gmra.mrb[0].mxu0 %v4419
  %v9236 = vpop.f32.mrb[0].mxu0
  %v9237 = vadd.f32 %v8004, %v9236
  %v9238 = vpop.f32.mrb[0].mxu0
  %v9239 = vpop.f32.mrb[0].mxu0
  %v9240 = vadd.f32 %v8007, %v9239
  %v9241 = vpop.f32.mrb[0].mxu0
  %9242 = vmatprep.mubr.bf16.mxu0 %v5746
  %9243 = vmatmul.mubr.bf16.gmra.mrb[0].mxu0 %v4425
  %v9244 = vpop.f32.mrb[0].mxu0
  %v9245 = vadd.f32 %v8012, %v9244
  %v9246 = vpop.f32.mrb[0].mxu0
  %v9247 = vpop.f32.mrb[0].mxu0
  %v9248 = vadd.f32 %v8015, %v9247
  %v9249 = vpop.f32.mrb[0].mxu0
  %9250 = vmatprep.mubr.bf16.mxu0 %v5749
  %9251 = vmatmul.mubr.bf16.gmra.mrb[0].mxu0 %v4431
  %v9252 = vpop.f32.mrb[0].mxu0
  %v9253 = vadd.f32 %v8020, %v9252
  %v9254 = vpop.f32.mrb[0].mxu0
  %v9255 = vpop.f32.mrb[0].mxu0
  %v9256 = vadd.f32 %v8023, %v9255
  %v9257 = vpop.f32.mrb[0].mxu0
  %9258 = vmatprep.mubr.bf16.mxu0 %v5752
  %9259 = vmatmul.mubr.bf16.gmra.mrb[0].mxu0 %v4437
  %v9260 = vpop.f32.mrb[0].mxu0
  %v9261 = vadd.f32 %v8028, %v9260
  %v9262 = vpop.f32.mrb[0].mxu0
  %v9263 = vpop.f32.mrb[0].mxu0
  %v9264 = vadd.f32 %v8031, %v9263
  %v9265 = vpop.f32.mrb[0].mxu0
  %9266 = vmatprep.mubr.bf16.mxu0 %v5755
  %9267 = vmatmul.mubr.bf16.gmra.mrb[0].mxu0 %v4443
  %v9268 = vpop.f32.mrb[0].mxu0
  %v9269 = vadd.f32 %v8036, %v9268
  %v9270 = vpop.f32.mrb[0].mxu0
  %v9271 = vpop.f32.mrb[0].mxu0
  %v9272 = vadd.f32 %v8039, %v9271
  %v9273 = vpop.f32.mrb[0].mxu0
  %9274 = vmatprep.mubr.bf16.mxu0 %v5758
  %9275 = vmatmul.mubr.bf16.gmra.mrb[0].mxu0 %v4449
  %v9276 = vpop.f32.mrb[0].mxu0
  %v9277 = vadd.f32 %v8044, %v9276
  %v9278 = vpop.f32.mrb[0].mxu0
  %v9279 = vpop.f32.mrb[0].mxu0
  %v9280 = vadd.f32 %v8047, %v9279
  %v9281 = vpop.f32.mrb[0].mxu0
  %9282 = vmatprep.mubr.bf16.mxu0 %v5761
  %9283 = vmatmul.mubr.bf16.gmra.mrb[0].mxu0 %v4455
  %v9284 = vpop.f32.mrb[0].mxu0
  %v9285 = vadd.f32 %v8052, %v9284
  %v9286 = vpop.f32.mrb[0].mxu0
  %v9287 = vpop.f32.mrb[0].mxu0
  %v9288 = vadd.f32 %v8055, %v9287
  %v9289 = vpop.f32.mrb[0].mxu0
  %9290 = vmatprep.mubr.bf16.mxu0 %v5764
  %9291 = vmatmul.mubr.bf16.gmra.mrb[0].mxu0 %v4461
  %v9292 = vpop.f32.mrb[0].mxu0
  %v9293 = vadd.f32 %v8060, %v9292
  %v9294 = vpop.f32.mrb[0].mxu0
  %v9295 = vpop.f32.mrb[0].mxu0
  %v9296 = vadd.f32 %v8063, %v9295
  %v9297 = vpop.f32.mrb[0].mxu0
  %9298 = vmatprep.mubr.bf16.mxu0 %v5767
  %9299 = vmatmul.mubr.bf16.gmra.mrb[0].mxu0 %v4467
  %v9300 = vpop.f32.mrb[0].mxu0
  %v9301 = vadd.f32 %v8068, %v9300
  %v9302 = vpop.f32.mrb[0].mxu0
  %v9303 = vpop.f32.mrb[0].mxu0
  %v9304 = vadd.f32 %v8071, %v9303
  %v9305 = vpop.f32.mrb[0].mxu0
  %9306 = vmatprep.mubr.bf16.mxu0 %v5770
  %9307 = vmatmul.mubr.bf16.gmra.mrb[0].mxu0 %v4473
  %v9308 = vpop.f32.mrb[0].mxu0
  %v9309 = vadd.f32 %v8076, %v9308
  %v9310 = vpop.f32.mrb[0].mxu0
  %v9311 = vpop.f32.mrb[0].mxu0
  %v9312 = vadd.f32 %v8079, %v9311
  %v9313 = vpop.f32.mrb[0].mxu0
  %9314 = vmatprep.mubr.bf16.mxu0 %v5773
  %9315 = vmatmul.mubr.bf16.gmra.mrb[0].mxu0 %v4479
  %v9316 = vpop.f32.mrb[0].mxu0
  %v9317 = vadd.f32 %v8084, %v9316
  %v9318 = vpop.f32.mrb[0].mxu0
  %v9319 = vpop.f32.mrb[0].mxu0
  %v9320 = vadd.f32 %v8087, %v9319
  %v9321 = vpop.f32.mrb[0].mxu0
  %9322 = vmatprep.mubr.bf16.mxu0 %v5776
  %9323 = vmatmul.mubr.bf16.gmra.mrb[0].mxu0 %v4485
  %v9324 = vpop.f32.mrb[0].mxu0
  %v9325 = vadd.f32 %v8092, %v9324
  %v9326 = vpop.f32.mrb[0].mxu0
  %v9327 = vpop.f32.mrb[0].mxu0
  %v9328 = vadd.f32 %v8095, %v9327
  %v9329 = vpop.f32.mrb[0].mxu0
  %9330 = vmatprep.mubr.bf16.mxu0 %v5779
  %9331 = vmatmul.mubr.bf16.gmra.mrb[0].mxu0 %v4491
  %v9332 = vpop.f32.mrb[0].mxu0
  %v9333 = vadd.f32 %v8100, %v9332
  %v9334 = vpop.f32.mrb[0].mxu0
  %v9335 = vpop.f32.mrb[0].mxu0
  %v9336 = vadd.f32 %v8103, %v9335
  %v9337 = vpop.f32.mrb[0].mxu0
  %9338 = vmatprep.mubr.bf16.mxu0 %v5782
  %9339 = vmatmul.mubr.bf16.gmra.mrb[0].mxu0 %v4497
  %v9340 = vpop.f32.mrb[0].mxu0
  %v9341 = vadd.f32 %v8108, %v9340
  %v9342 = vpop.f32.mrb[0].mxu0
  %v9343 = vpop.f32.mrb[0].mxu0
  %v9344 = vadd.f32 %v8111, %v9343
  %v9345 = vpop.f32.mrb[0].mxu0
  %9346 = vmatprep.mubr.bf16.mxu0 %v5785
  %9347 = vmatmul.mubr.bf16.gmra.mrb[0].mxu0 %v4503
  %v9348 = vpop.f32.mrb[0].mxu0
  %v9349 = vadd.f32 %v8116, %v9348
  %v9350 = vpop.f32.mrb[0].mxu0
  %v9351 = vpop.f32.mrb[0].mxu0
  %v9352 = vadd.f32 %v8119, %v9351
  %v9353 = vpop.f32.mrb[0].mxu0
  %9354 = vmatprep.mubr.bf16.mxu0 %v5788
  %9355 = vmatmul.mubr.bf16.gmra.mrb[0].mxu0 %v4509
  %v9356 = vpop.f32.mrb[0].mxu0
  %v9357 = vadd.f32 %v8124, %v9356
  %v9358 = vpop.f32.mrb[0].mxu0
  %v9359 = vpop.f32.mrb[0].mxu0
  %v9360 = vadd.f32 %v8127, %v9359
  %v9361 = vpop.f32.mrb[0].mxu0
  %9362 = vmatprep.mubr.bf16.mxu0 %v5791
  %9363 = vmatmul.mubr.bf16.gmra.mrb[0].mxu0 %v4515
  %v9364 = vpop.f32.mrb[0].mxu0
  %v9365 = vadd.f32 %v8132, %v9364
  %v9366 = vpop.f32.mrb[0].mxu0
  %v9367 = vpop.f32.mrb[0].mxu0
  %v9368 = vadd.f32 %v8135, %v9367
  %v9369 = vpop.f32.mrb[0].mxu0
  %9370 = vmatprep.mubr.bf16.mxu0 %v5794
  %9371 = vmatmul.mubr.bf16.gmra.mrb[0].mxu0 %v4521
  %v9372 = vpop.f32.mrb[0].mxu0
  %v9373 = vadd.f32 %v8140, %v9372
  %v9374 = vpop.f32.mrb[0].mxu0
  %v9375 = vpop.f32.mrb[0].mxu0
  %v9376 = vadd.f32 %v8143, %v9375
  %v9377 = vpop.f32.mrb[0].mxu0
  %9378 = vmatprep.mubr.bf16.mxu0 %v5797
  %9379 = vmatmul.mubr.bf16.gmra.mrb[0].mxu0 %v4527
  %v9380 = vpop.f32.mrb[0].mxu0
  %v9381 = vadd.f32 %v8148, %v9380
  %v9382 = vpop.f32.mrb[0].mxu0
  %v9383 = vpop.f32.mrb[0].mxu0
  %v9384 = vadd.f32 %v8151, %v9383
  %v9385 = vpop.f32.mrb[0].mxu0
  %9386 = vmatprep.mubr.bf16.mxu0 %v5800
  %9387 = vmatmul.mubr.bf16.gmra.mrb[0].mxu0 %v4533
  %v9388 = vpop.f32.mrb[0].mxu0
  %v9389 = vadd.f32 %v8156, %v9388
  %v9390 = vpop.f32.mrb[0].mxu0
  %v9391 = vpop.f32.mrb[0].mxu0
  %v9392 = vadd.f32 %v8159, %v9391
  %v9393 = vpop.f32.mrb[0].mxu0
  %9394 = vmatprep.mubr.bf16.mxu0 %v5803
  %9395 = vmatmul.mubr.bf16.gmra.mrb[0].mxu0 %v4539
  %v9396 = vpop.f32.mrb[0].mxu0
  %v9397 = vadd.f32 %v8164, %v9396
  %v9398 = vpop.f32.mrb[0].mxu0
  %v9399 = vpop.f32.mrb[0].mxu0
  %v9400 = vadd.f32 %v8167, %v9399
  %v9401 = vpop.f32.mrb[0].mxu0
  %9402 = vmatprep.mubr.bf16.mxu0 %v5806
  %9403 = vmatmul.mubr.bf16.gmra.mrb[0].mxu0 %v4545
  %v9404 = vpop.f32.mrb[0].mxu0
  %v9405 = vadd.f32 %v8172, %v9404
  %v9406 = vpop.f32.mrb[0].mxu0
  %v9407 = vpop.f32.mrb[0].mxu0
  %v9408 = vadd.f32 %v8175, %v9407
  %v9409 = vpop.f32.mrb[0].mxu0
  %9410 = vmatprep.mubr.bf16.mxu0 %v5809
  %9411 = vmatmul.mubr.bf16.gmra.mrb[0].mxu0 %v4551
  %v9412 = vpop.f32.mrb[0].mxu0
  %v9413 = vadd.f32 %v8180, %v9412
  %v9414 = vpop.f32.mrb[0].mxu0
  %v9415 = vpop.f32.mrb[0].mxu0
  %v9416 = vadd.f32 %v8183, %v9415
  %v9417 = vpop.f32.mrb[0].mxu0
  %9418 = vmatprep.mubr.bf16.mxu0 %v5812
  %9419 = vmatmul.mubr.bf16.gmra.mrb[0].mxu0 %v4557
  %v9420 = vpop.f32.mrb[0].mxu0
  %v9421 = vadd.f32 %v8188, %v9420
  %v9422 = vpop.f32.mrb[0].mxu0
  %v9423 = vpop.f32.mrb[0].mxu0
  %v9424 = vadd.f32 %v8191, %v9423
  %v9425 = vpop.f32.mrb[0].mxu0
  %9426 = vmatprep.mubr.bf16.mxu0 %v5815
  %9427 = vmatmul.mubr.bf16.gmra.mrb[0].mxu0 %v4563
  %v9428 = vpop.f32.mrb[0].mxu0
  %v9429 = vadd.f32 %v8196, %v9428
  %v9430 = vpop.f32.mrb[0].mxu0
  %v9431 = vpop.f32.mrb[0].mxu0
  %v9432 = vadd.f32 %v8199, %v9431
  %v9433 = vpop.f32.mrb[0].mxu0
  %9434 = vmatprep.mubr.bf16.mxu0 %v5818
  %9435 = vmatmul.mubr.bf16.gmra.mrb[0].mxu0 %v4569
  %v9436 = vpop.f32.mrb[0].mxu0
  %v9437 = vadd.f32 %v8204, %v9436
  %v9438 = vpop.f32.mrb[0].mxu0
  %v9439 = vpop.f32.mrb[0].mxu0
  %v9440 = vadd.f32 %v8207, %v9439
  %v9441 = vpop.f32.mrb[0].mxu0
  %9442 = vmatprep.mubr.bf16.mxu0 %v5821
  %9443 = vmatmul.mubr.bf16.gmra.mrb[0].mxu0 %v4575
  %v9444 = vpop.f32.mrb[0].mxu0
  %v9445 = vadd.f32 %v8212, %v9444
  %v9446 = vpop.f32.mrb[0].mxu0
  %v9447 = vpop.f32.mrb[0].mxu0
  %v9448 = vadd.f32 %v8215, %v9447
  %v9449 = vpop.f32.mrb[0].mxu0
  %9450 = vmatprep.mubr.bf16.mxu0 %v5824
  %9451 = vmatmul.mubr.bf16.gmra.mrb[0].mxu0 %v4581
  %v9452 = vpop.f32.mrb[0].mxu0
  %v9453 = vadd.f32 %v8220, %v9452
  %v9454 = vpop.f32.mrb[0].mxu0
  %v9455 = vpop.f32.mrb[0].mxu0
  %v9456 = vadd.f32 %v8223, %v9455
  %v9457 = vpop.f32.mrb[0].mxu0
  %9458 = vmatprep.mubr.bf16.mxu0 %v5827
  %9459 = vmatmul.mubr.bf16.gmra.mrb[0].mxu0 %v4587
  %v9460 = vpop.f32.mrb[0].mxu0
  %v9461 = vadd.f32 %v8228, %v9460
  %v9462 = vpop.f32.mrb[0].mxu0
  %v9463 = vpop.f32.mrb[0].mxu0
  %v9464 = vadd.f32 %v8231, %v9463
  %v9465 = vpop.f32.mrb[0].mxu0
  %9466 = vmatprep.mubr.bf16.mxu0 %v5830
  %9467 = vmatmul.mubr.bf16.gmra.mrb[0].mxu0 %v4593
  %v9468 = vpop.f32.mrb[0].mxu0
  %v9469 = vadd.f32 %v8236, %v9468
  %v9470 = vpop.f32.mrb[0].mxu0
  %v9471 = vpop.f32.mrb[0].mxu0
  %v9472 = vadd.f32 %v8239, %v9471
  %v9473 = vpop.f32.mrb[0].mxu0
  %9474 = vmatprep.mubr.bf16.mxu0 %v5833
  %9475 = vmatmul.mubr.bf16.gmra.mrb[0].mxu0 %v4599
  %v9476 = vpop.f32.mrb[0].mxu0
  %v9477 = vadd.f32 %v8244, %v9476
  %v9478 = vpop.f32.mrb[0].mxu0
  %v9479 = vpop.f32.mrb[0].mxu0
  %v9480 = vadd.f32 %v8247, %v9479
  %v9481 = vpop.f32.mrb[0].mxu0
  %9482 = vmatprep.mubr.bf16.mxu0 %v5836
  %9483 = vmatmul.mubr.bf16.gmra.mrb[0].mxu0 %v4605
  %v9484 = vpop.f32.mrb[0].mxu0
  %v9485 = vadd.f32 %v8252, %v9484
  %v9486 = vpop.f32.mrb[0].mxu0
  %v9487 = vpop.f32.mrb[0].mxu0
  %v9488 = vadd.f32 %v8255, %v9487
  %v9489 = vpop.f32.mrb[0].mxu0
  %9490 = vmatprep.mubr.bf16.mxu0 %v5839
  %9491 = vmatmul.mubr.bf16.gmra.mrb[0].mxu0 %v4611
  %v9492 = vpop.f32.mrb[0].mxu0
  %v9493 = vadd.f32 %v8260, %v9492
  %v9494 = vpop.f32.mrb[0].mxu0
  %v9495 = vpop.f32.mrb[0].mxu0
  %v9496 = vadd.f32 %v8263, %v9495
  %v9497 = vpop.f32.mrb[0].mxu0
  %9498 = vmatprep.mubr.bf16.mxu0 %v5842
  %9499 = vmatmul.mubr.bf16.gmra.mrb[0].mxu0 %v4617
  %v9500 = vpop.f32.mrb[0].mxu0
  %v9501 = vadd.f32 %v8268, %v9500
  %v9502 = vpop.f32.mrb[0].mxu0
  %v9503 = vpop.f32.mrb[0].mxu0
  %v9504 = vadd.f32 %v8271, %v9503
  %v9505 = vpop.f32.mrb[0].mxu0
  %9506 = vmatprep.mubr.bf16.mxu0 %v5845
  %9507 = vmatmul.mubr.bf16.gmra.mrb[0].mxu0 %v4623
  %v9508 = vpop.f32.mrb[0].mxu0
  %v9509 = vadd.f32 %v8276, %v9508
  %v9510 = vpop.f32.mrb[0].mxu0
  %v9511 = vpop.f32.mrb[0].mxu0
  %v9512 = vadd.f32 %v8279, %v9511
  %v9513 = vpop.f32.mrb[0].mxu0
  %9514 = vmatprep.mubr.bf16.mxu0 %v5848
  %9515 = vmatmul.mubr.bf16.gmra.mrb[0].mxu0 %v4629
  %v9516 = vpop.f32.mrb[0].mxu0
  %v9517 = vadd.f32 %v8284, %v9516
  %v9518 = vpop.f32.mrb[0].mxu0
  %v9519 = vpop.f32.mrb[0].mxu0
  %v9520 = vadd.f32 %v8287, %v9519
  %v9521 = vpop.f32.mrb[0].mxu0
  %9522 = vmatprep.mubr.bf16.mxu0 %v5851
  %9523 = vmatmul.mubr.bf16.gmra.mrb[0].mxu0 %v4635
  %v9524 = vpop.f32.mrb[0].mxu0
  %v9525 = vadd.f32 %v8292, %v9524
  %v9526 = vpop.f32.mrb[0].mxu0
  %v9527 = vpop.f32.mrb[0].mxu0
  %v9528 = vadd.f32 %v8295, %v9527
  %v9529 = vpop.f32.mrb[0].mxu0
  %9530 = vmatprep.mubr.bf16.mxu0 %v5854
  %9531 = vmatmul.mubr.bf16.gmra.mrb[0].mxu0 %v4641
  %v9532 = vpop.f32.mrb[0].mxu0
  %v9533 = vadd.f32 %v8300, %v9532
  %v9534 = vpop.f32.mrb[0].mxu0
  %v9535 = vpop.f32.mrb[0].mxu0
  %v9536 = vadd.f32 %v8303, %v9535
  %v9537 = vpop.f32.mrb[0].mxu0
  %9538 = vmatprep.mubr.bf16.mxu0 %v5857
  %9539 = vmatmul.mubr.bf16.gmra.mrb[0].mxu0 %v4647
  %v9540 = vpop.f32.mrb[0].mxu0
  %v9541 = vadd.f32 %v8308, %v9540
  %v9542 = vpop.f32.mrb[0].mxu0
  %v9543 = vpop.f32.mrb[0].mxu0
  %v9544 = vadd.f32 %v8311, %v9543
  %v9545 = vpop.f32.mrb[0].mxu0
  %9546 = vmatprep.mubr.bf16.mxu0 %v5860
  %9547 = vmatmul.mubr.bf16.gmra.mrb[0].mxu0 %v4653
  %v9548 = vpop.f32.mrb[0].mxu0
  %v9549 = vadd.f32 %v8316, %v9548
  %v9550 = vpop.f32.mrb[0].mxu0
  %v9551 = vpop.f32.mrb[0].mxu0
  %v9552 = vadd.f32 %v8319, %v9551
  %v9553 = vpop.f32.mrb[0].mxu0
  %9554 = vmatprep.mubr.bf16.mxu0 %v5863
  %9555 = vmatmul.mubr.bf16.gmra.mrb[0].mxu0 %v4659
  %v9556 = vpop.f32.mrb[0].mxu0
  %v9557 = vadd.f32 %v8324, %v9556
  %v9558 = vpop.f32.mrb[0].mxu0
  %v9559 = vpop.f32.mrb[0].mxu0
  %v9560 = vadd.f32 %v8327, %v9559
  %v9561 = vpop.f32.mrb[0].mxu0
  %9562 = vmatprep.mubr.bf16.mxu0 %v5866
  %9563 = vmatmul.mubr.bf16.gmra.mrb[0].mxu0 %v4665
  %v9564 = vpop.f32.mrb[0].mxu0
  %v9565 = vadd.f32 %v8332, %v9564
  %v9566 = vpop.f32.mrb[0].mxu0
  %v9567 = vpop.f32.mrb[0].mxu0
  %v9568 = vadd.f32 %v8335, %v9567
  %v9569 = vpop.f32.mrb[0].mxu0
  %9570 = vdwg.mxu0
  %v9571 = vmax.f32 %v8373, %v8672
  %v9572 = vmax.f32 %v8376, %v8677
  %v9573 = vmax.f32 %v8381, %v8680
  %v9574 = vmax.f32 %v8384, %v8685
  %v9575 = vmax.f32 %v8389, %v8688
  %v9576 = vmax.f32 %v8392, %v8693
  %v9577 = vmax.f32 %v8397, %v8696
  %v9578 = vmax.f32 %v8400, %v8701
  %v9579 = vmax.f32 %v8405, %v8704
  %v9580 = vmax.f32 %v8408, %v8709
  %v9581 = vmax.f32 %v8413, %v8712
  %v9582 = vmax.f32 %v8416, %v8717
  %v9583 = vmax.f32 %v8421, %v8720
  %v9584 = vmax.f32 %v8424, %v8725
  %v9585 = vmax.f32 %v8429, %v8728
  %v9586 = vmax.f32 %v8432, %v8733
  %v9587 = vmax.f32 %v8437, %v8736
  %v9588 = vmax.f32 %v8440, %v8741
  %v9589 = vmax.f32 %v8445, %v8744
  %v9590 = vmax.f32 %v8448, %v8749
  %v9591 = vmax.f32 %v8453, %v8752
  %v9592 = vmax.f32 %v8456, %v8757
  %v9593 = vmax.f32 %v8461, %v8760
  %v9594 = vmax.f32 %v8464, %v8765
  %v9595 = vmax.f32 %v8469, %v8768
  %v9596 = vmax.f32 %v8472, %v8773
  %v9597 = vmax.f32 %v8477, %v8776
  %v9598 = vmax.f32 %v8480, %v8781
  %v9599 = vmax.f32 %v8485, %v8784
  %v9600 = vmax.f32 %v8488, %v8789
  %v9601 = vmax.f32 %v8493, %v8792
  %v9602 = vmax.f32 %v8496, %v8797
  %v9603 = vmax.f32 %v8501, %v8800
  %v9604 = vmax.f32 %v8504, %v8805
  %v9605 = vmax.f32 %v8509, %v8808
  %v9606 = vmax.f32 %v8512, %v8813
  %v9607 = vmax.f32 %v8517, %v8816
  %v9608 = vmax.f32 %v8520, %v8821
  %v9609 = vmax.f32 %v8525, %v8824
  %v9610 = vmax.f32 %v8528, %v8829
  %v9611 = vmax.f32 %v8533, %v8832
  %v9612 = vmax.f32 %v8536, %v8837
  %v9613 = vmax.f32 %v8541, %v8840
  %v9614 = vmax.f32 %v8544, %v8845
  %v9615 = vmax.f32 %v8549, %v8848
  %v9616 = vmax.f32 %v8552, %v8853
  %v9617 = vmax.f32 %v8557, %v8856
  %v9618 = vmax.f32 %v8560, %v8861
  %v9619 = vmax.f32 %v8565, %v8864
  %v9620 = vmax.f32 %v8568, %v8869
  %v9621 = vmax.f32 %v8573, %v8872
  %v9622 = vmax.f32 %v8576, %v8877
  %v9623 = vmax.f32 %v8581, %v8880
  %v9624 = vmax.f32 %v8584, %v8885
  %v9625 = vmax.f32 %v8589, %v8888
  %v9626 = vmax.f32 %v8592, %v8893
  %v9627 = vmax.f32 %v8597, %v8896
  %v9628 = vmax.f32 %v8600, %v8901
  %v9629 = vmax.f32 %v8605, %v8904
  %v9630 = vmax.f32 %v8608, %v8909
  %v9631 = vmax.f32 %v8613, %v8912
  %v9632 = vmax.f32 %v8616, %v8917
  %v9633 = vmax.f32 %v8621, %v8920
  %v9634 = vmax.f32 %v8624, %v8925
  %v9635 = vmax.f32 %v8629, %v8928
  %v9636 = vmax.f32 %v8632, %v8933
  %v9637 = vmax.f32 %v8637, %v8936
  %v9638 = vmax.f32 %v8640, %v8941
  %v9639 = vmax.f32 %v8645, %v8944
  %v9640 = vmax.f32 %v8648, %v8949
  %v9641 = vmax.f32 %v8653, %v8952
  %v9642 = vmax.f32 %v8656, %v8957
  %v9643 = vmax.f32 %v8661, %v8960
  %v9644 = vmax.f32 %v8664, %v8965
  %v9645 = vmax.f32 %v8669, %v8968
  %v9646 = vmax.f32 %v8973, %v9272
  %v9647 = vmax.f32 %v8976, %v9277
  %v9648 = vmax.f32 %v8981, %v9280
  %v9649 = vmax.f32 %v8984, %v9285
  %v9650 = vmax.f32 %v8989, %v9288
  %v9651 = vmax.f32 %v8992, %v9293
  %v9652 = vmax.f32 %v8997, %v9296
  %v9653 = vmax.f32 %v9000, %v9301
  %v9654 = vmax.f32 %v9005, %v9304
  %v9655 = vmax.f32 %v9008, %v9309
  %v9656 = vmax.f32 %v9013, %v9312
  %v9657 = vmax.f32 %v9016, %v9317
  %v9658 = vmax.f32 %v9021, %v9320
  %v9659 = vmax.f32 %v9024, %v9325
  %v9660 = vmax.f32 %v9029, %v9328
  %v9661 = vmax.f32 %v9032, %v9333
  %v9662 = vmax.f32 %v9037, %v9336
  %v9663 = vmax.f32 %v9040, %v9341
  %v9664 = vmax.f32 %v9045, %v9344
  %v9665 = vmax.f32 %v9048, %v9349
  %v9666 = vmax.f32 %v9053, %v9352
  %v9667 = vmax.f32 %v9056, %v9357
  %v9668 = vmax.f32 %v9061, %v9360
  %v9669 = vmax.f32 %v9064, %v9365
  %v9670 = vmax.f32 %v9069, %v9368
  %v9671 = vmax.f32 %v9072, %v9373
  %v9672 = vmax.f32 %v9077, %v9376
  %v9673 = vmax.f32 %v9080, %v9381
  %v9674 = vmax.f32 %v9085, %v9384
  %v9675 = vmax.f32 %v9088, %v9389
  %v9676 = vmax.f32 %v9093, %v9392
  %v9677 = vmax.f32 %v9096, %v9397
  %v9678 = vmax.f32 %v9101, %v9400
  %v9679 = vmax.f32 %v9104, %v9405
  %v9680 = vmax.f32 %v9109, %v9408
  %v9681 = vmax.f32 %v9112, %v9413
  %v9682 = vmax.f32 %v9117, %v9416
  %v9683 = vmax.f32 %v9120, %v9421
  %v9684 = vmax.f32 %v9125, %v9424
  %v9685 = vmax.f32 %v9128, %v9429
  %v9686 = vmax.f32 %v9133, %v9432
  %v9687 = vmax.f32 %v9136, %v9437
  %v9688 = vmax.f32 %v9141, %v9440
  %v9689 = vmax.f32 %v9144, %v9445
  %v9690 = vmax.f32 %v9149, %v9448
  %v9691 = vmax.f32 %v9152, %v9453
  %v9692 = vmax.f32 %v9157, %v9456
  %v9693 = vmax.f32 %v9160, %v9461
  %v9694 = vmax.f32 %v9165, %v9464
  %v9695 = vmax.f32 %v9168, %v9469
  %v9696 = vmax.f32 %v9173, %v9472
  %v9697 = vmax.f32 %v9176, %v9477
  %v9698 = vmax.f32 %v9181, %v9480
  %v9699 = vmax.f32 %v9184, %v9485
  %v9700 = vmax.f32 %v9189, %v9488
  %v9701 = vmax.f32 %v9192, %v9493
  %v9702 = vmax.f32 %v9197, %v9496
  %v9703 = vmax.f32 %v9200, %v9501
  %v9704 = vmax.f32 %v9205, %v9504
  %v9705 = vmax.f32 %v9208, %v9509
  %v9706 = vmax.f32 %v9213, %v9512
  %v9707 = vmax.f32 %v9216, %v9517
  %v9708 = vmax.f32 %v9221, %v9520
  %v9709 = vmax.f32 %v9224, %v9525
  %v9710 = vmax.f32 %v9229, %v9528
  %v9711 = vmax.f32 %v9232, %v9533
  %v9712 = vmax.f32 %v9237, %v9536
  %v9713 = vmax.f32 %v9240, %v9541
  %v9714 = vmax.f32 %v9245, %v9544
  %v9715 = vmax.f32 %v9248, %v9549
  %v9716 = vmax.f32 %v9253, %v9552
  %v9717 = vmax.f32 %v9256, %v9557
  %v9718 = vmax.f32 %v9261, %v9560
  %v9719 = vmax.f32 %v9264, %v9565
  %v9720 = vmax.f32 %v9269, %v9568
  %v9721 = vmax.f32 %v9571, %v9646
  %v9722 = vmax.f32 %v9572, %v9647
  %v9723 = vmax.f32 %v9573, %v9648
  %v9724 = vmax.f32 %v9574, %v9649
  %v9725 = vmax.f32 %v9575, %v9650
  %v9726 = vmax.f32 %v9576, %v9651
  %v9727 = vmax.f32 %v9577, %v9652
  %v9728 = vmax.f32 %v9578, %v9653
  %v9729 = vmax.f32 %v9579, %v9654
  %v9730 = vmax.f32 %v9580, %v9655
  %v9731 = vmax.f32 %v9581, %v9656
  %v9732 = vmax.f32 %v9582, %v9657
  %v9733 = vmax.f32 %v9583, %v9658
  %v9734 = vmax.f32 %v9584, %v9659
  %v9735 = vmax.f32 %v9585, %v9660
  %v9736 = vmax.f32 %v9586, %v9661
  %v9737 = vmax.f32 %v9587, %v9662
  %v9738 = vmax.f32 %v9588, %v9663
  %v9739 = vmax.f32 %v9589, %v9664
  %v9740 = vmax.f32 %v9590, %v9665
  %v9741 = vmax.f32 %v9591, %v9666
  %v9742 = vmax.f32 %v9592, %v9667
  %v9743 = vmax.f32 %v9593, %v9668
  %v9744 = vmax.f32 %v9594, %v9669
  %v9745 = vmax.f32 %v9595, %v9670
  %v9746 = vmax.f32 %v9596, %v9671
  %v9747 = vmax.f32 %v9597, %v9672
  %v9748 = vmax.f32 %v9598, %v9673
  %v9749 = vmax.f32 %v9599, %v9674
  %v9750 = vmax.f32 %v9600, %v9675
  %v9751 = vmax.f32 %v9601, %v9676
  %v9752 = vmax.f32 %v9602, %v9677
  %v9753 = vmax.f32 %v9603, %v9678
  %v9754 = vmax.f32 %v9604, %v9679
  %v9755 = vmax.f32 %v9605, %v9680
  %v9756 = vmax.f32 %v9606, %v9681
  %v9757 = vmax.f32 %v9607, %v9682
  %v9758 = vmax.f32 %v9608, %v9683
  %v9759 = vmax.f32 %v9609, %v9684
  %v9760 = vmax.f32 %v9610, %v9685
  %v9761 = vmax.f32 %v9611, %v9686
  %v9762 = vmax.f32 %v9612, %v9687
  %v9763 = vmax.f32 %v9613, %v9688
  %v9764 = vmax.f32 %v9614, %v9689
  %v9765 = vmax.f32 %v9615, %v9690
  %v9766 = vmax.f32 %v9616, %v9691
  %v9767 = vmax.f32 %v9617, %v9692
  %v9768 = vmax.f32 %v9618, %v9693
  %v9769 = vmax.f32 %v9619, %v9694
  %v9770 = vmax.f32 %v9620, %v9695
  %v9771 = vmax.f32 %v9621, %v9696
  %v9772 = vmax.f32 %v9622, %v9697
  %v9773 = vmax.f32 %v9623, %v9698
  %v9774 = vmax.f32 %v9624, %v9699
  %v9775 = vmax.f32 %v9625, %v9700
  %v9776 = vmax.f32 %v9626, %v9701
  %v9777 = vmax.f32 %v9627, %v9702
  %v9778 = vmax.f32 %v9628, %v9703
  %v9779 = vmax.f32 %v9629, %v9704
  %v9780 = vmax.f32 %v9630, %v9705
  %v9781 = vmax.f32 %v9631, %v9706
  %v9782 = vmax.f32 %v9632, %v9707
  %v9783 = vmax.f32 %v9633, %v9708
  %v9784 = vmax.f32 %v9634, %v9709
  %v9785 = vmax.f32 %v9635, %v9710
  %v9786 = vmax.f32 %v9636, %v9711
  %v9787 = vmax.f32 %v9637, %v9712
  %v9788 = vmax.f32 %v9638, %v9713
  %v9789 = vmax.f32 %v9639, %v9714
  %v9790 = vmax.f32 %v9640, %v9715
  %v9791 = vmax.f32 %v9641, %v9716
  %v9792 = vmax.f32 %v9642, %v9717
  %v9793 = vmax.f32 %v9643, %v9718
  %v9794 = vmax.f32 %v9644, %v9719
  %v9795 = vmax.f32 %v9645, %v9720
  %v9796 = vld [vmem:[%s2] sm:$0xff]
  %v9797 = vld [vmem:[%s2 + $0x8] sm:$0xff]
  %v9798 = vld [vmem:[%s2 + $0x10] sm:$0xff]
  %v9799 = vld [vmem:[%s2 + $0x18] sm:$0xff]
  %v9800 = vld [vmem:[%s2 + $0x20] sm:$0xff]
  %v9801 = vld [vmem:[%s2 + $0x28] sm:$0xff]
  %v9802 = vld [vmem:[%s2 + $0x30] sm:$0xff]
  %v9803 = vld [vmem:[%s2 + $0x38] sm:$0xff]
  %v9804 = vld [vmem:[%s2 + $0x40] sm:$0xff]
  %v9805 = vld [vmem:[%s2 + $0x48] sm:$0xff]
  %v9806 = vld [vmem:[%s2 + $0x50] sm:$0xff]
  %v9807 = vld [vmem:[%s2 + $0x58] sm:$0xff]
  %v9808 = vld [vmem:[%s2 + $0x60] sm:$0xff]
  %v9809 = vld [vmem:[%s2 + $0x68] sm:$0xff]
  %v9810 = vld [vmem:[%s2 + $0x70] sm:$0xff]
  %v9811 = vld [vmem:[%s2 + $0x78] sm:$0xff]
  %v9812 = vld [vmem:[%s2 + $0x80] sm:$0xff]
  %v9813 = vld [vmem:[%s2 + $0x88] sm:$0xff]
  %v9814 = vld [vmem:[%s2 + $0x90] sm:$0xff]
  %v9815 = vld [vmem:[%s2 + $0x98] sm:$0xff]
  %v9816 = vld [vmem:[%s2 + $0xa0] sm:$0xff]
  %v9817 = vld [vmem:[%s2 + $0xa8] sm:$0xff]
  %v9818 = vld [vmem:[%s2 + $0xb0] sm:$0xff]
  %v9819 = vld [vmem:[%s2 + $0xb8] sm:$0xff]
  %v9820 = vld [vmem:[%s2 + $0xc0] sm:$0xff]
  %v9821 = vld [vmem:[%s2 + $0xc8] sm:$0xff]
  %v9822 = vld [vmem:[%s2 + $0xd0] sm:$0xff]
  %v9823 = vld [vmem:[%s2 + $0xd8] sm:$0xff]
  %v9824 = vld [vmem:[%s2 + $0xe0] sm:$0xff]
  %v9825 = vld [vmem:[%s2 + $0xe8] sm:$0xff]
  %v9826 = vld [vmem:[%s2 + $0xf0] sm:$0xff]
  %v9827 = vld [vmem:[%s2 + $0xf8] sm:$0xff]
  %v9828 = vld [vmem:[%s2 + $0x100] sm:$0xff]
  %v9829 = vld [vmem:[%s2 + $0x108] sm:$0xff]
  %v9830 = vld [vmem:[%s2 + $0x110] sm:$0xff]
  %v9831 = vld [vmem:[%s2 + $0x118] sm:$0xff]
  %v9832 = vld [vmem:[%s2 + $0x120] sm:$0xff]
  %v9833 = vld [vmem:[%s2 + $0x128] sm:$0xff]
  %v9834 = vld [vmem:[%s2 + $0x130] sm:$0xff]
  %v9835 = vld [vmem:[%s2 + $0x138] sm:$0xff]
  %v9836 = vld [vmem:[%s2 + $0x140] sm:$0xff]
  %v9837 = vld [vmem:[%s2 + $0x148] sm:$0xff]
  %v9838 = vld [vmem:[%s2 + $0x150] sm:$0xff]
  %v9839 = vld [vmem:[%s2 + $0x158] sm:$0xff]
  %v9840 = vld [vmem:[%s2 + $0x160] sm:$0xff]
  %v9841 = vld [vmem:[%s2 + $0x168] sm:$0xff]
  %v9842 = vld [vmem:[%s2 + $0x170] sm:$0xff]
  %v9843 = vld [vmem:[%s2 + $0x178] sm:$0xff]
  %v9844 = vld [vmem:[%s2 + $0x180] sm:$0xff]
  %v9845 = vld [vmem:[%s2 + $0x188] sm:$0xff]
  %v9846 = vld [vmem:[%s2 + $0x190] sm:$0xff]
  %v9847 = vld [vmem:[%s2 + $0x198] sm:$0xff]
  %v9848 = vld [vmem:[%s2 + $0x1a0] sm:$0xff]
  %v9849 = vld [vmem:[%s2 + $0x1a8] sm:$0xff]
  %v9850 = vld [vmem:[%s2 + $0x1b0] sm:$0xff]
  %v9851 = vld [vmem:[%s2 + $0x1b8] sm:$0xff]
  %v9852 = vld [vmem:[%s2 + $0x1c0] sm:$0xff]
  %v9853 = vld [vmem:[%s2 + $0x1c8] sm:$0xff]
  %v9854 = vld [vmem:[%s2 + $0x1d0] sm:$0xff]
  %v9855 = vld [vmem:[%s2 + $0x1d8] sm:$0xff]
  %v9856 = vld [vmem:[%s2 + $0x1e0] sm:$0xff]
  %v9857 = vld [vmem:[%s2 + $0x1e8] sm:$0xff]
  %v9858 = vld [vmem:[%s2 + $0x1f0] sm:$0xff]
  %v9859 = vld [vmem:[%s2 + $0x1f8] sm:$0xff]
  %v9860 = vld [vmem:[%s2 + $0x200] sm:$0xff]
  %v9861 = vld [vmem:[%s2 + $0x208] sm:$0xff]
  %v9862 = vld [vmem:[%s2 + $0x210] sm:$0xff]
  %v9863 = vld [vmem:[%s2 + $0x218] sm:$0xff]
  %v9864 = vld [vmem:[%s2 + $0x220] sm:$0xff]
  %v9865 = vld [vmem:[%s2 + $0x228] sm:$0xff]
  %v9866 = vld [vmem:[%s2 + $0x230] sm:$0xff]
  %v9867 = vld [vmem:[%s2 + $0x238] sm:$0xff]
  %v9868 = vld [vmem:[%s2 + $0x240] sm:$0xff]
  %v9869 = vld [vmem:[%s2 + $0x248] sm:$0xff]
  %v9870 = vld [vmem:[%s2 + $0x250] sm:$0xff]
  %9872 = vset.pattern.permute.xlu0 0
  %9873 = vperm.xlu0 %9872, %v9796
  %v9874 = vpop.permute.xlu0 %9873
  %9877 = vset.pattern.permute.xlu0 0
  %9878 = vperm.xlu0 %9877, %v9797
  %v9879 = vpop.permute.xlu0 %9878
  %9882 = vset.pattern.permute.xlu0 0
  %9883 = vperm.xlu0 %9882, %v9798
  %v9884 = vpop.permute.xlu0 %9883
  %9887 = vset.pattern.permute.xlu0 0
  %9888 = vperm.xlu0 %9887, %v9799
  %v9889 = vpop.permute.xlu0 %9888
  %9892 = vset.pattern.permute.xlu0 0
  %9893 = vperm.xlu0 %9892, %v9800
  %v9894 = vpop.permute.xlu0 %9893
  %9897 = vset.pattern.permute.xlu0 0
  %9898 = vperm.xlu0 %9897, %v9801
  %v9899 = vpop.permute.xlu0 %9898
  %9902 = vset.pattern.permute.xlu0 0
  %9903 = vperm.xlu0 %9902, %v9802
  %v9904 = vpop.permute.xlu0 %9903
  %9907 = vset.pattern.permute.xlu0 0
  %9908 = vperm.xlu0 %9907, %v9803
  %v9909 = vpop.permute.xlu0 %9908
  %9912 = vset.pattern.permute.xlu0 0
  %9913 = vperm.xlu0 %9912, %v9804
  %v9914 = vpop.permute.xlu0 %9913
  %9917 = vset.pattern.permute.xlu0 0
  %9918 = vperm.xlu0 %9917, %v9805
  %v9919 = vpop.permute.xlu0 %9918
  %9922 = vset.pattern.permute.xlu0 0
  %9923 = vperm.xlu0 %9922, %v9806
  %v9924 = vpop.permute.xlu0 %9923
  %9927 = vset.pattern.permute.xlu0 0
  %9928 = vperm.xlu0 %9927, %v9807
  %v9929 = vpop.permute.xlu0 %9928
  %9932 = vset.pattern.permute.xlu0 0
  %9933 = vperm.xlu0 %9932, %v9808
  %v9934 = vpop.permute.xlu0 %9933
  %9937 = vset.pattern.permute.xlu0 0
  %9938 = vperm.xlu0 %9937, %v9809
  %v9939 = vpop.permute.xlu0 %9938
  %9942 = vset.pattern.permute.xlu0 0
  %9943 = vperm.xlu0 %9942, %v9810
  %v9944 = vpop.permute.xlu0 %9943
  %9947 = vset.pattern.permute.xlu0 0
  %9948 = vperm.xlu0 %9947, %v9811
  %v9949 = vpop.permute.xlu0 %9948
  %9952 = vset.pattern.permute.xlu0 0
  %9953 = vperm.xlu0 %9952, %v9812
  %v9954 = vpop.permute.xlu0 %9953
  %9957 = vset.pattern.permute.xlu0 0
  %9958 = vperm.xlu0 %9957, %v9813
  %v9959 = vpop.permute.xlu0 %9958
  %9962 = vset.pattern.permute.xlu0 0
  %9963 = vperm.xlu0 %9962, %v9814
  %v9964 = vpop.permute.xlu0 %9963
  %9967 = vset.pattern.permute.xlu0 0
  %9968 = vperm.xlu0 %9967, %v9815
  %v9969 = vpop.permute.xlu0 %9968
  %9972 = vset.pattern.permute.xlu0 0
  %9973 = vperm.xlu0 %9972, %v9816
  %v9974 = vpop.permute.xlu0 %9973
  %9977 = vset.pattern.permute.xlu0 0
  %9978 = vperm.xlu0 %9977, %v9817
  %v9979 = vpop.permute.xlu0 %9978
  %9982 = vset.pattern.permute.xlu0 0
  %9983 = vperm.xlu0 %9982, %v9818
  %v9984 = vpop.permute.xlu0 %9983
  %9987 = vset.pattern.permute.xlu0 0
  %9988 = vperm.xlu0 %9987, %v9819
  %v9989 = vpop.permute.xlu0 %9988
  %9992 = vset.pattern.permute.xlu0 0
  %9993 = vperm.xlu0 %9992, %v9820
  %v9994 = vpop.permute.xlu0 %9993
  %9997 = vset.pattern.permute.xlu0 0
  %9998 = vperm.xlu0 %9997, %v9821
  %v9999 = vpop.permute.xlu0 %9998
  %10002 = vset.pattern.permute.xlu0 0
  %10003 = vperm.xlu0 %10002, %v9822
  %v10004 = vpop.permute.xlu0 %10003
  %10007 = vset.pattern.permute.xlu0 0
  %10008 = vperm.xlu0 %10007, %v9823
  %v10009 = vpop.permute.xlu0 %10008
  %10012 = vset.pattern.permute.xlu0 0
  %10013 = vperm.xlu0 %10012, %v9824
  %v10014 = vpop.permute.xlu0 %10013
  %10017 = vset.pattern.permute.xlu0 0
  %10018 = vperm.xlu0 %10017, %v9825
  %v10019 = vpop.permute.xlu0 %10018
  %10022 = vset.pattern.permute.xlu0 0
  %10023 = vperm.xlu0 %10022, %v9826
  %v10024 = vpop.permute.xlu0 %10023
  %10027 = vset.pattern.permute.xlu0 0
  %10028 = vperm.xlu0 %10027, %v9827
  %v10029 = vpop.permute.xlu0 %10028
  %10032 = vset.pattern.permute.xlu0 0
  %10033 = vperm.xlu0 %10032, %v9828
  %v10034 = vpop.permute.xlu0 %10033
  %10037 = vset.pattern.permute.xlu0 0
  %10038 = vperm.xlu0 %10037, %v9829
  %v10039 = vpop.permute.xlu0 %10038
  %10042 = vset.pattern.permute.xlu0 0
  %10043 = vperm.xlu0 %10042, %v9830
  %v10044 = vpop.permute.xlu0 %10043
  %10047 = vset.pattern.permute.xlu0 0
  %10048 = vperm.xlu0 %10047, %v9831
  %v10049 = vpop.permute.xlu0 %10048
  %10052 = vset.pattern.permute.xlu0 0
  %10053 = vperm.xlu0 %10052, %v9832
  %v10054 = vpop.permute.xlu0 %10053
  %10057 = vset.pattern.permute.xlu0 0
  %10058 = vperm.xlu0 %10057, %v9833
  %v10059 = vpop.permute.xlu0 %10058
  %10062 = vset.pattern.permute.xlu0 0
  %10063 = vperm.xlu0 %10062, %v9834
  %v10064 = vpop.permute.xlu0 %10063
  %10067 = vset.pattern.permute.xlu0 0
  %10068 = vperm.xlu0 %10067, %v9835
  %v10069 = vpop.permute.xlu0 %10068
  %10072 = vset.pattern.permute.xlu0 0
  %10073 = vperm.xlu0 %10072, %v9836
  %v10074 = vpop.permute.xlu0 %10073
  %10077 = vset.pattern.permute.xlu0 0
  %10078 = vperm.xlu0 %10077, %v9837
  %v10079 = vpop.permute.xlu0 %10078
  %10082 = vset.pattern.permute.xlu0 0
  %10083 = vperm.xlu0 %10082, %v9838
  %v10084 = vpop.permute.xlu0 %10083
  %10087 = vset.pattern.permute.xlu0 0
  %10088 = vperm.xlu0 %10087, %v9839
  %v10089 = vpop.permute.xlu0 %10088
  %10092 = vset.pattern.permute.xlu0 0
  %10093 = vperm.xlu0 %10092, %v9840
  %v10094 = vpop.permute.xlu0 %10093
  %10097 = vset.pattern.permute.xlu0 0
  %10098 = vperm.xlu0 %10097, %v9841
  %v10099 = vpop.permute.xlu0 %10098
  %10102 = vset.pattern.permute.xlu0 0
  %10103 = vperm.xlu0 %10102, %v9842
  %v10104 = vpop.permute.xlu0 %10103
  %10107 = vset.pattern.permute.xlu0 0
  %10108 = vperm.xlu0 %10107, %v9843
  %v10109 = vpop.permute.xlu0 %10108
  %10112 = vset.pattern.permute.xlu0 0
  %10113 = vperm.xlu0 %10112, %v9844
  %v10114 = vpop.permute.xlu0 %10113
  %10117 = vset.pattern.permute.xlu0 0
  %10118 = vperm.xlu0 %10117, %v9845
  %v10119 = vpop.permute.xlu0 %10118
  %10122 = vset.pattern.permute.xlu0 0
  %10123 = vperm.xlu0 %10122, %v9846
  %v10124 = vpop.permute.xlu0 %10123
  %10127 = vset.pattern.permute.xlu0 0
  %10128 = vperm.xlu0 %10127, %v9847
  %v10129 = vpop.permute.xlu0 %10128
  %10132 = vset.pattern.permute.xlu0 0
  %10133 = vperm.xlu0 %10132, %v9848
  %v10134 = vpop.permute.xlu0 %10133
  %10137 = vset.pattern.permute.xlu0 0
  %10138 = vperm.xlu0 %10137, %v9849
  %v10139 = vpop.permute.xlu0 %10138
  %10142 = vset.pattern.permute.xlu0 0
  %10143 = vperm.xlu0 %10142, %v9850
  %v10144 = vpop.permute.xlu0 %10143
  %10147 = vset.pattern.permute.xlu0 0
  %10148 = vperm.xlu0 %10147, %v9851
  %v10149 = vpop.permute.xlu0 %10148
  %10152 = vset.pattern.permute.xlu0 0
  %10153 = vperm.xlu0 %10152, %v9852
  %v10154 = vpop.permute.xlu0 %10153
  %10157 = vset.pattern.permute.xlu0 0
  %10158 = vperm.xlu0 %10157, %v9853
  %v10159 = vpop.permute.xlu0 %10158
  %10162 = vset.pattern.permute.xlu0 0
  %10163 = vperm.xlu0 %10162, %v9854
  %v10164 = vpop.permute.xlu0 %10163
  %10167 = vset.pattern.permute.xlu0 0
  %10168 = vperm.xlu0 %10167, %v9855
  %v10169 = vpop.permute.xlu0 %10168
  %10172 = vset.pattern.permute.xlu0 0
  %10173 = vperm.xlu0 %10172, %v9856
  %v10174 = vpop.permute.xlu0 %10173
  %10177 = vset.pattern.permute.xlu0 0
  %10178 = vperm.xlu0 %10177, %v9857
  %v10179 = vpop.permute.xlu0 %10178
  %10182 = vset.pattern.permute.xlu0 0
  %10183 = vperm.xlu0 %10182, %v9858
  %v10184 = vpop.permute.xlu0 %10183
  %10187 = vset.pattern.permute.xlu0 0
  %10188 = vperm.xlu0 %10187, %v9859
  %v10189 = vpop.permute.xlu0 %10188
  %10192 = vset.pattern.permute.xlu0 0
  %10193 = vperm.xlu0 %10192, %v9860
  %v10194 = vpop.permute.xlu0 %10193
  %10197 = vset.pattern.permute.xlu0 0
  %10198 = vperm.xlu0 %10197, %v9861
  %v10199 = vpop.permute.xlu0 %10198
  %10202 = vset.pattern.permute.xlu0 0
  %10203 = vperm.xlu0 %10202, %v9862
  %v10204 = vpop.permute.xlu0 %10203
  %10207 = vset.pattern.permute.xlu0 0
  %10208 = vperm.xlu0 %10207, %v9863
  %v10209 = vpop.permute.xlu0 %10208
  %10212 = vset.pattern.permute.xlu0 0
  %10213 = vperm.xlu0 %10212, %v9864
  %v10214 = vpop.permute.xlu0 %10213
  %10217 = vset.pattern.permute.xlu0 0
  %10218 = vperm.xlu0 %10217, %v9865
  %v10219 = vpop.permute.xlu0 %10218
  %10222 = vset.pattern.permute.xlu0 0
  %10223 = vperm.xlu0 %10222, %v9866
  %v10224 = vpop.permute.xlu0 %10223
  %10227 = vset.pattern.permute.xlu0 0
  %10228 = vperm.xlu0 %10227, %v9867
  %v10229 = vpop.permute.xlu0 %10228
  %10232 = vset.pattern.permute.xlu0 0
  %10233 = vperm.xlu0 %10232, %v9868
  %v10234 = vpop.permute.xlu0 %10233
  %10237 = vset.pattern.permute.xlu0 0
  %10238 = vperm.xlu0 %10237, %v9869
  %v10239 = vpop.permute.xlu0 %10238
  %10242 = vset.pattern.permute.xlu0 0
  %10243 = vperm.xlu0 %10242, %v9870
  %v10244 = vpop.permute.xlu0 %10243
  %v10246 = vadd.f32 %v9721, %v9874
  %v10247 = vadd.f32 %v9722, %v9879
  %v10248 = vadd.f32 %v9723, %v9884
  %v10249 = vadd.f32 %v9724, %v9889
  %v10250 = vadd.f32 %v9725, %v9894
  %v10251 = vadd.f32 %v9726, %v9899
  %v10252 = vadd.f32 %v9727, %v9904
  %v10253 = vadd.f32 %v9728, %v9909
  %v10254 = vadd.f32 %v9729, %v9914
  %v10255 = vadd.f32 %v9730, %v9919
  %v10256 = vadd.f32 %v9731, %v9924
  %v10257 = vadd.f32 %v9732, %v9929
  %v10258 = vadd.f32 %v9733, %v9934
  %v10259 = vadd.f32 %v9734, %v9939
  %v10260 = vadd.f32 %v9735, %v9944
  %v10261 = vadd.f32 %v9736, %v9949
  %v10262 = vadd.f32 %v9737, %v9954
  %v10263 = vadd.f32 %v9738, %v9959
  %v10264 = vadd.f32 %v9739, %v9964
  %v10265 = vadd.f32 %v9740, %v9969
  %v10266 = vadd.f32 %v9741, %v9974
  %v10267 = vadd.f32 %v9742, %v9979
  %v10268 = vadd.f32 %v9743, %v9984
  %v10269 = vadd.f32 %v9744, %v9989
  %v10270 = vadd.f32 %v9745, %v9994
  %v10271 = vadd.f32 %v9746, %v9999
  %v10272 = vadd.f32 %v9747, %v10004
  %v10273 = vadd.f32 %v9748, %v10009
  %v10274 = vadd.f32 %v9749, %v10014
  %v10275 = vadd.f32 %v9750, %v10019
  %v10276 = vadd.f32 %v9751, %v10024
  %v10277 = vadd.f32 %v9752, %v10029
  %v10278 = vadd.f32 %v9753, %v10034
  %v10279 = vadd.f32 %v9754, %v10039
  %v10280 = vadd.f32 %v9755, %v10044
  %v10281 = vadd.f32 %v9756, %v10049
  %v10282 = vadd.f32 %v9757, %v10054
  %v10283 = vadd.f32 %v9758, %v10059
  %v10284 = vadd.f32 %v9759, %v10064
  %v10285 = vadd.f32 %v9760, %v10069
  %v10286 = vadd.f32 %v9761, %v10074
  %v10287 = vadd.f32 %v9762, %v10079
  %v10288 = vadd.f32 %v9763, %v10084
  %v10289 = vadd.f32 %v9764, %v10089
  %v10290 = vadd.f32 %v9765, %v10094
  %v10291 = vadd.f32 %v9766, %v10099
  %v10292 = vadd.f32 %v9767, %v10104
  %v10293 = vadd.f32 %v9768, %v10109
  %v10294 = vadd.f32 %v9769, %v10114
  %v10295 = vadd.f32 %v9770, %v10119
  %v10296 = vadd.f32 %v9771, %v10124
  %v10297 = vadd.f32 %v9772, %v10129
  %v10298 = vadd.f32 %v9773, %v10134
  %v10299 = vadd.f32 %v9774, %v10139
  %v10300 = vadd.f32 %v9775, %v10144
  %v10301 = vadd.f32 %v9776, %v10149
  %v10302 = vadd.f32 %v9777, %v10154
  %v10303 = vadd.f32 %v9778, %v10159
  %v10304 = vadd.f32 %v9779, %v10164
  %v10305 = vadd.f32 %v9780, %v10169
  %v10306 = vadd.f32 %v9781, %v10174
  %v10307 = vadd.f32 %v9782, %v10179
  %v10308 = vadd.f32 %v9783, %v10184
  %v10309 = vadd.f32 %v9784, %v10189
  %v10310 = vadd.f32 %v9785, %v10194
  %v10311 = vadd.f32 %v9786, %v10199
  %v10312 = vadd.f32 %v9787, %v10204
  %v10313 = vadd.f32 %v9788, %v10209
  %v10314 = vadd.f32 %v9789, %v10214
  %v10315 = vadd.f32 %v9790, %v10219
  %v10316 = vadd.f32 %v9791, %v10224
  %v10317 = vadd.f32 %v9792, %v10229
  %v10318 = vadd.f32 %v9793, %v10234
  %v10319 = vadd.f32 %v9794, %v10239
  %v10320 = vadd.f32 %v9795, %v10244
  %v10321 = vmax.f32 %v10246, 0.0
  %v10322 = vmax.f32 %v10247, 0.0
  %v10323 = vmax.f32 %v10248, 0.0
  %v10324 = vmax.f32 %v10249, 0.0
  %v10325 = vmax.f32 %v10250, 0.0
  %v10326 = vmax.f32 %v10251, 0.0
  %v10327 = vmax.f32 %v10252, 0.0
  %v10328 = vmax.f32 %v10253, 0.0
  %v10329 = vmax.f32 %v10254, 0.0
  %v10330 = vmax.f32 %v10255, 0.0
  %v10331 = vmax.f32 %v10256, 0.0
  %v10332 = vmax.f32 %v10257, 0.0
  %v10333 = vmax.f32 %v10258, 0.0
  %v10334 = vmax.f32 %v10259, 0.0
  %v10335 = vmax.f32 %v10260, 0.0
  %v10336 = vmax.f32 %v10261, 0.0
  %v10337 = vmax.f32 %v10262, 0.0
  %v10338 = vmax.f32 %v10263, 0.0
  %v10339 = vmax.f32 %v10264, 0.0
  %v10340 = vmax.f32 %v10265, 0.0
  %v10341 = vmax.f32 %v10266, 0.0
  %v10342 = vmax.f32 %v10267, 0.0
  %v10343 = vmax.f32 %v10268, 0.0
  %v10344 = vmax.f32 %v10269, 0.0
  %v10345 = vmax.f32 %v10270, 0.0
  %v10346 = vmax.f32 %v10271, 0.0
  %v10347 = vmax.f32 %v10272, 0.0
  %v10348 = vmax.f32 %v10273, 0.0
  %v10349 = vmax.f32 %v10274, 0.0
  %v10350 = vmax.f32 %v10275, 0.0
  %v10351 = vmax.f32 %v10276, 0.0
  %v10352 = vmax.f32 %v10277, 0.0
  %v10353 = vmax.f32 %v10278, 0.0
  %v10354 = vmax.f32 %v10279, 0.0
  %v10355 = vmax.f32 %v10280, 0.0
  %v10356 = vmax.f32 %v10281, 0.0
  %v10357 = vmax.f32 %v10282, 0.0
  %v10358 = vmax.f32 %v10283, 0.0
  %v10359 = vmax.f32 %v10284, 0.0
  %v10360 = vmax.f32 %v10285, 0.0
  %v10361 = vmax.f32 %v10286, 0.0
  %v10362 = vmax.f32 %v10287, 0.0
  %v10363 = vmax.f32 %v10288, 0.0
  %v10364 = vmax.f32 %v10289, 0.0
  %v10365 = vmax.f32 %v10290, 0.0
  %v10366 = vmax.f32 %v10291, 0.0
  %v10367 = vmax.f32 %v10292, 0.0
  %v10368 = vmax.f32 %v10293, 0.0
  %v10369 = vmax.f32 %v10294, 0.0
  %v10370 = vmax.f32 %v10295, 0.0
  %v10371 = vmax.f32 %v10296, 0.0
  %v10372 = vmax.f32 %v10297, 0.0
  %v10373 = vmax.f32 %v10298, 0.0
  %v10374 = vmax.f32 %v10299, 0.0
  %v10375 = vmax.f32 %v10300, 0.0
  %v10376 = vmax.f32 %v10301, 0.0
  %v10377 = vmax.f32 %v10302, 0.0
  %v10378 = vmax.f32 %v10303, 0.0
  %v10379 = vmax.f32 %v10304, 0.0
  %v10380 = vmax.f32 %v10305, 0.0
  %v10381 = vmax.f32 %v10306, 0.0
  %v10382 = vmax.f32 %v10307, 0.0
  %v10383 = vmax.f32 %v10308, 0.0
  %v10384 = vmax.f32 %v10309, 0.0
  %v10385 = vmax.f32 %v10310, 0.0
  %v10386 = vmax.f32 %v10311, 0.0
  %v10387 = vmax.f32 %v10312, 0.0
  %v10388 = vmax.f32 %v10313, 0.0
  %v10389 = vmax.f32 %v10314, 0.0
  %v10390 = vmax.f32 %v10315, 0.0
  %v10391 = vmax.f32 %v10316, 0.0
  %v10392 = vmax.f32 %v10317, 0.0
  %v10393 = vmax.f32 %v10318, 0.0
  %v10394 = vmax.f32 %v10319, 0.0
  %v10395 = vmax.f32 %v10320, 0.0
  %v10396 = vpack.c.bf16 %v10322, %v10321
  %v10397 = vpack.c.bf16 %v10324, %v10323
  %v10398 = vpack.c.bf16 %v10326, %v10325
  %v10399 = vpack.c.bf16 %v10328, %v10327
  %v10400 = vpack.c.bf16 %v10330, %v10329
  %v10401 = vpack.c.bf16 %v10332, %v10331
  %v10402 = vpack.c.bf16 %v10334, %v10333
  %v10403 = vpack.c.bf16 %v10336, %v10335
  %v10404 = vpack.c.bf16 %v10338, %v10337
  %v10405 = vpack.c.bf16 %v10340, %v10339
  %v10406 = vpack.c.bf16 %v10342, %v10341
  %v10407 = vpack.c.bf16 %v10344, %v10343
  %v10408 = vpack.c.bf16 %v10346, %v10345
  %v10409 = vpack.c.bf16 %v10348, %v10347
  %v10410 = vpack.c.bf16 %v10350, %v10349
  %v10411 = vpack.c.bf16 %v10352, %v10351
  %v10412 = vpack.c.bf16 %v10354, %v10353
  %v10413 = vpack.c.bf16 %v10356, %v10355
  %v10414 = vpack.c.bf16 %v10358, %v10357
  %v10415 = vpack.c.bf16 %v10360, %v10359
  %v10416 = vpack.c.bf16 %v10362, %v10361
  %v10417 = vpack.c.bf16 %v10364, %v10363
  %v10418 = vpack.c.bf16 %v10366, %v10365
  %v10419 = vpack.c.bf16 %v10368, %v10367
  %v10420 = vpack.c.bf16 %v10370, %v10369
  %v10421 = vpack.c.bf16 %v10372, %v10371
  %v10422 = vpack.c.bf16 %v10374, %v10373
  %v10423 = vpack.c.bf16 %v10376, %v10375
  %v10424 = vpack.c.bf16 %v10378, %v10377
  %v10425 = vpack.c.bf16 %v10380, %v10379
  %v10426 = vpack.c.bf16 %v10382, %v10381
  %v10427 = vpack.c.bf16 %v10384, %v10383
  %v10428 = vpack.c.bf16 %v10386, %v10385
  %v10429 = vpack.c.bf16 %v10388, %v10387
  %v10430 = vpack.c.bf16 %v10390, %v10389
  %v10431 = vpack.c.bf16 %v10392, %v10391
  %v10432 = vpack.c.bf16 %v10394, %v10393
  %v10433 = vpack.c.bf16 %v10395, %v10395
  %v10434 = vld [vmem:[%s3] sm:$0xff]
  %v10435 = vld [vmem:[%s3 + $0x8] sm:$0xff]
  %v10436 = vld [vmem:[%s3 + $0x10] sm:$0xf]
  %v10437 = vld [vmem:[%s3 + $0x14] sm:$0xff]
  %v10438 = vld [vmem:[%s3 + $0x1c] sm:$0xff]
  %v10439 = vld [vmem:[%s3 + $0x24] sm:$0xf]
  %v10440 = vld [vmem:[%s3 + $0x28] sm:$0xff]
  %v10441 = vld [vmem:[%s3 + $0x30] sm:$0xff]
  %v10442 = vld [vmem:[%s3 + $0x38] sm:$0xf]
  %v10443 = vld [vmem:[%s3 + $0x3c] sm:$0xff]
  %v10444 = vld [vmem:[%s3 + $0x44] sm:$0xff]
  %v10445 = vld [vmem:[%s3 + $0x4c] sm:$0xf]
  %v10446 = vld [vmem:[%s3 + $0x50] sm:$0xff]
  %v10447 = vld [vmem:[%s3 + $0x58] sm:$0xff]
  %v10448 = vld [vmem:[%s3 + $0x60] sm:$0xf]
  %v10449 = vld [vmem:[%s3 + $0x64] sm:$0xff]
  %v10450 = vld [vmem:[%s3 + $0x6c] sm:$0xff]
  %v10451 = vld [vmem:[%s3 + $0x74] sm:$0xf]
  %v10452 = vld [vmem:[%s3 + $0x78] sm:$0xff]
  %v10453 = vld [vmem:[%s3 + $0x80] sm:$0xff]
  %v10454 = vld [vmem:[%s3 + $0x88] sm:$0xf]
  %v10455 = vld [vmem:[%s3 + $0x8c] sm:$0xff]
  %v10456 = vld [vmem:[%s3 + $0x94] sm:$0xff]
  %v10457 = vld [vmem:[%s3 + $0x9c] sm:$0xf]
  %v10458 = vld [vmem:[%s3 + $0xa0] sm:$0xff]
  %v10459 = vld [vmem:[%s3 + $0xa8] sm:$0xff]
  %v10460 = vld [vmem:[%s3 + $0xb0] sm:$0xf]
  %v10461 = vld [vmem:[%s3 + $0xb4] sm:$0xff]
  %v10462 = vld [vmem:[%s3 + $0xbc] sm:$0xff]
  %v10463 = vld [vmem:[%s3 + $0xc4] sm:$0xf]
  %v10464 = vld [vmem:[%s3 + $0xc8] sm:$0xff]
  %v10465 = vld [vmem:[%s3 + $0xd0] sm:$0xff]
  %v10466 = vld [vmem:[%s3 + $0xd8] sm:$0xf]
  %v10467 = vld [vmem:[%s3 + $0xdc] sm:$0xff]
  %v10468 = vld [vmem:[%s3 + $0xe4] sm:$0xff]
  %v10469 = vld [vmem:[%s3 + $0xec] sm:$0xf]
  %v10470 = vld [vmem:[%s3 + $0xf0] sm:$0xff]
  %v10471 = vld [vmem:[%s3 + $0xf8] sm:$0xff]
  %v10472 = vld [vmem:[%s3 + $0x100] sm:$0xf]
  %v10473 = vld [vmem:[%s3 + $0x104] sm:$0xff]
  %v10474 = vld [vmem:[%s3 + $0x10c] sm:$0xff]
  %v10475 = vld [vmem:[%s3 + $0x114] sm:$0xf]
  %v10476 = vld [vmem:[%s3 + $0x118] sm:$0xff]
  %v10477 = vld [vmem:[%s3 + $0x120] sm:$0xff]
  %v10478 = vld [vmem:[%s3 + $0x128] sm:$0xf]
  %v10479 = vld [vmem:[%s3 + $0x12c] sm:$0xff]
  %v10480 = vld [vmem:[%s3 + $0x134] sm:$0xff]
  %v10481 = vld [vmem:[%s3 + $0x13c] sm:$0xf]
  %v10482 = vld [vmem:[%s3 + $0x140] sm:$0xff]
  %v10483 = vld [vmem:[%s3 + $0x148] sm:$0xff]
  %v10484 = vld [vmem:[%s3 + $0x150] sm:$0xf]
  %v10485 = vld [vmem:[%s3 + $0x154] sm:$0xff]
  %v10486 = vld [vmem:[%s3 + $0x15c] sm:$0xff]
  %v10487 = vld [vmem:[%s3 + $0x164] sm:$0xf]
  %v10488 = vld [vmem:[%s3 + $0x168] sm:$0xff]
  %v10489 = vld [vmem:[%s3 + $0x170] sm:$0xff]
  %v10490 = vld [vmem:[%s3 + $0x178] sm:$0xf]
  %v10491 = vld [vmem:[%s3 + $0x17c] sm:$0xff]
  %v10492 = vld [vmem:[%s3 + $0x184] sm:$0xff]
  %v10493 = vld [vmem:[%s3 + $0x18c] sm:$0xf]
  %v10494 = vld [vmem:[%s3 + $0x190] sm:$0xff]
  %v10495 = vld [vmem:[%s3 + $0x198] sm:$0xff]
  %v10496 = vld [vmem:[%s3 + $0x1a0] sm:$0xf]
  %v10497 = vld [vmem:[%s3 + $0x1a4] sm:$0xff]
  %v10498 = vld [vmem:[%s3 + $0x1ac] sm:$0xff]
  %v10499 = vld [vmem:[%s3 + $0x1b4] sm:$0xf]
  %v10500 = vld [vmem:[%s3 + $0x1b8] sm:$0xff]
  %v10501 = vld [vmem:[%s3 + $0x1c0] sm:$0xff]
  %v10502 = vld [vmem:[%s3 + $0x1c8] sm:$0xf]
  %v10503 = vld [vmem:[%s3 + $0x1cc] sm:$0xff]
  %v10504 = vld [vmem:[%s3 + $0x1d4] sm:$0xff]
  %v10505 = vld [vmem:[%s3 + $0x1dc] sm:$0xf]
  %v10506 = vld [vmem:[%s3 + $0x1e0] sm:$0xff]
  %v10507 = vld [vmem:[%s3 + $0x1e8] sm:$0xff]
  %v10508 = vld [vmem:[%s3 + $0x1f0] sm:$0xf]
  %v10509 = vld [vmem:[%s3 + $0x1f4] sm:$0xff]
  %v10510 = vld [vmem:[%s3 + $0x1fc] sm:$0xff]
  %v10511 = vld [vmem:[%s3 + $0x204] sm:$0xf]
  %v10512 = vld [vmem:[%s3 + $0x208] sm:$0xff]
  %v10513 = vld [vmem:[%s3 + $0x210] sm:$0xff]
  %v10514 = vld [vmem:[%s3 + $0x218] sm:$0xf]
  %v10515 = vld [vmem:[%s3 + $0x21c] sm:$0xff]
  %v10516 = vld [vmem:[%s3 + $0x224] sm:$0xff]
  %v10517 = vld [vmem:[%s3 + $0x22c] sm:$0xf]
  %v10518 = vld [vmem:[%s3 + $0x230] sm:$0xff]
  %v10519 = vld [vmem:[%s3 + $0x238] sm:$0xff]
  %v10520 = vld [vmem:[%s3 + $0x240] sm:$0xf]
  %v10521 = vld [vmem:[%s3 + $0x244] sm:$0xff]
  %v10522 = vld [vmem:[%s3 + $0x24c] sm:$0xff]
  %v10523 = vld [vmem:[%s3 + $0x254] sm:$0xf]
  %v10524 = vld [vmem:[%s3 + $0x258] sm:$0xff]
  %v10525 = vld [vmem:[%s3 + $0x260] sm:$0xff]
  %v10526 = vld [vmem:[%s3 + $0x268] sm:$0xf]
  %v10527 = vld [vmem:[%s3 + $0x26c] sm:$0xff]
  %v10528 = vld [vmem:[%s3 + $0x274] sm:$0xff]
  %v10529 = vld [vmem:[%s3 + $0x27c] sm:$0xf]
  %v10626 = vunpack.c.l.b16 %v10434
  %v10627 = vunpack.c.h.b16 %v10434
  %v10628 = vunpack.c.l.b16 %v10435
  %v10629 = vunpack.c.h.b16 %v10435
  %v10630 = vunpack.c.l.b16 %v10436
  %v10631 = vunpack.c.l.b16 %v10437
  %v10632 = vunpack.c.h.b16 %v10437
  %v10633 = vunpack.c.l.b16 %v10438
  %v10634 = vunpack.c.h.b16 %v10438
  %v10635 = vunpack.c.l.b16 %v10439
  %v10636 = vunpack.c.l.b16 %v10440
  %v10637 = vunpack.c.h.b16 %v10440
  %v10638 = vunpack.c.l.b16 %v10441
  %v10639 = vunpack.c.h.b16 %v10441
  %v10640 = vunpack.c.l.b16 %v10442
  %v10641 = vunpack.c.l.b16 %v10443
  %v10642 = vunpack.c.h.b16 %v10443
  %v10643 = vunpack.c.l.b16 %v10444
  %v10644 = vunpack.c.h.b16 %v10444
  %v10645 = vunpack.c.l.b16 %v10445
  %v10646 = vunpack.c.l.b16 %v10446
  %v10647 = vunpack.c.h.b16 %v10446
  %v10648 = vunpack.c.l.b16 %v10447
  %v10649 = vunpack.c.h.b16 %v10447
  %v10650 = vunpack.c.l.b16 %v10448
  %v10651 = vunpack.c.l.b16 %v10449
  %v10652 = vunpack.c.h.b16 %v10449
  %v10653 = vunpack.c.l.b16 %v10450
  %v10654 = vunpack.c.h.b16 %v10450
  %v10655 = vunpack.c.l.b16 %v10451
  %v10656 = vunpack.c.l.b16 %v10452
  %v10657 = vunpack.c.h.b16 %v10452
  %v10658 = vunpack.c.l.b16 %v10453
  %v10659 = vunpack.c.h.b16 %v10453
  %v10660 = vunpack.c.l.b16 %v10454
  %v10661 = vunpack.c.l.b16 %v10455
  %v10662 = vunpack.c.h.b16 %v10455
  %v10663 = vunpack.c.l.b16 %v10456
  %v10664 = vunpack.c.h.b16 %v10456
  %v10665 = vunpack.c.l.b16 %v10457
  %v10666 = vunpack.c.l.b16 %v10458
  %v10667 = vunpack.c.h.b16 %v10458
  %v10668 = vunpack.c.l.b16 %v10459
  %v10669 = vunpack.c.h.b16 %v10459
  %v10670 = vunpack.c.l.b16 %v10460
  %v10671 = vunpack.c.l.b16 %v10461
  %v10672 = vunpack.c.h.b16 %v10461
  %v10673 = vunpack.c.l.b16 %v10462
  %v10674 = vunpack.c.h.b16 %v10462
  %v10675 = vunpack.c.l.b16 %v10463
  %v10676 = vunpack.c.l.b16 %v10464
  %v10677 = vunpack.c.h.b16 %v10464
  %v10678 = vunpack.c.l.b16 %v10465
  %v10679 = vunpack.c.h.b16 %v10465
  %v10680 = vunpack.c.l.b16 %v10466
  %v10681 = vunpack.c.l.b16 %v10467
  %v10682 = vunpack.c.h.b16 %v10467
  %v10683 = vunpack.c.l.b16 %v10468
  %v10684 = vunpack.c.h.b16 %v10468
  %v10685 = vunpack.c.l.b16 %v10469
  %v10686 = vunpack.c.l.b16 %v10470
  %v10687 = vunpack.c.h.b16 %v10470
  %v10688 = vunpack.c.l.b16 %v10471
  %v10689 = vunpack.c.h.b16 %v10471
  %v10690 = vunpack.c.l.b16 %v10472
  %v10691 = vunpack.c.l.b16 %v10473
  %v10692 = vunpack.c.h.b16 %v10473
  %v10693 = vunpack.c.l.b16 %v10474
  %v10694 = vunpack.c.h.b16 %v10474
  %v10695 = vunpack.c.l.b16 %v10475
  %v10696 = vunpack.c.l.b16 %v10476
  %v10697 = vunpack.c.h.b16 %v10476
  %v10698 = vunpack.c.l.b16 %v10477
  %v10699 = vunpack.c.h.b16 %v10477
  %v10700 = vunpack.c.l.b16 %v10478
  %v10701 = vunpack.c.l.b16 %v10479
  %v10702 = vunpack.c.h.b16 %v10479
  %v10703 = vunpack.c.l.b16 %v10480
  %v10704 = vunpack.c.h.b16 %v10480
  %v10705 = vunpack.c.l.b16 %v10481
  %v10706 = vunpack.c.l.b16 %v10482
  %v10707 = vunpack.c.h.b16 %v10482
  %v10708 = vunpack.c.l.b16 %v10483
  %v10709 = vunpack.c.h.b16 %v10483
  %v10710 = vunpack.c.l.b16 %v10484
  %v10711 = vunpack.c.l.b16 %v10485
  %v10712 = vunpack.c.h.b16 %v10485
  %v10713 = vunpack.c.l.b16 %v10486
  %v10714 = vunpack.c.h.b16 %v10486
  %v10715 = vunpack.c.l.b16 %v10487
  %v10716 = vunpack.c.l.b16 %v10488
  %v10717 = vunpack.c.h.b16 %v10488
  %v10718 = vunpack.c.l.b16 %v10489
  %v10719 = vunpack.c.h.b16 %v10489
  %v10720 = vunpack.c.l.b16 %v10490
  %v10721 = vunpack.c.l.b16 %v10491
  %v10722 = vunpack.c.h.b16 %v10491
  %v10723 = vunpack.c.l.b16 %v10492
  %v10724 = vunpack.c.h.b16 %v10492
  %v10725 = vunpack.c.l.b16 %v10493
  %v10726 = vunpack.c.l.b16 %v10494
  %v10727 = vunpack.c.h.b16 %v10494
  %v10728 = vunpack.c.l.b16 %v10495
  %v10729 = vunpack.c.h.b16 %v10495
  %v10730 = vunpack.c.l.b16 %v10496
  %v10731 = vunpack.c.l.b16 %v10497
  %v10732 = vunpack.c.h.b16 %v10497
  %v10733 = vunpack.c.l.b16 %v10498
  %v10734 = vunpack.c.h.b16 %v10498
  %v10735 = vunpack.c.l.b16 %v10499
  %v10736 = vunpack.c.l.b16 %v10500
  %v10737 = vunpack.c.h.b16 %v10500
  %v10738 = vunpack.c.l.b16 %v10501
  %v10739 = vunpack.c.h.b16 %v10501
  %v10740 = vunpack.c.l.b16 %v10502
  %v10741 = vunpack.c.l.b16 %v10503
  %v10742 = vunpack.c.h.b16 %v10503
  %v10743 = vunpack.c.l.b16 %v10504
  %v10744 = vunpack.c.h.b16 %v10504
  %v10745 = vunpack.c.l.b16 %v10505
  %v10746 = vunpack.c.l.b16 %v10506
  %v10747 = vunpack.c.h.b16 %v10506
  %v10748 = vunpack.c.l.b16 %v10507
  %v10749 = vunpack.c.h.b16 %v10507
  %v10750 = vunpack.c.l.b16 %v10508
  %v10751 = vunpack.c.l.b16 %v10509
  %v10752 = vunpack.c.h.b16 %v10509
  %v10753 = vunpack.c.l.b16 %v10510
  %v10754 = vunpack.c.h.b16 %v10510
  %v10755 = vunpack.c.l.b16 %v10511
  %v10756 = vunpack.c.l.b16 %v10512
  %v10757 = vunpack.c.h.b16 %v10512
  %v10758 = vunpack.c.l.b16 %v10513
  %v10759 = vunpack.c.h.b16 %v10513
  %v10760 = vunpack.c.l.b16 %v10514
  %v10761 = vunpack.c.l.b16 %v10515
  %v10762 = vunpack.c.h.b16 %v10515
  %v10763 = vunpack.c.l.b16 %v10516
  %v10764 = vunpack.c.h.b16 %v10516
  %v10765 = vunpack.c.l.b16 %v10517
  %v10766 = vunpack.c.l.b16 %v10518
  %v10767 = vunpack.c.h.b16 %v10518
  %v10768 = vunpack.c.l.b16 %v10519
  %v10769 = vunpack.c.h.b16 %v10519
  %v10770 = vunpack.c.l.b16 %v10520
  %v10771 = vunpack.c.l.b16 %v10521
  %v10772 = vunpack.c.h.b16 %v10521
  %v10773 = vunpack.c.l.b16 %v10522
  %v10774 = vunpack.c.h.b16 %v10522
  %v10775 = vunpack.c.l.b16 %v10523
  %v10776 = vunpack.c.l.b16 %v10524
  %v10777 = vunpack.c.h.b16 %v10524
  %v10778 = vunpack.c.l.b16 %v10525
  %v10779 = vunpack.c.h.b16 %v10525
  %v10780 = vunpack.c.l.b16 %v10526
  %v10781 = vunpack.c.l.b16 %v10527
  %v10782 = vunpack.c.h.b16 %v10527
  %v10783 = vunpack.c.l.b16 %v10528
  %v10784 = vunpack.c.h.b16 %v10528
  %v10785 = vunpack.c.l.b16 %v10529
  %v10786 = vpack.c.b16 %v10631, %v10626
  %v10787 = vpack.c.b16 %v10632, %v10627
  %v10788 = vpack.c.b16 %v10633, %v10628
  %v10789 = vpack.c.b16 %v10634, %v10629
  %v10790 = vpack.c.b16 %v10635, %v10630
  %v10791 = vpack.c.b16 %v10641, %v10636
  %v10792 = vpack.c.b16 %v10642, %v10637
  %v10793 = vpack.c.b16 %v10643, %v10638
  %v10794 = vpack.c.b16 %v10644, %v10639
  %v10795 = vpack.c.b16 %v10645, %v10640
  %v10796 = vpack.c.b16 %v10651, %v10646
  %v10797 = vpack.c.b16 %v10652, %v10647
  %v10798 = vpack.c.b16 %v10653, %v10648
  %v10799 = vpack.c.b16 %v10654, %v10649
  %v10800 = vpack.c.b16 %v10655, %v10650
  %v10801 = vpack.c.b16 %v10661, %v10656
  %v10802 = vpack.c.b16 %v10662, %v10657
  %v10803 = vpack.c.b16 %v10663, %v10658
  %v10804 = vpack.c.b16 %v10664, %v10659
  %v10805 = vpack.c.b16 %v10665, %v10660
  %v10806 = vpack.c.b16 %v10671, %v10666
  %v10807 = vpack.c.b16 %v10672, %v10667
  %v10808 = vpack.c.b16 %v10673, %v10668
  %v10809 = vpack.c.b16 %v10674, %v10669
  %v10810 = vpack.c.b16 %v10675, %v10670
  %v10811 = vpack.c.b16 %v10681, %v10676
  %v10812 = vpack.c.b16 %v10682, %v10677
  %v10813 = vpack.c.b16 %v10683, %v10678
  %v10814 = vpack.c.b16 %v10684, %v10679
  %v10815 = vpack.c.b16 %v10685, %v10680
  %v10816 = vpack.c.b16 %v10691, %v10686
  %v10817 = vpack.c.b16 %v10692, %v10687
  %v10818 = vpack.c.b16 %v10693, %v10688
  %v10819 = vpack.c.b16 %v10694, %v10689
  %v10820 = vpack.c.b16 %v10695, %v10690
  %v10821 = vpack.c.b16 %v10701, %v10696
  %v10822 = vpack.c.b16 %v10702, %v10697
  %v10823 = vpack.c.b16 %v10703, %v10698
  %v10824 = vpack.c.b16 %v10704, %v10699
  %v10825 = vpack.c.b16 %v10705, %v10700
  %v10826 = vpack.c.b16 %v10711, %v10706
  %v10827 = vpack.c.b16 %v10712, %v10707
  %v10828 = vpack.c.b16 %v10713, %v10708
  %v10829 = vpack.c.b16 %v10714, %v10709
  %v10830 = vpack.c.b16 %v10715, %v10710
  %v10831 = vpack.c.b16 %v10721, %v10716
  %v10832 = vpack.c.b16 %v10722, %v10717
  %v10833 = vpack.c.b16 %v10723, %v10718
  %v10834 = vpack.c.b16 %v10724, %v10719
  %v10835 = vpack.c.b16 %v10725, %v10720
  %v10836 = vpack.c.b16 %v10731, %v10726
  %v10837 = vpack.c.b16 %v10732, %v10727
  %v10838 = vpack.c.b16 %v10733, %v10728
  %v10839 = vpack.c.b16 %v10734, %v10729
  %v10840 = vpack.c.b16 %v10735, %v10730
  %v10841 = vpack.c.b16 %v10741, %v10736
  %v10842 = vpack.c.b16 %v10742, %v10737
  %v10843 = vpack.c.b16 %v10743, %v10738
  %v10844 = vpack.c.b16 %v10744, %v10739
  %v10845 = vpack.c.b16 %v10745, %v10740
  %v10846 = vpack.c.b16 %v10751, %v10746
  %v10847 = vpack.c.b16 %v10752, %v10747
  %v10848 = vpack.c.b16 %v10753, %v10748
  %v10849 = vpack.c.b16 %v10754, %v10749
  %v10850 = vpack.c.b16 %v10755, %v10750
  %v10851 = vpack.c.b16 %v10761, %v10756
  %v10852 = vpack.c.b16 %v10762, %v10757
  %v10853 = vpack.c.b16 %v10763, %v10758
  %v10854 = vpack.c.b16 %v10764, %v10759
  %v10855 = vpack.c.b16 %v10765, %v10760
  %v10856 = vpack.c.b16 %v10771, %v10766
  %v10857 = vpack.c.b16 %v10772, %v10767
  %v10858 = vpack.c.b16 %v10773, %v10768
  %v10859 = vpack.c.b16 %v10774, %v10769
  %v10860 = vpack.c.b16 %v10775, %v10770
  %v10861 = vpack.c.b16 %v10781, %v10776
  %v10862 = vpack.c.b16 %v10782, %v10777
  %v10863 = vpack.c.b16 %v10783, %v10778
  %v10864 = vpack.c.b16 %v10784, %v10779
  %v10865 = vpack.c.b16 %v10785, %v10780
  %vm10930 = vcmask 719872
  %v10932 = vsel %vm10930, %v10790, 0
  %v10935 = vsel %vm10930, %v10795, 0
  %v10938 = vsel %vm10930, %v10800, 0
  %v10941 = vsel %vm10930, %v10805, 0
  %v10944 = vsel %vm10930, %v10810, 0
  %v10947 = vsel %vm10930, %v10815, 0
  %v10950 = vsel %vm10930, %v10820, 0
  %v10953 = vsel %vm10930, %v10825, 0
  %v10956 = vsel %vm10930, %v10830, 0
  %v10959 = vsel %vm10930, %v10835, 0
  %v10962 = vsel %vm10930, %v10840, 0
  %v10965 = vsel %vm10930, %v10845, 0
  %v10968 = vsel %vm10930, %v10850, 0
  %v10971 = vsel %vm10930, %v10855, 0
  %v10974 = vsel %vm10930, %v10860, 0
  %v10977 = vsel %vm10930, %v10865, 0
  %vm10979 = vcmask 1043456
  %v10981 = vsel %vm10979, %v10433, 0
  %10983 = vmatprep.subr.bf16.mxu0 0
  %10984 = vmatpush1.bf16.msra.mxu0 %v10396
  %10985 = vmatprep.subr.bf16.mxu0 0
  %10986 = vmatpush1.bf16.msra.mxu0 %v10397
  %10987 = vmatprep.subr.bf16.mxu0 0
  %10988 = vmatpush1.bf16.msra.mxu0 %v10398
  %10989 = vmatprep.subr.bf16.mxu0 0
  %10990 = vmatpush1.bf16.msra.mxu0 %v10399
  %10991 = vmatprep.subr.bf16.mxu0 0
  %10992 = vmatpush1.bf16.msra.mxu0 %v10400
  %10993 = vmatprep.subr.bf16.mxu0 0
  %10994 = vmatpush1.bf16.msra.mxu0 %v10401
  %10995 = vmatprep.subr.bf16.mxu0 0
  %10996 = vmatpush1.bf16.msra.mxu0 %v10402
  %10997 = vmatprep.subr.bf16.mxu0 0
  %10998 = vmatpush1.bf16.msra.mxu0 %v10403
  %10999 = vmatprep.subr.bf16.mxu0 0
  %11000 = vmatpush1.bf16.msra.mxu0 %v10404
  %11001 = vmatprep.subr.bf16.mxu0 0
  %11002 = vmatpush1.bf16.msra.mxu0 %v10405
  %11003 = vmatprep.subr.bf16.mxu0 0
  %11004 = vmatpush1.bf16.msra.mxu0 %v10406
  %11005 = vmatprep.subr.bf16.mxu0 0
  %11006 = vmatpush1.bf16.msra.mxu0 %v10407
  %11007 = vmatprep.subr.bf16.mxu0 0
  %11008 = vmatpush1.bf16.msra.mxu0 %v10408
  %11009 = vmatprep.subr.bf16.mxu0 0
  %11010 = vmatpush1.bf16.msra.mxu0 %v10409
  %11011 = vmatprep.subr.bf16.mxu0 0
  %11012 = vmatpush1.bf16.msra.mxu0 %v10410
  %11013 = vmatprep.subr.bf16.mxu0 0
  %11014 = vmatpush1.bf16.msra.mxu0 %v10411
  %11015 = vmatprep.mubr.bf16.mxu0 %v10787
  %11016 = vmatmul.mubr.bf16.gmra.mrb[0].mxu0 %v10786
  %v11017 = vpop.f32.mrb[0].mxu0
  %v11018 = vadd.f32 0.0, %v11017
  %v11019 = vpop.f32.mrb[0].mxu0
  %v11020 = vpop.f32.mrb[0].mxu0
  %v11021 = vadd.f32 0.0, %v11020
  %v11022 = vpop.f32.mrb[0].mxu0
  %11023 = vmatprep.mubr.bf16.mxu0 %v10792
  %11024 = vmatmul.mubr.bf16.gmra.mrb[0].mxu0 %v10791
  %v11025 = vpop.f32.mrb[0].mxu0
  %v11026 = vadd.f32 0.0, %v11025
  %v11027 = vpop.f32.mrb[0].mxu0
  %v11028 = vpop.f32.mrb[0].mxu0
  %v11029 = vadd.f32 0.0, %v11028
  %v11030 = vpop.f32.mrb[0].mxu0
  %11031 = vmatprep.mubr.bf16.mxu0 %v10797
  %11032 = vmatmul.mubr.bf16.gmra.mrb[0].mxu0 %v10796
  %v11033 = vpop.f32.mrb[0].mxu0
  %v11034 = vadd.f32 0.0, %v11033
  %v11035 = vpop.f32.mrb[0].mxu0
  %v11036 = vpop.f32.mrb[0].mxu0
  %v11037 = vadd.f32 0.0, %v11036
  %v11038 = vpop.f32.mrb[0].mxu0
  %11039 = vmatprep.mubr.bf16.mxu0 %v10802
  %11040 = vmatmul.mubr.bf16.gmra.mrb[0].mxu0 %v10801
  %v11041 = vpop.f32.mrb[0].mxu0
  %v11042 = vadd.f32 0.0, %v11041
  %v11043 = vpop.f32.mrb[0].mxu0
  %v11044 = vpop.f32.mrb[0].mxu0
  %v11045 = vadd.f32 0.0, %v11044
  %v11046 = vpop.f32.mrb[0].mxu0
  %11047 = vmatprep.mubr.bf16.mxu0 %v10807
  %11048 = vmatmul.mubr.bf16.gmra.mrb[0].mxu0 %v10806
  %v11049 = vpop.f32.mrb[0].mxu0
  %v11050 = vadd.f32 0.0, %v11049
  %v11051 = vpop.f32.mrb[0].mxu0
  %v11052 = vpop.f32.mrb[0].mxu0
  %v11053 = vadd.f32 0.0, %v11052
  %v11054 = vpop.f32.mrb[0].mxu0
  %11055 = vmatprep.mubr.bf16.mxu0 %v10812
  %11056 = vmatmul.mubr.bf16.gmra.mrb[0].mxu0 %v10811
  %v11057 = vpop.f32.mrb[0].mxu0
  %v11058 = vadd.f32 0.0, %v11057
  %v11059 = vpop.f32.mrb[0].mxu0
  %v11060 = vpop.f32.mrb[0].mxu0
  %v11061 = vadd.f32 0.0, %v11060
  %v11062 = vpop.f32.mrb[0].mxu0
  %11063 = vmatprep.mubr.bf16.mxu0 %v10817
  %11064 = vmatmul.mubr.bf16.gmra.mrb[0].mxu0 %v10816
  %v11065 = vpop.f32.mrb[0].mxu0
  %v11066 = vadd.f32 0.0, %v11065
  %v11067 = vpop.f32.mrb[0].mxu0
  %v11068 = vpop.f32.mrb[0].mxu0
  %v11069 = vadd.f32 0.0, %v11068
  %v11070 = vpop.f32.mrb[0].mxu0
  %11071 = vmatprep.mubr.bf16.mxu0 %v10822
  %11072 = vmatmul.mubr.bf16.gmra.mrb[0].mxu0 %v10821
  %v11073 = vpop.f32.mrb[0].mxu0
  %v11074 = vadd.f32 0.0, %v11073
  %v11075 = vpop.f32.mrb[0].mxu0
  %v11076 = vpop.f32.mrb[0].mxu0
  %v11077 = vadd.f32 0.0, %v11076
  %v11078 = vpop.f32.mrb[0].mxu0
  %11079 = vmatprep.mubr.bf16.mxu0 %v10827
  %11080 = vmatmul.mubr.bf16.gmra.mrb[0].mxu0 %v10826
  %v11081 = vpop.f32.mrb[0].mxu0
  %v11082 = vadd.f32 0.0, %v11081
  %v11083 = vpop.f32.mrb[0].mxu0
  %v11084 = vpop.f32.mrb[0].mxu0
  %v11085 = vadd.f32 0.0, %v11084
  %v11086 = vpop.f32.mrb[0].mxu0
  %11087 = vmatprep.mubr.bf16.mxu0 %v10832
  %11088 = vmatmul.mubr.bf16.gmra.mrb[0].mxu0 %v10831
  %v11089 = vpop.f32.mrb[0].mxu0
  %v11090 = vadd.f32 0.0, %v11089
  %v11091 = vpop.f32.mrb[0].mxu0
  %v11092 = vpop.f32.mrb[0].mxu0
  %v11093 = vadd.f32 0.0, %v11092
  %v11094 = vpop.f32.mrb[0].mxu0
  %11095 = vmatprep.mubr.bf16.mxu0 %v10837
  %11096 = vmatmul.mubr.bf16.gmra.mrb[0].mxu0 %v10836
  %v11097 = vpop.f32.mrb[0].mxu0
  %v11098 = vadd.f32 0.0, %v11097
  %v11099 = vpop.f32.mrb[0].mxu0
  %v11100 = vpop.f32.mrb[0].mxu0
  %v11101 = vadd.f32 0.0, %v11100
  %v11102 = vpop.f32.mrb[0].mxu0
  %11103 = vmatprep.mubr.bf16.mxu0 %v10842
  %11104 = vmatmul.mubr.bf16.gmra.mrb[0].mxu0 %v10841
  %v11105 = vpop.f32.mrb[0].mxu0
  %v11106 = vadd.f32 0.0, %v11105
  %v11107 = vpop.f32.mrb[0].mxu0
  %v11108 = vpop.f32.mrb[0].mxu0
  %v11109 = vadd.f32 0.0, %v11108
  %v11110 = vpop.f32.mrb[0].mxu0
  %11111 = vmatprep.mubr.bf16.mxu0 %v10847
  %11112 = vmatmul.mubr.bf16.gmra.mrb[0].mxu0 %v10846
  %v11113 = vpop.f32.mrb[0].mxu0
  %v11114 = vadd.f32 0.0, %v11113
  %v11115 = vpop.f32.mrb[0].mxu0
  %v11116 = vpop.f32.mrb[0].mxu0
  %v11117 = vadd.f32 0.0, %v11116
  %v11118 = vpop.f32.mrb[0].mxu0
  %11119 = vmatprep.mubr.bf16.mxu0 %v10852
  %11120 = vmatmul.mubr.bf16.gmra.mrb[0].mxu0 %v10851
  %v11121 = vpop.f32.mrb[0].mxu0
  %v11122 = vadd.f32 0.0, %v11121
  %v11123 = vpop.f32.mrb[0].mxu0
  %v11124 = vpop.f32.mrb[0].mxu0
  %v11125 = vadd.f32 0.0, %v11124
  %v11126 = vpop.f32.mrb[0].mxu0
  %11127 = vmatprep.mubr.bf16.mxu0 %v10857
  %11128 = vmatmul.mubr.bf16.gmra.mrb[0].mxu0 %v10856
  %v11129 = vpop.f32.mrb[0].mxu0
  %v11130 = vadd.f32 0.0, %v11129
  %v11131 = vpop.f32.mrb[0].mxu0
  %v11132 = vpop.f32.mrb[0].mxu0
  %v11133 = vadd.f32 0.0, %v11132
  %v11134 = vpop.f32.mrb[0].mxu0
  %11135 = vmatprep.mubr.bf16.mxu0 %v10862
  %11136 = vmatmul.mubr.bf16.gmra.mrb[0].mxu0 %v10861
  %v11137 = vpop.f32.mrb[0].mxu0
  %v11138 = vadd.f32 0.0, %v11137
  %v11139 = vpop.f32.mrb[0].mxu0
  %v11140 = vpop.f32.mrb[0].mxu0
  %v11141 = vadd.f32 0.0, %v11140
  %v11142 = vpop.f32.mrb[0].mxu0
  %11143 = vdwg.mxu0
  %11144 = vmatprep.subr.bf16.mxu0 0
  %11145 = vmatpush1.bf16.msra.mxu0 %v10412
  %11146 = vmatprep.subr.bf16.mxu0 0
  %11147 = vmatpush1.bf16.msra.mxu0 %v10413
  %11148 = vmatprep.subr.bf16.mxu0 0
  %11149 = vmatpush1.bf16.msra.mxu0 %v10414
  %11150 = vmatprep.subr.bf16.mxu0 0
  %11151 = vmatpush1.bf16.msra.mxu0 %v10415
  %11152 = vmatprep.subr.bf16.mxu0 0
  %11153 = vmatpush1.bf16.msra.mxu0 %v10416
  %11154 = vmatprep.subr.bf16.mxu0 0
  %11155 = vmatpush1.bf16.msra.mxu0 %v10417
  %11156 = vmatprep.subr.bf16.mxu0 0
  %11157 = vmatpush1.bf16.msra.mxu0 %v10418
  %11158 = vmatprep.subr.bf16.mxu0 0
  %11159 = vmatpush1.bf16.msra.mxu0 %v10419
  %11160 = vmatprep.subr.bf16.mxu0 0
  %11161 = vmatpush1.bf16.msra.mxu0 %v10420
  %11162 = vmatprep.subr.bf16.mxu0 0
  %11163 = vmatpush1.bf16.msra.mxu0 %v10421
  %11164 = vmatprep.subr.bf16.mxu0 0
  %11165 = vmatpush1.bf16.msra.mxu0 %v10422
  %11166 = vmatprep.subr.bf16.mxu0 0
  %11167 = vmatpush1.bf16.msra.mxu0 %v10423
  %11168 = vmatprep.subr.bf16.mxu0 0
  %11169 = vmatpush1.bf16.msra.mxu0 %v10424
  %11170 = vmatprep.subr.bf16.mxu0 0
  %11171 = vmatpush1.bf16.msra.mxu0 %v10425
  %11172 = vmatprep.subr.bf16.mxu0 0
  %11173 = vmatpush1.bf16.msra.mxu0 %v10426
  %11174 = vmatprep.subr.bf16.mxu0 0
  %11175 = vmatpush1.bf16.msra.mxu0 %v10427
  %11176 = vmatprep.mubr.bf16.mxu0 %v10789
  %11177 = vmatmul.mubr.bf16.gmra.mrb[0].mxu0 %v10788
  %v11178 = vpop.f32.mrb[0].mxu0
  %v11179 = vadd.f32 %v11018, %v11178
  %v11180 = vpop.f32.mrb[0].mxu0
  %v11181 = vpop.f32.mrb[0].mxu0
  %v11182 = vadd.f32 %v11021, %v11181
  %v11183 = vpop.f32.mrb[0].mxu0
  %11184 = vmatprep.mubr.bf16.mxu0 %v10794
  %11185 = vmatmul.mubr.bf16.gmra.mrb[0].mxu0 %v10793
  %v11186 = vpop.f32.mrb[0].mxu0
  %v11187 = vadd.f32 %v11026, %v11186
  %v11188 = vpop.f32.mrb[0].mxu0
  %v11189 = vpop.f32.mrb[0].mxu0
  %v11190 = vadd.f32 %v11029, %v11189
  %v11191 = vpop.f32.mrb[0].mxu0
  %11192 = vmatprep.mubr.bf16.mxu0 %v10799
  %11193 = vmatmul.mubr.bf16.gmra.mrb[0].mxu0 %v10798
  %v11194 = vpop.f32.mrb[0].mxu0
  %v11195 = vadd.f32 %v11034, %v11194
  %v11196 = vpop.f32.mrb[0].mxu0
  %v11197 = vpop.f32.mrb[0].mxu0
  %v11198 = vadd.f32 %v11037, %v11197
  %v11199 = vpop.f32.mrb[0].mxu0
  %11200 = vmatprep.mubr.bf16.mxu0 %v10804
  %11201 = vmatmul.mubr.bf16.gmra.mrb[0].mxu0 %v10803
  %v11202 = vpop.f32.mrb[0].mxu0
  %v11203 = vadd.f32 %v11042, %v11202
  %v11204 = vpop.f32.mrb[0].mxu0
  %v11205 = vpop.f32.mrb[0].mxu0
  %v11206 = vadd.f32 %v11045, %v11205
  %v11207 = vpop.f32.mrb[0].mxu0
  %11208 = vmatprep.mubr.bf16.mxu0 %v10809
  %11209 = vmatmul.mubr.bf16.gmra.mrb[0].mxu0 %v10808
  %v11210 = vpop.f32.mrb[0].mxu0
  %v11211 = vadd.f32 %v11050, %v11210
  %v11212 = vpop.f32.mrb[0].mxu0
  %v11213 = vpop.f32.mrb[0].mxu0
  %v11214 = vadd.f32 %v11053, %v11213
  %v11215 = vpop.f32.mrb[0].mxu0
  %11216 = vmatprep.mubr.bf16.mxu0 %v10814
  %11217 = vmatmul.mubr.bf16.gmra.mrb[0].mxu0 %v10813
  %v11218 = vpop.f32.mrb[0].mxu0
  %v11219 = vadd.f32 %v11058, %v11218
  %v11220 = vpop.f32.mrb[0].mxu0
  %v11221 = vpop.f32.mrb[0].mxu0
  %v11222 = vadd.f32 %v11061, %v11221
  %v11223 = vpop.f32.mrb[0].mxu0
  %11224 = vmatprep.mubr.bf16.mxu0 %v10819
  %11225 = vmatmul.mubr.bf16.gmra.mrb[0].mxu0 %v10818
  %v11226 = vpop.f32.mrb[0].mxu0
  %v11227 = vadd.f32 %v11066, %v11226
  %v11228 = vpop.f32.mrb[0].mxu0
  %v11229 = vpop.f32.mrb[0].mxu0
  %v11230 = vadd.f32 %v11069, %v11229
  %v11231 = vpop.f32.mrb[0].mxu0
  %11232 = vmatprep.mubr.bf16.mxu0 %v10824
  %11233 = vmatmul.mubr.bf16.gmra.mrb[0].mxu0 %v10823
  %v11234 = vpop.f32.mrb[0].mxu0
  %v11235 = vadd.f32 %v11074, %v11234
  %v11236 = vpop.f32.mrb[0].mxu0
  %v11237 = vpop.f32.mrb[0].mxu0
  %v11238 = vadd.f32 %v11077, %v11237
  %v11239 = vpop.f32.mrb[0].mxu0
  %11240 = vmatprep.mubr.bf16.mxu0 %v10829
  %11241 = vmatmul.mubr.bf16.gmra.mrb[0].mxu0 %v10828
  %v11242 = vpop.f32.mrb[0].mxu0
  %v11243 = vadd.f32 %v11082, %v11242
  %v11244 = vpop.f32.mrb[0].mxu0
  %v11245 = vpop.f32.mrb[0].mxu0
  %v11246 = vadd.f32 %v11085, %v11245
  %v11247 = vpop.f32.mrb[0].mxu0
  %11248 = vmatprep.mubr.bf16.mxu0 %v10834
  %11249 = vmatmul.mubr.bf16.gmra.mrb[0].mxu0 %v10833
  %v11250 = vpop.f32.mrb[0].mxu0
  %v11251 = vadd.f32 %v11090, %v11250
  %v11252 = vpop.f32.mrb[0].mxu0
  %v11253 = vpop.f32.mrb[0].mxu0
  %v11254 = vadd.f32 %v11093, %v11253
  %v11255 = vpop.f32.mrb[0].mxu0
  %11256 = vmatprep.mubr.bf16.mxu0 %v10839
  %11257 = vmatmul.mubr.bf16.gmra.mrb[0].mxu0 %v10838
  %v11258 = vpop.f32.mrb[0].mxu0
  %v11259 = vadd.f32 %v11098, %v11258
  %v11260 = vpop.f32.mrb[0].mxu0
  %v11261 = vpop.f32.mrb[0].mxu0
  %v11262 = vadd.f32 %v11101, %v11261
  %v11263 = vpop.f32.mrb[0].mxu0
  %11264 = vmatprep.mubr.bf16.mxu0 %v10844
  %11265 = vmatmul.mubr.bf16.gmra.mrb[0].mxu0 %v10843
  %v11266 = vpop.f32.mrb[0].mxu0
  %v11267 = vadd.f32 %v11106, %v11266
  %v11268 = vpop.f32.mrb[0].mxu0
  %v11269 = vpop.f32.mrb[0].mxu0
  %v11270 = vadd.f32 %v11109, %v11269
  %v11271 = vpop.f32.mrb[0].mxu0
  %11272 = vmatprep.mubr.bf16.mxu0 %v10849
  %11273 = vmatmul.mubr.bf16.gmra.mrb[0].mxu0 %v10848
  %v11274 = vpop.f32.mrb[0].mxu0
  %v11275 = vadd.f32 %v11114, %v11274
  %v11276 = vpop.f32.mrb[0].mxu0
  %v11277 = vpop.f32.mrb[0].mxu0
  %v11278 = vadd.f32 %v11117, %v11277
  %v11279 = vpop.f32.mrb[0].mxu0
  %11280 = vmatprep.mubr.bf16.mxu0 %v10854
  %11281 = vmatmul.mubr.bf16.gmra.mrb[0].mxu0 %v10853
  %v11282 = vpop.f32.mrb[0].mxu0
  %v11283 = vadd.f32 %v11122, %v11282
  %v11284 = vpop.f32.mrb[0].mxu0
  %v11285 = vpop.f32.mrb[0].mxu0
  %v11286 = vadd.f32 %v11125, %v11285
  %v11287 = vpop.f32.mrb[0].mxu0
  %11288 = vmatprep.mubr.bf16.mxu0 %v10859
  %11289 = vmatmul.mubr.bf16.gmra.mrb[0].mxu0 %v10858
  %v11290 = vpop.f32.mrb[0].mxu0
  %v11291 = vadd.f32 %v11130, %v11290
  %v11292 = vpop.f32.mrb[0].mxu0
  %v11293 = vpop.f32.mrb[0].mxu0
  %v11294 = vadd.f32 %v11133, %v11293
  %v11295 = vpop.f32.mrb[0].mxu0
  %11296 = vmatprep.mubr.bf16.mxu0 %v10864
  %11297 = vmatmul.mubr.bf16.gmra.mrb[0].mxu0 %v10863
  %v11298 = vpop.f32.mrb[0].mxu0
  %v11299 = vadd.f32 %v11138, %v11298
  %v11300 = vpop.f32.mrb[0].mxu0
  %v11301 = vpop.f32.mrb[0].mxu0
  %v11302 = vadd.f32 %v11141, %v11301
  %v11303 = vpop.f32.mrb[0].mxu0
  %11304 = vdwg.mxu0
  %11305 = vmatprep.subr.bf16.mxu0 0
  %11306 = vmatpush1.bf16.msra.mxu0 %v10428
  %11307 = vmatprep.subr.bf16.mxu0 0
  %11308 = vmatpush1.bf16.msra.mxu0 %v10429
  %11309 = vmatprep.subr.bf16.mxu0 0
  %11310 = vmatpush1.bf16.msra.mxu0 %v10430
  %11311 = vmatprep.subr.bf16.mxu0 0
  %11312 = vmatpush1.bf16.msra.mxu0 %v10431
  %11313 = vmatprep.subr.bf16.mxu0 0
  %11314 = vmatpush1.bf16.msra.mxu0 %v10432
  %11315 = vmatprep.subr.bf16.mxu0 0
  %11316 = vmatpush1.bf16.msra.mxu0 %v10981
  %11317 = vmatprep.subr.bf16.mxu0 0
  %11318 = vmatpush1.bf16.msra.mxu0 0
  %11319 = vmatprep.subr.bf16.mxu0 0
  %11320 = vmatpush1.bf16.msra.mxu0 0
  %11321 = vmatprep.subr.bf16.mxu0 0
  %11322 = vmatpush1.bf16.msra.mxu0 0
  %11323 = vmatprep.subr.bf16.mxu0 0
  %11324 = vmatpush1.bf16.msra.mxu0 0
  %11325 = vmatprep.subr.bf16.mxu0 0
  %11326 = vmatpush1.bf16.msra.mxu0 0
  %11327 = vmatprep.subr.bf16.mxu0 0
  %11328 = vmatpush1.bf16.msra.mxu0 0
  %11329 = vmatprep.subr.bf16.mxu0 0
  %11330 = vmatpush1.bf16.msra.mxu0 0
  %11331 = vmatprep.subr.bf16.mxu0 0
  %11332 = vmatpush1.bf16.msra.mxu0 0
  %11333 = vmatprep.subr.bf16.mxu0 0
  %11334 = vmatpush1.bf16.msra.mxu0 0
  %11335 = vmatprep.subr.bf16.mxu0 0
  %11336 = vmatpush1.bf16.msra.mxu0 0
  %11337 = vmatprep.mubr.bf16.mxu0 0
  %11338 = vmatmul.mubr.bf16.gmra.mrb[0].mxu0 %v10932
  %v11339 = vpop.f32.mrb[0].mxu0
  %v11340 = vadd.f32 %v11179, %v11339
  %v11341 = vpop.f32.mrb[0].mxu0
  %v11342 = vpop.f32.mrb[0].mxu0
  %v11343 = vadd.f32 %v11182, %v11342
  %v11344 = vpop.f32.mrb[0].mxu0
  %11345 = vmatprep.mubr.bf16.mxu0 0
  %11346 = vmatmul.mubr.bf16.gmra.mrb[0].mxu0 %v10935
  %v11347 = vpop.f32.mrb[0].mxu0
  %v11348 = vadd.f32 %v11187, %v11347
  %v11349 = vpop.f32.mrb[0].mxu0
  %v11350 = vpop.f32.mrb[0].mxu0
  %v11351 = vadd.f32 %v11190, %v11350
  %v11352 = vpop.f32.mrb[0].mxu0
  %11353 = vmatprep.mubr.bf16.mxu0 0
  %11354 = vmatmul.mubr.bf16.gmra.mrb[0].mxu0 %v10938
  %v11355 = vpop.f32.mrb[0].mxu0
  %v11356 = vadd.f32 %v11195, %v11355
  %v11357 = vpop.f32.mrb[0].mxu0
  %v11358 = vpop.f32.mrb[0].mxu0
  %v11359 = vadd.f32 %v11198, %v11358
  %v11360 = vpop.f32.mrb[0].mxu0
  %11361 = vmatprep.mubr.bf16.mxu0 0
  %11362 = vmatmul.mubr.bf16.gmra.mrb[0].mxu0 %v10941
  %v11363 = vpop.f32.mrb[0].mxu0
  %v11364 = vadd.f32 %v11203, %v11363
  %v11365 = vpop.f32.mrb[0].mxu0
  %v11366 = vpop.f32.mrb[0].mxu0
  %v11367 = vadd.f32 %v11206, %v11366
  %v11368 = vpop.f32.mrb[0].mxu0
  %11369 = vmatprep.mubr.bf16.mxu0 0
  %11370 = vmatmul.mubr.bf16.gmra.mrb[0].mxu0 %v10944
  %v11371 = vpop.f32.mrb[0].mxu0
  %v11372 = vadd.f32 %v11211, %v11371
  %v11373 = vpop.f32.mrb[0].mxu0
  %v11374 = vpop.f32.mrb[0].mxu0
  %v11375 = vadd.f32 %v11214, %v11374
  %v11376 = vpop.f32.mrb[0].mxu0
  %11377 = vmatprep.mubr.bf16.mxu0 0
  %11378 = vmatmul.mubr.bf16.gmra.mrb[0].mxu0 %v10947
  %v11379 = vpop.f32.mrb[0].mxu0
  %v11380 = vadd.f32 %v11219, %v11379
  %v11381 = vpop.f32.mrb[0].mxu0
  %v11382 = vpop.f32.mrb[0].mxu0
  %v11383 = vadd.f32 %v11222, %v11382
  %v11384 = vpop.f32.mrb[0].mxu0
  %11385 = vmatprep.mubr.bf16.mxu0 0
  %11386 = vmatmul.mubr.bf16.gmra.mrb[0].mxu0 %v10950
  %v11387 = vpop.f32.mrb[0].mxu0
  %v11388 = vadd.f32 %v11227, %v11387
  %v11389 = vpop.f32.mrb[0].mxu0
  %v11390 = vpop.f32.mrb[0].mxu0
  %v11391 = vadd.f32 %v11230, %v11390
  %v11392 = vpop.f32.mrb[0].mxu0
  %11393 = vmatprep.mubr.bf16.mxu0 0
  %11394 = vmatmul.mubr.bf16.gmra.mrb[0].mxu0 %v10953
  %v11395 = vpop.f32.mrb[0].mxu0
  %v11396 = vadd.f32 %v11235, %v11395
  %v11397 = vpop.f32.mrb[0].mxu0
  %v11398 = vpop.f32.mrb[0].mxu0
  %v11399 = vadd.f32 %v11238, %v11398
  %v11400 = vpop.f32.mrb[0].mxu0
  %11401 = vmatprep.mubr.bf16.mxu0 0
  %11402 = vmatmul.mubr.bf16.gmra.mrb[0].mxu0 %v10956
  %v11403 = vpop.f32.mrb[0].mxu0
  %v11404 = vadd.f32 %v11243, %v11403
  %v11405 = vpop.f32.mrb[0].mxu0
  %v11406 = vpop.f32.mrb[0].mxu0
  %v11407 = vadd.f32 %v11246, %v11406
  %v11408 = vpop.f32.mrb[0].mxu0
  %11409 = vmatprep.mubr.bf16.mxu0 0
  %11410 = vmatmul.mubr.bf16.gmra.mrb[0].mxu0 %v10959
  %v11411 = vpop.f32.mrb[0].mxu0
  %v11412 = vadd.f32 %v11251, %v11411
  %v11413 = vpop.f32.mrb[0].mxu0
  %v11414 = vpop.f32.mrb[0].mxu0
  %v11415 = vadd.f32 %v11254, %v11414
  %v11416 = vpop.f32.mrb[0].mxu0
  %11417 = vmatprep.mubr.bf16.mxu0 0
  %11418 = vmatmul.mubr.bf16.gmra.mrb[0].mxu0 %v10962
  %v11419 = vpop.f32.mrb[0].mxu0
  %v11420 = vadd.f32 %v11259, %v11419
  %v11421 = vpop.f32.mrb[0].mxu0
  %v11422 = vpop.f32.mrb[0].mxu0
  %v11423 = vadd.f32 %v11262, %v11422
  %v11424 = vpop.f32.mrb[0].mxu0
  %11425 = vmatprep.mubr.bf16.mxu0 0
  %11426 = vmatmul.mubr.bf16.gmra.mrb[0].mxu0 %v10965
  %v11427 = vpop.f32.mrb[0].mxu0
  %v11428 = vadd.f32 %v11267, %v11427
  %v11429 = vpop.f32.mrb[0].mxu0
  %v11430 = vpop.f32.mrb[0].mxu0
  %v11431 = vadd.f32 %v11270, %v11430
  %v11432 = vpop.f32.mrb[0].mxu0
  %11433 = vmatprep.mubr.bf16.mxu0 0
  %11434 = vmatmul.mubr.bf16.gmra.mrb[0].mxu0 %v10968
  %v11435 = vpop.f32.mrb[0].mxu0
  %v11436 = vadd.f32 %v11275, %v11435
  %v11437 = vpop.f32.mrb[0].mxu0
  %v11438 = vpop.f32.mrb[0].mxu0
  %v11439 = vadd.f32 %v11278, %v11438
  %v11440 = vpop.f32.mrb[0].mxu0
  %11441 = vmatprep.mubr.bf16.mxu0 0
  %11442 = vmatmul.mubr.bf16.gmra.mrb[0].mxu0 %v10971
  %v11443 = vpop.f32.mrb[0].mxu0
  %v11444 = vadd.f32 %v11283, %v11443
  %v11445 = vpop.f32.mrb[0].mxu0
  %v11446 = vpop.f32.mrb[0].mxu0
  %v11447 = vadd.f32 %v11286, %v11446
  %v11448 = vpop.f32.mrb[0].mxu0
  %11449 = vmatprep.mubr.bf16.mxu0 0
  %11450 = vmatmul.mubr.bf16.gmra.mrb[0].mxu0 %v10974
  %v11451 = vpop.f32.mrb[0].mxu0
  %v11452 = vadd.f32 %v11291, %v11451
  %v11453 = vpop.f32.mrb[0].mxu0
  %v11454 = vpop.f32.mrb[0].mxu0
  %v11455 = vadd.f32 %v11294, %v11454
  %v11456 = vpop.f32.mrb[0].mxu0
  %11457 = vmatprep.mubr.bf16.mxu0 0
  %11458 = vmatmul.mubr.bf16.gmra.mrb[0].mxu0 %v10977
  %v11459 = vpop.f32.mrb[0].mxu0
  %v11460 = vadd.f32 %v11299, %v11459
  %v11461 = vpop.f32.mrb[0].mxu0
  %v11462 = vpop.f32.mrb[0].mxu0
  %v11463 = vadd.f32 %v11302, %v11462
  %v11464 = vpop.f32.mrb[0].mxu0
  %11465 = vdwg.mxu0
  %v11466 = vmax.f32 %v11340, %v11372
  %v11467 = vmax.f32 %v11343, %v11375
  %v11468 = vmax.f32 %v11348, %v11380
  %v11469 = vmax.f32 %v11351, %v11383
  %v11470 = vmax.f32 %v11356, %v11388
  %v11471 = vmax.f32 %v11359, %v11391
  %v11472 = vmax.f32 %v11364, %v11396
  %v11473 = vmax.f32 %v11367, %v11399
  %v11474 = vmax.f32 %v11404, %v11436
  %v11475 = vmax.f32 %v11407, %v11439
  %v11476 = vmax.f32 %v11412, %v11444
  %v11477 = vmax.f32 %v11415, %v11447
  %v11478 = vmax.f32 %v11420, %v11452
  %v11479 = vmax.f32 %v11423, %v11455
  %v11480 = vmax.f32 %v11428, %v11460
  %v11481 = vmax.f32 %v11431, %v11463
  %v11482 = vmax.f32 %v11466, %v11474
  %v11483 = vmax.f32 %v11467, %v11475
  %v11484 = vmax.f32 %v11468, %v11476
  %v11485 = vmax.f32 %v11469, %v11477
  %v11486 = vmax.f32 %v11470, %v11478
  %v11487 = vmax.f32 %v11471, %v11479
  %v11488 = vmax.f32 %v11472, %v11480
  %v11489 = vmax.f32 %v11473, %v11481
  %v11490 = vld [vmem:[%s4] sm:$0xff]
  %v11491 = vld [vmem:[%s4 + $0x8] sm:$0xff]
  %v11492 = vld [vmem:[%s4 + $0x10] sm:$0xff]
  %v11493 = vld [vmem:[%s4 + $0x18] sm:$0xff]
  %v11494 = vld [vmem:[%s4 + $0x20] sm:$0xff]
  %v11495 = vld [vmem:[%s4 + $0x28] sm:$0xff]
  %v11496 = vld [vmem:[%s4 + $0x30] sm:$0xff]
  %v11497 = vld [vmem:[%s4 + $0x38] sm:$0xff]
  %11499 = vset.pattern.permute.xlu0 0
  %11500 = vperm.xlu0 %11499, %v11490
  %v11501 = vpop.permute.xlu0 %11500
  %11504 = vset.pattern.permute.xlu0 0
  %11505 = vperm.xlu0 %11504, %v11491
  %v11506 = vpop.permute.xlu0 %11505
  %11509 = vset.pattern.permute.xlu0 0
  %11510 = vperm.xlu0 %11509, %v11492
  %v11511 = vpop.permute.xlu0 %11510
  %11514 = vset.pattern.permute.xlu0 0
  %11515 = vperm.xlu0 %11514, %v11493
  %v11516 = vpop.permute.xlu0 %11515
  %11519 = vset.pattern.permute.xlu0 0
  %11520 = vperm.xlu0 %11519, %v11494
  %v11521 = vpop.permute.xlu0 %11520
  %11524 = vset.pattern.permute.xlu0 0
  %11525 = vperm.xlu0 %11524, %v11495
  %v11526 = vpop.permute.xlu0 %11525
  %11529 = vset.pattern.permute.xlu0 0
  %11530 = vperm.xlu0 %11529, %v11496
  %v11531 = vpop.permute.xlu0 %11530
  %11534 = vset.pattern.permute.xlu0 0
  %11535 = vperm.xlu0 %11534, %v11497
  %v11536 = vpop.permute.xlu0 %11535
  %v11538 = vadd.f32 %v11482, %v11501
  %v11539 = vadd.f32 %v11483, %v11506
  %v11540 = vadd.f32 %v11484, %v11511
  %v11541 = vadd.f32 %v11485, %v11516
  %v11542 = vadd.f32 %v11486, %v11521
  %v11543 = vadd.f32 %v11487, %v11526
  %v11544 = vadd.f32 %v11488, %v11531
  %v11545 = vadd.f32 %v11489, %v11536
  %v11546 = vmax.f32 %v11538, 0.0
  %v11547 = vmax.f32 %v11539, 0.0
  %v11548 = vmax.f32 %v11540, 0.0
  %v11549 = vmax.f32 %v11541, 0.0
  %v11550 = vmax.f32 %v11542, 0.0
  %v11551 = vmax.f32 %v11543, 0.0
  %v11552 = vmax.f32 %v11544, 0.0
  %v11553 = vmax.f32 %v11545, 0.0
  %v11554 = vpack.c.bf16 %v11547, %v11546
  %v11555 = vpack.c.bf16 %v11549, %v11548
  %v11556 = vpack.c.bf16 %v11551, %v11550
  %v11557 = vpack.c.bf16 %v11553, %v11552
  %v11558 = vld [vmem:[%s5] sm:$0xf]
  %v11559 = vld [vmem:[%s5 + $0x4] sm:$0xf]
  %v11560 = vld [vmem:[%s5 + $0x8] sm:$0xf]
  %v11561 = vld [vmem:[%s5 + $0xc] sm:$0xf]
  %v11562 = vld [vmem:[%s5 + $0x10] sm:$0xf]
  %v11563 = vld [vmem:[%s5 + $0x14] sm:$0xf]
  %v11564 = vld [vmem:[%s5 + $0x18] sm:$0xf]
  %v11565 = vld [vmem:[%s5 + $0x1c] sm:$0xf]
  %v11566 = vld [vmem:[%s5 + $0x20] sm:$0xf]
  %v11567 = vld [vmem:[%s5 + $0x24] sm:$0xf]
  %v11568 = vld [vmem:[%s5 + $0x28] sm:$0xf]
  %v11569 = vld [vmem:[%s5 + $0x2c] sm:$0xf]
  %v11570 = vld [vmem:[%s5 + $0x30] sm:$0xf]
  %v11571 = vld [vmem:[%s5 + $0x34] sm:$0xf]
  %v11572 = vld [vmem:[%s5 + $0x38] sm:$0xf]
  %v11573 = vld [vmem:[%s6] sm:$0xff]
  %v11574 = vld [vmem:[%s6 + $0x8] sm:$0xff]
  %v11575 = vld [vmem:[%s6 + $0x10] sm:$0xff]
  %v11576 = vld [vmem:[%s6 + $0x18] sm:$0xff]
  %v11577 = vld [vmem:[%s6 + $0x20] sm:$0xff]
  %v11578 = vld [vmem:[%s6 + $0x28] sm:$0xff]
  %v11579 = vld [vmem:[%s6 + $0x30] sm:$0xff]
  %v11580 = vld [vmem:[%s6 + $0x38] sm:$0xff]
  %v11581 = vld [vmem:[%s6 + $0x40] sm:$0xff]
  %v11582 = vld [vmem:[%s6 + $0x48] sm:$0xff]
  %v11583 = vld [vmem:[%s6 + $0x50] sm:$0xff]
  %v11584 = vld [vmem:[%s6 + $0x58] sm:$0xff]
  %v11585 = vld [vmem:[%s6 + $0x60] sm:$0xff]
  %v11586 = vld [vmem:[%s6 + $0x68] sm:$0xff]
  %v11587 = vld [vmem:[%s6 + $0x70] sm:$0xff]
  %11589 = vset.pattern.permute.xlu0 0
  %11590 = vperm.xlu0 %11589, %v11573
  %v11591 = vpop.permute.xlu0 %11590
  %11594 = vset.pattern.permute.xlu0 0
  %11595 = vperm.xlu0 %11594, %v11574
  %v11596 = vpop.permute.xlu0 %11595
  %11599 = vset.pattern.permute.xlu0 0
  %11600 = vperm.xlu0 %11599, %v11575
  %v11601 = vpop.permute.xlu0 %11600
  %11604 = vset.pattern.permute.xlu0 0
  %11605 = vperm.xlu0 %11604, %v11576
  %v11606 = vpop.permute.xlu0 %11605
  %11609 = vset.pattern.permute.xlu0 0
  %11610 = vperm.xlu0 %11609, %v11577
  %v11611 = vpop.permute.xlu0 %11610
  %11614 = vset.pattern.permute.xlu0 0
  %11615 = vperm.xlu0 %11614, %v11578
  %v11616 = vpop.permute.xlu0 %11615
  %11619 = vset.pattern.permute.xlu0 0
  %11620 = vperm.xlu0 %11619, %v11579
  %v11621 = vpop.permute.xlu0 %11620
  %11624 = vset.pattern.permute.xlu0 0
  %11625 = vperm.xlu0 %11624, %v11580
  %v11626 = vpop.permute.xlu0 %11625
  %11629 = vset.pattern.permute.xlu0 0
  %11630 = vperm.xlu0 %11629, %v11581
  %v11631 = vpop.permute.xlu0 %11630
  %11634 = vset.pattern.permute.xlu0 0
  %11635 = vperm.xlu0 %11634, %v11582
  %v11636 = vpop.permute.xlu0 %11635
  %11639 = vset.pattern.permute.xlu0 0
  %11640 = vperm.xlu0 %11639, %v11583
  %v11641 = vpop.permute.xlu0 %11640
  %11644 = vset.pattern.permute.xlu0 0
  %11645 = vperm.xlu0 %11644, %v11584
  %v11646 = vpop.permute.xlu0 %11645
  %11649 = vset.pattern.permute.xlu0 0
  %11650 = vperm.xlu0 %11649, %v11585
  %v11651 = vpop.permute.xlu0 %11650
  %11654 = vset.pattern.permute.xlu0 0
  %11655 = vperm.xlu0 %11654, %v11586
  %v11656 = vpop.permute.xlu0 %11655
  %11659 = vset.pattern.permute.xlu0 0
  %11660 = vperm.xlu0 %11659, %v11587
  %v11661 = vpop.permute.xlu0 %11660
  %v11678 = vunpack.c.l.b16 %v11558
  %v11679 = vunpack.c.l.b16 %v11559
  %v11680 = vunpack.c.l.b16 %v11560
  %v11681 = vunpack.c.l.b16 %v11561
  %v11682 = vunpack.c.l.b16 %v11562
  %v11683 = vunpack.c.l.b16 %v11563
  %v11684 = vunpack.c.l.b16 %v11564
  %v11685 = vunpack.c.l.b16 %v11565
  %v11686 = vunpack.c.l.b16 %v11566
  %v11687 = vunpack.c.l.b16 %v11567
  %v11688 = vunpack.c.l.b16 %v11568
  %v11689 = vunpack.c.l.b16 %v11569
  %v11690 = vunpack.c.l.b16 %v11570
  %v11691 = vunpack.c.l.b16 %v11571
  %v11692 = vunpack.c.l.b16 %v11572
  %v11693 = vpack.c.b16 %v11679, %v11678
  %v11694 = vpack.c.b16 %v11681, %v11680
  %v11695 = vpack.c.b16 %v11683, %v11682
  %v11696 = vpack.c.b16 %v11685, %v11684
  %v11697 = vpack.c.b16 %v11687, %v11686
  %v11698 = vpack.c.b16 %v11689, %v11688
  %v11699 = vpack.c.b16 %v11691, %v11690
  %v11700 = vpack.c.b16 %v11692, %v11692
  %vm11701 = vcmask 523264
  %v11703 = vsel %vm11701, %v11693, 0
  %v11706 = vsel %vm11701, %v11694, 0
  %v11709 = vsel %vm11701, %v11695, 0
  %v11712 = vsel %vm11701, %v11696, 0
  %v11715 = vsel %vm11701, %v11697, 0
  %v11718 = vsel %vm11701, %v11698, 0
  %v11721 = vsel %vm11701, %v11699, 0
  %v11724 = vsel %vm11701, %v11700, 0
  %11726 = vmatprep.subr.bf16.mxu0 0
  %11727 = vmatpush1.bf16.msra.mxu0 %v11554
  %11728 = vmatprep.subr.bf16.mxu0 0
  %11729 = vmatpush1.bf16.msra.mxu0 %v11555
  %11730 = vmatprep.subr.bf16.mxu0 0
  %11731 = vmatpush1.bf16.msra.mxu0 %v11556
  %11732 = vmatprep.subr.bf16.mxu0 0
  %11733 = vmatpush1.bf16.msra.mxu0 %v11557
  %11734 = vmatprep.subr.bf16.mxu0 0
  %11735 = vmatpush1.bf16.msra.mxu0 0
  %11736 = vmatprep.subr.bf16.mxu0 0
  %11737 = vmatpush1.bf16.msra.mxu0 0
  %11738 = vmatprep.subr.bf16.mxu0 0
  %11739 = vmatpush1.bf16.msra.mxu0 0
  %11740 = vmatprep.subr.bf16.mxu0 0
  %11741 = vmatpush1.bf16.msra.mxu0 0
  %11742 = vmatprep.subr.bf16.mxu0 0
  %11743 = vmatpush1.bf16.msra.mxu0 0
  %11744 = vmatprep.subr.bf16.mxu0 0
  %11745 = vmatpush1.bf16.msra.mxu0 0
  %11746 = vmatprep.subr.bf16.mxu0 0
  %11747 = vmatpush1.bf16.msra.mxu0 0
  %11748 = vmatprep.subr.bf16.mxu0 0
  %11749 = vmatpush1.bf16.msra.mxu0 0
  %11750 = vmatprep.subr.bf16.mxu0 0
  %11751 = vmatpush1.bf16.msra.mxu0 0
  %11752 = vmatprep.subr.bf16.mxu0 0
  %11753 = vmatpush1.bf16.msra.mxu0 0
  %11754 = vmatprep.subr.bf16.mxu0 0
  %11755 = vmatpush1.bf16.msra.mxu0 0
  %11756 = vmatprep.subr.bf16.mxu0 0
  %11757 = vmatpush1.bf16.msra.mxu0 0
  %11758 = vmatprep.mubr.bf16.mxu0 0
  %11759 = vmatmul.mubr.bf16.gmra.mrb[0].mxu0 %v11703
  %v11760 = vpop.f32.mrb[0].mxu0
  %v11761 = vadd.f32 %v11591, %v11760
  %v11762 = vpop.f32.mrb[0].mxu0
  %v11763 = vpop.f32.mrb[0].mxu0
  %v11764 = vadd.f32 %v11596, %v11763
  %v11765 = vpop.f32.mrb[0].mxu0
  %11766 = vmatprep.mubr.bf16.mxu0 0
  %11767 = vmatmul.mubr.bf16.gmra.mrb[0].mxu0 %v11706
  %v11768 = vpop.f32.mrb[0].mxu0
  %v11769 = vadd.f32 %v11601, %v11768
  %v11770 = vpop.f32.mrb[0].mxu0
  %v11771 = vpop.f32.mrb[0].mxu0
  %v11772 = vadd.f32 %v11606, %v11771
  %v11773 = vpop.f32.mrb[0].mxu0
  %11774 = vmatprep.mubr.bf16.mxu0 0
  %11775 = vmatmul.mubr.bf16.gmra.mrb[0].mxu0 %v11709
  %v11776 = vpop.f32.mrb[0].mxu0
  %v11777 = vadd.f32 %v11611, %v11776
  %v11778 = vpop.f32.mrb[0].mxu0
  %v11779 = vpop.f32.mrb[0].mxu0
  %v11780 = vadd.f32 %v11616, %v11779
  %v11781 = vpop.f32.mrb[0].mxu0
  %11782 = vmatprep.mubr.bf16.mxu0 0
  %11783 = vmatmul.mubr.bf16.gmra.mrb[0].mxu0 %v11712
  %v11784 = vpop.f32.mrb[0].mxu0
  %v11785 = vadd.f32 %v11621, %v11784
  %v11786 = vpop.f32.mrb[0].mxu0
  %v11787 = vpop.f32.mrb[0].mxu0
  %v11788 = vadd.f32 %v11626, %v11787
  %v11789 = vpop.f32.mrb[0].mxu0
  %11790 = vmatprep.mubr.bf16.mxu0 0
  %11791 = vmatmul.mubr.bf16.gmra.mrb[0].mxu0 %v11715
  %v11792 = vpop.f32.mrb[0].mxu0
  %v11793 = vadd.f32 %v11631, %v11792
  %v11794 = vpop.f32.mrb[0].mxu0
  %v11795 = vpop.f32.mrb[0].mxu0
  %v11796 = vadd.f32 %v11636, %v11795
  %v11797 = vpop.f32.mrb[0].mxu0
  %11798 = vmatprep.mubr.bf16.mxu0 0
  %11799 = vmatmul.mubr.bf16.gmra.mrb[0].mxu0 %v11718
  %v11800 = vpop.f32.mrb[0].mxu0
  %v11801 = vadd.f32 %v11641, %v11800
  %v11802 = vpop.f32.mrb[0].mxu0
  %v11803 = vpop.f32.mrb[0].mxu0
  %v11804 = vadd.f32 %v11646, %v11803
  %v11805 = vpop.f32.mrb[0].mxu0
  %11806 = vmatprep.mubr.bf16.mxu0 0
  %11807 = vmatmul.mubr.bf16.gmra.mrb[0].mxu0 %v11721
  %v11808 = vpop.f32.mrb[0].mxu0
  %v11809 = vadd.f32 %v11651, %v11808
  %v11810 = vpop.f32.mrb[0].mxu0
  %v11811 = vpop.f32.mrb[0].mxu0
  %v11812 = vadd.f32 %v11656, %v11811
  %v11813 = vpop.f32.mrb[0].mxu0
  %11814 = vmatprep.mubr.bf16.mxu0 0
  %11815 = vmatmul.mubr.bf16.gmra.mrb[0].mxu0 %v11724
  %v11816 = vpop.f32.mrb[0].mxu0
  %v11817 = vadd.f32 %v11661, %v11816
  %v11818 = vpop.f32.mrb[0].mxu0
  %v11819 = vpop.f32.mrb[0].mxu0
  %v11820 = vpop.f32.mrb[0].mxu0
  %11821 = vdwg.mxu0
  %v11822 = vmax.f32 %v11761, 0.0
  %v11823 = vmax.f32 %v11764, 0.0
  %v11824 = vmax.f32 %v11769, 0.0
  %v11825 = vmax.f32 %v11772, 0.0
  %v11826 = vmax.f32 %v11777, 0.0
  %v11827 = vmax.f32 %v11780, 0.0
  %v11828 = vmax.f32 %v11785, 0.0
  %v11829 = vmax.f32 %v11788, 0.0
  %v11830 = vmax.f32 %v11793, 0.0
  %v11831 = vmax.f32 %v11796, 0.0
  %v11832 = vmax.f32 %v11801, 0.0
  %v11833 = vmax.f32 %v11804, 0.0
  %v11834 = vmax.f32 %v11809, 0.0
  %v11835 = vmax.f32 %v11812, 0.0
  %v11836 = vmax.f32 %v11817, 0.0
  %v11837 = vpack.c.bf16 %v11823, %v11822
  %v11838 = vpack.c.bf16 %v11825, %v11824
  %v11839 = vpack.c.bf16 %v11827, %v11826
  %v11840 = vpack.c.bf16 %v11829, %v11828
  %v11841 = vpack.c.bf16 %v11831, %v11830
  %v11842 = vpack.c.bf16 %v11833, %v11832
  %v11843 = vpack.c.bf16 %v11835, %v11834
  %v11844 = vpack.c.bf16 %v11836, %v11836
  %v11845 = vld [vmem:[%s7] sm:$0xf]
  %v11846 = vld [vmem:[%s7 + $0x4] sm:$0xf]
  %v11847 = vld [vmem:[%s7 + $0x8] sm:$0xf]
  %v11848 = vld [vmem:[%s7 + $0xc] sm:$0xf]
  %v11849 = vld [vmem:[%s7 + $0x10] sm:$0xf]
  %v11850 = vld [vmem:[%s7 + $0x14] sm:$0xf]
  %v11851 = vld [vmem:[%s7 + $0x18] sm:$0xf]
  %v11852 = vld [vmem:[%s7 + $0x1c] sm:$0xf]
  %v11853 = vld [vmem:[%s7 + $0x20] sm:$0xf]
  %v11854 = vld [vmem:[%s7 + $0x24] sm:$0xf]
  %v11855 = vld [vmem:[%s7 + $0x28] sm:$0xf]
  %v11856 = vld [vmem:[%s8] sm:$0xff]
  %v11857 = vld [vmem:[%s8 + $0x8] sm:$0xff]
  %v11858 = vld [vmem:[%s8 + $0x10] sm:$0xff]
  %v11859 = vld [vmem:[%s8 + $0x18] sm:$0xff]
  %v11860 = vld [vmem:[%s8 + $0x20] sm:$0xff]
  %v11861 = vld [vmem:[%s8 + $0x28] sm:$0xff]
  %v11862 = vld [vmem:[%s8 + $0x30] sm:$0xff]
  %v11863 = vld [vmem:[%s8 + $0x38] sm:$0xff]
  %v11864 = vld [vmem:[%s8 + $0x40] sm:$0xff]
  %v11865 = vld [vmem:[%s8 + $0x48] sm:$0xff]
  %v11866 = vld [vmem:[%s8 + $0x50] sm:$0xff]
  %11868 = vset.pattern.permute.xlu0 0
  %11869 = vperm.xlu0 %11868, %v11856
  %v11870 = vpop.permute.xlu0 %11869
  %11873 = vset.pattern.permute.xlu0 0
  %11874 = vperm.xlu0 %11873, %v11857
  %v11875 = vpop.permute.xlu0 %11874
  %11878 = vset.pattern.permute.xlu0 0
  %11879 = vperm.xlu0 %11878, %v11858
  %v11880 = vpop.permute.xlu0 %11879
  %11883 = vset.pattern.permute.xlu0 0
  %11884 = vperm.xlu0 %11883, %v11859
  %v11885 = vpop.permute.xlu0 %11884
  %11888 = vset.pattern.permute.xlu0 0
  %11889 = vperm.xlu0 %11888, %v11860
  %v11890 = vpop.permute.xlu0 %11889
  %11893 = vset.pattern.permute.xlu0 0
  %11894 = vperm.xlu0 %11893, %v11861
  %v11895 = vpop.permute.xlu0 %11894
  %11898 = vset.pattern.permute.xlu0 0
  %11899 = vperm.xlu0 %11898, %v11862
  %v11900 = vpop.permute.xlu0 %11899
  %11903 = vset.pattern.permute.xlu0 0
  %11904 = vperm.xlu0 %11903, %v11863
  %v11905 = vpop.permute.xlu0 %11904
  %11908 = vset.pattern.permute.xlu0 0
  %11909 = vperm.xlu0 %11908, %v11864
  %v11910 = vpop.permute.xlu0 %11909
  %11913 = vset.pattern.permute.xlu0 0
  %11914 = vperm.xlu0 %11913, %v11865
  %v11915 = vpop.permute.xlu0 %11914
  %11918 = vset.pattern.permute.xlu0 0
  %11919 = vperm.xlu0 %11918, %v11866
  %v11920 = vpop.permute.xlu0 %11919
  %v11933 = vunpack.c.l.b16 %v11845
  %v11934 = vunpack.c.l.b16 %v11846
  %v11935 = vunpack.c.l.b16 %v11847
  %v11936 = vunpack.c.l.b16 %v11848
  %v11937 = vunpack.c.l.b16 %v11849
  %v11938 = vunpack.c.l.b16 %v11850
  %v11939 = vunpack.c.l.b16 %v11851
  %v11940 = vunpack.c.l.b16 %v11852
  %v11941 = vunpack.c.l.b16 %v11853
  %v11942 = vunpack.c.l.b16 %v11854
  %v11943 = vunpack.c.l.b16 %v11855
  %v11944 = vpack.c.b16 %v11934, %v11933
  %v11945 = vpack.c.b16 %v11936, %v11935
  %v11946 = vpack.c.b16 %v11938, %v11937
  %v11947 = vpack.c.b16 %v11940, %v11939
  %v11948 = vpack.c.b16 %v11942, %v11941
  %v11949 = vpack.c.b16 %v11943, %v11943
  %vm11950 = vcmask 982016
  %v11952 = vsel %vm11950, %v11944, 0
  %v11955 = vsel %vm11950, %v11945, 0
  %v11958 = vsel %vm11950, %v11946, 0
  %v11961 = vsel %vm11950, %v11947, 0
  %v11964 = vsel %vm11950, %v11948, 0
  %v11967 = vsel %vm11950, %v11949, 0
  %v11970 = vsel %vm10979, %v11844, 0
  %11972 = vmatprep.subr.bf16.mxu0 0
  %11973 = vmatpush1.bf16.msra.mxu0 %v11837
  %11974 = vmatprep.subr.bf16.mxu0 0
  %11975 = vmatpush1.bf16.msra.mxu0 %v11838
  %11976 = vmatprep.subr.bf16.mxu0 0
  %11977 = vmatpush1.bf16.msra.mxu0 %v11839
  %11978 = vmatprep.subr.bf16.mxu0 0
  %11979 = vmatpush1.bf16.msra.mxu0 %v11840
  %11980 = vmatprep.subr.bf16.mxu0 0
  %11981 = vmatpush1.bf16.msra.mxu0 %v11841
  %11982 = vmatprep.subr.bf16.mxu0 0
  %11983 = vmatpush1.bf16.msra.mxu0 %v11842
  %11984 = vmatprep.subr.bf16.mxu0 0
  %11985 = vmatpush1.bf16.msra.mxu0 %v11843
  %11986 = vmatprep.subr.bf16.mxu0 0
  %11987 = vmatpush1.bf16.msra.mxu0 %v11970
  %11988 = vmatprep.subr.bf16.mxu0 0
  %11989 = vmatpush1.bf16.msra.mxu0 0
  %11990 = vmatprep.subr.bf16.mxu0 0
  %11991 = vmatpush1.bf16.msra.mxu0 0
  %11992 = vmatprep.subr.bf16.mxu0 0
  %11993 = vmatpush1.bf16.msra.mxu0 0
  %11994 = vmatprep.subr.bf16.mxu0 0
  %11995 = vmatpush1.bf16.msra.mxu0 0
  %11996 = vmatprep.subr.bf16.mxu0 0
  %11997 = vmatpush1.bf16.msra.mxu0 0
  %11998 = vmatprep.subr.bf16.mxu0 0
  %11999 = vmatpush1.bf16.msra.mxu0 0
  %12000 = vmatprep.subr.bf16.mxu0 0
  %12001 = vmatpush1.bf16.msra.mxu0 0
  %12002 = vmatprep.subr.bf16.mxu0 0
  %12003 = vmatpush1.bf16.msra.mxu0 0
  %12004 = vmatprep.mubr.bf16.mxu0 0
  %12005 = vmatmul.mubr.bf16.gmra.mrb[0].mxu0 %v11952
  %v12006 = vpop.f32.mrb[0].mxu0
  %v12007 = vadd.f32 %v11870, %v12006
  %v12008 = vpop.f32.mrb[0].mxu0
  %v12009 = vpop.f32.mrb[0].mxu0
  %v12010 = vadd.f32 %v11875, %v12009
  %v12011 = vpop.f32.mrb[0].mxu0
  %12012 = vmatprep.mubr.bf16.mxu0 0
  %12013 = vmatmul.mubr.bf16.gmra.mrb[0].mxu0 %v11955
  %v12014 = vpop.f32.mrb[0].mxu0
  %v12015 = vadd.f32 %v11880, %v12014
  %v12016 = vpop.f32.mrb[0].mxu0
  %v12017 = vpop.f32.mrb[0].mxu0
  %v12018 = vadd.f32 %v11885, %v12017
  %v12019 = vpop.f32.mrb[0].mxu0
  %12020 = vmatprep.mubr.bf16.mxu0 0
  %12021 = vmatmul.mubr.bf16.gmra.mrb[0].mxu0 %v11958
  %v12022 = vpop.f32.mrb[0].mxu0
  %v12023 = vadd.f32 %v11890, %v12022
  %v12024 = vpop.f32.mrb[0].mxu0
  %v12025 = vpop.f32.mrb[0].mxu0
  %v12026 = vadd.f32 %v11895, %v12025
  %v12027 = vpop.f32.mrb[0].mxu0
  %12028 = vmatprep.mubr.bf16.mxu0 0
  %12029 = vmatmul.mubr.bf16.gmra.mrb[0].mxu0 %v11961
  %v12030 = vpop.f32.mrb[0].mxu0
  %v12031 = vadd.f32 %v11900, %v12030
  %v12032 = vpop.f32.mrb[0].mxu0
  %v12033 = vpop.f32.mrb[0].mxu0
  %v12034 = vadd.f32 %v11905, %v12033
  %v12035 = vpop.f32.mrb[0].mxu0
  %12036 = vmatprep.mubr.bf16.mxu0 0
  %12037 = vmatmul.mubr.bf16.gmra.mrb[0].mxu0 %v11964
  %v12038 = vpop.f32.mrb[0].mxu0
  %v12039 = vadd.f32 %v11910, %v12038
  %v12040 = vpop.f32.mrb[0].mxu0
  %v12041 = vpop.f32.mrb[0].mxu0
  %v12042 = vadd.f32 %v11915, %v12041
  %v12043 = vpop.f32.mrb[0].mxu0
  %12044 = vmatprep.mubr.bf16.mxu0 0
  %12045 = vmatmul.mubr.bf16.gmra.mrb[0].mxu0 %v11967
  %v12046 = vpop.f32.mrb[0].mxu0
  %v12047 = vadd.f32 %v11920, %v12046
  %v12048 = vpop.f32.mrb[0].mxu0
  %v12049 = vpop.f32.mrb[0].mxu0
  %v12050 = vpop.f32.mrb[0].mxu0
  %12051 = vdwg.mxu0
  %v12052 = vmax.f32 %v12007, 0.0
  %v12053 = vmax.f32 %v12010, 0.0
  %v12054 = vmax.f32 %v12015, 0.0
  %v12055 = vmax.f32 %v12018, 0.0
  %v12056 = vmax.f32 %v12023, 0.0
  %v12057 = vmax.f32 %v12026, 0.0
  %v12058 = vmax.f32 %v12031, 0.0
  %v12059 = vmax.f32 %v12034, 0.0
  %v12060 = vmax.f32 %v12039, 0.0
  %v12061 = vmax.f32 %v12042, 0.0
  %v12062 = vmax.f32 %v12047, 0.0
  %v12063 = vpack.c.bf16 %v12053, %v12052
  %v12064 = vpack.c.bf16 %v12055, %v12054
  %v12065 = vpack.c.bf16 %v12057, %v12056
  %v12066 = vpack.c.bf16 %v12059, %v12058
  %v12067 = vpack.c.bf16 %v12061, %v12060
  %v12068 = vpack.c.bf16 %v12062, %v12062
  %v12069 = vld [vmem:[%s9] sm:$0xf]
  %v12070 = vld [vmem:[%s9 + $0x4] sm:$0xf]
  %v12071 = vld [vmem:[%s10] sm:$0xff]
  %v12072 = vld [vmem:[%s10 + $0x8] sm:$0xff]
  %12074 = vset.pattern.permute.xlu0 0
  %12075 = vperm.xlu0 %12074, %v12071
  %v12076 = vpop.permute.xlu0 %12075
  %12079 = vset.pattern.permute.xlu0 0
  %12080 = vperm.xlu0 %12079, %v12072
  %v12081 = vpop.permute.xlu0 %12080
  %v12085 = vunpack.c.l.b16 %v12069
  %v12086 = vunpack.c.l.b16 %v12070
  %v12087 = vpack.c.b16 %v12086, %v12085
  %v12089 = vsel %vm10930, %v12087, 0
  %v12092 = vsel %vm10979, %v12068, 0
  %12094 = vmatprep.subr.bf16.mxu0 0
  %12095 = vmatpush1.bf16.msra.mxu0 %v12063
  %12096 = vmatprep.subr.bf16.mxu0 0
  %12097 = vmatpush1.bf16.msra.mxu0 %v12064
  %12098 = vmatprep.subr.bf16.mxu0 0
  %12099 = vmatpush1.bf16.msra.mxu0 %v12065
  %12100 = vmatprep.subr.bf16.mxu0 0
  %12101 = vmatpush1.bf16.msra.mxu0 %v12066
  %12102 = vmatprep.subr.bf16.mxu0 0
  %12103 = vmatpush1.bf16.msra.mxu0 %v12067
  %12104 = vmatprep.subr.bf16.mxu0 0
  %12105 = vmatpush1.bf16.msra.mxu0 %v12092
  %12106 = vmatprep.subr.bf16.mxu0 0
  %12107 = vmatpush1.bf16.msra.mxu0 0
  %12108 = vmatprep.subr.bf16.mxu0 0
  %12109 = vmatpush1.bf16.msra.mxu0 0
  %12110 = vmatprep.subr.bf16.mxu0 0
  %12111 = vmatpush1.bf16.msra.mxu0 0
  %12112 = vmatprep.subr.bf16.mxu0 0
  %12113 = vmatpush1.bf16.msra.mxu0 0
  %12114 = vmatprep.subr.bf16.mxu0 0
  %12115 = vmatpush1.bf16.msra.mxu0 0
  %12116 = vmatprep.subr.bf16.mxu0 0
  %12117 = vmatpush1.bf16.msra.mxu0 0
  %12118 = vmatprep.subr.bf16.mxu0 0
  %12119 = vmatpush1.bf16.msra.mxu0 0
  %12120 = vmatprep.subr.bf16.mxu0 0
  %12121 = vmatpush1.bf16.msra.mxu0 0
  %12122 = vmatprep.subr.bf16.mxu0 0
  %12123 = vmatpush1.bf16.msra.mxu0 0
  %12124 = vmatprep.subr.bf16.mxu0 0
  %12125 = vmatpush1.bf16.msra.mxu0 0
  %12126 = vmatprep.mubr.bf16.mxu0 0
  %12127 = vmatmul.mubr.bf16.gmra.mrb[0].mxu0 %v12089
  %v12128 = vpop.f32.mrb[0].mxu0
  %v12129 = vadd.f32 %v12076, %v12128
  %v12130 = vpop.f32.mrb[0].mxu0
  %v12131 = vpop.f32.mrb[0].mxu0
  %v12132 = vadd.f32 %v12081, %v12131
  %v12133 = vpop.f32.mrb[0].mxu0
  %12134 = vdwg.mxu0
  %12135 = vst [vmem:[%s11] sm:$0xff] %v12129
  %12136 = vst [vmem:[%s11 + $0x8] sm:$0xff] %v12132
  // Predicated region
  $region46: #{net_forward.1} parent=0 // pred_check
    _
  $region47: #{net_forward.1} parent=0 // pred_check_branch
    %12138 = sbr.rel (0) target = $region49
  $region48: #{net_forward.1} parent=0 // pred_region
    _
  $region49: #{net_forward.1} parent=0 // pred_fallthru
    _
  // Predicated region
  $region50: #{net_forward.1} parent=0 // pred_check
    _
  $region51: #{net_forward.1} parent=0 // pred_check_branch
    %12140 = sbr.rel (0) target = $region53
  $region52: #{net_forward.1} parent=0 // pred_region
    _
  $region53: #{net_forward.1} parent=0 // pred_fallthru
    _

</llo_original>
